<compile_context>
chip_gen: v7x
topology: tpu7x:2x2x1
jax: 0.10.0
libtpu: 0.0.40
codegen_flags: <defaults>
</compile_context>

<pallas_src>
import numpy as np

import jax
import jax.numpy as jnp
from jax import lax
from jax.experimental import pallas as pl
from jax.experimental.pallas import tpu as pltpu


_CONV_TILE_ROWS = 256     # target M (= D_tile * H) for the conv matmuls
_UP_TILE_ROWS = 128       # target M (= D_tile * H1) for the upsample matmul

_VMEM_LIMIT_CACHE = None
_BUFFERED_ONE = None


# ----------------------------------------------------------------------------
# Small runtime probes / helpers
# ----------------------------------------------------------------------------
def _vmem_limit_bytes():
    """Generation-aware VMEM limit: ~75% of capacity, capped at 100 MiB."""
    global _VMEM_LIMIT_CACHE
    if _VMEM_LIMIT_CACHE is None:
        cap = 128 * 1024 * 1024
        try:
            cap = int(getattr(pltpu.get_tpu_info(), "vmem_capacity_bytes", cap))
        except Exception:
            pass
        _VMEM_LIMIT_CACHE = int(min(cap - cap // 4, 100 * 1024 * 1024))
    return _VMEM_LIMIT_CACHE


def _buffered_one_ok():
    """Probe once whether pipeline_mode=pl.Buffered(1) is supported."""
    global _BUFFERED_ONE
    if _BUFFERED_ONE is not None:
        return _BUFFERED_ONE
    ok = False
    if hasattr(pl, "Buffered"):
        try:
            def k(x_ref, o_ref):
                o_ref[...] = x_ref[...] + 1.0
            spec = pl.BlockSpec((8, 128), lambda i: (0, 0),
                                pipeline_mode=pl.Buffered(1))
            out = pl.pallas_call(
                k,
                out_shape=jax.ShapeDtypeStruct((8, 128), jnp.float32),
                grid=(2,),
                in_specs=[spec],
                out_specs=pl.BlockSpec((8, 128), lambda i: (0, 0)),
            )(jnp.zeros((8, 128), jnp.float32))
            jax.block_until_ready(out)
            ok = True
        except Exception:
            ok = False
    _BUFFERED_ONE = ok
    return ok


def _const_spec(shape):
    """BlockSpec for a grid-constant, fully VMEM-resident operand."""
    index_map = lambda *_: (0,) * len(shape)
    if _buffered_one_ok():
        return pl.BlockSpec(shape, index_map, pipeline_mode=pl.Buffered(1))
    return pl.BlockSpec(shape, index_map)


def _pick_tile(d, h, target_rows):
    """Largest divisor of d with tile*h <= target_rows (>= 1)."""
    best = 1
    for cand in range(1, d + 1):
        if d % cand == 0 and cand * h <= target_rows:
            best = cand
    return best


def _reflect_np(i, size):
    a = np.abs(i)
    return np.minimum(a, 2 * size - 2 - a)


# ----------------------------------------------------------------------------
# Hoisted parameter preparation (host numpy; run ONCE per parameter set)
# ----------------------------------------------------------------------------
def _build_upsample_consts(wt, bias, w1):
    """wt: (Cin, Cout, 2, 2, 2) torch ConvTranspose3d layout; bias: (Cout,)."""
    cin, cout = wt.shape[0], wt.shape[1]
    w2 = 2 * w1
    e = np.zeros((2, w1, w2), np.float32)
    for k in range(2):
        e[k, np.arange(w1), 2 * np.arange(w1) + k] = 1.0
    vs = []
    for i in range(2):                       # output depth parity
        blocks = []
        for j in range(2):                   # output height parity
            m = np.zeros((w1 * cin, w2 * cout), np.float32)
            for k in range(2):               # output width parity
                m += np.kron(e[k], wt[:, :, i, j, k].astype(np.float32))
            blocks.append(m)
        vs.append(np.concatenate(blocks, axis=1))   # (W1*Cin, 4*W1*Cout)
    v = np.stack(vs, axis=0)                         # (2, W1*Cin, 4*W1*Cout)
    b_row = np.tile(bias.astype(np.float32), 2 * w2).reshape(1, -1)
    return jnp.asarray(v, jnp.bfloat16), jnp.asarray(b_row, jnp.float32)


def _build_conv_consts(w, b, gamma, beta, rmean, rvar, alpha, W, c_sizes,
                       eps=1e-5):
    """w: (Cout, sum(c_sizes), 3, 3, 3) torch Conv3d layout.

    Returns banded per-source weights (W-reflection folded in, kh taps fused
    along the output axis) + folded BN/bias/PReLU rows."""
    cout = w.shape[0]
    wco = W * cout
    wk = np.transpose(w.astype(np.float32), (2, 3, 4, 1, 0))  # (kd,kh,kw,Ci,Co)
    ew = np.zeros((3, W, W), np.float32)                       # ew[kw, w', w]
    for kw in range(3):
        src = _reflect_np(np.arange(W) + kw - 1, W)
        ew[kw, src, np.arange(W)] = 1.0

    mats, c0 = [], 0
    for cs in c_sizes:
        wk_s = wk[:, :, :, c0:c0 + cs, :]
        c0 += cs
        per_kd = []
        for kd in range(3):
            cols = []
            for kh in range(3):
                m = np.zeros((W * cs, wco), np.float32)
                for kw in range(3):
                    m += np.kron(ew[kw], wk_s[kd, kh, kw])
                cols.append(m)
            per_kd.append(np.concatenate(cols, axis=1))        # (W*cs, 3*W*Cout)
        mats.append(jnp.asarray(np.stack(per_kd, 0), jnp.bfloat16))

    scale = gamma.astype(np.float32) / np.sqrt(rvar.astype(np.float32) + eps)
    shift = (b.astype(np.float32) * scale + beta.astype(np.float32)
             - rmean.astype(np.float32) * scale)
    alpha_arr = np.asarray(alpha, np.float32).reshape(-1)
    if alpha_arr.size == 1:
        alpha_arr = np.broadcast_to(alpha_arr, (cout,))        # shared PReLU
    scale_row = np.tile(scale, W).reshape(1, wco)
    shift_row = np.tile(shift, W).reshape(1, wco)
    alpha_row = np.tile(np.asarray(alpha_arr, np.float32), W).reshape(1, wco)
    return {
        "w": tuple(mats),
        "scale": jnp.asarray(scale_row, jnp.float32),
        "shift": jnp.asarray(shift_row, jnp.float32),
        "alpha": jnp.asarray(alpha_row, jnp.float32),
    }


def prepare_deconv_params(p, x1_shape, x2_shape, eps=1e-5):
    """Re-lay-out torch parameters once (outside jit) for the Pallas kernels."""
    _buffered_one_ok()                      # run the probe eagerly, outside jit
    _, _, _, w1, _ = x1_shape
    cskip = int(x2_shape[-1])
    cout = int(np.asarray(p["wt"]).shape[1])
    W = 2 * w1
    up_v, up_b = _build_upsample_consts(np.asarray(p["wt"]), np.asarray(p["bt"]), w1)
    c1 = _build_conv_consts(np.asarray(p["w1"]), np.asarray(p["b1"]),
                            np.asarray(p["g1"]), np.asarray(p["be1"]),
                            np.asarray(p["rm1"]), np.asarray(p["rv1"]),
                            p["a1"], W, (cskip, cout), eps)
    c2 = _build_conv_consts(np.asarray(p["w2"]), np.asarray(p["b2"]),
                            np.asarray(p["g2"]), np.asarray(p["be2"]),
                            np.asarray(p["rm2"]), np.asarray(p["rv2"]),
                            p["a2"], W, (cout,), eps)
    return {"up_v": up_v, "up_b": up_b, "c1": c1, "c2": c2}


# ----------------------------------------------------------------------------
# Kernel 1: ConvTranspose3d(kernel=2, stride=2), parity-fused, D-tiled
# ----------------------------------------------------------------------------
def _upsample_kernel(x_ref, v_ref, b_ref, o_ref):
    # x_ref: (DT1, H1, W1*Cin) bf16       input depth tile (resident across i)
    # v_ref: (2, W1*Cin, 4*W1*Cout) bf16  both depth-parity weight blocks
    # b_ref: (1, 4*W1*Cout) f32           bias tiled over (h-parity, w_out)
    # o_ref: (DT1, 1, H1, 4*W1*Cout)      out[n, t*DT1:..., i] in final layout
    i = pl.program_id(2)
    dt1, h1, wcin = x_ref.shape
    x = x_ref[...].reshape(dt1 * h1, wcin)
    y = jnp.dot(x, v_ref[i], preferred_element_type=jnp.float32) + b_ref[...]
    o_ref[...] = y.reshape(dt1, 1, h1, -1).astype(o_ref.dtype)


def conv_transpose3d_k2s2(x1, up_v, up_b):
    """x1: (N, D1, H1, W1, Cin).  Returns bf16 (N, 2D1, 2H1, 2W1, Cout)."""
    n, d1, h1, w1, cin = x1.shape
    four_w1cout = up_v.shape[-1]
    cout = four_w1cout // (4 * w1)
    dt1 = _pick_tile(d1, h1, _UP_TILE_ROWS)
    t1 = d1 // dt1

    xv = x1.astype(jnp.bfloat16).reshape(n, d1, h1, w1 * cin)
    out = pl.pallas_call(
        _upsample_kernel,
        out_shape=jax.ShapeDtypeStruct((n, d1, 2, h1, four_w1cout), jnp.bfloat16),
        grid=(n, t1, 2),
        in_specs=[
            pl.BlockSpec((None, dt1, h1, w1 * cin),
                         lambda b, t, i: (b, t, 0, 0)),
            _const_spec(up_v.shape),
            _const_spec(up_b.shape),
        ],
        out_specs=pl.BlockSpec((None, dt1, 1, h1, four_w1cout),
                               lambda b, t, i: (b, t, i, 0, 0)),
        compiler_params=pltpu.CompilerParams(
            dimension_semantics=("parallel", "parallel", "parallel"),
            vmem_limit_bytes=_vmem_limit_bytes(),
        ),
    )(xv, up_v, up_b)
    # Pure-view reshape: (N, D1, 2, H1, 2, W2, Cout) -> (N, D2, H2, W2, Cout).
    return out.reshape(n, 2 * d1, 2 * h1, 2 * w1, cout)


# ----------------------------------------------------------------------------
# Kernel 2: fused ReflectionPad3d(1) + Conv3d 3x3x3 + BN(eval) + PReLU
#           (Dropout eval == identity).  D-tiled, kh-fused banded weights.
# ----------------------------------------------------------------------------
def _make_conv_kernel(n_src, dt, h, wco):
    def kernel(*refs):
        x_refs = refs[:n_src]                    # (D+2, H, W*Cs) resident, bf16
        w_refs = refs[n_src:2 * n_src]           # (3, W*Cs, 3*W*Cout) bf16
        r_ref, scale_ref, shift_ref, alpha_ref, o_ref, acc_ref = refs[2 * n_src:]
        base = pl.program_id(1) * dt
        first = True
        for s in range(n_src):
            wcs = x_refs[s].shape[-1]
            for kd in range(3):
                tap = x_refs[s][pl.ds(base + kd, dt)]          # (dt, h, wcs)
                tap = tap.reshape(dt * h, wcs)
                contrib = jnp.dot(tap, w_refs[s][kd],
                                  preferred_element_type=jnp.float32)
                if first:
                    acc_ref[...] = contrib
                    first = False
                else:
                    acc_ref[...] += contrib
        acc = acc_ref[...]                                      # (dt*h, 3*wco)
        p0 = acc[:, :wco].astype(jnp.bfloat16)                  # kh = 0 partials
        p1 = acc[:, wco:2 * wco]                                # kh = 1
        p2 = acc[:, 2 * wco:].astype(jnp.bfloat16)              # kh = 2
        # H-reflection applied once per step via block-diagonal 0/1 row mixes.
        y = p1 + jnp.dot(r_ref[0], p0, preferred_element_type=jnp.float32)
        y = y + jnp.dot(r_ref[1], p2, preferred_element_type=jnp.float32)
        y = y * scale_ref[...] + shift_ref[...]   # conv bias + BN(eval) folded
        y = jnp.where(y > 0.0, y, alpha_ref[...] * y)           # PReLU
        o_ref[...] = y.reshape(dt, h, wco).astype(o_ref.dtype)  # Dropout(eval)
    return kernel


def _build_row_mix(h, dt):
    r = np.zeros((2, h, h), np.float32)
    r[0, np.arange(h), _reflect_np(np.arange(h) - 1, h)] = 1.0
    r[1, np.arange(h), _reflect_np(np.arange(h) + 1, h)] = 1.0
    eye = np.eye(dt, dtype=np.float32)
    rb = np.stack([np.kron(eye, r[k]) for k in range(2)], axis=0)
    return jnp.asarray(rb, jnp.bfloat16)          # (2, dt*h, dt*h)


def conv3x3_block(sources, consts, out_dtype):
    """sources: channels-last (N,D,H,W,C_s) arrays whose channel groups,
    concatenated in order, form the conv input (fuses torch.cat)."""
    n, d, h, w, _ = sources[0].shape
    wco = consts["scale"].shape[-1]
    cout = wco // w
    dt = _pick_tile(d, h, _CONV_TILE_ROWS)
    t = d // dt

    r = _build_row_mix(h, dt)                     # weight-independent constant

    in_specs, args = [], []
    for src in sources:
        cs = src.shape[-1]
        # Reflection along D pre-folded (1 row each side) -> in-kernel taps are
        # plain contiguous slices; the padded block stays resident per batch.
        xp = jnp.pad(src.astype(jnp.bfloat16),
                     ((0, 0), (1, 1), (0, 0), (0, 0), (0, 0)), mode="reflect")
        xp = xp.reshape(n, d + 2, h, w * cs)
        in_specs.append(pl.BlockSpec((None, d + 2, h, w * cs),
                                     lambda b, i: (b, 0, 0, 0)))
        args.append(xp)
    for bm in consts["w"]:
        in_specs.append(_const_spec(bm.shape))
        args.append(bm)
    for c in (r, consts["scale"], consts["shift"], consts["alpha"]):
        in_specs.append(_const_spec(c.shape))
        args.append(c)

    out = pl.pallas_call(
        _make_conv_kernel(len(sources), dt, h, wco),
        out_shape=jax.ShapeDtypeStruct((n, d, h, wco), out_dtype),
        grid=(n, t),
        in_specs=in_specs,
        out_specs=pl.BlockSpec((None, dt, h, wco), lambda b, i: (b, i, 0, 0)),
        scratch_shapes=[pltpu.VMEM((dt * h, 3 * wco), jnp.float32)],
        compiler_params=pltpu.CompilerParams(
            dimension_semantics=("parallel", "parallel"),
            vmem_limit_bytes=_vmem_limit_bytes(),
        ),
    )(*args)
    return out.reshape(n, d, h, w, cout)


# ----------------------------------------------------------------------------
# Full `deconv` forward
# ----------------------------------------------------------------------------
def deconv_forward(x1, x2, prep):
    x1_up = conv_transpose3d_k2s2(x1, prep["up_v"], prep["up_b"])   # bf16
    # torch.cat([x2, x1_up], dim=1) is fused into conv1 (two channel groups).
    y1 = conv3x3_block([x2, x1_up], prep["c1"], out_dtype=jnp.bfloat16)
    y2 = conv3x3_block([y1], prep["c2"], out_dtype=jnp.float32)
    return y2


# ----------------------------------------------------------------------------
# Pure-JAX reference (sanity check of the Pallas path)
# ----------------------------------------------------------------------------
def _ref_upsample(x, w_t, b):
    N, D, H, W, Cin = x.shape
    Cout = w_t.shape[1]
    y = jnp.einsum("ndhwc,coijk->ndihjwko", x, w_t)
    return y.reshape(N, 2 * D, 2 * H, 2 * W, Cout) + b


def _ref_conv_block(x, w, b, gamma, beta, rmean, rvar, alpha, eps=1e-5):
    xpad = jnp.pad(x, ((0, 0), (1, 1), (1, 1), (1, 1), (0, 0)), mode="reflect")
    w_dhwio = jnp.transpose(w, (2, 3, 4, 1, 0))
    y = lax.conv_general_dilated(
        xpad, w_dhwio, (1, 1, 1), "VALID",
        dimension_numbers=("NDHWC", "DHWIO", "NDHWC"),
    ) + b
    y = (y - rmean) / jnp.sqrt(rvar + eps) * gamma + beta
    return jnp.where(y > 0, y, alpha * y)


def ref_forward(x1, x2, p):
    x1_up = _ref_upsample(x1, p["wt"], p["bt"])
    x = jnp.concatenate([x2, x1_up], axis=-1)
    x = _ref_conv_block(x, p["w1"], p["b1"], p["g1"], p["be1"], p["rm1"], p["rv1"], p["a1"])
    x = _ref_conv_block(x, p["w2"], p["b2"], p["g2"], p["be2"], p["rm2"], p["rv2"], p["a2"])
    return x


if __name__ == "__main__":
    # deconv(in_size=8, out_size=4); skip connection x2 has in_size-out_size chans
    N, in_size, out_size = 2, 8, 4
    D1, H1, W1 = 16, 16, 8
    D2, H2, W2 = 2 * D1, 2 * H1, 2 * W1

    key = jax.random.PRNGKey(0)
    ks = jax.random.split(key, 8)
    x1 = jax.random.normal(ks[0], (N, D1, H1, W1, in_size), jnp.float32)             # NDHWC
    x2 = jax.random.normal(ks[1], (N, D2, H2, W2, in_size - out_size), jnp.float32)  # NDHWC

    params = {
        # ConvTranspose3d(in, out, 2, stride=2): weight (in, out, 2, 2, 2), bias (out,)
        "wt": 0.1 * jax.random.normal(ks[2], (in_size, out_size, 2, 2, 2), jnp.float32),
        "bt": 0.1 * jax.random.normal(ks[3], (out_size,), jnp.float32),
        # conv1: Conv3d(in_size, out_size, 3): weight (out, in, 3, 3, 3), bias (out,)
        "w1": 0.1 * jax.random.normal(ks[4], (out_size, in_size, 3, 3, 3), jnp.float32),
        "b1": 0.1 * jax.random.normal(ks[5], (out_size,), jnp.float32),
        "g1": jnp.ones((out_size,), jnp.float32),
        "be1": jnp.zeros((out_size,), jnp.float32),
        "rm1": jnp.zeros((out_size,), jnp.float32),
        "rv1": jnp.ones((out_size,), jnp.float32),
        "a1": 0.25,  # PReLU default init (single shared alpha; per-channel also supported)
        # conv2: Conv3d(out_size, out_size, 3)
        "w2": 0.1 * jax.random.normal(ks[6], (out_size, out_size, 3, 3, 3), jnp.float32),
        "b2": 0.1 * jax.random.normal(ks[7], (out_size,), jnp.float32),
        "g2": jnp.ones((out_size,), jnp.float32),
        "be2": jnp.zeros((out_size,), jnp.float32),
        "rm2": jnp.zeros((out_size,), jnp.float32),
        "rv2": jnp.ones((out_size,), jnp.float32),
        "a2": 0.25,
    }

    # Hoisted, parameter-only preparation (banded weights etc.) -- done once.
    prep = prepare_deconv_params(params, x1.shape, x2.shape)

    out = jax.jit(deconv_forward)(x1, x2, prep)
    out = jax.block_until_ready(out)
    assert out.shape == (N, D2, H2, W2, out_size), out.shape

    ref = jax.block_until_ready(ref_forward(x1, x2, params))
    # Tolerance covers the bf16 MXU inputs and bf16 intermediates vs f32 reference.
    np.testing.assert_allclose(np.asarray(out), np.asarray(ref), rtol=5e-2, atol=7e-2)

    print("KERNEL_OK")
</pallas_src>

<mosaic_0001>
module attributes {stable_mosaic.version = 11 : i64} {
  func.func @k(%arg0: i32, %arg1: memref<8x128xf32, #tpu.memory_space<vmem>>, %arg2: memref<8x128xf32, #tpu.memory_space<vmem>>) attributes {dimension_semantics = [#tpu.dimension_semantics<arbitrary>], iteration_bounds = array<i64: 2>, scalar_prefetch = 0 : i64, scratch_operands = 0 : i64, tpu.core_type = #tpu.core_type<tc>, window_params = [{pipeline_mode = #tpu.pipeline_mode<synchronous>, transform_indices = @transform_0, window_bounds = array<i64: 8, 128>}, {pipeline_mode = #tpu.pipeline_mode<synchronous>, transform_indices = @transform_1, window_bounds = array<i64: 8, 128>}]} {
    %c0 = arith.constant 0 : index
    %c0_0 = arith.constant 0 : index
    %0 = vector.load %arg1[%c0, %c0_0] : memref<8x128xf32, #tpu.memory_space<vmem>>, vector<8x128xf32>
    %cst = arith.constant 1.000000e+00 : f32
    %1 = vector.broadcast %cst : f32 to vector<8x128xf32>
    %2 = arith.addf %0, %1 : vector<8x128xf32>
    %c0_1 = arith.constant 0 : index
    %c0_2 = arith.constant 0 : index
    %3 = vector.load %arg2[%c0_1, %c0_2] : memref<8x128xf32, #tpu.memory_space<vmem>>, vector<8x128xf32>
    tpu.vector_store %arg2[%c0_1, %c0_2], %2 {strides = array<i32>} : memref<8x128xf32, #tpu.memory_space<vmem>>, vector<8x128xf32>,
    return
  }
  func.func @transform_0(%arg0: i32) -> (i32, i32) {
    %c0_i32 = arith.constant 0 : i32
    %c0_i32_0 = arith.constant 0 : i32
    %c0_i32_1 = arith.constant 0 : i32
    return %c0_i32, %c0_i32_0 : i32, i32
  }
  func.func @transform_1(%arg0: i32) -> (i32, i32) {
    %c0_i32 = arith.constant 0 : i32
    %c0_i32_0 = arith.constant 0 : i32
    %c0_i32_1 = arith.constant 0 : i32
    return %c0_i32, %c0_i32_0 : i32, i32
  }
}

module attributes {stable_mosaic.version = 11 : i64} {
  func.func @_upsample_kernel(%arg0: i32, %arg1: i32, %arg2: i32, %arg3: memref<1x8x16x64xbf16, #tpu.memory_space<vmem>>, %arg4: memref<2x64x128xbf16, #tpu.memory_space<vmem>>, %arg5: memref<1x128xf32, #tpu.memory_space<vmem>>, %arg6: memref<1x8x1x16x128xbf16, #tpu.memory_space<vmem>>) attributes {dimension_semantics = [#tpu.dimension_semantics<parallel>, #tpu.dimension_semantics<parallel>, #tpu.dimension_semantics<parallel>], iteration_bounds = array<i64: 2, 2, 2>, scalar_prefetch = 0 : i64, scratch_operands = 0 : i64, tpu.core_type = #tpu.core_type<tc>, window_params = [{transform_indices = @transform_0, window_bounds = array<i64: 1, 8, 16, 64>}, {pipeline_mode = #tpu.pipeline_mode<synchronous>, transform_indices = @transform_1, window_bounds = array<i64: 2, 64, 128>}, {pipeline_mode = #tpu.pipeline_mode<synchronous>, transform_indices = @transform_2, window_bounds = array<i64: 1, 128>}, {transform_indices = @transform_3, window_bounds = array<i64: 1, 8, 1, 16, 128>}]} {
    %c0 = arith.constant 0 : index
    %c0_0 = arith.constant 0 : index
    %c0_1 = arith.constant 0 : index
    %c0_2 = arith.constant 0 : index
    %0 = vector.load %arg3[%c0, %c0_0, %c0_1, %c0_2] : memref<1x8x16x64xbf16, #tpu.memory_space<vmem>>, vector<1x8x16x64xbf16>
    %1 = vector.shape_cast %0 : vector<1x8x16x64xbf16> to vector<8x16x64xbf16>
    %2 = vector.shape_cast %1 : vector<8x16x64xbf16> to vector<128x64xbf16>
    %3 = arith.index_cast %arg2 : i32 to index
    %c0_3 = arith.constant 0 : index
    %c0_4 = arith.constant 0 : index
    %4 = vector.load %arg4[%3, %c0_3, %c0_4] : memref<2x64x128xbf16, #tpu.memory_space<vmem>>, vector<1x64x128xbf16>
    %5 = vector.shape_cast %4 : vector<1x64x128xbf16> to vector<64x128xbf16>
    %cst = arith.constant dense<0.000000e+00> : vector<128x128xf32>
    %6 = tpu.matmul %2, %5, %cst {dimension_numbers = #tpu.dot_dimension_numbers<[1], [0], [0], [1], [0, 0, 1, 1], [], []>} : vector<128x64xbf16>, vector<64x128xbf16>, vector<128x128xf32> -> vector<128x128xf32>
    %c0_5 = arith.constant 0 : index
    %c0_6 = arith.constant 0 : index
    %7 = vector.load %arg5[%c0_5, %c0_6] : memref<1x128xf32, #tpu.memory_space<vmem>>, vector<1x128xf32>
    %8 = vector.broadcast %7 : vector<1x128xf32> to vector<128x128xf32>
    %9 = arith.addf %6, %8 : vector<128x128xf32>
    %10 = vector.shape_cast %9 : vector<128x128xf32> to vector<8x1x16x128xf32>
    %11 = arith.truncf %10 : vector<8x1x16x128xf32> to vector<8x1x16x128xbf16>
    %c0_7 = arith.constant 0 : index
    %c0_8 = arith.constant 0 : index
    %c0_9 = arith.constant 0 : index
    %c0_10 = arith.constant 0 : index
    %c0_11 = arith.constant 0 : index
    %12 = vector.load %arg6[%c0_7, %c0_8, %c0_9, %c0_10, %c0_11] : memref<1x8x1x16x128xbf16, #tpu.memory_space<vmem>>, vector<1x8x1x16x128xbf16>
    %13 = vector.shape_cast %12 : vector<1x8x1x16x128xbf16> to vector<8x1x16x128xbf16>
    %14 = vector.shape_cast %11 : vector<8x1x16x128xbf16> to vector<1x8x1x16x128xbf16>
    tpu.vector_store %arg6[%c0_7, %c0_8, %c0_9, %c0_10, %c0_11], %14 {strides = array<i32>} : memref<1x8x1x16x128xbf16, #tpu.memory_space<vmem>>, vector<1x8x1x16x128xbf16>,
    return
  }
  func.func @transform_0(%arg0: i32, %arg1: i32, %arg2: i32) -> (i32, i32, i32, i32) {
    %c0_i32 = arith.constant 0 : i32
    %c0_i32_0 = arith.constant 0 : i32
    %c0_i32_1 = arith.constant 0 : i32
    return %arg0, %arg1, %c0_i32, %c0_i32_0 : i32, i32, i32, i32
  }
  func.func @transform_1(%arg0: i32, %arg1: i32, %arg2: i32) -> (i32, i32, i32) {
    %c0_i32 = arith.constant 0 : i32
    %c0_i32_0 = arith.constant 0 : i32
    %c0_i32_1 = arith.constant 0 : i32
    %c0_i32_2 = arith.constant 0 : i32
    return %c0_i32, %c0_i32_0, %c0_i32_1 : i32, i32, i32
  }
  func.func @transform_2(%arg0: i32, %arg1: i32, %arg2: i32) -> (i32, i32) {
    %c0_i32 = arith.constant 0 : i32
    %c0_i32_0 = arith.constant 0 : i32
    %c0_i32_1 = arith.constant 0 : i32
    return %c0_i32, %c0_i32_0 : i32, i32
  }
  func.func @transform_3(%arg0: i32, %arg1: i32, %arg2: i32) -> (i32, i32, i32, i32, i32) {
    %c0_i32 = arith.constant 0 : i32
    %c0_i32_0 = arith.constant 0 : i32
    %c0_i32_1 = arith.constant 0 : i32
    return %arg0, %arg1, %arg2, %c0_i32, %c0_i32_0 : i32, i32, i32, i32, i32
  }
}

module attributes {stable_mosaic.version = 11 : i64} {
  func.func @kernel(%arg0: i32, %arg1: i32, %arg2: memref<1x34x32x64xbf16, #tpu.memory_space<vmem>>, %arg3: memref<1x34x32x64xbf16, #tpu.memory_space<vmem>>, %arg4: memref<3x64x192xbf16, #tpu.memory_space<vmem>>, %arg5: memref<3x64x192xbf16, #tpu.memory_space<vmem>>, %arg6: memref<2x256x256xbf16, #tpu.memory_space<vmem>>, %arg7: memref<1x64xf32, #tpu.memory_space<vmem>>, %arg8: memref<1x64xf32, #tpu.memory_space<vmem>>, %arg9: memref<1x64xf32, #tpu.memory_space<vmem>>, %arg10: memref<1x8x32x64xbf16, #tpu.memory_space<vmem>>, %arg11: memref<256x192xf32, #tpu.memory_space<vmem>>) attributes {dimension_semantics = [#tpu.dimension_semantics<parallel>, #tpu.dimension_semantics<parallel>], iteration_bounds = array<i64: 2, 4>, scalar_prefetch = 0 : i64, scratch_operands = 1 : i64, tpu.core_type = #tpu.core_type<tc>, window_params = [{transform_indices = @transform_0, window_bounds = array<i64: 1, 34, 32, 64>}, {transform_indices = @transform_1, window_bounds = array<i64: 1, 34, 32, 64>}, {pipeline_mode = #tpu.pipeline_mode<synchronous>, transform_indices = @transform_2, window_bounds = array<i64: 3, 64, 192>}, {pipeline_mode = #tpu.pipeline_mode<synchronous>, transform_indices = @transform_3, window_bounds = array<i64: 3, 64, 192>}, {pipeline_mode = #tpu.pipeline_mode<synchronous>, transform_indices = @transform_4, window_bounds = array<i64: 2, 256, 256>}, {pipeline_mode = #tpu.pipeline_mode<synchronous>, transform_indices = @transform_5, window_bounds = array<i64: 1, 64>}, {pipeline_mode = #tpu.pipeline_mode<synchronous>, transform_indices = @transform_6, window_bounds = array<i64: 1, 64>}, {pipeline_mode = #tpu.pipeline_mode<synchronous>, transform_indices = @transform_7, window_bounds = array<i64: 1, 64>}, {transform_indices = @transform_8, window_bounds = array<i64: 1, 8, 32, 64>}]} {
    %c8_i32 = arith.constant 8 : i32
    %0 = arith.muli %arg1, %c8_i32 : i32
    %c0_i32 = arith.constant 0 : i32
    %1 = arith.addi %0, %c0_i32 : i32
    %c0 = arith.constant 0 : index
    %2 = arith.index_cast %1 : i32 to index
    %c0_0 = arith.constant 0 : index
    %c0_1 = arith.constant 0 : index
    %3 = vector.load %arg2[%c0, %2, %c0_0, %c0_1] : memref<1x34x32x64xbf16, #tpu.memory_space<vmem>>, vector<1x8x32x64xbf16>
    %4 = vector.shape_cast %3 : vector<1x8x32x64xbf16> to vector<8x32x64xbf16>
    %5 = vector.shape_cast %4 : vector<8x32x64xbf16> to vector<256x64xbf16>
    %c0_2 = arith.constant 0 : index
    %c0_3 = arith.constant 0 : index
    %c0_4 = arith.constant 0 : index
    %6 = vector.load %arg4[%c0_2, %c0_3, %c0_4] : memref<3x64x192xbf16, #tpu.memory_space<vmem>>, vector<1x64x192xbf16>
    %7 = vector.shape_cast %6 : vector<1x64x192xbf16> to vector<64x192xbf16>
    %cst = arith.constant dense<0.000000e+00> : vector<256x192xf32>
    %8 = tpu.matmul %5, %7, %cst {dimension_numbers = #tpu.dot_dimension_numbers<[1], [0], [0], [1], [0, 0, 1, 1], [], []>} : vector<256x64xbf16>, vector<64x192xbf16>, vector<256x192xf32> -> vector<256x192xf32>
    %c0_5 = arith.constant 0 : index
    %c0_6 = arith.constant 0 : index
    %9 = vector.load %arg11[%c0_5, %c0_6] : memref<256x192xf32, #tpu.memory_space<vmem>>, vector<256x192xf32>
    tpu.vector_store %arg11[%c0_5, %c0_6], %8 {strides = array<i32>} : memref<256x192xf32, #tpu.memory_space<vmem>>, vector<256x192xf32>,
    %c1_i32 = arith.constant 1 : i32
    %10 = arith.addi %0, %c1_i32 : i32
    %c0_7 = arith.constant 0 : index
    %11 = arith.index_cast %10 : i32 to index
    %c0_8 = arith.constant 0 : index
    %c0_9 = arith.constant 0 : index
    %12 = vector.load %arg2[%c0_7, %11, %c0_8, %c0_9] : memref<1x34x32x64xbf16, #tpu.memory_space<vmem>>, vector<1x8x32x64xbf16>
    %13 = vector.shape_cast %12 : vector<1x8x32x64xbf16> to vector<8x32x64xbf16>
    %14 = vector.shape_cast %13 : vector<8x32x64xbf16> to vector<256x64xbf16>
    %c1 = arith.constant 1 : index
    %c0_10 = arith.constant 0 : index
    %c0_11 = arith.constant 0 : index
    %15 = vector.load %arg4[%c1, %c0_10, %c0_11] : memref<3x64x192xbf16, #tpu.memory_space<vmem>>, vector<1x64x192xbf16>
    %16 = vector.shape_cast %15 : vector<1x64x192xbf16> to vector<64x192xbf16>
    %cst_12 = arith.constant dense<0.000000e+00> : vector<256x192xf32>
    %17 = tpu.matmul %14, %16, %cst_12 {dimension_numbers = #tpu.dot_dimension_numbers<[1], [0], [0], [1], [0, 0, 1, 1], [], []>} : vector<256x64xbf16>, vector<64x192xbf16>, vector<256x192xf32> -> vector<256x192xf32>
    %c0_13 = arith.constant 0 : index
    %c0_14 = arith.constant 0 : index
    %18 = vector.load %arg11[%c0_13, %c0_14] : memref<256x192xf32, #tpu.memory_space<vmem>>, vector<256x192xf32>
    %19 = arith.addf %18, %17 : vector<256x192xf32>
    %c0_15 = arith.constant 0 : index
    %c0_16 = arith.constant 0 : index
    %20 = vector.load %arg11[%c0_15, %c0_16] : memref<256x192xf32, #tpu.memory_space<vmem>>, vector<256x192xf32>
    tpu.vector_store %arg11[%c0_15, %c0_16], %19 {strides = array<i32>} : memref<256x192xf32, #tpu.memory_space<vmem>>, vector<256x192xf32>,
    %c2_i32 = arith.constant 2 : i32
    %21 = arith.addi %0, %c2_i32 : i32
    %c0_17 = arith.constant 0 : index
    %22 = arith.index_cast %21 : i32 to index
    %c0_18 = arith.constant 0 : index
    %c0_19 = arith.constant 0 : index
    %23 = vector.load %arg2[%c0_17, %22, %c0_18, %c0_19] : memref<1x34x32x64xbf16, #tpu.memory_space<vmem>>, vector<1x8x32x64xbf16>
    %24 = vector.shape_cast %23 : vector<1x8x32x64xbf16> to vector<8x32x64xbf16>
    %25 = vector.shape_cast %24 : vector<8x32x64xbf16> to vector<256x64xbf16>
    %c2 = arith.constant 2 : index
    %c0_20 = arith.constant 0 : index
    %c0_21 = arith.constant 0 : index
    %26 = vector.load %arg4[%c2, %c0_20, %c0_21] : memref<3x64x192xbf16, #tpu.memory_space<vmem>>, vector<1x64x192xbf16>
    %27 = vector.shape_cast %26 : vector<1x64x192xbf16> to vector<64x192xbf16>
    %cst_22 = arith.constant dense<0.000000e+00> : vector<256x192xf32>
    %28 = tpu.matmul %25, %27, %cst_22 {dimension_numbers = #tpu.dot_dimension_numbers<[1], [0], [0], [1], [0, 0, 1, 1], [], []>} : vector<256x64xbf16>, vector<64x192xbf16>, vector<256x192xf32> -> vector<256x192xf32>
    %c0_23 = arith.constant 0 : index
    %c0_24 = arith.constant 0 : index
    %29 = vector.load %arg11[%c0_23, %c0_24] : memref<256x192xf32, #tpu.memory_space<vmem>>, vector<256x192xf32>
    %30 = arith.addf %29, %28 : vector<256x192xf32>
    %c0_25 = arith.constant 0 : index
    %c0_26 = arith.constant 0 : index
    %31 = vector.load %arg11[%c0_25, %c0_26] : memref<256x192xf32, #tpu.memory_space<vmem>>, vector<256x192xf32>
    tpu.vector_store %arg11[%c0_25, %c0_26], %30 {strides = array<i32>} : memref<256x192xf32, #tpu.memory_space<vmem>>, vector<256x192xf32>,
    %c0_i32_27 = arith.constant 0 : i32
    %32 = arith.addi %0, %c0_i32_27 : i32
    %c0_28 = arith.constant 0 : index
    %33 = arith.index_cast %32 : i32 to index
    %c0_29 = arith.constant 0 : index
    %c0_30 = arith.constant 0 : index
    %34 = vector.load %arg3[%c0_28, %33, %c0_29, %c0_30] : memref<1x34x32x64xbf16, #tpu.memory_space<vmem>>, vector<1x8x32x64xbf16>
    %35 = vector.shape_cast %34 : vector<1x8x32x64xbf16> to vector<8x32x64xbf16>
    %36 = vector.shape_cast %35 : vector<8x32x64xbf16> to vector<256x64xbf16>
    %c0_31 = arith.constant 0 : index
    %c0_32 = arith.constant 0 : index
    %c0_33 = arith.constant 0 : index
    %37 = vector.load %arg5[%c0_31, %c0_32, %c0_33] : memref<3x64x192xbf16, #tpu.memory_space<vmem>>, vector<1x64x192xbf16>
    %38 = vector.shape_cast %37 : vector<1x64x192xbf16> to vector<64x192xbf16>
    %cst_34 = arith.constant dense<0.000000e+00> : vector<256x192xf32>
    %39 = tpu.matmul %36, %38, %cst_34 {dimension_numbers = #tpu.dot_dimension_numbers<[1], [0], [0], [1], [0, 0, 1, 1], [], []>} : vector<256x64xbf16>, vector<64x192xbf16>, vector<256x192xf32> -> vector<256x192xf32>
    %c0_35 = arith.constant 0 : index
    %c0_36 = arith.constant 0 : index
    %40 = vector.load %arg11[%c0_35, %c0_36] : memref<256x192xf32, #tpu.memory_space<vmem>>, vector<256x192xf32>
    %41 = arith.addf %40, %39 : vector<256x192xf32>
    %c0_37 = arith.constant 0 : index
    %c0_38 = arith.constant 0 : index
    %42 = vector.load %arg11[%c0_37, %c0_38] : memref<256x192xf32, #tpu.memory_space<vmem>>, vector<256x192xf32>
    tpu.vector_store %arg11[%c0_37, %c0_38], %41 {strides = array<i32>} : memref<256x192xf32, #tpu.memory_space<vmem>>, vector<256x192xf32>,
    %c1_i32_39 = arith.constant 1 : i32
    %43 = arith.addi %0, %c1_i32_39 : i32
    %c0_40 = arith.constant 0 : index
    %44 = arith.index_cast %43 : i32 to index
    %c0_41 = arith.constant 0 : index
    %c0_42 = arith.constant 0 : index
    %45 = vector.load %arg3[%c0_40, %44, %c0_41, %c0_42] : memref<1x34x32x64xbf16, #tpu.memory_space<vmem>>, vector<1x8x32x64xbf16>
    %46 = vector.shape_cast %45 : vector<1x8x32x64xbf16> to vector<8x32x64xbf16>
    %47 = vector.shape_cast %46 : vector<8x32x64xbf16> to vector<256x64xbf16>
    %c1_43 = arith.constant 1 : index
    %c0_44 = arith.constant 0 : index
    %c0_45 = arith.constant 0 : index
    %48 = vector.load %arg5[%c1_43, %c0_44, %c0_45] : memref<3x64x192xbf16, #tpu.memory_space<vmem>>, vector<1x64x192xbf16>
    %49 = vector.shape_cast %48 : vector<1x64x192xbf16> to vector<64x192xbf16>
    %cst_46 = arith.constant dense<0.000000e+00> : vector<256x192xf32>
    %50 = tpu.matmul %47, %49, %cst_46 {dimension_numbers = #tpu.dot_dimension_numbers<[1], [0], [0], [1], [0, 0, 1, 1], [], []>} : vector<256x64xbf16>, vector<64x192xbf16>, vector<256x192xf32> -> vector<256x192xf32>
    %c0_47 = arith.constant 0 : index
    %c0_48 = arith.constant 0 : index
    %51 = vector.load %arg11[%c0_47, %c0_48] : memref<256x192xf32, #tpu.memory_space<vmem>>, vector<256x192xf32>
    %52 = arith.addf %51, %50 : vector<256x192xf32>
    %c0_49 = arith.constant 0 : index
    %c0_50 = arith.constant 0 : index
    %53 = vector.load %arg11[%c0_49, %c0_50] : memref<256x192xf32, #tpu.memory_space<vmem>>, vector<256x192xf32>
    tpu.vector_store %arg11[%c0_49, %c0_50], %52 {strides = array<i32>} : memref<256x192xf32, #tpu.memory_space<vmem>>, vector<256x192xf32>,
    %c2_i32_51 = arith.constant 2 : i32
    %54 = arith.addi %0, %c2_i32_51 : i32
    %c0_52 = arith.constant 0 : index
    %55 = arith.index_cast %54 : i32 to index
    %c0_53 = arith.constant 0 : index
    %c0_54 = arith.constant 0 : index
    %56 = vector.load %arg3[%c0_52, %55, %c0_53, %c0_54] : memref<1x34x32x64xbf16, #tpu.memory_space<vmem>>, vector<1x8x32x64xbf16>
    %57 = vector.shape_cast %56 : vector<1x8x32x64xbf16> to vector<8x32x64xbf16>
    %58 = vector.shape_cast %57 : vector<8x32x64xbf16> to vector<256x64xbf16>
    %c2_55 = arith.constant 2 : index
    %c0_56 = arith.constant 0 : index
    %c0_57 = arith.constant 0 : index
    %59 = vector.load %arg5[%c2_55, %c0_56, %c0_57] : memref<3x64x192xbf16, #tpu.memory_space<vmem>>, vector<1x64x192xbf16>
    %60 = vector.shape_cast %59 : vector<1x64x192xbf16> to vector<64x192xbf16>
    %cst_58 = arith.constant dense<0.000000e+00> : vector<256x192xf32>
    %61 = tpu.matmul %58, %60, %cst_58 {dimension_numbers = #tpu.dot_dimension_numbers<[1], [0], [0], [1], [0, 0, 1, 1], [], []>} : vector<256x64xbf16>, vector<64x192xbf16>, vector<256x192xf32> -> vector<256x192xf32>
    %c0_59 = arith.constant 0 : index
    %c0_60 = arith.constant 0 : index
    %62 = vector.load %arg11[%c0_59, %c0_60] : memref<256x192xf32, #tpu.memory_space<vmem>>, vector<256x192xf32>
    %63 = arith.addf %62, %61 : vector<256x192xf32>
    %c0_61 = arith.constant 0 : index
    %c0_62 = arith.constant 0 : index
    %64 = vector.load %arg11[%c0_61, %c0_62] : memref<256x192xf32, #tpu.memory_space<vmem>>, vector<256x192xf32>
    tpu.vector_store %arg11[%c0_61, %c0_62], %63 {strides = array<i32>} : memref<256x192xf32, #tpu.memory_space<vmem>>, vector<256x192xf32>,
    %c0_63 = arith.constant 0 : index
    %c0_64 = arith.constant 0 : index
    %65 = vector.load %arg11[%c0_63, %c0_64] : memref<256x192xf32, #tpu.memory_space<vmem>>, vector<256x192xf32>
    %66 = vector.extract_strided_slice %65 {offsets = [0, 0], sizes = [256, 64], strides = [1, 1]} : vector<256x192xf32> to vector<256x64xf32>
    %67 = arith.truncf %66 : vector<256x64xf32> to vector<256x64xbf16>
    %68 = vector.extract_strided_slice %65 {offsets = [0, 64], sizes = [256, 64], strides = [1, 1]} : vector<256x192xf32> to vector<256x64xf32>
    %69 = vector.extract_strided_slice %65 {offsets = [0, 128], sizes = [256, 64], strides = [1, 1]} : vector<256x192xf32> to vector<256x64xf32>
    %70 = arith.truncf %69 : vector<256x64xf32> to vector<256x64xbf16>
    %c0_65 = arith.constant 0 : index
    %c0_66 = arith.constant 0 : index
    %c0_67 = arith.constant 0 : index
    %71 = vector.load %arg6[%c0_65, %c0_66, %c0_67] : memref<2x256x256xbf16, #tpu.memory_space<vmem>>, vector<1x256x256xbf16>
    %72 = vector.shape_cast %71 : vector<1x256x256xbf16> to vector<256x256xbf16>
    %cst_68 = arith.constant dense<0.000000e+00> : vector<256x64xf32>
    %73 = tpu.matmul %72, %67, %cst_68 {dimension_numbers = #tpu.dot_dimension_numbers<[1], [0], [0], [1], [0, 0, 1, 1], [], []>} : vector<256x256xbf16>, vector<256x64xbf16>, vector<256x64xf32> -> vector<256x64xf32>
    %74 = arith.addf %68, %73 : vector<256x64xf32>
    %c1_69 = arith.constant 1 : index
    %c0_70 = arith.constant 0 : index
    %c0_71 = arith.constant 0 : index
    %75 = vector.load %arg6[%c1_69, %c0_70, %c0_71] : memref<2x256x256xbf16, #tpu.memory_space<vmem>>, vector<1x256x256xbf16>
    %76 = vector.shape_cast %75 : vector<1x256x256xbf16> to vector<256x256xbf16>
    %cst_72 = arith.constant dense<0.000000e+00> : vector<256x64xf32>
    %77 = tpu.matmul %76, %70, %cst_72 {dimension_numbers = #tpu.dot_dimension_numbers<[1], [0], [0], [1], [0, 0, 1, 1], [], []>} : vector<256x256xbf16>, vector<256x64xbf16>, vector<256x64xf32> -> vector<256x64xf32>
    %78 = arith.addf %74, %77 : vector<256x64xf32>
    %c0_73 = arith.constant 0 : index
    %c0_74 = arith.constant 0 : index
    %79 = vector.load %arg7[%c0_73, %c0_74] : memref<1x64xf32, #tpu.memory_space<vmem>>, vector<1x64xf32>
    %80 = vector.broadcast %79 : vector<1x64xf32> to vector<256x64xf32>
    %81 = arith.mulf %78, %80 : vector<256x64xf32>
    %c0_75 = arith.constant 0 : index
    %c0_76 = arith.constant 0 : index
    %82 = vector.load %arg8[%c0_75, %c0_76] : memref<1x64xf32, #tpu.memory_space<vmem>>, vector<1x64xf32>
    %83 = vector.broadcast %82 : vector<1x64xf32> to vector<256x64xf32>
    %84 = arith.addf %81, %83 : vector<256x64xf32>
    %cst_77 = arith.constant 0.000000e+00 : f32
    %85 = vector.broadcast %cst_77 : f32 to vector<256x64xf32>
    %86 = arith.cmpf ogt, %84, %85 : vector<256x64xf32>
    %c0_78 = arith.constant 0 : index
    %c0_79 = arith.constant 0 : index
    %87 = vector.load %arg9[%c0_78, %c0_79] : memref<1x64xf32, #tpu.memory_space<vmem>>, vector<1x64xf32>
    %88 = vector.broadcast %87 : vector<1x64xf32> to vector<256x64xf32>
    %89 = arith.mulf %88, %84 : vector<256x64xf32>
    %90 = arith.select %86, %84, %89 : vector<256x64xi1>, vector<256x64xf32>
    %91 = vector.shape_cast %90 : vector<256x64xf32> to vector<8x32x64xf32>
    %92 = arith.truncf %91 : vector<8x32x64xf32> to vector<8x32x64xbf16>
    %c0_80 = arith.constant 0 : index
    %c0_81 = arith.constant 0 : index
    %c0_82 = arith.constant 0 : index
    %c0_83 = arith.constant 0 : index
    %93 = vector.load %arg10[%c0_80, %c0_81, %c0_82, %c0_83] : memref<1x8x32x64xbf16, #tpu.memory_space<vmem>>, vector<1x8x32x64xbf16>
    %94 = vector.shape_cast %93 : vector<1x8x32x64xbf16> to vector<8x32x64xbf16>
    %95 = vector.shape_cast %92 : vector<8x32x64xbf16> to vector<1x8x32x64xbf16>
    tpu.vector_store %arg10[%c0_80, %c0_81, %c0_82, %c0_83], %95 {strides = array<i32>} : memref<1x8x32x64xbf16, #tpu.memory_space<vmem>>, vector<1x8x32x64xbf16>,
    return
  }
  func.func @transform_0(%arg0: i32, %arg1: i32) -> (i32, i32, i32, i32) {
    %c0_i32 = arith.constant 0 : i32
    %c0_i32_0 = arith.constant 0 : i32
    %c0_i32_1 = arith.constant 0 : i32
    %c0_i32_2 = arith.constant 0 : i32
    return %arg0, %c0_i32, %c0_i32_0, %c0_i32_1 : i32, i32, i32, i32
  }
  func.func @transform_1(%arg0: i32, %arg1: i32) -> (i32, i32, i32, i32) {
    %c0_i32 = arith.constant 0 : i32
    %c0_i32_0 = arith.constant 0 : i32
    %c0_i32_1 = arith.constant 0 : i32
    %c0_i32_2 = arith.constant 0 : i32
    return %arg0, %c0_i32, %c0_i32_0, %c0_i32_1 : i32, i32, i32, i32
  }
  func.func @transform_2(%arg0: i32, %arg1: i32) -> (i32, i32, i32) {
    %c0_i32 = arith.constant 0 : i32
    %c0_i32_0 = arith.constant 0 : i32
    %c0_i32_1 = arith.constant 0 : i32
    %c0_i32_2 = arith.constant 0 : i32
    return %c0_i32, %c0_i32_0, %c0_i32_1 : i32, i32, i32
  }
  func.func @transform_3(%arg0: i32, %arg1: i32) -> (i32, i32, i32) {
    %c0_i32 = arith.constant 0 : i32
    %c0_i32_0 = arith.constant 0 : i32
    %c0_i32_1 = arith.constant 0 : i32
    %c0_i32_2 = arith.constant 0 : i32
    return %c0_i32, %c0_i32_0, %c0_i32_1 : i32, i32, i32
  }
  func.func @transform_4(%arg0: i32, %arg1: i32) -> (i32, i32, i32) {
    %c0_i32 = arith.constant 0 : i32
    %c0_i32_0 = arith.constant 0 : i32
    %c0_i32_1 = arith.constant 0 : i32
    %c0_i32_2 = arith.constant 0 : i32
    return %c0_i32, %c0_i32_0, %c0_i32_1 : i32, i32, i32
  }
  func.func @transform_5(%arg0: i32, %arg1: i32) -> (i32, i32) {
    %c0_i32 = arith.constant 0 : i32
    %c0_i32_0 = arith.constant 0 : i32
    %c0_i32_1 = arith.constant 0 : i32
    return %c0_i32, %c0_i32_0 : i32, i32
  }
  func.func @transform_6(%arg0: i32, %arg1: i32) -> (i32, i32) {
    %c0_i32 = arith.constant 0 : i32
    %c0_i32_0 = arith.constant 0 : i32
    %c0_i32_1 = arith.constant 0 : i32
    return %c0_i32, %c0_i32_0 : i32, i32
  }
  func.func @transform_7(%arg0: i32, %arg1: i32) -> (i32, i32) {
    %c0_i32 = arith.constant 0 : i32
    %c0_i32_0 = arith.constant 0 : i32
    %c0_i32_1 = arith.constant 0 : i32
    return %c0_i32, %c0_i32_0 : i32, i32
  }
  func.func @transform_8(%arg0: i32, %arg1: i32) -> (i32, i32, i32, i32) {
    %c0_i32 = arith.constant 0 : i32
    %c0_i32_0 = arith.constant 0 : i32
    %c0_i32_1 = arith.constant 0 : i32
    return %arg0, %arg1, %c0_i32, %c0_i32_0 : i32, i32, i32, i32
  }
}

module attributes {stable_mosaic.version = 11 : i64} {
  func.func @kernel(%arg0: i32, %arg1: i32, %arg2: memref<1x34x32x64xbf16, #tpu.memory_space<vmem>>, %arg3: memref<3x64x192xbf16, #tpu.memory_space<vmem>>, %arg4: memref<2x256x256xbf16, #tpu.memory_space<vmem>>, %arg5: memref<1x64xf32, #tpu.memory_space<vmem>>, %arg6: memref<1x64xf32, #tpu.memory_space<vmem>>, %arg7: memref<1x64xf32, #tpu.memory_space<vmem>>, %arg8: memref<1x8x32x64xf32, #tpu.memory_space<vmem>>, %arg9: memref<256x192xf32, #tpu.memory_space<vmem>>) attributes {dimension_semantics = [#tpu.dimension_semantics<parallel>, #tpu.dimension_semantics<parallel>], iteration_bounds = array<i64: 2, 4>, scalar_prefetch = 0 : i64, scratch_operands = 1 : i64, tpu.core_type = #tpu.core_type<tc>, window_params = [{transform_indices = @transform_0, window_bounds = array<i64: 1, 34, 32, 64>}, {pipeline_mode = #tpu.pipeline_mode<synchronous>, transform_indices = @transform_1, window_bounds = array<i64: 3, 64, 192>}, {pipeline_mode = #tpu.pipeline_mode<synchronous>, transform_indices = @transform_2, window_bounds = array<i64: 2, 256, 256>}, {pipeline_mode = #tpu.pipeline_mode<synchronous>, transform_indices = @transform_3, window_bounds = array<i64: 1, 64>}, {pipeline_mode = #tpu.pipeline_mode<synchronous>, transform_indices = @transform_4, window_bounds = array<i64: 1, 64>}, {pipeline_mode = #tpu.pipeline_mode<synchronous>, transform_indices = @transform_5, window_bounds = array<i64: 1, 64>}, {transform_indices = @transform_6, window_bounds = array<i64: 1, 8, 32, 64>}]} {
    %c8_i32 = arith.constant 8 : i32
    %0 = arith.muli %arg1, %c8_i32 : i32
    %c0_i32 = arith.constant 0 : i32
    %1 = arith.addi %0, %c0_i32 : i32
    %c0 = arith.constant 0 : index
    %2 = arith.index_cast %1 : i32 to index
    %c0_0 = arith.constant 0 : index
    %c0_1 = arith.constant 0 : index
    %3 = vector.load %arg2[%c0, %2, %c0_0, %c0_1] : memref<1x34x32x64xbf16, #tpu.memory_space<vmem>>, vector<1x8x32x64xbf16>
    %4 = vector.shape_cast %3 : vector<1x8x32x64xbf16> to vector<8x32x64xbf16>
    %5 = vector.shape_cast %4 : vector<8x32x64xbf16> to vector<256x64xbf16>
    %c0_2 = arith.constant 0 : index
    %c0_3 = arith.constant 0 : index
    %c0_4 = arith.constant 0 : index
    %6 = vector.load %arg3[%c0_2, %c0_3, %c0_4] : memref<3x64x192xbf16, #tpu.memory_space<vmem>>, vector<1x64x192xbf16>
    %7 = vector.shape_cast %6 : vector<1x64x192xbf16> to vector<64x192xbf16>
    %cst = arith.constant dense<0.000000e+00> : vector<256x192xf32>
    %8 = tpu.matmul %5, %7, %cst {dimension_numbers = #tpu.dot_dimension_numbers<[1], [0], [0], [1], [0, 0, 1, 1], [], []>} : vector<256x64xbf16>, vector<64x192xbf16>, vector<256x192xf32> -> vector<256x192xf32>
    %c0_5 = arith.constant 0 : index
    %c0_6 = arith.constant 0 : index
    %9 = vector.load %arg9[%c0_5, %c0_6] : memref<256x192xf32, #tpu.memory_space<vmem>>, vector<256x192xf32>
    tpu.vector_store %arg9[%c0_5, %c0_6], %8 {strides = array<i32>} : memref<256x192xf32, #tpu.memory_space<vmem>>, vector<256x192xf32>,
    %c1_i32 = arith.constant 1 : i32
    %10 = arith.addi %0, %c1_i32 : i32
    %c0_7 = arith.constant 0 : index
    %11 = arith.index_cast %10 : i32 to index
    %c0_8 = arith.constant 0 : index
    %c0_9 = arith.constant 0 : index
    %12 = vector.load %arg2[%c0_7, %11, %c0_8, %c0_9] : memref<1x34x32x64xbf16, #tpu.memory_space<vmem>>, vector<1x8x32x64xbf16>
    %13 = vector.shape_cast %12 : vector<1x8x32x64xbf16> to vector<8x32x64xbf16>
    %14 = vector.shape_cast %13 : vector<8x32x64xbf16> to vector<256x64xbf16>
    %c1 = arith.constant 1 : index
    %c0_10 = arith.constant 0 : index
    %c0_11 = arith.constant 0 : index
    %15 = vector.load %arg3[%c1, %c0_10, %c0_11] : memref<3x64x192xbf16, #tpu.memory_space<vmem>>, vector<1x64x192xbf16>
    %16 = vector.shape_cast %15 : vector<1x64x192xbf16> to vector<64x192xbf16>
    %cst_12 = arith.constant dense<0.000000e+00> : vector<256x192xf32>
    %17 = tpu.matmul %14, %16, %cst_12 {dimension_numbers = #tpu.dot_dimension_numbers<[1], [0], [0], [1], [0, 0, 1, 1], [], []>} : vector<256x64xbf16>, vector<64x192xbf16>, vector<256x192xf32> -> vector<256x192xf32>
    %c0_13 = arith.constant 0 : index
    %c0_14 = arith.constant 0 : index
    %18 = vector.load %arg9[%c0_13, %c0_14] : memref<256x192xf32, #tpu.memory_space<vmem>>, vector<256x192xf32>
    %19 = arith.addf %18, %17 : vector<256x192xf32>
    %c0_15 = arith.constant 0 : index
    %c0_16 = arith.constant 0 : index
    %20 = vector.load %arg9[%c0_15, %c0_16] : memref<256x192xf32, #tpu.memory_space<vmem>>, vector<256x192xf32>
    tpu.vector_store %arg9[%c0_15, %c0_16], %19 {strides = array<i32>} : memref<256x192xf32, #tpu.memory_space<vmem>>, vector<256x192xf32>,
    %c2_i32 = arith.constant 2 : i32
    %21 = arith.addi %0, %c2_i32 : i32
    %c0_17 = arith.constant 0 : index
    %22 = arith.index_cast %21 : i32 to index
    %c0_18 = arith.constant 0 : index
    %c0_19 = arith.constant 0 : index
    %23 = vector.load %arg2[%c0_17, %22, %c0_18, %c0_19] : memref<1x34x32x64xbf16, #tpu.memory_space<vmem>>, vector<1x8x32x64xbf16>
    %24 = vector.shape_cast %23 : vector<1x8x32x64xbf16> to vector<8x32x64xbf16>
    %25 = vector.shape_cast %24 : vector<8x32x64xbf16> to vector<256x64xbf16>
    %c2 = arith.constant 2 : index
    %c0_20 = arith.constant 0 : index
    %c0_21 = arith.constant 0 : index
    %26 = vector.load %arg3[%c2, %c0_20, %c0_21] : memref<3x64x192xbf16, #tpu.memory_space<vmem>>, vector<1x64x192xbf16>
    %27 = vector.shape_cast %26 : vector<1x64x192xbf16> to vector<64x192xbf16>
    %cst_22 = arith.constant dense<0.000000e+00> : vector<256x192xf32>
    %28 = tpu.matmul %25, %27, %cst_22 {dimension_numbers = #tpu.dot_dimension_numbers<[1], [0], [0], [1], [0, 0, 1, 1], [], []>} : vector<256x64xbf16>, vector<64x192xbf16>, vector<256x192xf32> -> vector<256x192xf32>
    %c0_23 = arith.constant 0 : index
    %c0_24 = arith.constant 0 : index
    %29 = vector.load %arg9[%c0_23, %c0_24] : memref<256x192xf32, #tpu.memory_space<vmem>>, vector<256x192xf32>
    %30 = arith.addf %29, %28 : vector<256x192xf32>
    %c0_25 = arith.constant 0 : index
    %c0_26 = arith.constant 0 : index
    %31 = vector.load %arg9[%c0_25, %c0_26] : memref<256x192xf32, #tpu.memory_space<vmem>>, vector<256x192xf32>
    tpu.vector_store %arg9[%c0_25, %c0_26], %30 {strides = array<i32>} : memref<256x192xf32, #tpu.memory_space<vmem>>, vector<256x192xf32>,
    %c0_27 = arith.constant 0 : index
    %c0_28 = arith.constant 0 : index
    %32 = vector.load %arg9[%c0_27, %c0_28] : memref<256x192xf32, #tpu.memory_space<vmem>>, vector<256x192xf32>
    %33 = vector.extract_strided_slice %32 {offsets = [0, 0], sizes = [256, 64], strides = [1, 1]} : vector<256x192xf32> to vector<256x64xf32>
    %34 = arith.truncf %33 : vector<256x64xf32> to vector<256x64xbf16>
    %35 = vector.extract_strided_slice %32 {offsets = [0, 64], sizes = [256, 64], strides = [1, 1]} : vector<256x192xf32> to vector<256x64xf32>
    %36 = vector.extract_strided_slice %32 {offsets = [0, 128], sizes = [256, 64], strides = [1, 1]} : vector<256x192xf32> to vector<256x64xf32>
    %37 = arith.truncf %36 : vector<256x64xf32> to vector<256x64xbf16>
    %c0_29 = arith.constant 0 : index
    %c0_30 = arith.constant 0 : index
    %c0_31 = arith.constant 0 : index
    %38 = vector.load %arg4[%c0_29, %c0_30, %c0_31] : memref<2x256x256xbf16, #tpu.memory_space<vmem>>, vector<1x256x256xbf16>
    %39 = vector.shape_cast %38 : vector<1x256x256xbf16> to vector<256x256xbf16>
    %cst_32 = arith.constant dense<0.000000e+00> : vector<256x64xf32>
    %40 = tpu.matmul %39, %34, %cst_32 {dimension_numbers = #tpu.dot_dimension_numbers<[1], [0], [0], [1], [0, 0, 1, 1], [], []>} : vector<256x256xbf16>, vector<256x64xbf16>, vector<256x64xf32> -> vector<256x64xf32>
    %41 = arith.addf %35, %40 : vector<256x64xf32>
    %c1_33 = arith.constant 1 : index
    %c0_34 = arith.constant 0 : index
    %c0_35 = arith.constant 0 : index
    %42 = vector.load %arg4[%c1_33, %c0_34, %c0_35] : memref<2x256x256xbf16, #tpu.memory_space<vmem>>, vector<1x256x256xbf16>
    %43 = vector.shape_cast %42 : vector<1x256x256xbf16> to vector<256x256xbf16>
    %cst_36 = arith.constant dense<0.000000e+00> : vector<256x64xf32>
    %44 = tpu.matmul %43, %37, %cst_36 {dimension_numbers = #tpu.dot_dimension_numbers<[1], [0], [0], [1], [0, 0, 1, 1], [], []>} : vector<256x256xbf16>, vector<256x64xbf16>, vector<256x64xf32> -> vector<256x64xf32>
    %45 = arith.addf %41, %44 : vector<256x64xf32>
    %c0_37 = arith.constant 0 : index
    %c0_38 = arith.constant 0 : index
    %46 = vector.load %arg5[%c0_37, %c0_38] : memref<1x64xf32, #tpu.memory_space<vmem>>, vector<1x64xf32>
    %47 = vector.broadcast %46 : vector<1x64xf32> to vector<256x64xf32>
    %48 = arith.mulf %45, %47 : vector<256x64xf32>
    %c0_39 = arith.constant 0 : index
    %c0_40 = arith.constant 0 : index
    %49 = vector.load %arg6[%c0_39, %c0_40] : memref<1x64xf32, #tpu.memory_space<vmem>>, vector<1x64xf32>
    %50 = vector.broadcast %49 : vector<1x64xf32> to vector<256x64xf32>
    %51 = arith.addf %48, %50 : vector<256x64xf32>
    %cst_41 = arith.constant 0.000000e+00 : f32
    %52 = vector.broadcast %cst_41 : f32 to vector<256x64xf32>
    %53 = arith.cmpf ogt, %51, %52 : vector<256x64xf32>
    %c0_42 = arith.constant 0 : index
    %c0_43 = arith.constant 0 : index
    %54 = vector.load %arg7[%c0_42, %c0_43] : memref<1x64xf32, #tpu.memory_space<vmem>>, vector<1x64xf32>
    %55 = vector.broadcast %54 : vector<1x64xf32> to vector<256x64xf32>
    %56 = arith.mulf %55, %51 : vector<256x64xf32>
    %57 = arith.select %53, %51, %56 : vector<256x64xi1>, vector<256x64xf32>
    %58 = vector.shape_cast %57 : vector<256x64xf32> to vector<8x32x64xf32>
    %c0_44 = arith.constant 0 : index
    %c0_45 = arith.constant 0 : index
    %c0_46 = arith.constant 0 : index
    %c0_47 = arith.constant 0 : index
    %59 = vector.load %arg8[%c0_44, %c0_45, %c0_46, %c0_47] : memref<1x8x32x64xf32, #tpu.memory_space<vmem>>, vector<1x8x32x64xf32>
    %60 = vector.shape_cast %59 : vector<1x8x32x64xf32> to vector<8x32x64xf32>
    %61 = vector.shape_cast %58 : vector<8x32x64xf32> to vector<1x8x32x64xf32>
    tpu.vector_store %arg8[%c0_44, %c0_45, %c0_46, %c0_47], %61 {strides = array<i32>} : memref<1x8x32x64xf32, #tpu.memory_space<vmem>>, vector<1x8x32x64xf32>,
    return
  }
  func.func @transform_0(%arg0: i32, %arg1: i32) -> (i32, i32, i32, i32) {
    %c0_i32 = arith.constant 0 : i32
    %c0_i32_0 = arith.constant 0 : i32
    %c0_i32_1 = arith.constant 0 : i32
    %c0_i32_2 = arith.constant 0 : i32
    return %arg0, %c0_i32, %c0_i32_0, %c0_i32_1 : i32, i32, i32, i32
  }
  func.func @transform_1(%arg0: i32, %arg1: i32) -> (i32, i32, i32) {
    %c0_i32 = arith.constant 0 : i32
    %c0_i32_0 = arith.constant 0 : i32
    %c0_i32_1 = arith.constant 0 : i32
    %c0_i32_2 = arith.constant 0 : i32
    return %c0_i32, %c0_i32_0, %c0_i32_1 : i32, i32, i32
  }
  func.func @transform_2(%arg0: i32, %arg1: i32) -> (i32, i32, i32) {
    %c0_i32 = arith.constant 0 : i32
    %c0_i32_0 = arith.constant 0 : i32
    %c0_i32_1 = arith.constant 0 : i32
    %c0_i32_2 = arith.constant 0 : i32
    return %c0_i32, %c0_i32_0, %c0_i32_1 : i32, i32, i32
  }
  func.func @transform_3(%arg0: i32, %arg1: i32) -> (i32, i32) {
    %c0_i32 = arith.constant 0 : i32
    %c0_i32_0 = arith.constant 0 : i32
    %c0_i32_1 = arith.constant 0 : i32
    return %c0_i32, %c0_i32_0 : i32, i32
  }
  func.func @transform_4(%arg0: i32, %arg1: i32) -> (i32, i32) {
    %c0_i32 = arith.constant 0 : i32
    %c0_i32_0 = arith.constant 0 : i32
    %c0_i32_1 = arith.constant 0 : i32
    return %c0_i32, %c0_i32_0 : i32, i32
  }
  func.func @transform_5(%arg0: i32, %arg1: i32) -> (i32, i32) {
    %c0_i32 = arith.constant 0 : i32
    %c0_i32_0 = arith.constant 0 : i32
    %c0_i32_1 = arith.constant 0 : i32
    return %c0_i32, %c0_i32_0 : i32, i32
  }
  func.func @transform_6(%arg0: i32, %arg1: i32) -> (i32, i32, i32, i32) {
    %c0_i32 = arith.constant 0 : i32
    %c0_i32_0 = arith.constant 0 : i32
    %c0_i32_1 = arith.constant 0 : i32
    return %arg0, %arg1, %c0_i32, %c0_i32_0 : i32, i32, i32, i32
  }
}

</mosaic_0001>

<llo_original>
// kernel: tpu_custom_call.1
$region0: #{tpu_custom_call.1}
  #allocation0 [shape = 'u32[]', space=smem, size = 0x4, offset = 0x4, fixed_abs, tag = 'smem constant byte address 0x4 - core index']
  #allocation1 [shape = 'u32[144,128]{1,0:T(1,128)}', space=vmem, size = 0x12000, scoped, tag = 'internal scratch']
  %s0 = inlined_call_operand.hbm [shape: f32[8,128], index: 0, kind: input, shape index: {}]
  %s1 = inlined_call_operand.hbm [shape: f32[8,128], index: 1, kind: output, shape index: {}]
  %s2 = sld [smem:[#allocation0]]
  $region41: #{tpu_custom_call.1} parent=0
    _
  %s4 = ssub.s32 1, %s2
  %s5 = scalar_select 0, %s4, %s2
  $region1: #{tpu_custom_call.1} parent=0
    #allocation2 [shape = 'u8[4096]{0}', space=vmem, size = 0x1000, scoped, tag = 'input window, operand 0, single buffered']
    #allocation3 [shape = 's32[2]{0}', space=sflag, size = 0x8, scoped, tag = 'scoped memory for tpu_custom_call.1']
    #allocation4 [shape = 's32[2]{0}', space=sflag, size = 0x8, scoped, tag = 'scoped memory for tpu_custom_call.1']
    #allocation5 [shape = 'u8[4096]{0}', space=vmem, size = 0x1000, scoped, tag = 'output window, operand 0, single buffered']
    %6 = vsyncpa [#allocation3], 0
    %7 = vsyncpa [#allocation4], 0
    loop: start=0, step=1, limit=4
    $region2: #{tpu_custom_call.1} parent=1 // loop_pre_header
      _
    $region3: #{tpu_custom_call.1} parent=1 // loop_header
      %s9 = sphi 0, %s13
      %p10 = scmp.ge.s32.totalorder %s9, 4
      %s17 = sphi 0, %s17
      %s19 = sphi 0, %s17
      %s20 = sphi 0, %s19
      %s34 = sphi 0, %s20
      %s38 = sphi 0, %s38
      %s40 = sphi 0, %s38
      %s41 = sphi 0, %s40
      %s55 = sphi 0, %s41
    $region4: #{tpu_custom_call.1} parent=1 // loop_header_branch
      %12 = sbr.rel (%p10) target = $region8
    $region5: #{tpu_custom_call.1} parent=1 // loop_body
      %s14 = ssub.s32 %s9, 1
      %s15 = ssub.s32 %s9, 2
      %s16 = sadd.s32 %s9, 1
      %s18 = sadd.s32 %s17, 1
      %p21 = scmp.eq.s32.totalorder %s9, 1
      %p22 = scmp.ne.s32.totalorder %s17, %s19
      %p23 = scmp.eq.s32.totalorder %s9, 0
      %p24 = por %p22, %p23
      %p25 = scmp.ne.s32.totalorder %s17, %s19
      %p26 = scmp.eq.s32.totalorder %s14, 1
      %p27 = por %p25, %p26
      %p28 = scmp.ne.s32.totalorder %s19, %s20
      %p29 = scmp.eq.s32.totalorder %s14, 0
      %p30 = por %p28, %p29
      %p31 = scmp.ne.s32.totalorder %s19, %s20
      %p32 = scmp.eq.s32.totalorder %s15, 1
      %p33 = por %p31, %p32
      %p35 = scmp.ne.s32.totalorder %s20, %s34
      %p36 = scmp.eq.s32.totalorder %s15, 0
      %p37 = por %p35, %p36
      %s39 = sadd.s32 %s38, 1
      %p42 = scmp.eq.s32.totalorder %s9, 1
      %p43 = scmp.ne.s32.totalorder %s38, %s40
      %p44 = scmp.eq.s32.totalorder %s9, 0
      %p45 = por %p43, %p44
      %p46 = scmp.ne.s32.totalorder %s38, %s40
      %p47 = scmp.eq.s32.totalorder %s14, 1
      %p48 = por %p46, %p47
      %p49 = scmp.ne.s32.totalorder %s40, %s41
      %p50 = scmp.eq.s32.totalorder %s14, 0
      %p51 = por %p49, %p50
      %p52 = scmp.ne.s32.totalorder %s40, %s41
      %p53 = scmp.eq.s32.totalorder %s15, 1
      %p54 = por %p52, %p53
      %p56 = scmp.ne.s32.totalorder %s41, %s55
      %p57 = scmp.eq.s32.totalorder %s15, 0
      %p58 = por %p56, %p57
      %p59 = scmp.le.s32.totalorder 1, %s9
      %p60 = scmp.lt.s32.totalorder %s9, 3
      %p61 = pnand %p59, %p60
      %p62 = pneg %p61
      // Predicated region
      $region9: #{tpu_custom_call.1} parent=5 // pred_check
        _
      $region10: #{tpu_custom_call.1} parent=5 // pred_check_branch
        %64 = sbr.rel (%p61) target = $region12
      $region11: #{tpu_custom_call.1} parent=5 // pred_region
        %s65 = ssub.s32 %s9, 1
        // Predicated region
        $region13: #{tpu_custom_call.1} parent=11 // pred_check
          %p66 = pneg %p30
        $region14: #{tpu_custom_call.1} parent=11 // pred_check_branch
          %68 = sbr.rel (%p66) target = $region16
        $region15: #{tpu_custom_call.1} parent=11 // pred_region
          %s70 = ssub.s32 128, 128
          %71 = vsyncadd [#allocation3], %s70
          %s73 = sshll.u32 [#allocation2], 4
          %s74 = int_to_ptr.vmem [resolvable:$true] %s73
          %76 = dma.hbm_to_vmem [thread:$0]  %s0, 128, %s74, [#allocation3]
        $region16: #{tpu_custom_call.1} parent=11 // pred_fallthru
          _
      $region12: #{tpu_custom_call.1} parent=5 // pred_fallthru
        _
      %p77 = scmp.lt.s32.totalorder %s9, 2
      // Predicated region
      $region17: #{tpu_custom_call.1} parent=5 // pred_check
        %p78 = pneg %p77
      $region18: #{tpu_custom_call.1} parent=5 // pred_check_branch
        %80 = sbr.rel (%p78) target = $region20
      $region19: #{tpu_custom_call.1} parent=5 // pred_region
        _
      $region20: #{tpu_custom_call.1} parent=5 // pred_fallthru
        _
      %p81 = scmp.le.s32.totalorder 1, %s9
      %p82 = scmp.lt.s32.totalorder %s9, 3
      %p83 = pnand %p81, %p82
      %p84 = pneg %p83
      // Predicated region
      $region21: #{tpu_custom_call.1} parent=5 // pred_check
        _
      $region22: #{tpu_custom_call.1} parent=5 // pred_check_branch
        %86 = sbr.rel (%p83) target = $region24
      $region23: #{tpu_custom_call.1} parent=5 // pred_region
        %s87 = ssub.s32 %s9, 1
        // Predicated region
        $region25: #{tpu_custom_call.1} parent=23 // pred_check
          %p88 = pneg %p30
        $region26: #{tpu_custom_call.1} parent=23 // pred_check_branch
          %90 = sbr.rel (%p88) target = $region28
        $region27: #{tpu_custom_call.1} parent=23 // pred_region
          %91 = dma.done [#allocation3], 128
        $region28: #{tpu_custom_call.1} parent=23 // pred_fallthru
          _
        %p92 = pneg %p30
        %p93 = pneg %p27
        %p94 = pneg %p51
        %p95 = pneg %p48
        %v96 = vld [vmem:[#allocation2] sm:$0xff]
        %v97 = vadd.f32 %v96, 1.0
        %98 = vst [vmem:[#allocation5] sm:$0xff] %v97
        // Predicated region
        $region29: #{tpu_custom_call.1} parent=23 // pred_check
          %p99 = pneg %p48
        $region30: #{tpu_custom_call.1} parent=23 // pred_check_branch
          %101 = sbr.rel (%p99) target = $region32
        $region31: #{tpu_custom_call.1} parent=23 // pred_region
          %s103 = ssub.s32 128, 128
          %104 = vsyncadd [#allocation4], %s103
          %s106 = sshll.u32 [#allocation5], 4
          %s107 = int_to_ptr.vmem [resolvable:$true] %s106
          %109 = dma.vmem_to_hbm [thread:$0]  %s107, 128, %s1, [#allocation4]
        $region32: #{tpu_custom_call.1} parent=23 // pred_fallthru
          _
        // Predicated region
        $region33: #{tpu_custom_call.1} parent=23 // pred_check
          %p110 = pneg %p48
        $region34: #{tpu_custom_call.1} parent=23 // pred_check_branch
          %112 = sbr.rel (%p110) target = $region36
        $region35: #{tpu_custom_call.1} parent=23 // pred_region
          %113 = dma.done [#allocation4], 128
        $region36: #{tpu_custom_call.1} parent=23 // pred_fallthru
          _
      $region24: #{tpu_custom_call.1} parent=5 // pred_fallthru
        _
      %p114 = scmp.le.s32.totalorder 2, %s9
      // Predicated region
      $region37: #{tpu_custom_call.1} parent=5 // pred_check
        %p115 = pneg %p114
      $region38: #{tpu_custom_call.1} parent=5 // pred_check_branch
        %117 = sbr.rel (%p115) target = $region40
      $region39: #{tpu_custom_call.1} parent=5 // pred_region
        %s118 = ssub.s32 %s9, 2
      $region40: #{tpu_custom_call.1} parent=5 // pred_fallthru
        _
    $region6: #{tpu_custom_call.1} parent=1 // loop_footer
      %s13 = sadd.s32 1, %s9
    $region7: #{tpu_custom_call.1} parent=1 // loop_footer_branch
      %8 = sbr.rel target = $region3
    $region8: #{tpu_custom_call.1} parent=1 // loop_exit
      _
    %119 = vsyncpa [#allocation3], 1
    %s120 = scalar_lea.sflag [#allocation3], 1
    %121 = vsyncpa %s120, 1
    %122 = vsyncpa [#allocation4], 1
    %s123 = scalar_lea.sflag [#allocation4], 1
    %124 = vsyncpa %s123, 1

// kernel: deconv_forward.3
$region0: #{deconv_forward.3}
  #allocation0 [shape = 'u32[]', space=smem, size = 0x4, offset = 0x4, fixed_abs, tag = 'smem constant byte address 0x4 - core index']
  #allocation1 [shape = 'u32[144,128]{1,0:T(1,128)}', space=vmem, size = 0x12000, scoped, tag = 'internal scratch']
  #allocation9 [shape = 's32[]', space=sflag, size = 0x4, offset = 0, fixed_abs, tag = 'sflag constant byte address 0x0 - dummy sync flag']
  %s0 = inlined_call_operand.hbm [shape: bf16[2,16,16,64], index: 0, kind: input, shape index: {}]
  %s1 = inlined_call_operand.hbm [shape: bf16[2,64,128], index: 1, kind: input, shape index: {}]
  %s2 = inlined_call_operand.hbm [shape: f32[1,128], index: 2, kind: input, shape index: {}]
  %s3 = inlined_call_operand.hbm [shape: bf16[2,16,2,16,128], index: 3, kind: output, shape index: {}]
  %s4 = sld [smem:[#allocation0]]
  $region57: #{deconv_forward.3} parent=0
    _
  %s6 = ssub.s32 1, %s4
  %s7 = scalar_select 0, %s6, %s4
  $region1: #{deconv_forward.3} parent=0
    #allocation2 [shape = 'u8[65536]{0}', space=vmem, size = 0x10000, scoped, tag = 'input window, operand 0']
    #allocation3 [shape = 's32[2]{0}', space=sflag, size = 0x8, scoped, tag = 'scoped memory for deconv_forward.3']
    #allocation4 [shape = 's32[2]{0}', space=sflag, size = 0x8, scoped, tag = 'scoped memory for deconv_forward.3']
    #allocation5 [shape = 'u8[32768]{0}', space=vmem, size = 0x8000, scoped, tag = 'input window, operand 1, single buffered']
    #allocation6 [shape = 's32[1]{0}', space=sflag, size = 0x4, scoped, tag = 'scoped memory for deconv_forward.3']
    #allocation7 [shape = 'u8[512]{0}', space=vmem, size = 0x400, scoped, tag = 'input window, operand 2, single buffered']
    #allocation8 [shape = 'u8[65536]{0}', space=vmem, size = 0x10000, scoped, tag = 'output window, operand 0']
    %8 = vsyncpa [#allocation3], 0
    %s9 = scalar_lea.sflag [#allocation3], 1
    %10 = vsyncpa %s9, 0
    %11 = vsyncpa [#allocation6], 0
    %12 = vsyncpa [#allocation4], 0
    %s13 = scalar_lea.sflag [#allocation4], 1
    %14 = vsyncpa %s13, 0
    loop: start=0, step=1, limit=10
    $region2: #{deconv_forward.3} parent=1 // loop_pre_header
      _
    $region3: #{deconv_forward.3} parent=1 // loop_header
      %s16 = sphi 0, %s20
      %p17 = scmp.ge.s32.totalorder %s16, 10
      %s23 = sphi 0, %s42
      %s24 = sphi 0, %s38
      %s25 = sphi 0, %s34
      %s26 = sphi 0, %s23
      %s27 = sphi 0, %s24
      %s28 = sphi 0, %s25
      %s29 = sphi 0, %s26
      %s30 = sphi 0, %s27
      %s31 = sphi 0, %s28
      %s47 = sphi 0, %s49
      %s50 = sphi 0, %s47
      %s51 = sphi 0, %s50
      %s67 = sphi 0, %s51
      %s71 = sphi 0, %s71
      %s73 = sphi 0, %s71
      %s74 = sphi 0, %s73
      %s88 = sphi 0, %s74
      %s92 = sphi 0, %s92
      %s94 = sphi 0, %s92
      %s95 = sphi 0, %s94
      %s109 = sphi 0, %s95
      %s119 = sphi 0, %s121
      %s122 = sphi 0, %s119
      %s123 = sphi 0, %s122
      %s139 = sphi 0, %s123
    $region4: #{deconv_forward.3} parent=1 // loop_header_branch
      %19 = sbr.rel (%p17) target = $region8
    $region5: #{deconv_forward.3} parent=1 // loop_body
      %s21 = ssub.s32 %s16, 1
      %s22 = ssub.s32 %s16, 2
      %s32 = sadd.s32 1, %s25
      %p33 = scmp.ge.s32.totalorder %s32, 2
      %s34 = scalar_select %p33, 0, %s32
      %s35 = sadd.s32 1, %s24
      %s36 = scalar_select %p33, %s35, %s24
      %p37 = scmp.ge.s32.totalorder %s36, 2
      %s38 = scalar_select %p37, 0, %s36
      %s39 = sadd.s32 1, %s23
      %s40 = scalar_select %p37, %s39, %s23
      %p41 = scmp.ge.s32.totalorder %s40, 2
      %s42 = scalar_select %p41, 0, %s40
      %s43 = ssub.s32 %s23, %s42
      %s44 = ssub.s32 %s24, %s38
      %s45 = sor.u32 %s43, %s44
      %p46 = scmp.eq.s32.totalorder %s45, 0
      %s48 = sadd.s32 %s47, 1
      %s49 = scalar_select %p46, %s47, %s48
      %p52 = pneg %p46
      %p53 = scmp.eq.s32.totalorder %s16, 7
      %p54 = por %p52, %p53
      %p55 = scmp.ne.s32.totalorder %s47, %s50
      %p56 = scmp.eq.s32.totalorder %s16, 0
      %p57 = por %p55, %p56
      %p58 = scmp.ne.s32.totalorder %s47, %s50
      %p59 = scmp.eq.s32.totalorder %s21, 7
      %p60 = por %p58, %p59
      %p61 = scmp.ne.s32.totalorder %s50, %s51
      %p62 = scmp.eq.s32.totalorder %s21, 0
      %p63 = por %p61, %p62
      %p64 = scmp.ne.s32.totalorder %s50, %s51
      %p65 = scmp.eq.s32.totalorder %s22, 7
      %p66 = por %p64, %p65
      %p68 = scmp.ne.s32.totalorder %s51, %s67
      %p69 = scmp.eq.s32.totalorder %s22, 0
      %p70 = por %p68, %p69
      %s72 = sadd.s32 %s71, 1
      %p75 = scmp.eq.s32.totalorder %s16, 7
      %p76 = scmp.ne.s32.totalorder %s71, %s73
      %p77 = scmp.eq.s32.totalorder %s16, 0
      %p78 = por %p76, %p77
      %p79 = scmp.ne.s32.totalorder %s71, %s73
      %p80 = scmp.eq.s32.totalorder %s21, 7
      %p81 = por %p79, %p80
      %p82 = scmp.ne.s32.totalorder %s73, %s74
      %p83 = scmp.eq.s32.totalorder %s21, 0
      %p84 = por %p82, %p83
      %p85 = scmp.ne.s32.totalorder %s73, %s74
      %p86 = scmp.eq.s32.totalorder %s22, 7
      %p87 = por %p85, %p86
      %p89 = scmp.ne.s32.totalorder %s74, %s88
      %p90 = scmp.eq.s32.totalorder %s22, 0
      %p91 = por %p89, %p90
      %s93 = sadd.s32 %s92, 1
      %p96 = scmp.eq.s32.totalorder %s16, 7
      %p97 = scmp.ne.s32.totalorder %s92, %s94
      %p98 = scmp.eq.s32.totalorder %s16, 0
      %p99 = por %p97, %p98
      %p100 = scmp.ne.s32.totalorder %s92, %s94
      %p101 = scmp.eq.s32.totalorder %s21, 7
      %p102 = por %p100, %p101
      %p103 = scmp.ne.s32.totalorder %s94, %s95
      %p104 = scmp.eq.s32.totalorder %s21, 0
      %p105 = por %p103, %p104
      %p106 = scmp.ne.s32.totalorder %s94, %s95
      %p107 = scmp.eq.s32.totalorder %s22, 7
      %p108 = por %p106, %p107
      %p110 = scmp.ne.s32.totalorder %s95, %s109
      %p111 = scmp.eq.s32.totalorder %s22, 0
      %p112 = por %p110, %p111
      %s113 = ssub.s32 %s23, %s42
      %s114 = ssub.s32 %s24, %s38
      %s115 = sor.u32 %s113, %s114
      %s116 = ssub.s32 %s25, %s34
      %s117 = sor.u32 %s115, %s116
      %p118 = scmp.eq.s32.totalorder %s117, 0
      %s120 = sadd.s32 %s119, 1
      %s121 = scalar_select %p118, %s119, %s120
      %p124 = pneg %p118
      %p125 = scmp.eq.s32.totalorder %s16, 7
      %p126 = por %p124, %p125
      %p127 = scmp.ne.s32.totalorder %s119, %s122
      %p128 = scmp.eq.s32.totalorder %s16, 0
      %p129 = por %p127, %p128
      %p130 = scmp.ne.s32.totalorder %s119, %s122
      %p131 = scmp.eq.s32.totalorder %s21, 7
      %p132 = por %p130, %p131
      %p133 = scmp.ne.s32.totalorder %s122, %s123
      %p134 = scmp.eq.s32.totalorder %s21, 0
      %p135 = por %p133, %p134
      %p136 = scmp.ne.s32.totalorder %s122, %s123
      %p137 = scmp.eq.s32.totalorder %s22, 7
      %p138 = por %p136, %p137
      %p140 = scmp.ne.s32.totalorder %s123, %s139
      %p141 = scmp.eq.s32.totalorder %s22, 0
      %p142 = por %p140, %p141
      %p143 = scmp.le.s32.totalorder 1, %s16
      %p144 = scmp.lt.s32.totalorder %s16, 9
      %p145 = pnand %p143, %p144
      %p146 = pneg %p145
      // Predicated region
      $region9: #{deconv_forward.3} parent=5 // pred_check
        _
      $region10: #{deconv_forward.3} parent=5 // pred_check_branch
        %148 = sbr.rel (%p145) target = $region12
      $region11: #{deconv_forward.3} parent=5 // pred_region
        %s149 = ssub.s32 %s16, 1
        // Predicated region
        $region13: #{deconv_forward.3} parent=11 // pred_check
          %p150 = pneg %p84
        $region14: #{deconv_forward.3} parent=11 // pred_check_branch
          %152 = sbr.rel (%p150) target = $region16
        $region15: #{deconv_forward.3} parent=11 // pred_region
          %s154 = ssub.s32 1024, 1024
          %155 = vsyncadd [#allocation6], %s154
          %s156 = sshll.u32 [#allocation5], 4
          %s157 = int_to_ptr.vmem [resolvable:$true] %s156
          %162 = dma.hbm_to_vmem [thread:$0]  %s1, 1024, %s157, [#allocation6], 64, 64, 4
        $region16: #{deconv_forward.3} parent=11 // pred_fallthru
          _
        // Predicated region
        $region17: #{deconv_forward.3} parent=11 // pred_check
          %p163 = pneg %p105
        $region18: #{deconv_forward.3} parent=11 // pred_check_branch
          %165 = sbr.rel (%p163) target = $region20
        $region19: #{deconv_forward.3} parent=11 // pred_region
          %s167 = ssub.s32 16, 16
          %168 = vsyncadd [#allocation6], %s167
          %s170 = sshll.u32 [#allocation7], 4
          %s171 = int_to_ptr.vmem [resolvable:$true] %s170
          %173 = dma.hbm_to_vmem [thread:$0]  %s2, 16, %s171, [#allocation6]
        $region20: #{deconv_forward.3} parent=11 // pred_fallthru
          _
      $region12: #{deconv_forward.3} parent=5 // pred_fallthru
        _
      %p174 = scmp.lt.s32.totalorder %s16, 8
      // Predicated region
      $region21: #{deconv_forward.3} parent=5 // pred_check
        %p175 = pneg %p174
      $region22: #{deconv_forward.3} parent=5 // pred_check_branch
        %177 = sbr.rel (%p175) target = $region24
      $region23: #{deconv_forward.3} parent=5 // pred_region
        // Predicated region
        $region25: #{deconv_forward.3} parent=23 // pred_check
          %p178 = pneg %p57
        $region26: #{deconv_forward.3} parent=23 // pred_check_branch
          %180 = sbr.rel (%p178) target = $region28
        $region27: #{deconv_forward.3} parent=23 // pred_region
          %s181 = sand.u32 %s47, 1
          %s182 = scalar_lea.sflag [#allocation3], %s181
          %s183 = sand.u32 %s47, 1
          %s184 = smul.addr %s183, 64
          %s185 = scalar_lea.vmem [#allocation2], %s184
          %s186 = smul.u32 8, %s24
          %s188 = ssub.s32 1024, 1024
          %189 = vsyncadd %s182, %s188
          %s190 = smul.addr %s186, 2
          %s191 = smul.addr %s23, 32
          %s192 = sadd.s32 %s190, %s191
          %s193 = smul.addr %s192, 64
          %s194 = scalar_lea.hbm %s0, %s193
          %s195 = sshll.u32 %s185, 4
          %s196 = int_to_ptr.vmem [resolvable:$true] %s195
          %201 = dma.hbm_to_vmem [thread:$0]  %s194, 1024, %s196, %s182, 64, 64, 4
        $region28: #{deconv_forward.3} parent=23 // pred_fallthru
          _
      $region24: #{deconv_forward.3} parent=5 // pred_fallthru
        _
      %p202 = scmp.le.s32.totalorder 1, %s16
      %p203 = scmp.lt.s32.totalorder %s16, 9
      %p204 = pnand %p202, %p203
      %p205 = pneg %p204
      // Predicated region
      $region29: #{deconv_forward.3} parent=5 // pred_check
        _
      $region30: #{deconv_forward.3} parent=5 // pred_check_branch
        %207 = sbr.rel (%p204) target = $region32
      $region31: #{deconv_forward.3} parent=5 // pred_region
        %s208 = ssub.s32 %s16, 1
        %s209 = sand.u32 %s50, 1
        %s210 = scalar_lea.sflag [#allocation3], %s209
        %s211 = sand.u32 %s50, 1
        %s212 = smul.addr %s211, 64
        %s213 = scalar_lea.vmem [#allocation2], %s212
        // Predicated region
        $region33: #{deconv_forward.3} parent=31 // pred_check
          %p214 = pneg %p63
        $region34: #{deconv_forward.3} parent=31 // pred_check_branch
          %216 = sbr.rel (%p214) target = $region36
        $region35: #{deconv_forward.3} parent=31 // pred_region
          %217 = dma.done %s210, 1024
        $region36: #{deconv_forward.3} parent=31 // pred_fallthru
          _
        // Predicated region
        $region37: #{deconv_forward.3} parent=31 // pred_check
          %p218 = pneg %p84
        $region38: #{deconv_forward.3} parent=31 // pred_check_branch
          %220 = sbr.rel (%p218) target = $region40
        $region39: #{deconv_forward.3} parent=31 // pred_region
          %221 = dma.done [#allocation6], 1024
        $region40: #{deconv_forward.3} parent=31 // pred_fallthru
          _
        // Predicated region
        $region41: #{deconv_forward.3} parent=31 // pred_check
          %p222 = pneg %p105
        $region42: #{deconv_forward.3} parent=31 // pred_check_branch
          %224 = sbr.rel (%p222) target = $region44
        $region43: #{deconv_forward.3} parent=31 // pred_region
          %225 = dma.done [#allocation6], 16
        $region44: #{deconv_forward.3} parent=31 // pred_fallthru
          _
        %s226 = sand.u32 %s50, 1
        %s227 = scalar_lea.sflag [#allocation3], %s226
        %s228 = sand.u32 %s50, 1
        %s229 = smul.addr %s228, 64
        %s230 = scalar_lea.vmem [#allocation2], %s229
        %p231 = pneg %p63
        %p232 = pneg %p60
        %p233 = pneg %p84
        %p234 = pneg %p81
        %p235 = pneg %p105
        %p236 = pneg %p102
        %p237 = pneg %p135
        %p238 = pneg %p132
        %s239 = sand.u32 %s122, 1
        %s240 = scalar_lea.sflag [#allocation4], %s239
        %s241 = sand.u32 %s122, 1
        %s242 = smul.addr %s241, 64
        %s243 = scalar_lea.vmem [#allocation8], %s242
        %s244 = smul.u32 8, %s27
        %s245 = smul.u32 8, %s27
        %v247 = vld [vmem:[%s213] sm:$0xf]
        %v248 = vld [vmem:[%s213 + $0x4] sm:$0xf]
        %v249 = vld [vmem:[%s213 + $0x8] sm:$0xf]
        %v250 = vld [vmem:[%s213 + $0xc] sm:$0xf]
        %v251 = vld [vmem:[%s213 + $0x10] sm:$0xf]
        %v252 = vld [vmem:[%s213 + $0x14] sm:$0xf]
        %v253 = vld [vmem:[%s213 + $0x18] sm:$0xf]
        %v254 = vld [vmem:[%s213 + $0x1c] sm:$0xf]
        %v255 = vld [vmem:[%s213 + $0x20] sm:$0xf]
        %v256 = vld [vmem:[%s213 + $0x24] sm:$0xf]
        %v257 = vld [vmem:[%s213 + $0x28] sm:$0xf]
        %v258 = vld [vmem:[%s213 + $0x2c] sm:$0xf]
        %v259 = vld [vmem:[%s213 + $0x30] sm:$0xf]
        %v260 = vld [vmem:[%s213 + $0x34] sm:$0xf]
        %v261 = vld [vmem:[%s213 + $0x38] sm:$0xf]
        %v262 = vld [vmem:[%s213 + $0x3c] sm:$0xf]
        %s263 = smul.u32 %s28, 8
        %s264 = smul.addr %s263, 4
        %s265 = scalar_lea.vmem [#allocation5], %s264
        %v266 = vld [vmem:[%s265] sm:$0xf]
        %v267 = vld [vmem:[%s265 + $0x4] sm:$0xf]
        %v268 = vld [vmem:[%s265 + $0x8] sm:$0xf]
        %v269 = vld [vmem:[%s265 + $0xc] sm:$0xf]
        %v270 = vld [vmem:[%s265 + $0x10] sm:$0xf]
        %v271 = vld [vmem:[%s265 + $0x14] sm:$0xf]
        %v272 = vld [vmem:[%s265 + $0x18] sm:$0xf]
        %v273 = vld [vmem:[%s265 + $0x1c] sm:$0xf]
        %v274 = vld [vmem:[#allocation7] sm:$0x1]
        %v276 = vlaneseq
        %v277 = vshrl.u32 %v276, 7
        %v278 = vsub.s32 0, %v277
        %v279 = vrot.slane %v274, %v278
        %v297 = vunpack.c.l.b16 %v247
        %v298 = vunpack.c.l.b16 %v248
        %v299 = vunpack.c.l.b16 %v249
        %v300 = vunpack.c.l.b16 %v250
        %v301 = vunpack.c.l.b16 %v251
        %v302 = vunpack.c.l.b16 %v252
        %v303 = vunpack.c.l.b16 %v253
        %v304 = vunpack.c.l.b16 %v254
        %v305 = vunpack.c.l.b16 %v255
        %v306 = vunpack.c.l.b16 %v256
        %v307 = vunpack.c.l.b16 %v257
        %v308 = vunpack.c.l.b16 %v258
        %v309 = vunpack.c.l.b16 %v259
        %v310 = vunpack.c.l.b16 %v260
        %v311 = vunpack.c.l.b16 %v261
        %v312 = vunpack.c.l.b16 %v262
        %v313 = vpack.c.b16 %v298, %v297
        %v314 = vpack.c.b16 %v300, %v299
        %v315 = vpack.c.b16 %v302, %v301
        %v316 = vpack.c.b16 %v304, %v303
        %v317 = vpack.c.b16 %v306, %v305
        %v318 = vpack.c.b16 %v308, %v307
        %v319 = vpack.c.b16 %v310, %v309
        %v320 = vpack.c.b16 %v312, %v311
        %v329 = vunpack.c.l.b16 %v266
        %v330 = vunpack.c.l.b16 %v267
        %v331 = vunpack.c.l.b16 %v268
        %v332 = vunpack.c.l.b16 %v269
        %v333 = vunpack.c.l.b16 %v270
        %v334 = vunpack.c.l.b16 %v271
        %v335 = vunpack.c.l.b16 %v272
        %v336 = vunpack.c.l.b16 %v273
        %v337 = vpack.c.b16 %v330, %v329
        %v338 = vpack.c.b16 %v332, %v331
        %v339 = vpack.c.b16 %v334, %v333
        %v340 = vpack.c.b16 %v336, %v335
        %vm345 = vcmask 523264
        %v347 = vsel %vm345, %v313, 0
        %v350 = vsel %vm345, %v314, 0
        %v353 = vsel %vm345, %v315, 0
        %v356 = vsel %vm345, %v316, 0
        %v359 = vsel %vm345, %v317, 0
        %v362 = vsel %vm345, %v318, 0
        %v365 = vsel %vm345, %v319, 0
        %v368 = vsel %vm345, %v320, 0
        %370 = vmatprep.subr.bf16.mxu0 0
        %371 = vmatpush1.bf16.msra.mxu0 %v337
        %372 = vmatprep.subr.bf16.mxu0 0
        %373 = vmatpush1.bf16.msra.mxu0 %v338
        %374 = vmatprep.subr.bf16.mxu0 0
        %375 = vmatpush1.bf16.msra.mxu0 %v339
        %376 = vmatprep.subr.bf16.mxu0 0
        %377 = vmatpush1.bf16.msra.mxu0 %v340
        %378 = vmatprep.subr.bf16.mxu0 0
        %379 = vmatpush1.bf16.msra.mxu0 0
        %380 = vmatprep.subr.bf16.mxu0 0
        %381 = vmatpush1.bf16.msra.mxu0 0
        %382 = vmatprep.subr.bf16.mxu0 0
        %383 = vmatpush1.bf16.msra.mxu0 0
        %384 = vmatprep.subr.bf16.mxu0 0
        %385 = vmatpush1.bf16.msra.mxu0 0
        %386 = vmatprep.subr.bf16.mxu0 0
        %387 = vmatpush1.bf16.msra.mxu0 0
        %388 = vmatprep.subr.bf16.mxu0 0
        %389 = vmatpush1.bf16.msra.mxu0 0
        %390 = vmatprep.subr.bf16.mxu0 0
        %391 = vmatpush1.bf16.msra.mxu0 0
        %392 = vmatprep.subr.bf16.mxu0 0
        %393 = vmatpush1.bf16.msra.mxu0 0
        %394 = vmatprep.subr.bf16.mxu0 0
        %395 = vmatpush1.bf16.msra.mxu0 0
        %396 = vmatprep.subr.bf16.mxu0 0
        %397 = vmatpush1.bf16.msra.mxu0 0
        %398 = vmatprep.subr.bf16.mxu0 0
        %399 = vmatpush1.bf16.msra.mxu0 0
        %400 = vmatprep.subr.bf16.mxu0 0
        %401 = vmatpush1.bf16.msra.mxu0 0
        %402 = vmatprep.mubr.bf16.mxu0 0
        %403 = vmatmul.mubr.bf16.gmra.mrb[0].mxu0 %v347
        %v404 = vpop.f32.mrb[0].mxu0
        %v405 = vadd.f32 %v279, %v404
        %v406 = vpop.f32.mrb[0].mxu0
        %v407 = vpop.f32.mrb[0].mxu0
        %v408 = vadd.f32 %v279, %v407
        %v409 = vpop.f32.mrb[0].mxu0
        %410 = vmatprep.mubr.bf16.mxu0 0
        %411 = vmatmul.mubr.bf16.gmra.mrb[0].mxu0 %v350
        %v412 = vpop.f32.mrb[0].mxu0
        %v413 = vadd.f32 %v279, %v412
        %v414 = vpop.f32.mrb[0].mxu0
        %v415 = vpop.f32.mrb[0].mxu0
        %v416 = vadd.f32 %v279, %v415
        %v417 = vpop.f32.mrb[0].mxu0
        %418 = vmatprep.mubr.bf16.mxu0 0
        %419 = vmatmul.mubr.bf16.gmra.mrb[0].mxu0 %v353
        %v420 = vpop.f32.mrb[0].mxu0
        %v421 = vadd.f32 %v279, %v420
        %v422 = vpop.f32.mrb[0].mxu0
        %v423 = vpop.f32.mrb[0].mxu0
        %v424 = vadd.f32 %v279, %v423
        %v425 = vpop.f32.mrb[0].mxu0
        %426 = vmatprep.mubr.bf16.mxu0 0
        %427 = vmatmul.mubr.bf16.gmra.mrb[0].mxu0 %v356
        %v428 = vpop.f32.mrb[0].mxu0
        %v429 = vadd.f32 %v279, %v428
        %v430 = vpop.f32.mrb[0].mxu0
        %v431 = vpop.f32.mrb[0].mxu0
        %v432 = vadd.f32 %v279, %v431
        %v433 = vpop.f32.mrb[0].mxu0
        %434 = vmatprep.mubr.bf16.mxu0 0
        %435 = vmatmul.mubr.bf16.gmra.mrb[0].mxu0 %v359
        %v436 = vpop.f32.mrb[0].mxu0
        %v437 = vadd.f32 %v279, %v436
        %v438 = vpop.f32.mrb[0].mxu0
        %v439 = vpop.f32.mrb[0].mxu0
        %v440 = vadd.f32 %v279, %v439
        %v441 = vpop.f32.mrb[0].mxu0
        %442 = vmatprep.mubr.bf16.mxu0 0
        %443 = vmatmul.mubr.bf16.gmra.mrb[0].mxu0 %v362
        %v444 = vpop.f32.mrb[0].mxu0
        %v445 = vadd.f32 %v279, %v444
        %v446 = vpop.f32.mrb[0].mxu0
        %v447 = vpop.f32.mrb[0].mxu0
        %v448 = vadd.f32 %v279, %v447
        %v449 = vpop.f32.mrb[0].mxu0
        %450 = vmatprep.mubr.bf16.mxu0 0
        %451 = vmatmul.mubr.bf16.gmra.mrb[0].mxu0 %v365
        %v452 = vpop.f32.mrb[0].mxu0
        %v453 = vadd.f32 %v279, %v452
        %v454 = vpop.f32.mrb[0].mxu0
        %v455 = vpop.f32.mrb[0].mxu0
        %v456 = vadd.f32 %v279, %v455
        %v457 = vpop.f32.mrb[0].mxu0
        %458 = vmatprep.mubr.bf16.mxu0 0
        %459 = vmatmul.mubr.bf16.gmra.mrb[0].mxu0 %v368
        %v460 = vpop.f32.mrb[0].mxu0
        %v461 = vadd.f32 %v279, %v460
        %v462 = vpop.f32.mrb[0].mxu0
        %v463 = vpop.f32.mrb[0].mxu0
        %v464 = vadd.f32 %v279, %v463
        %v465 = vpop.f32.mrb[0].mxu0
        %466 = vdwg.mxu0
        %v467 = vpack.c.bf16 %v408, %v405
        %v468 = vpack.c.bf16 %v416, %v413
        %v469 = vpack.c.bf16 %v424, %v421
        %v470 = vpack.c.bf16 %v432, %v429
        %v471 = vpack.c.bf16 %v440, %v437
        %v472 = vpack.c.bf16 %v448, %v445
        %v473 = vpack.c.bf16 %v456, %v453
        %v474 = vpack.c.bf16 %v464, %v461
        %v483 = vunpack.c.l.b16 %v467
        %v484 = vunpack.c.h.b16 %v467
        %v485 = vunpack.c.l.b16 %v468
        %v486 = vunpack.c.h.b16 %v468
        %v487 = vunpack.c.l.b16 %v469
        %v488 = vunpack.c.h.b16 %v469
        %v489 = vunpack.c.l.b16 %v470
        %v490 = vunpack.c.h.b16 %v470
        %v491 = vunpack.c.l.b16 %v471
        %v492 = vunpack.c.h.b16 %v471
        %v493 = vunpack.c.l.b16 %v472
        %v494 = vunpack.c.h.b16 %v472
        %v495 = vunpack.c.l.b16 %v473
        %v496 = vunpack.c.h.b16 %v473
        %v497 = vunpack.c.l.b16 %v474
        %v498 = vunpack.c.h.b16 %v474
        %v499 = vpack.c.b16 %v483, %v483
        %v500 = vpack.c.b16 %v484, %v484
        %v501 = vpack.c.b16 %v485, %v485
        %v502 = vpack.c.b16 %v486, %v486
        %v503 = vpack.c.b16 %v487, %v487
        %v504 = vpack.c.b16 %v488, %v488
        %v505 = vpack.c.b16 %v489, %v489
        %v506 = vpack.c.b16 %v490, %v490
        %v507 = vpack.c.b16 %v491, %v491
        %v508 = vpack.c.b16 %v492, %v492
        %v509 = vpack.c.b16 %v493, %v493
        %v510 = vpack.c.b16 %v494, %v494
        %v511 = vpack.c.b16 %v495, %v495
        %v512 = vpack.c.b16 %v496, %v496
        %v513 = vpack.c.b16 %v497, %v497
        %v514 = vpack.c.b16 %v498, %v498
        %531 = vst [vmem:[%s243] sm:$0xf] %v499
        %532 = vst [vmem:[%s243 + $0x4] sm:$0xf] %v500
        %533 = vst [vmem:[%s243 + $0x8] sm:$0xf] %v501
        %534 = vst [vmem:[%s243 + $0xc] sm:$0xf] %v502
        %535 = vst [vmem:[%s243 + $0x10] sm:$0xf] %v503
        %536 = vst [vmem:[%s243 + $0x14] sm:$0xf] %v504
        %537 = vst [vmem:[%s243 + $0x18] sm:$0xf] %v505
        %538 = vst [vmem:[%s243 + $0x1c] sm:$0xf] %v506
        %539 = vst [vmem:[%s243 + $0x20] sm:$0xf] %v507
        %540 = vst [vmem:[%s243 + $0x24] sm:$0xf] %v508
        %541 = vst [vmem:[%s243 + $0x28] sm:$0xf] %v509
        %542 = vst [vmem:[%s243 + $0x2c] sm:$0xf] %v510
        %543 = vst [vmem:[%s243 + $0x30] sm:$0xf] %v511
        %544 = vst [vmem:[%s243 + $0x34] sm:$0xf] %v512
        %545 = vst [vmem:[%s243 + $0x38] sm:$0xf] %v513
        %546 = vst [vmem:[%s243 + $0x3c] sm:$0xf] %v514
        %s547 = sand.u32 %s122, 1
        %s548 = scalar_lea.sflag [#allocation4], %s547
        %s549 = sand.u32 %s122, 1
        %s550 = smul.addr %s549, 64
        %s551 = scalar_lea.vmem [#allocation8], %s550
        // Predicated region
        $region45: #{deconv_forward.3} parent=31 // pred_check
          %p552 = pneg %p132
        $region46: #{deconv_forward.3} parent=31 // pred_check_branch
          %554 = sbr.rel (%p552) target = $region48
        $region47: #{deconv_forward.3} parent=31 // pred_region
          #allocation10 [shape = 'u32[6]{0}', space=smem, size = 0x18, scoped, tag = 'DMA stride descriptor']
          %s555 = smul.u32 8, %s27
          %s557 = ssub.s32 1024, 1024
          %558 = vsyncadd %s548, %s557
          %s559 = smul.addr %s28, 2
          %s560 = smul.addr %s555, 4
          %s561 = sadd.s32 %s559, %s560
          %s562 = smul.addr %s26, 64
          %s563 = sadd.s32 %s561, %s562
          %s564 = smul.addr %s563, 64
          %s565 = scalar_lea.hbm %s3, %s564
          %s567 = sshll.u32 1, 14
          %s568 = sxor.u32 4294967295, %s567
          %s571 = sshll.u32 7, 18
          %s572 = sxor.u32 4294967295, %s571
          %s573 = sand.u32 0, %s572
          %s575 = sor.u32 %s573, 0
          %s577 = sshll.u32 3, 24
          %s578 = sxor.u32 4294967295, %s577
          %s579 = sand.u32 %s575, %s578
          %s581 = sor.u32 %s579, 0
          %s582 = sshll.u32 %s551, 4
          %s583 = int_to_ptr.vmem [resolvable:$true] %s582
          %589 = sst [smem:[#allocation10]] 128
          %s590 = scalar_lea.smem [#allocation10], 1
          %591 = sst [smem:[%s590]] 256
          %s592 = scalar_lea.smem [#allocation10], 2
          %593 = sst [smem:[%s592]] 2
          %s594 = scalar_lea.smem [#allocation10], 3
          %595 = sst [smem:[%s594]] 64
          %s596 = scalar_lea.smem [#allocation10], 4
          %597 = sst [smem:[%s596]] 64
          %s598 = scalar_lea.smem [#allocation10], 5
          %599 = sst [smem:[%s598]] 4
          %601 = dma.general %s583, 1024, %s565, %s548, [#allocation9], [#allocation10], %s581, 0
        $region48: #{deconv_forward.3} parent=31 // pred_fallthru
          _
      $region32: #{deconv_forward.3} parent=5 // pred_fallthru
        _
      %p602 = scmp.le.s32.totalorder 2, %s16
      // Predicated region
      $region49: #{deconv_forward.3} parent=5 // pred_check
        %p603 = pneg %p602
      $region50: #{deconv_forward.3} parent=5 // pred_check_branch
        %605 = sbr.rel (%p603) target = $region52
      $region51: #{deconv_forward.3} parent=5 // pred_region
        %s606 = ssub.s32 %s16, 2
        // Predicated region
        $region53: #{deconv_forward.3} parent=51 // pred_check
          %p607 = pneg %p138
        $region54: #{deconv_forward.3} parent=51 // pred_check_branch
          %609 = sbr.rel (%p607) target = $region56
        $region55: #{deconv_forward.3} parent=51 // pred_region
          %s610 = sand.u32 %s123, 1
          %s611 = scalar_lea.sflag [#allocation4], %s610
          %s612 = sand.u32 %s123, 1
          %s613 = smul.addr %s612, 64
          %s614 = scalar_lea.vmem [#allocation8], %s613
          %615 = dma.done %s611, 1024
        $region56: #{deconv_forward.3} parent=51 // pred_fallthru
          _
      $region52: #{deconv_forward.3} parent=5 // pred_fallthru
        _
    $region6: #{deconv_forward.3} parent=1 // loop_footer
      %s20 = sadd.s32 1, %s16
    $region7: #{deconv_forward.3} parent=1 // loop_footer_branch
      %15 = sbr.rel target = $region3
    $region8: #{deconv_forward.3} parent=1 // loop_exit
      _
    %616 = vsyncpa [#allocation3], 1
    %s617 = scalar_lea.sflag [#allocation3], 1
    %618 = vsyncpa %s617, 1
    %619 = vsyncpa [#allocation6], 1
    %620 = vsyncpa [#allocation4], 1
    %s621 = scalar_lea.sflag [#allocation4], 1
    %622 = vsyncpa %s621, 1

// kernel: deconv_forward.4
$region0: #{deconv_forward.4}
  #allocation0 [shape = 'u32[]', space=smem, size = 0x4, offset = 0x4, fixed_abs, tag = 'smem constant byte address 0x4 - core index']
  #allocation1 [shape = 'u32[144,128]{1,0:T(1,128)}', space=vmem, size = 0x12000, scoped, tag = 'internal scratch']
  #allocation2 [shape = 'f32[256,192]{1,0:T(8,128)}', space=vmem, size = 0x40000, scoped, tag = 'scratch operand']
  %s0 = inlined_call_operand.hbm [shape: bf16[2,34,32,64], index: 0, kind: input, shape index: {}]
  %s1 = inlined_call_operand.hbm [shape: bf16[2,34,32,64], index: 1, kind: input, shape index: {}]
  %s2 = inlined_call_operand.hbm [shape: bf16[3,64,192], index: 2, kind: input, shape index: {}]
  %s3 = inlined_call_operand.hbm [shape: bf16[3,64,192], index: 3, kind: input, shape index: {}]
  %s4 = inlined_call_operand.hbm [shape: bf16[2,256,256], index: 4, kind: input, shape index: {}]
  %s5 = inlined_call_operand.hbm [shape: f32[1,64], index: 5, kind: input, shape index: {}]
  %s6 = inlined_call_operand.hbm [shape: f32[1,64], index: 6, kind: input, shape index: {}]
  %s7 = inlined_call_operand.hbm [shape: f32[1,64], index: 7, kind: input, shape index: {}]
  %s8 = inlined_call_operand.hbm [shape: bf16[2,32,32,64], index: 8, kind: output, shape index: {}]
  %s9 = sld [smem:[#allocation0]]
  $region97: #{deconv_forward.4} parent=0
    _
  %s11 = ssub.s32 1, %s9
  %s12 = scalar_select 0, %s11, %s9
  $region1: #{deconv_forward.4} parent=0
    #allocation3 [shape = 'u8[557056]{0}', space=vmem, size = 0x88000, scoped, tag = 'input window, operand 0']
    #allocation4 [shape = 's32[2]{0}', space=sflag, size = 0x8, scoped, tag = 'scoped memory for deconv_forward.4']
    #allocation5 [shape = 's32[2]{0}', space=sflag, size = 0x8, scoped, tag = 'scoped memory for deconv_forward.4']
    #allocation6 [shape = 'u8[557056]{0}', space=vmem, size = 0x88000, scoped, tag = 'input window, operand 1']
    #allocation7 [shape = 's32[2]{0}', space=sflag, size = 0x8, scoped, tag = 'scoped memory for deconv_forward.4']
    #allocation8 [shape = 'u8[98304]{0}', space=vmem, size = 0x18000, scoped, tag = 'input window, operand 2, single buffered']
    #allocation9 [shape = 'u8[98304]{0}', space=vmem, size = 0x18000, scoped, tag = 'input window, operand 3, single buffered']
    #allocation10 [shape = 's32[1]{0}', space=sflag, size = 0x4, scoped, tag = 'scoped memory for deconv_forward.4']
    #allocation11 [shape = 'u8[262144]{0}', space=vmem, size = 0x40000, scoped, tag = 'input window, operand 4, single buffered']
    #allocation12 [shape = 'u8[512]{0}', space=vmem, size = 0x400, scoped, tag = 'input window, operand 5, single buffered']
    #allocation13 [shape = 's32[1]{0}', space=sflag, size = 0x4, scoped, tag = 'scoped memory for deconv_forward.4']
    #allocation14 [shape = 'u8[512]{0}', space=vmem, size = 0x400, scoped, tag = 'input window, operand 6, single buffered']
    #allocation15 [shape = 'u8[512]{0}', space=vmem, size = 0x400, scoped, tag = 'input window, operand 7, single buffered']
    #allocation16 [shape = 's32[1]{0}', space=sflag, size = 0x4, scoped, tag = 'scoped memory for deconv_forward.4']
    #allocation17 [shape = 'u8[131072]{0}', space=vmem, size = 0x20000, scoped, tag = 'output window, operand 0']
    %13 = vsyncpa [#allocation4], 0
    %s14 = scalar_lea.sflag [#allocation4], 1
    %15 = vsyncpa %s14, 0
    %16 = vsyncpa [#allocation7], 0
    %s17 = scalar_lea.sflag [#allocation7], 1
    %18 = vsyncpa %s17, 0
    %19 = vsyncpa [#allocation10], 0
    %20 = vsyncpa [#allocation13], 0
    %21 = vsyncpa [#allocation16], 0
    %22 = vsyncpa [#allocation5], 0
    %s23 = scalar_lea.sflag [#allocation5], 1
    %24 = vsyncpa %s23, 0
    loop: start=0, step=1, limit=10
    $region2: #{deconv_forward.4} parent=1 // loop_pre_header
      _
    $region3: #{deconv_forward.4} parent=1 // loop_header
      %s26 = sphi 0, %s30
      %p27 = scmp.ge.s32.totalorder %s26, 10
      %s33 = sphi 0, %s45
      %s34 = sphi 0, %s41
      %s35 = sphi 0, %s33
      %s36 = sphi 0, %s34
      %s37 = sphi 0, %s35
      %s38 = sphi 0, %s36
      %s48 = sphi 0, %s50
      %s51 = sphi 0, %s48
      %s52 = sphi 0, %s51
      %s68 = sphi 0, %s52
      %s74 = sphi 0, %s76
      %s77 = sphi 0, %s74
      %s78 = sphi 0, %s77
      %s94 = sphi 0, %s78
      %s98 = sphi 0, %s98
      %s100 = sphi 0, %s98
      %s101 = sphi 0, %s100
      %s115 = sphi 0, %s101
      %s119 = sphi 0, %s119
      %s121 = sphi 0, %s119
      %s122 = sphi 0, %s121
      %s136 = sphi 0, %s122
      %s140 = sphi 0, %s140
      %s142 = sphi 0, %s140
      %s143 = sphi 0, %s142
      %s157 = sphi 0, %s143
      %s161 = sphi 0, %s161
      %s163 = sphi 0, %s161
      %s164 = sphi 0, %s163
      %s178 = sphi 0, %s164
      %s182 = sphi 0, %s182
      %s184 = sphi 0, %s182
      %s185 = sphi 0, %s184
      %s199 = sphi 0, %s185
      %s203 = sphi 0, %s203
      %s205 = sphi 0, %s203
      %s206 = sphi 0, %s205
      %s220 = sphi 0, %s206
      %s228 = sphi 0, %s230
      %s231 = sphi 0, %s228
      %s232 = sphi 0, %s231
      %s248 = sphi 0, %s232
    $region4: #{deconv_forward.4} parent=1 // loop_header_branch
      %29 = sbr.rel (%p27) target = $region8
    $region5: #{deconv_forward.4} parent=1 // loop_body
      %s31 = ssub.s32 %s26, 1
      %s32 = ssub.s32 %s26, 2
      %s39 = sadd.s32 1, %s34
      %p40 = scmp.ge.s32.totalorder %s39, 4
      %s41 = scalar_select %p40, 0, %s39
      %s42 = sadd.s32 1, %s33
      %s43 = scalar_select %p40, %s42, %s33
      %p44 = scmp.ge.s32.totalorder %s43, 2
      %s45 = scalar_select %p44, 0, %s43
      %s46 = ssub.s32 %s33, %s45
      %p47 = scmp.eq.s32.totalorder %s46, 0
      %s49 = sadd.s32 %s48, 1
      %s50 = scalar_select %p47, %s48, %s49
      %p53 = pneg %p47
      %p54 = scmp.eq.s32.totalorder %s26, 7
      %p55 = por %p53, %p54
      %p56 = scmp.ne.s32.totalorder %s48, %s51
      %p57 = scmp.eq.s32.totalorder %s26, 0
      %p58 = por %p56, %p57
      %p59 = scmp.ne.s32.totalorder %s48, %s51
      %p60 = scmp.eq.s32.totalorder %s31, 7
      %p61 = por %p59, %p60
      %p62 = scmp.ne.s32.totalorder %s51, %s52
      %p63 = scmp.eq.s32.totalorder %s31, 0
      %p64 = por %p62, %p63
      %p65 = scmp.ne.s32.totalorder %s51, %s52
      %p66 = scmp.eq.s32.totalorder %s32, 7
      %p67 = por %p65, %p66
      %p69 = scmp.ne.s32.totalorder %s52, %s68
      %p70 = scmp.eq.s32.totalorder %s32, 0
      %p71 = por %p69, %p70
      %s72 = ssub.s32 %s33, %s45
      %p73 = scmp.eq.s32.totalorder %s72, 0
      %s75 = sadd.s32 %s74, 1
      %s76 = scalar_select %p73, %s74, %s75
      %p79 = pneg %p73
      %p80 = scmp.eq.s32.totalorder %s26, 7
      %p81 = por %p79, %p80
      %p82 = scmp.ne.s32.totalorder %s74, %s77
      %p83 = scmp.eq.s32.totalorder %s26, 0
      %p84 = por %p82, %p83
      %p85 = scmp.ne.s32.totalorder %s74, %s77
      %p86 = scmp.eq.s32.totalorder %s31, 7
      %p87 = por %p85, %p86
      %p88 = scmp.ne.s32.totalorder %s77, %s78
      %p89 = scmp.eq.s32.totalorder %s31, 0
      %p90 = por %p88, %p89
      %p91 = scmp.ne.s32.totalorder %s77, %s78
      %p92 = scmp.eq.s32.totalorder %s32, 7
      %p93 = por %p91, %p92
      %p95 = scmp.ne.s32.totalorder %s78, %s94
      %p96 = scmp.eq.s32.totalorder %s32, 0
      %p97 = por %p95, %p96
      %s99 = sadd.s32 %s98, 1
      %p102 = scmp.eq.s32.totalorder %s26, 7
      %p103 = scmp.ne.s32.totalorder %s98, %s100
      %p104 = scmp.eq.s32.totalorder %s26, 0
      %p105 = por %p103, %p104
      %p106 = scmp.ne.s32.totalorder %s98, %s100
      %p107 = scmp.eq.s32.totalorder %s31, 7
      %p108 = por %p106, %p107
      %p109 = scmp.ne.s32.totalorder %s100, %s101
      %p110 = scmp.eq.s32.totalorder %s31, 0
      %p111 = por %p109, %p110
      %p112 = scmp.ne.s32.totalorder %s100, %s101
      %p113 = scmp.eq.s32.totalorder %s32, 7
      %p114 = por %p112, %p113
      %p116 = scmp.ne.s32.totalorder %s101, %s115
      %p117 = scmp.eq.s32.totalorder %s32, 0
      %p118 = por %p116, %p117
      %s120 = sadd.s32 %s119, 1
      %p123 = scmp.eq.s32.totalorder %s26, 7
      %p124 = scmp.ne.s32.totalorder %s119, %s121
      %p125 = scmp.eq.s32.totalorder %s26, 0
      %p126 = por %p124, %p125
      %p127 = scmp.ne.s32.totalorder %s119, %s121
      %p128 = scmp.eq.s32.totalorder %s31, 7
      %p129 = por %p127, %p128
      %p130 = scmp.ne.s32.totalorder %s121, %s122
      %p131 = scmp.eq.s32.totalorder %s31, 0
      %p132 = por %p130, %p131
      %p133 = scmp.ne.s32.totalorder %s121, %s122
      %p134 = scmp.eq.s32.totalorder %s32, 7
      %p135 = por %p133, %p134
      %p137 = scmp.ne.s32.totalorder %s122, %s136
      %p138 = scmp.eq.s32.totalorder %s32, 0
      %p139 = por %p137, %p138
      %s141 = sadd.s32 %s140, 1
      %p144 = scmp.eq.s32.totalorder %s26, 7
      %p145 = scmp.ne.s32.totalorder %s140, %s142
      %p146 = scmp.eq.s32.totalorder %s26, 0
      %p147 = por %p145, %p146
      %p148 = scmp.ne.s32.totalorder %s140, %s142
      %p149 = scmp.eq.s32.totalorder %s31, 7
      %p150 = por %p148, %p149
      %p151 = scmp.ne.s32.totalorder %s142, %s143
      %p152 = scmp.eq.s32.totalorder %s31, 0
      %p153 = por %p151, %p152
      %p154 = scmp.ne.s32.totalorder %s142, %s143
      %p155 = scmp.eq.s32.totalorder %s32, 7
      %p156 = por %p154, %p155
      %p158 = scmp.ne.s32.totalorder %s143, %s157
      %p159 = scmp.eq.s32.totalorder %s32, 0
      %p160 = por %p158, %p159
      %s162 = sadd.s32 %s161, 1
      %p165 = scmp.eq.s32.totalorder %s26, 7
      %p166 = scmp.ne.s32.totalorder %s161, %s163
      %p167 = scmp.eq.s32.totalorder %s26, 0
      %p168 = por %p166, %p167
      %p169 = scmp.ne.s32.totalorder %s161, %s163
      %p170 = scmp.eq.s32.totalorder %s31, 7
      %p171 = por %p169, %p170
      %p172 = scmp.ne.s32.totalorder %s163, %s164
      %p173 = scmp.eq.s32.totalorder %s31, 0
      %p174 = por %p172, %p173
      %p175 = scmp.ne.s32.totalorder %s163, %s164
      %p176 = scmp.eq.s32.totalorder %s32, 7
      %p177 = por %p175, %p176
      %p179 = scmp.ne.s32.totalorder %s164, %s178
      %p180 = scmp.eq.s32.totalorder %s32, 0
      %p181 = por %p179, %p180
      %s183 = sadd.s32 %s182, 1
      %p186 = scmp.eq.s32.totalorder %s26, 7
      %p187 = scmp.ne.s32.totalorder %s182, %s184
      %p188 = scmp.eq.s32.totalorder %s26, 0
      %p189 = por %p187, %p188
      %p190 = scmp.ne.s32.totalorder %s182, %s184
      %p191 = scmp.eq.s32.totalorder %s31, 7
      %p192 = por %p190, %p191
      %p193 = scmp.ne.s32.totalorder %s184, %s185
      %p194 = scmp.eq.s32.totalorder %s31, 0
      %p195 = por %p193, %p194
      %p196 = scmp.ne.s32.totalorder %s184, %s185
      %p197 = scmp.eq.s32.totalorder %s32, 7
      %p198 = por %p196, %p197
      %p200 = scmp.ne.s32.totalorder %s185, %s199
      %p201 = scmp.eq.s32.totalorder %s32, 0
      %p202 = por %p200, %p201
      %s204 = sadd.s32 %s203, 1
      %p207 = scmp.eq.s32.totalorder %s26, 7
      %p208 = scmp.ne.s32.totalorder %s203, %s205
      %p209 = scmp.eq.s32.totalorder %s26, 0
      %p210 = por %p208, %p209
      %p211 = scmp.ne.s32.totalorder %s203, %s205
      %p212 = scmp.eq.s32.totalorder %s31, 7
      %p213 = por %p211, %p212
      %p214 = scmp.ne.s32.totalorder %s205, %s206
      %p215 = scmp.eq.s32.totalorder %s31, 0
      %p216 = por %p214, %p215
      %p217 = scmp.ne.s32.totalorder %s205, %s206
      %p218 = scmp.eq.s32.totalorder %s32, 7
      %p219 = por %p217, %p218
      %p221 = scmp.ne.s32.totalorder %s206, %s220
      %p222 = scmp.eq.s32.totalorder %s32, 0
      %p223 = por %p221, %p222
      %s224 = ssub.s32 %s33, %s45
      %s225 = ssub.s32 %s34, %s41
      %s226 = sor.u32 %s224, %s225
      %p227 = scmp.eq.s32.totalorder %s226, 0
      %s229 = sadd.s32 %s228, 1
      %s230 = scalar_select %p227, %s228, %s229
      %p233 = pneg %p227
      %p234 = scmp.eq.s32.totalorder %s26, 7
      %p235 = por %p233, %p234
      %p236 = scmp.ne.s32.totalorder %s228, %s231
      %p237 = scmp.eq.s32.totalorder %s26, 0
      %p238 = por %p236, %p237
      %p239 = scmp.ne.s32.totalorder %s228, %s231
      %p240 = scmp.eq.s32.totalorder %s31, 7
      %p241 = por %p239, %p240
      %p242 = scmp.ne.s32.totalorder %s231, %s232
      %p243 = scmp.eq.s32.totalorder %s31, 0
      %p244 = por %p242, %p243
      %p245 = scmp.ne.s32.totalorder %s231, %s232
      %p246 = scmp.eq.s32.totalorder %s32, 7
      %p247 = por %p245, %p246
      %p249 = scmp.ne.s32.totalorder %s232, %s248
      %p250 = scmp.eq.s32.totalorder %s32, 0
      %p251 = por %p249, %p250
      %p252 = scmp.le.s32.totalorder 1, %s26
      %p253 = scmp.lt.s32.totalorder %s26, 9
      %p254 = pnand %p252, %p253
      %p255 = pneg %p254
      // Predicated region
      $region9: #{deconv_forward.4} parent=5 // pred_check
        _
      $region10: #{deconv_forward.4} parent=5 // pred_check_branch
        %257 = sbr.rel (%p254) target = $region12
      $region11: #{deconv_forward.4} parent=5 // pred_region
        %s258 = ssub.s32 %s26, 1
        // Predicated region
        $region13: #{deconv_forward.4} parent=11 // pred_check
          %p259 = pneg %p111
        $region14: #{deconv_forward.4} parent=11 // pred_check_branch
          %261 = sbr.rel (%p259) target = $region16
        $region15: #{deconv_forward.4} parent=11 // pred_region
          %s263 = ssub.s32 3072, 3072
          %264 = vsyncadd [#allocation7], %s263
          %s265 = sshll.u32 [#allocation8], 4
          %s266 = int_to_ptr.vmem [resolvable:$true] %s265
          %271 = dma.hbm_to_vmem [thread:$0]  %s2, 3072, %s266, [#allocation7], 128, 128, 8
        $region16: #{deconv_forward.4} parent=11 // pred_fallthru
          _
        // Predicated region
        $region17: #{deconv_forward.4} parent=11 // pred_check
          %p272 = pneg %p132
        $region18: #{deconv_forward.4} parent=11 // pred_check_branch
          %274 = sbr.rel (%p272) target = $region20
        $region19: #{deconv_forward.4} parent=11 // pred_region
          %s276 = ssub.s32 3072, 3072
          %277 = vsyncadd [#allocation10], %s276
          %s278 = sshll.u32 [#allocation9], 4
          %s279 = int_to_ptr.vmem [resolvable:$true] %s278
          %284 = dma.hbm_to_vmem [thread:$0]  %s3, 3072, %s279, [#allocation10], 128, 128, 8
        $region20: #{deconv_forward.4} parent=11 // pred_fallthru
          _
        // Predicated region
        $region21: #{deconv_forward.4} parent=11 // pred_check
          %p285 = pneg %p153
        $region22: #{deconv_forward.4} parent=11 // pred_check_branch
          %287 = sbr.rel (%p285) target = $region24
        $region23: #{deconv_forward.4} parent=11 // pred_region
          %s289 = ssub.s32 8192, 8192
          %290 = vsyncadd [#allocation10], %s289
          %s291 = sshll.u32 [#allocation11], 4
          %s292 = int_to_ptr.vmem [resolvable:$true] %s291
          %297 = dma.hbm_to_vmem [thread:$0]  %s4, 8192, %s292, [#allocation10], 128, 128, 8
        $region24: #{deconv_forward.4} parent=11 // pred_fallthru
          _
        // Predicated region
        $region25: #{deconv_forward.4} parent=11 // pred_check
          %p298 = pneg %p174
        $region26: #{deconv_forward.4} parent=11 // pred_check_branch
          %300 = sbr.rel (%p298) target = $region28
        $region27: #{deconv_forward.4} parent=11 // pred_region
          %s302 = ssub.s32 16, 16
          %303 = vsyncadd [#allocation13], %s302
          %s305 = sshll.u32 [#allocation12], 4
          %s306 = int_to_ptr.vmem [resolvable:$true] %s305
          %308 = dma.hbm_to_vmem [thread:$0]  %s5, 16, %s306, [#allocation13]
        $region28: #{deconv_forward.4} parent=11 // pred_fallthru
          _
        // Predicated region
        $region29: #{deconv_forward.4} parent=11 // pred_check
          %p309 = pneg %p195
        $region30: #{deconv_forward.4} parent=11 // pred_check_branch
          %311 = sbr.rel (%p309) target = $region32
        $region31: #{deconv_forward.4} parent=11 // pred_region
          %s313 = ssub.s32 16, 16
          %314 = vsyncadd [#allocation13], %s313
          %s316 = sshll.u32 [#allocation14], 4
          %s317 = int_to_ptr.vmem [resolvable:$true] %s316
          %319 = dma.hbm_to_vmem [thread:$0]  %s6, 16, %s317, [#allocation13]
        $region32: #{deconv_forward.4} parent=11 // pred_fallthru
          _
        // Predicated region
        $region33: #{deconv_forward.4} parent=11 // pred_check
          %p320 = pneg %p216
        $region34: #{deconv_forward.4} parent=11 // pred_check_branch
          %322 = sbr.rel (%p320) target = $region36
        $region35: #{deconv_forward.4} parent=11 // pred_region
          %s324 = ssub.s32 16, 16
          %325 = vsyncadd [#allocation16], %s324
          %s327 = sshll.u32 [#allocation15], 4
          %s328 = int_to_ptr.vmem [resolvable:$true] %s327
          %330 = dma.hbm_to_vmem [thread:$0]  %s7, 16, %s328, [#allocation16]
        $region36: #{deconv_forward.4} parent=11 // pred_fallthru
          _
      $region12: #{deconv_forward.4} parent=5 // pred_fallthru
        _
      %p331 = scmp.lt.s32.totalorder %s26, 8
      // Predicated region
      $region37: #{deconv_forward.4} parent=5 // pred_check
        %p332 = pneg %p331
      $region38: #{deconv_forward.4} parent=5 // pred_check_branch
        %334 = sbr.rel (%p332) target = $region40
      $region39: #{deconv_forward.4} parent=5 // pred_region
        // Predicated region
        $region41: #{deconv_forward.4} parent=39 // pred_check
          %p335 = pneg %p58
        $region42: #{deconv_forward.4} parent=39 // pred_check_branch
          %337 = sbr.rel (%p335) target = $region44
        $region43: #{deconv_forward.4} parent=39 // pred_region
          %s338 = sand.u32 %s48, 1
          %s339 = scalar_lea.sflag [#allocation4], %s338
          %s340 = sand.u32 %s48, 1
          %s341 = smul.addr %s340, 544
          %s342 = scalar_lea.vmem [#allocation3], %s341
          %s344 = ssub.s32 8704, 8704
          %345 = vsyncadd %s339, %s344
          %s346 = smul.addr %s33, 136
          %s347 = smul.addr %s346, 64
          %s348 = scalar_lea.hbm %s0, %s347
          %s349 = sshll.u32 %s342, 4
          %s350 = int_to_ptr.vmem [resolvable:$true] %s349
          %355 = dma.hbm_to_vmem [thread:$0]  %s348, 8704, %s350, %s339, 64, 64, 4
        $region44: #{deconv_forward.4} parent=39 // pred_fallthru
          _
        // Predicated region
        $region45: #{deconv_forward.4} parent=39 // pred_check
          %p356 = pneg %p84
        $region46: #{deconv_forward.4} parent=39 // pred_check_branch
          %358 = sbr.rel (%p356) target = $region48
        $region47: #{deconv_forward.4} parent=39 // pred_region
          %s359 = sand.u32 %s26, 1
          %s360 = scalar_lea.sflag [#allocation7], %s359
          %s361 = sand.u32 %s74, 1
          %s362 = smul.addr %s361, 544
          %s363 = scalar_lea.vmem [#allocation6], %s362
          %s365 = ssub.s32 8704, 8704
          %366 = vsyncadd %s360, %s365
          %s367 = smul.addr %s33, 136
          %s368 = smul.addr %s367, 64
          %s369 = scalar_lea.hbm %s1, %s368
          %s370 = sshll.u32 %s363, 4
          %s371 = int_to_ptr.vmem [resolvable:$true] %s370
          %376 = dma.hbm_to_vmem [thread:$0]  %s369, 8704, %s371, %s360, 64, 64, 4
        $region48: #{deconv_forward.4} parent=39 // pred_fallthru
          _
      $region40: #{deconv_forward.4} parent=5 // pred_fallthru
        _
      %p377 = scmp.le.s32.totalorder 1, %s26
      %p378 = scmp.lt.s32.totalorder %s26, 9
      %p379 = pnand %p377, %p378
      %p380 = pneg %p379
      // Predicated region
      $region49: #{deconv_forward.4} parent=5 // pred_check
        _
      $region50: #{deconv_forward.4} parent=5 // pred_check_branch
        %382 = sbr.rel (%p379) target = $region52
      $region51: #{deconv_forward.4} parent=5 // pred_region
        %s383 = ssub.s32 %s26, 1
        %s384 = sand.u32 %s51, 1
        %s385 = scalar_lea.sflag [#allocation4], %s384
        %s386 = sand.u32 %s51, 1
        %s387 = smul.addr %s386, 544
        %s388 = scalar_lea.vmem [#allocation3], %s387
        // Predicated region
        $region53: #{deconv_forward.4} parent=51 // pred_check
          %p389 = pneg %p64
        $region54: #{deconv_forward.4} parent=51 // pred_check_branch
          %391 = sbr.rel (%p389) target = $region56
        $region55: #{deconv_forward.4} parent=51 // pred_region
          %392 = dma.done %s385, 8704
        $region56: #{deconv_forward.4} parent=51 // pred_fallthru
          _
        %s393 = sand.u32 %s31, 1
        %s394 = scalar_lea.sflag [#allocation7], %s393
        %s395 = sand.u32 %s77, 1
        %s396 = smul.addr %s395, 544
        %s397 = scalar_lea.vmem [#allocation6], %s396
        // Predicated region
        $region57: #{deconv_forward.4} parent=51 // pred_check
          %p398 = pneg %p90
        $region58: #{deconv_forward.4} parent=51 // pred_check_branch
          %400 = sbr.rel (%p398) target = $region60
        $region59: #{deconv_forward.4} parent=51 // pred_region
          %401 = dma.done %s394, 8704
        $region60: #{deconv_forward.4} parent=51 // pred_fallthru
          _
        // Predicated region
        $region61: #{deconv_forward.4} parent=51 // pred_check
          %p402 = pneg %p111
        $region62: #{deconv_forward.4} parent=51 // pred_check_branch
          %404 = sbr.rel (%p402) target = $region64
        $region63: #{deconv_forward.4} parent=51 // pred_region
          %405 = dma.done [#allocation7], 3072
        $region64: #{deconv_forward.4} parent=51 // pred_fallthru
          _
        // Predicated region
        $region65: #{deconv_forward.4} parent=51 // pred_check
          %p406 = pneg %p132
        $region66: #{deconv_forward.4} parent=51 // pred_check_branch
          %408 = sbr.rel (%p406) target = $region68
        $region67: #{deconv_forward.4} parent=51 // pred_region
          %409 = dma.done [#allocation10], 3072
        $region68: #{deconv_forward.4} parent=51 // pred_fallthru
          _
        // Predicated region
        $region69: #{deconv_forward.4} parent=51 // pred_check
          %p410 = pneg %p153
        $region70: #{deconv_forward.4} parent=51 // pred_check_branch
          %412 = sbr.rel (%p410) target = $region72
        $region71: #{deconv_forward.4} parent=51 // pred_region
          %413 = dma.done [#allocation10], 8192
        $region72: #{deconv_forward.4} parent=51 // pred_fallthru
          _
        // Predicated region
        $region73: #{deconv_forward.4} parent=51 // pred_check
          %p414 = pneg %p174
        $region74: #{deconv_forward.4} parent=51 // pred_check_branch
          %416 = sbr.rel (%p414) target = $region76
        $region75: #{deconv_forward.4} parent=51 // pred_region
          %417 = dma.done [#allocation13], 16
        $region76: #{deconv_forward.4} parent=51 // pred_fallthru
          _
        // Predicated region
        $region77: #{deconv_forward.4} parent=51 // pred_check
          %p418 = pneg %p195
        $region78: #{deconv_forward.4} parent=51 // pred_check_branch
          %420 = sbr.rel (%p418) target = $region80
        $region79: #{deconv_forward.4} parent=51 // pred_region
          %421 = dma.done [#allocation13], 16
        $region80: #{deconv_forward.4} parent=51 // pred_fallthru
          _
        // Predicated region
        $region81: #{deconv_forward.4} parent=51 // pred_check
          %p422 = pneg %p216
        $region82: #{deconv_forward.4} parent=51 // pred_check_branch
          %424 = sbr.rel (%p422) target = $region84
        $region83: #{deconv_forward.4} parent=51 // pred_region
          %425 = dma.done [#allocation16], 16
        $region84: #{deconv_forward.4} parent=51 // pred_fallthru
          _
        %s426 = sand.u32 %s51, 1
        %s427 = scalar_lea.sflag [#allocation4], %s426
        %s428 = sand.u32 %s51, 1
        %s429 = smul.addr %s428, 544
        %s430 = scalar_lea.vmem [#allocation3], %s429
        %p431 = pneg %p64
        %p432 = pneg %p61
        %s433 = sand.u32 %s31, 1
        %s434 = scalar_lea.sflag [#allocation7], %s433
        %s435 = sand.u32 %s77, 1
        %s436 = smul.addr %s435, 544
        %s437 = scalar_lea.vmem [#allocation6], %s436
        %p438 = pneg %p90
        %p439 = pneg %p87
        %p440 = pneg %p111
        %p441 = pneg %p108
        %p442 = pneg %p132
        %p443 = pneg %p129
        %p444 = pneg %p153
        %p445 = pneg %p150
        %p446 = pneg %p174
        %p447 = pneg %p171
        %p448 = pneg %p195
        %p449 = pneg %p192
        %p450 = pneg %p216
        %p451 = pneg %p213
        %p452 = pneg %p244
        %p453 = pneg %p241
        %s454 = sand.u32 %s231, 1
        %s455 = scalar_lea.sflag [#allocation5], %s454
        %s456 = sand.u32 %s231, 1
        %s457 = smul.addr %s456, 128
        %s458 = scalar_lea.vmem [#allocation17], %s457
        %s459 = smul.u32 8, %s36
        %s461 = smul.u32 %s36, 8
        %s462 = smul.u32 %s461, 4
        %s463 = smul.addr %s462, 4
        %s464 = scalar_lea.vmem %s388, %s463 [#allocation3]
        %v465 = vld [vmem:[%s464] sm:$0xf]
        %v466 = vld [vmem:[%s464 + $0x4] sm:$0xf]
        %v467 = vld [vmem:[%s464 + $0x8] sm:$0xf]
        %v468 = vld [vmem:[%s464 + $0xc] sm:$0xf]
        %v469 = vld [vmem:[%s464 + $0x10] sm:$0xf]
        %v470 = vld [vmem:[%s464 + $0x14] sm:$0xf]
        %v471 = vld [vmem:[%s464 + $0x18] sm:$0xf]
        %v472 = vld [vmem:[%s464 + $0x1c] sm:$0xf]
        %v473 = vld [vmem:[%s464 + $0x20] sm:$0xf]
        %v474 = vld [vmem:[%s464 + $0x24] sm:$0xf]
        %v475 = vld [vmem:[%s464 + $0x28] sm:$0xf]
        %v476 = vld [vmem:[%s464 + $0x2c] sm:$0xf]
        %v477 = vld [vmem:[%s464 + $0x30] sm:$0xf]
        %v478 = vld [vmem:[%s464 + $0x34] sm:$0xf]
        %v479 = vld [vmem:[%s464 + $0x38] sm:$0xf]
        %v480 = vld [vmem:[%s464 + $0x3c] sm:$0xf]
        %v481 = vld [vmem:[%s464 + $0x40] sm:$0xf]
        %v482 = vld [vmem:[%s464 + $0x44] sm:$0xf]
        %v483 = vld [vmem:[%s464 + $0x48] sm:$0xf]
        %v484 = vld [vmem:[%s464 + $0x4c] sm:$0xf]
        %v485 = vld [vmem:[%s464 + $0x50] sm:$0xf]
        %v486 = vld [vmem:[%s464 + $0x54] sm:$0xf]
        %v487 = vld [vmem:[%s464 + $0x58] sm:$0xf]
        %v488 = vld [vmem:[%s464 + $0x5c] sm:$0xf]
        %v489 = vld [vmem:[%s464 + $0x60] sm:$0xf]
        %v490 = vld [vmem:[%s464 + $0x64] sm:$0xf]
        %v491 = vld [vmem:[%s464 + $0x68] sm:$0xf]
        %v492 = vld [vmem:[%s464 + $0x6c] sm:$0xf]
        %v493 = vld [vmem:[%s464 + $0x70] sm:$0xf]
        %v494 = vld [vmem:[%s464 + $0x74] sm:$0xf]
        %v495 = vld [vmem:[%s464 + $0x78] sm:$0xf]
        %v496 = vld [vmem:[%s464 + $0x7c] sm:$0xf]
        %v497 = vld [vmem:[#allocation8] sm:$0xff]
        %v498 = vld [vmem:[#allocation8 + $0x8] sm:$0xff]
        %v499 = vld [vmem:[#allocation8 + $0x10] sm:$0xff]
        %v500 = vld [vmem:[#allocation8 + $0x18] sm:$0xff]
        %v501 = vld [vmem:[#allocation8 + $0x20] sm:$0xff]
        %v502 = vld [vmem:[#allocation8 + $0x28] sm:$0xff]
        %v503 = vld [vmem:[#allocation8 + $0x30] sm:$0xff]
        %v504 = vld [vmem:[#allocation8 + $0x38] sm:$0xff]
        %v537 = vunpack.c.l.b16 %v465
        %v538 = vunpack.c.l.b16 %v466
        %v539 = vunpack.c.l.b16 %v467
        %v540 = vunpack.c.l.b16 %v468
        %v541 = vunpack.c.l.b16 %v469
        %v542 = vunpack.c.l.b16 %v470
        %v543 = vunpack.c.l.b16 %v471
        %v544 = vunpack.c.l.b16 %v472
        %v545 = vunpack.c.l.b16 %v473
        %v546 = vunpack.c.l.b16 %v474
        %v547 = vunpack.c.l.b16 %v475
        %v548 = vunpack.c.l.b16 %v476
        %v549 = vunpack.c.l.b16 %v477
        %v550 = vunpack.c.l.b16 %v478
        %v551 = vunpack.c.l.b16 %v479
        %v552 = vunpack.c.l.b16 %v480
        %v553 = vunpack.c.l.b16 %v481
        %v554 = vunpack.c.l.b16 %v482
        %v555 = vunpack.c.l.b16 %v483
        %v556 = vunpack.c.l.b16 %v484
        %v557 = vunpack.c.l.b16 %v485
        %v558 = vunpack.c.l.b16 %v486
        %v559 = vunpack.c.l.b16 %v487
        %v560 = vunpack.c.l.b16 %v488
        %v561 = vunpack.c.l.b16 %v489
        %v562 = vunpack.c.l.b16 %v490
        %v563 = vunpack.c.l.b16 %v491
        %v564 = vunpack.c.l.b16 %v492
        %v565 = vunpack.c.l.b16 %v493
        %v566 = vunpack.c.l.b16 %v494
        %v567 = vunpack.c.l.b16 %v495
        %v568 = vunpack.c.l.b16 %v496
        %v569 = vpack.c.b16 %v538, %v537
        %v570 = vpack.c.b16 %v540, %v539
        %v571 = vpack.c.b16 %v542, %v541
        %v572 = vpack.c.b16 %v544, %v543
        %v573 = vpack.c.b16 %v546, %v545
        %v574 = vpack.c.b16 %v548, %v547
        %v575 = vpack.c.b16 %v550, %v549
        %v576 = vpack.c.b16 %v552, %v551
        %v577 = vpack.c.b16 %v554, %v553
        %v578 = vpack.c.b16 %v556, %v555
        %v579 = vpack.c.b16 %v558, %v557
        %v580 = vpack.c.b16 %v560, %v559
        %v581 = vpack.c.b16 %v562, %v561
        %v582 = vpack.c.b16 %v564, %v563
        %v583 = vpack.c.b16 %v566, %v565
        %v584 = vpack.c.b16 %v568, %v567
        %v593 = vunpack.c.l.b16 %v497
        %v594 = vunpack.c.h.b16 %v497
        %v595 = vunpack.c.l.b16 %v498
        %v596 = vunpack.c.h.b16 %v498
        %v597 = vunpack.c.l.b16 %v499
        %v598 = vunpack.c.h.b16 %v499
        %v599 = vunpack.c.l.b16 %v500
        %v600 = vunpack.c.h.b16 %v500
        %v601 = vunpack.c.l.b16 %v501
        %v602 = vunpack.c.h.b16 %v501
        %v603 = vunpack.c.l.b16 %v502
        %v604 = vunpack.c.h.b16 %v502
        %v605 = vunpack.c.l.b16 %v503
        %v606 = vunpack.c.h.b16 %v503
        %v607 = vunpack.c.l.b16 %v504
        %v608 = vunpack.c.h.b16 %v504
        %v609 = vpack.c.b16 %v595, %v593
        %v610 = vpack.c.b16 %v596, %v594
        %v611 = vpack.c.b16 %v599, %v597
        %v612 = vpack.c.b16 %v600, %v598
        %v613 = vpack.c.b16 %v603, %v601
        %v614 = vpack.c.b16 %v604, %v602
        %v615 = vpack.c.b16 %v607, %v605
        %v616 = vpack.c.b16 %v608, %v606
        %vm625 = vcmask 523264
        %v627 = vsel %vm625, %v569, 0
        %v630 = vsel %vm625, %v570, 0
        %v633 = vsel %vm625, %v571, 0
        %v636 = vsel %vm625, %v572, 0
        %v639 = vsel %vm625, %v573, 0
        %v642 = vsel %vm625, %v574, 0
        %v645 = vsel %vm625, %v575, 0
        %v648 = vsel %vm625, %v576, 0
        %v651 = vsel %vm625, %v577, 0
        %v654 = vsel %vm625, %v578, 0
        %v657 = vsel %vm625, %v579, 0
        %v660 = vsel %vm625, %v580, 0
        %v663 = vsel %vm625, %v581, 0
        %v666 = vsel %vm625, %v582, 0
        %v669 = vsel %vm625, %v583, 0
        %v672 = vsel %vm625, %v584, 0
        %674 = vmatprep.subr.bf16.mxu0 %v610
        %675 = vmatpush1.bf16.msra.mxu0 %v609
        %676 = vmatprep.subr.bf16.mxu0 %v612
        %677 = vmatpush1.bf16.msra.mxu0 %v611
        %678 = vmatprep.subr.bf16.mxu0 %v614
        %679 = vmatpush1.bf16.msra.mxu0 %v613
        %680 = vmatprep.subr.bf16.mxu0 %v616
        %681 = vmatpush1.bf16.msra.mxu0 %v615
        %682 = vmatprep.subr.bf16.mxu0 0
        %683 = vmatpush1.bf16.msra.mxu0 0
        %684 = vmatprep.subr.bf16.mxu0 0
        %685 = vmatpush1.bf16.msra.mxu0 0
        %686 = vmatprep.subr.bf16.mxu0 0
        %687 = vmatpush1.bf16.msra.mxu0 0
        %688 = vmatprep.subr.bf16.mxu0 0
        %689 = vmatpush1.bf16.msra.mxu0 0
        %690 = vmatprep.subr.bf16.mxu0 0
        %691 = vmatpush1.bf16.msra.mxu0 0
        %692 = vmatprep.subr.bf16.mxu0 0
        %693 = vmatpush1.bf16.msra.mxu0 0
        %694 = vmatprep.subr.bf16.mxu0 0
        %695 = vmatpush1.bf16.msra.mxu0 0
        %696 = vmatprep.subr.bf16.mxu0 0
        %697 = vmatpush1.bf16.msra.mxu0 0
        %698 = vmatprep.subr.bf16.mxu0 0
        %699 = vmatpush1.bf16.msra.mxu0 0
        %700 = vmatprep.subr.bf16.mxu0 0
        %701 = vmatpush1.bf16.msra.mxu0 0
        %702 = vmatprep.subr.bf16.mxu0 0
        %703 = vmatpush1.bf16.msra.mxu0 0
        %704 = vmatprep.subr.bf16.mxu0 0
        %705 = vmatpush1.bf16.msra.mxu0 0
        %706 = vmatprep.mubr.bf16.mxu0 0
        %707 = vmatmul.mubr.bf16.gmra.mrb[0].mxu0 %v627
        %v708 = vpop.f32.mrb[0].mxu0
        %v709 = vadd.f32 0.0, %v708
        %v710 = vpop.f32.mrb[0].mxu0
        %v711 = vadd.f32 0.0, %v710
        %v712 = vpop.f32.mrb[0].mxu0
        %v713 = vadd.f32 0.0, %v712
        %v714 = vpop.f32.mrb[0].mxu0
        %v715 = vadd.f32 0.0, %v714
        %716 = vmatprep.mubr.bf16.mxu0 0
        %717 = vmatmul.mubr.bf16.gmra.mrb[0].mxu0 %v630
        %v718 = vpop.f32.mrb[0].mxu0
        %v719 = vadd.f32 0.0, %v718
        %v720 = vpop.f32.mrb[0].mxu0
        %v721 = vadd.f32 0.0, %v720
        %v722 = vpop.f32.mrb[0].mxu0
        %v723 = vadd.f32 0.0, %v722
        %v724 = vpop.f32.mrb[0].mxu0
        %v725 = vadd.f32 0.0, %v724
        %726 = vmatprep.mubr.bf16.mxu0 0
        %727 = vmatmul.mubr.bf16.gmra.mrb[0].mxu0 %v633
        %v728 = vpop.f32.mrb[0].mxu0
        %v729 = vadd.f32 0.0, %v728
        %v730 = vpop.f32.mrb[0].mxu0
        %v731 = vadd.f32 0.0, %v730
        %v732 = vpop.f32.mrb[0].mxu0
        %v733 = vadd.f32 0.0, %v732
        %v734 = vpop.f32.mrb[0].mxu0
        %v735 = vadd.f32 0.0, %v734
        %736 = vmatprep.mubr.bf16.mxu0 0
        %737 = vmatmul.mubr.bf16.gmra.mrb[0].mxu0 %v636
        %v738 = vpop.f32.mrb[0].mxu0
        %v739 = vadd.f32 0.0, %v738
        %v740 = vpop.f32.mrb[0].mxu0
        %v741 = vadd.f32 0.0, %v740
        %v742 = vpop.f32.mrb[0].mxu0
        %v743 = vadd.f32 0.0, %v742
        %v744 = vpop.f32.mrb[0].mxu0
        %v745 = vadd.f32 0.0, %v744
        %746 = vmatprep.mubr.bf16.mxu0 0
        %747 = vmatmul.mubr.bf16.gmra.mrb[0].mxu0 %v639
        %v748 = vpop.f32.mrb[0].mxu0
        %v749 = vadd.f32 0.0, %v748
        %v750 = vpop.f32.mrb[0].mxu0
        %v751 = vadd.f32 0.0, %v750
        %v752 = vpop.f32.mrb[0].mxu0
        %v753 = vadd.f32 0.0, %v752
        %v754 = vpop.f32.mrb[0].mxu0
        %v755 = vadd.f32 0.0, %v754
        %756 = vmatprep.mubr.bf16.mxu0 0
        %757 = vmatmul.mubr.bf16.gmra.mrb[0].mxu0 %v642
        %v758 = vpop.f32.mrb[0].mxu0
        %v759 = vadd.f32 0.0, %v758
        %v760 = vpop.f32.mrb[0].mxu0
        %v761 = vadd.f32 0.0, %v760
        %v762 = vpop.f32.mrb[0].mxu0
        %v763 = vadd.f32 0.0, %v762
        %v764 = vpop.f32.mrb[0].mxu0
        %v765 = vadd.f32 0.0, %v764
        %766 = vmatprep.mubr.bf16.mxu0 0
        %767 = vmatmul.mubr.bf16.gmra.mrb[0].mxu0 %v645
        %v768 = vpop.f32.mrb[0].mxu0
        %v769 = vadd.f32 0.0, %v768
        %v770 = vpop.f32.mrb[0].mxu0
        %v771 = vadd.f32 0.0, %v770
        %v772 = vpop.f32.mrb[0].mxu0
        %v773 = vadd.f32 0.0, %v772
        %v774 = vpop.f32.mrb[0].mxu0
        %v775 = vadd.f32 0.0, %v774
        %776 = vmatprep.mubr.bf16.mxu0 0
        %777 = vmatmul.mubr.bf16.gmra.mrb[0].mxu0 %v648
        %v778 = vpop.f32.mrb[0].mxu0
        %v779 = vadd.f32 0.0, %v778
        %v780 = vpop.f32.mrb[0].mxu0
        %v781 = vadd.f32 0.0, %v780
        %v782 = vpop.f32.mrb[0].mxu0
        %v783 = vadd.f32 0.0, %v782
        %v784 = vpop.f32.mrb[0].mxu0
        %v785 = vadd.f32 0.0, %v784
        %786 = vmatprep.mubr.bf16.mxu0 0
        %787 = vmatmul.mubr.bf16.gmra.mrb[0].mxu0 %v651
        %v788 = vpop.f32.mrb[0].mxu0
        %v789 = vadd.f32 0.0, %v788
        %v790 = vpop.f32.mrb[0].mxu0
        %v791 = vadd.f32 0.0, %v790
        %v792 = vpop.f32.mrb[0].mxu0
        %v793 = vadd.f32 0.0, %v792
        %v794 = vpop.f32.mrb[0].mxu0
        %v795 = vadd.f32 0.0, %v794
        %796 = vmatprep.mubr.bf16.mxu0 0
        %797 = vmatmul.mubr.bf16.gmra.mrb[0].mxu0 %v654
        %v798 = vpop.f32.mrb[0].mxu0
        %v799 = vadd.f32 0.0, %v798
        %v800 = vpop.f32.mrb[0].mxu0
        %v801 = vadd.f32 0.0, %v800
        %v802 = vpop.f32.mrb[0].mxu0
        %v803 = vadd.f32 0.0, %v802
        %v804 = vpop.f32.mrb[0].mxu0
        %v805 = vadd.f32 0.0, %v804
        %806 = vmatprep.mubr.bf16.mxu0 0
        %807 = vmatmul.mubr.bf16.gmra.mrb[0].mxu0 %v657
        %v808 = vpop.f32.mrb[0].mxu0
        %v809 = vadd.f32 0.0, %v808
        %v810 = vpop.f32.mrb[0].mxu0
        %v811 = vadd.f32 0.0, %v810
        %v812 = vpop.f32.mrb[0].mxu0
        %v813 = vadd.f32 0.0, %v812
        %v814 = vpop.f32.mrb[0].mxu0
        %v815 = vadd.f32 0.0, %v814
        %816 = vmatprep.mubr.bf16.mxu0 0
        %817 = vmatmul.mubr.bf16.gmra.mrb[0].mxu0 %v660
        %v818 = vpop.f32.mrb[0].mxu0
        %v819 = vadd.f32 0.0, %v818
        %v820 = vpop.f32.mrb[0].mxu0
        %v821 = vadd.f32 0.0, %v820
        %v822 = vpop.f32.mrb[0].mxu0
        %v823 = vadd.f32 0.0, %v822
        %v824 = vpop.f32.mrb[0].mxu0
        %v825 = vadd.f32 0.0, %v824
        %826 = vmatprep.mubr.bf16.mxu0 0
        %827 = vmatmul.mubr.bf16.gmra.mrb[0].mxu0 %v663
        %v828 = vpop.f32.mrb[0].mxu0
        %v829 = vadd.f32 0.0, %v828
        %v830 = vpop.f32.mrb[0].mxu0
        %v831 = vadd.f32 0.0, %v830
        %v832 = vpop.f32.mrb[0].mxu0
        %v833 = vadd.f32 0.0, %v832
        %v834 = vpop.f32.mrb[0].mxu0
        %v835 = vadd.f32 0.0, %v834
        %836 = vmatprep.mubr.bf16.mxu0 0
        %837 = vmatmul.mubr.bf16.gmra.mrb[0].mxu0 %v666
        %v838 = vpop.f32.mrb[0].mxu0
        %v839 = vadd.f32 0.0, %v838
        %v840 = vpop.f32.mrb[0].mxu0
        %v841 = vadd.f32 0.0, %v840
        %v842 = vpop.f32.mrb[0].mxu0
        %v843 = vadd.f32 0.0, %v842
        %v844 = vpop.f32.mrb[0].mxu0
        %v845 = vadd.f32 0.0, %v844
        %846 = vmatprep.mubr.bf16.mxu0 0
        %847 = vmatmul.mubr.bf16.gmra.mrb[0].mxu0 %v669
        %v848 = vpop.f32.mrb[0].mxu0
        %v849 = vadd.f32 0.0, %v848
        %v850 = vpop.f32.mrb[0].mxu0
        %v851 = vadd.f32 0.0, %v850
        %v852 = vpop.f32.mrb[0].mxu0
        %v853 = vadd.f32 0.0, %v852
        %v854 = vpop.f32.mrb[0].mxu0
        %v855 = vadd.f32 0.0, %v854
        %856 = vmatprep.mubr.bf16.mxu0 0
        %857 = vmatmul.mubr.bf16.gmra.mrb[0].mxu0 %v672
        %v858 = vpop.f32.mrb[0].mxu0
        %v859 = vadd.f32 0.0, %v858
        %v860 = vpop.f32.mrb[0].mxu0
        %v861 = vadd.f32 0.0, %v860
        %v862 = vpop.f32.mrb[0].mxu0
        %v863 = vadd.f32 0.0, %v862
        %v864 = vpop.f32.mrb[0].mxu0
        %v865 = vadd.f32 0.0, %v864
        %866 = vdwg.mxu0
        %867 = vst [vmem:[#allocation2] sm:$0xff] %v709
        %868 = vst.msk [vmem:[#allocation2 + $0x8] sm:$0xff] %vm625, %v711
        %869 = vst [vmem:[#allocation2 + $0x10] sm:$0xff] %v713
        %870 = vst.msk [vmem:[#allocation2 + $0x18] sm:$0xff] %vm625, %v715
        %871 = vst [vmem:[#allocation2 + $0x20] sm:$0xff] %v719
        %872 = vst.msk [vmem:[#allocation2 + $0x28] sm:$0xff] %vm625, %v721
        %873 = vst [vmem:[#allocation2 + $0x30] sm:$0xff] %v723
        %874 = vst.msk [vmem:[#allocation2 + $0x38] sm:$0xff] %vm625, %v725
        %875 = vst [vmem:[#allocation2 + $0x40] sm:$0xff] %v729
        %876 = vst.msk [vmem:[#allocation2 + $0x48] sm:$0xff] %vm625, %v731
        %877 = vst [vmem:[#allocation2 + $0x50] sm:$0xff] %v733
        %878 = vst.msk [vmem:[#allocation2 + $0x58] sm:$0xff] %vm625, %v735
        %879 = vst [vmem:[#allocation2 + $0x60] sm:$0xff] %v739
        %880 = vst.msk [vmem:[#allocation2 + $0x68] sm:$0xff] %vm625, %v741
        %881 = vst [vmem:[#allocation2 + $0x70] sm:$0xff] %v743
        %882 = vst.msk [vmem:[#allocation2 + $0x78] sm:$0xff] %vm625, %v745
        %883 = vst [vmem:[#allocation2 + $0x80] sm:$0xff] %v749
        %884 = vst.msk [vmem:[#allocation2 + $0x88] sm:$0xff] %vm625, %v751
        %885 = vst [vmem:[#allocation2 + $0x90] sm:$0xff] %v753
        %886 = vst.msk [vmem:[#allocation2 + $0x98] sm:$0xff] %vm625, %v755
        %887 = vst [vmem:[#allocation2 + $0xa0] sm:$0xff] %v759
        %888 = vst.msk [vmem:[#allocation2 + $0xa8] sm:$0xff] %vm625, %v761
        %889 = vst [vmem:[#allocation2 + $0xb0] sm:$0xff] %v763
        %890 = vst.msk [vmem:[#allocation2 + $0xb8] sm:$0xff] %vm625, %v765
        %891 = vst [vmem:[#allocation2 + $0xc0] sm:$0xff] %v769
        %892 = vst.msk [vmem:[#allocation2 + $0xc8] sm:$0xff] %vm625, %v771
        %893 = vst [vmem:[#allocation2 + $0xd0] sm:$0xff] %v773
        %894 = vst.msk [vmem:[#allocation2 + $0xd8] sm:$0xff] %vm625, %v775
        %895 = vst [vmem:[#allocation2 + $0xe0] sm:$0xff] %v779
        %896 = vst.msk [vmem:[#allocation2 + $0xe8] sm:$0xff] %vm625, %v781
        %897 = vst [vmem:[#allocation2 + $0xf0] sm:$0xff] %v783
        %898 = vst.msk [vmem:[#allocation2 + $0xf8] sm:$0xff] %vm625, %v785
        %899 = vst [vmem:[#allocation2 + $0x100] sm:$0xff] %v789
        %900 = vst.msk [vmem:[#allocation2 + $0x108] sm:$0xff] %vm625, %v791
        %901 = vst [vmem:[#allocation2 + $0x110] sm:$0xff] %v793
        %902 = vst.msk [vmem:[#allocation2 + $0x118] sm:$0xff] %vm625, %v795
        %903 = vst [vmem:[#allocation2 + $0x120] sm:$0xff] %v799
        %904 = vst.msk [vmem:[#allocation2 + $0x128] sm:$0xff] %vm625, %v801
        %905 = vst [vmem:[#allocation2 + $0x130] sm:$0xff] %v803
        %906 = vst.msk [vmem:[#allocation2 + $0x138] sm:$0xff] %vm625, %v805
        %907 = vst [vmem:[#allocation2 + $0x140] sm:$0xff] %v809
        %908 = vst.msk [vmem:[#allocation2 + $0x148] sm:$0xff] %vm625, %v811
        %909 = vst [vmem:[#allocation2 + $0x150] sm:$0xff] %v813
        %910 = vst.msk [vmem:[#allocation2 + $0x158] sm:$0xff] %vm625, %v815
        %911 = vst [vmem:[#allocation2 + $0x160] sm:$0xff] %v819
        %912 = vst.msk [vmem:[#allocation2 + $0x168] sm:$0xff] %vm625, %v821
        %913 = vst [vmem:[#allocation2 + $0x170] sm:$0xff] %v823
        %914 = vst.msk [vmem:[#allocation2 + $0x178] sm:$0xff] %vm625, %v825
        %915 = vst [vmem:[#allocation2 + $0x180] sm:$0xff] %v829
        %916 = vst.msk [vmem:[#allocation2 + $0x188] sm:$0xff] %vm625, %v831
        %917 = vst [vmem:[#allocation2 + $0x190] sm:$0xff] %v833
        %918 = vst.msk [vmem:[#allocation2 + $0x198] sm:$0xff] %vm625, %v835
        %919 = vst [vmem:[#allocation2 + $0x1a0] sm:$0xff] %v839
        %920 = vst.msk [vmem:[#allocation2 + $0x1a8] sm:$0xff] %vm625, %v841
        %921 = vst [vmem:[#allocation2 + $0x1b0] sm:$0xff] %v843
        %922 = vst.msk [vmem:[#allocation2 + $0x1b8] sm:$0xff] %vm625, %v845
        %923 = vst [vmem:[#allocation2 + $0x1c0] sm:$0xff] %v849
        %924 = vst.msk [vmem:[#allocation2 + $0x1c8] sm:$0xff] %vm625, %v851
        %925 = vst [vmem:[#allocation2 + $0x1d0] sm:$0xff] %v853
        %926 = vst.msk [vmem:[#allocation2 + $0x1d8] sm:$0xff] %vm625, %v855
        %927 = vst [vmem:[#allocation2 + $0x1e0] sm:$0xff] %v859
        %928 = vst.msk [vmem:[#allocation2 + $0x1e8] sm:$0xff] %vm625, %v861
        %929 = vst [vmem:[#allocation2 + $0x1f0] sm:$0xff] %v863
        %930 = vst.msk [vmem:[#allocation2 + $0x1f8] sm:$0xff] %vm625, %v865
        %s931 = sadd.s32 %s461, 1
        %s932 = smul.u32 %s931, 4
        %s933 = smul.addr %s932, 4
        %s934 = scalar_lea.vmem %s388, %s933 [#allocation3]
        %v935 = vld [vmem:[%s934] sm:$0xf]
        %v936 = vld [vmem:[%s934 + $0x4] sm:$0xf]
        %v937 = vld [vmem:[%s934 + $0x8] sm:$0xf]
        %v938 = vld [vmem:[%s934 + $0xc] sm:$0xf]
        %v939 = vld [vmem:[%s934 + $0x10] sm:$0xf]
        %v940 = vld [vmem:[%s934 + $0x14] sm:$0xf]
        %v941 = vld [vmem:[%s934 + $0x18] sm:$0xf]
        %v942 = vld [vmem:[%s934 + $0x1c] sm:$0xf]
        %v943 = vld [vmem:[%s934 + $0x20] sm:$0xf]
        %v944 = vld [vmem:[%s934 + $0x24] sm:$0xf]
        %v945 = vld [vmem:[%s934 + $0x28] sm:$0xf]
        %v946 = vld [vmem:[%s934 + $0x2c] sm:$0xf]
        %v947 = vld [vmem:[%s934 + $0x30] sm:$0xf]
        %v948 = vld [vmem:[%s934 + $0x34] sm:$0xf]
        %v949 = vld [vmem:[%s934 + $0x38] sm:$0xf]
        %v950 = vld [vmem:[%s934 + $0x3c] sm:$0xf]
        %v951 = vld [vmem:[%s934 + $0x40] sm:$0xf]
        %v952 = vld [vmem:[%s934 + $0x44] sm:$0xf]
        %v953 = vld [vmem:[%s934 + $0x48] sm:$0xf]
        %v954 = vld [vmem:[%s934 + $0x4c] sm:$0xf]
        %v955 = vld [vmem:[%s934 + $0x50] sm:$0xf]
        %v956 = vld [vmem:[%s934 + $0x54] sm:$0xf]
        %v957 = vld [vmem:[%s934 + $0x58] sm:$0xf]
        %v958 = vld [vmem:[%s934 + $0x5c] sm:$0xf]
        %v959 = vld [vmem:[%s934 + $0x60] sm:$0xf]
        %v960 = vld [vmem:[%s934 + $0x64] sm:$0xf]
        %v961 = vld [vmem:[%s934 + $0x68] sm:$0xf]
        %v962 = vld [vmem:[%s934 + $0x6c] sm:$0xf]
        %v963 = vld [vmem:[%s934 + $0x70] sm:$0xf]
        %v964 = vld [vmem:[%s934 + $0x74] sm:$0xf]
        %v965 = vld [vmem:[%s934 + $0x78] sm:$0xf]
        %v966 = vld [vmem:[%s934 + $0x7c] sm:$0xf]
        %s967 = scalar_lea.vmem [#allocation8], 64
        %v968 = vld [vmem:[%s967] sm:$0xff]
        %v969 = vld [vmem:[%s967 + $0x8] sm:$0xff]
        %v970 = vld [vmem:[%s967 + $0x10] sm:$0xff]
        %v971 = vld [vmem:[%s967 + $0x18] sm:$0xff]
        %v972 = vld [vmem:[%s967 + $0x20] sm:$0xff]
        %v973 = vld [vmem:[%s967 + $0x28] sm:$0xff]
        %v974 = vld [vmem:[%s967 + $0x30] sm:$0xff]
        %v975 = vld [vmem:[%s967 + $0x38] sm:$0xff]
        %v1008 = vunpack.c.l.b16 %v935
        %v1009 = vunpack.c.l.b16 %v936
        %v1010 = vunpack.c.l.b16 %v937
        %v1011 = vunpack.c.l.b16 %v938
        %v1012 = vunpack.c.l.b16 %v939
        %v1013 = vunpack.c.l.b16 %v940
        %v1014 = vunpack.c.l.b16 %v941
        %v1015 = vunpack.c.l.b16 %v942
        %v1016 = vunpack.c.l.b16 %v943
        %v1017 = vunpack.c.l.b16 %v944
        %v1018 = vunpack.c.l.b16 %v945
        %v1019 = vunpack.c.l.b16 %v946
        %v1020 = vunpack.c.l.b16 %v947
        %v1021 = vunpack.c.l.b16 %v948
        %v1022 = vunpack.c.l.b16 %v949
        %v1023 = vunpack.c.l.b16 %v950
        %v1024 = vunpack.c.l.b16 %v951
        %v1025 = vunpack.c.l.b16 %v952
        %v1026 = vunpack.c.l.b16 %v953
        %v1027 = vunpack.c.l.b16 %v954
        %v1028 = vunpack.c.l.b16 %v955
        %v1029 = vunpack.c.l.b16 %v956
        %v1030 = vunpack.c.l.b16 %v957
        %v1031 = vunpack.c.l.b16 %v958
        %v1032 = vunpack.c.l.b16 %v959
        %v1033 = vunpack.c.l.b16 %v960
        %v1034 = vunpack.c.l.b16 %v961
        %v1035 = vunpack.c.l.b16 %v962
        %v1036 = vunpack.c.l.b16 %v963
        %v1037 = vunpack.c.l.b16 %v964
        %v1038 = vunpack.c.l.b16 %v965
        %v1039 = vunpack.c.l.b16 %v966
        %v1040 = vpack.c.b16 %v1009, %v1008
        %v1041 = vpack.c.b16 %v1011, %v1010
        %v1042 = vpack.c.b16 %v1013, %v1012
        %v1043 = vpack.c.b16 %v1015, %v1014
        %v1044 = vpack.c.b16 %v1017, %v1016
        %v1045 = vpack.c.b16 %v1019, %v1018
        %v1046 = vpack.c.b16 %v1021, %v1020
        %v1047 = vpack.c.b16 %v1023, %v1022
        %v1048 = vpack.c.b16 %v1025, %v1024
        %v1049 = vpack.c.b16 %v1027, %v1026
        %v1050 = vpack.c.b16 %v1029, %v1028
        %v1051 = vpack.c.b16 %v1031, %v1030
        %v1052 = vpack.c.b16 %v1033, %v1032
        %v1053 = vpack.c.b16 %v1035, %v1034
        %v1054 = vpack.c.b16 %v1037, %v1036
        %v1055 = vpack.c.b16 %v1039, %v1038
        %v1064 = vunpack.c.l.b16 %v968
        %v1065 = vunpack.c.h.b16 %v968
        %v1066 = vunpack.c.l.b16 %v969
        %v1067 = vunpack.c.h.b16 %v969
        %v1068 = vunpack.c.l.b16 %v970
        %v1069 = vunpack.c.h.b16 %v970
        %v1070 = vunpack.c.l.b16 %v971
        %v1071 = vunpack.c.h.b16 %v971
        %v1072 = vunpack.c.l.b16 %v972
        %v1073 = vunpack.c.h.b16 %v972
        %v1074 = vunpack.c.l.b16 %v973
        %v1075 = vunpack.c.h.b16 %v973
        %v1076 = vunpack.c.l.b16 %v974
        %v1077 = vunpack.c.h.b16 %v974
        %v1078 = vunpack.c.l.b16 %v975
        %v1079 = vunpack.c.h.b16 %v975
        %v1080 = vpack.c.b16 %v1066, %v1064
        %v1081 = vpack.c.b16 %v1067, %v1065
        %v1082 = vpack.c.b16 %v1070, %v1068
        %v1083 = vpack.c.b16 %v1071, %v1069
        %v1084 = vpack.c.b16 %v1074, %v1072
        %v1085 = vpack.c.b16 %v1075, %v1073
        %v1086 = vpack.c.b16 %v1078, %v1076
        %v1087 = vpack.c.b16 %v1079, %v1077
        %v1097 = vsel %vm625, %v1040, 0
        %v1100 = vsel %vm625, %v1041, 0
        %v1103 = vsel %vm625, %v1042, 0
        %v1106 = vsel %vm625, %v1043, 0
        %v1109 = vsel %vm625, %v1044, 0
        %v1112 = vsel %vm625, %v1045, 0
        %v1115 = vsel %vm625, %v1046, 0
        %v1118 = vsel %vm625, %v1047, 0
        %v1121 = vsel %vm625, %v1048, 0
        %v1124 = vsel %vm625, %v1049, 0
        %v1127 = vsel %vm625, %v1050, 0
        %v1130 = vsel %vm625, %v1051, 0
        %v1133 = vsel %vm625, %v1052, 0
        %v1136 = vsel %vm625, %v1053, 0
        %v1139 = vsel %vm625, %v1054, 0
        %v1142 = vsel %vm625, %v1055, 0
        %1144 = vmatprep.subr.bf16.mxu0 %v1081
        %1145 = vmatpush1.bf16.msra.mxu0 %v1080
        %1146 = vmatprep.subr.bf16.mxu0 %v1083
        %1147 = vmatpush1.bf16.msra.mxu0 %v1082
        %1148 = vmatprep.subr.bf16.mxu0 %v1085
        %1149 = vmatpush1.bf16.msra.mxu0 %v1084
        %1150 = vmatprep.subr.bf16.mxu0 %v1087
        %1151 = vmatpush1.bf16.msra.mxu0 %v1086
        %1152 = vmatprep.subr.bf16.mxu0 0
        %1153 = vmatpush1.bf16.msra.mxu0 0
        %1154 = vmatprep.subr.bf16.mxu0 0
        %1155 = vmatpush1.bf16.msra.mxu0 0
        %1156 = vmatprep.subr.bf16.mxu0 0
        %1157 = vmatpush1.bf16.msra.mxu0 0
        %1158 = vmatprep.subr.bf16.mxu0 0
        %1159 = vmatpush1.bf16.msra.mxu0 0
        %1160 = vmatprep.subr.bf16.mxu0 0
        %1161 = vmatpush1.bf16.msra.mxu0 0
        %1162 = vmatprep.subr.bf16.mxu0 0
        %1163 = vmatpush1.bf16.msra.mxu0 0
        %1164 = vmatprep.subr.bf16.mxu0 0
        %1165 = vmatpush1.bf16.msra.mxu0 0
        %1166 = vmatprep.subr.bf16.mxu0 0
        %1167 = vmatpush1.bf16.msra.mxu0 0
        %1168 = vmatprep.subr.bf16.mxu0 0
        %1169 = vmatpush1.bf16.msra.mxu0 0
        %1170 = vmatprep.subr.bf16.mxu0 0
        %1171 = vmatpush1.bf16.msra.mxu0 0
        %1172 = vmatprep.subr.bf16.mxu0 0
        %1173 = vmatpush1.bf16.msra.mxu0 0
        %1174 = vmatprep.subr.bf16.mxu0 0
        %1175 = vmatpush1.bf16.msra.mxu0 0
        %1176 = vmatprep.mubr.bf16.mxu0 0
        %1177 = vmatmul.mubr.bf16.gmra.mrb[0].mxu0 %v1097
        %v1178 = vpop.f32.mrb[0].mxu0
        %v1179 = vadd.f32 0.0, %v1178
        %v1180 = vpop.f32.mrb[0].mxu0
        %v1181 = vadd.f32 0.0, %v1180
        %v1182 = vpop.f32.mrb[0].mxu0
        %v1183 = vadd.f32 0.0, %v1182
        %v1184 = vpop.f32.mrb[0].mxu0
        %v1185 = vadd.f32 0.0, %v1184
        %1186 = vmatprep.mubr.bf16.mxu0 0
        %1187 = vmatmul.mubr.bf16.gmra.mrb[0].mxu0 %v1100
        %v1188 = vpop.f32.mrb[0].mxu0
        %v1189 = vadd.f32 0.0, %v1188
        %v1190 = vpop.f32.mrb[0].mxu0
        %v1191 = vadd.f32 0.0, %v1190
        %v1192 = vpop.f32.mrb[0].mxu0
        %v1193 = vadd.f32 0.0, %v1192
        %v1194 = vpop.f32.mrb[0].mxu0
        %v1195 = vadd.f32 0.0, %v1194
        %1196 = vmatprep.mubr.bf16.mxu0 0
        %1197 = vmatmul.mubr.bf16.gmra.mrb[0].mxu0 %v1103
        %v1198 = vpop.f32.mrb[0].mxu0
        %v1199 = vadd.f32 0.0, %v1198
        %v1200 = vpop.f32.mrb[0].mxu0
        %v1201 = vadd.f32 0.0, %v1200
        %v1202 = vpop.f32.mrb[0].mxu0
        %v1203 = vadd.f32 0.0, %v1202
        %v1204 = vpop.f32.mrb[0].mxu0
        %v1205 = vadd.f32 0.0, %v1204
        %1206 = vmatprep.mubr.bf16.mxu0 0
        %1207 = vmatmul.mubr.bf16.gmra.mrb[0].mxu0 %v1106
        %v1208 = vpop.f32.mrb[0].mxu0
        %v1209 = vadd.f32 0.0, %v1208
        %v1210 = vpop.f32.mrb[0].mxu0
        %v1211 = vadd.f32 0.0, %v1210
        %v1212 = vpop.f32.mrb[0].mxu0
        %v1213 = vadd.f32 0.0, %v1212
        %v1214 = vpop.f32.mrb[0].mxu0
        %v1215 = vadd.f32 0.0, %v1214
        %1216 = vmatprep.mubr.bf16.mxu0 0
        %1217 = vmatmul.mubr.bf16.gmra.mrb[0].mxu0 %v1109
        %v1218 = vpop.f32.mrb[0].mxu0
        %v1219 = vadd.f32 0.0, %v1218
        %v1220 = vpop.f32.mrb[0].mxu0
        %v1221 = vadd.f32 0.0, %v1220
        %v1222 = vpop.f32.mrb[0].mxu0
        %v1223 = vadd.f32 0.0, %v1222
        %v1224 = vpop.f32.mrb[0].mxu0
        %v1225 = vadd.f32 0.0, %v1224
        %1226 = vmatprep.mubr.bf16.mxu0 0
        %1227 = vmatmul.mubr.bf16.gmra.mrb[0].mxu0 %v1112
        %v1228 = vpop.f32.mrb[0].mxu0
        %v1229 = vadd.f32 0.0, %v1228
        %v1230 = vpop.f32.mrb[0].mxu0
        %v1231 = vadd.f32 0.0, %v1230
        %v1232 = vpop.f32.mrb[0].mxu0
        %v1233 = vadd.f32 0.0, %v1232
        %v1234 = vpop.f32.mrb[0].mxu0
        %v1235 = vadd.f32 0.0, %v1234
        %1236 = vmatprep.mubr.bf16.mxu0 0
        %1237 = vmatmul.mubr.bf16.gmra.mrb[0].mxu0 %v1115
        %v1238 = vpop.f32.mrb[0].mxu0
        %v1239 = vadd.f32 0.0, %v1238
        %v1240 = vpop.f32.mrb[0].mxu0
        %v1241 = vadd.f32 0.0, %v1240
        %v1242 = vpop.f32.mrb[0].mxu0
        %v1243 = vadd.f32 0.0, %v1242
        %v1244 = vpop.f32.mrb[0].mxu0
        %v1245 = vadd.f32 0.0, %v1244
        %1246 = vmatprep.mubr.bf16.mxu0 0
        %1247 = vmatmul.mubr.bf16.gmra.mrb[0].mxu0 %v1118
        %v1248 = vpop.f32.mrb[0].mxu0
        %v1249 = vadd.f32 0.0, %v1248
        %v1250 = vpop.f32.mrb[0].mxu0
        %v1251 = vadd.f32 0.0, %v1250
        %v1252 = vpop.f32.mrb[0].mxu0
        %v1253 = vadd.f32 0.0, %v1252
        %v1254 = vpop.f32.mrb[0].mxu0
        %v1255 = vadd.f32 0.0, %v1254
        %1256 = vmatprep.mubr.bf16.mxu0 0
        %1257 = vmatmul.mubr.bf16.gmra.mrb[0].mxu0 %v1121
        %v1258 = vpop.f32.mrb[0].mxu0
        %v1259 = vadd.f32 0.0, %v1258
        %v1260 = vpop.f32.mrb[0].mxu0
        %v1261 = vadd.f32 0.0, %v1260
        %v1262 = vpop.f32.mrb[0].mxu0
        %v1263 = vadd.f32 0.0, %v1262
        %v1264 = vpop.f32.mrb[0].mxu0
        %v1265 = vadd.f32 0.0, %v1264
        %1266 = vmatprep.mubr.bf16.mxu0 0
        %1267 = vmatmul.mubr.bf16.gmra.mrb[0].mxu0 %v1124
        %v1268 = vpop.f32.mrb[0].mxu0
        %v1269 = vadd.f32 0.0, %v1268
        %v1270 = vpop.f32.mrb[0].mxu0
        %v1271 = vadd.f32 0.0, %v1270
        %v1272 = vpop.f32.mrb[0].mxu0
        %v1273 = vadd.f32 0.0, %v1272
        %v1274 = vpop.f32.mrb[0].mxu0
        %v1275 = vadd.f32 0.0, %v1274
        %1276 = vmatprep.mubr.bf16.mxu0 0
        %1277 = vmatmul.mubr.bf16.gmra.mrb[0].mxu0 %v1127
        %v1278 = vpop.f32.mrb[0].mxu0
        %v1279 = vadd.f32 0.0, %v1278
        %v1280 = vpop.f32.mrb[0].mxu0
        %v1281 = vadd.f32 0.0, %v1280
        %v1282 = vpop.f32.mrb[0].mxu0
        %v1283 = vadd.f32 0.0, %v1282
        %v1284 = vpop.f32.mrb[0].mxu0
        %v1285 = vadd.f32 0.0, %v1284
        %1286 = vmatprep.mubr.bf16.mxu0 0
        %1287 = vmatmul.mubr.bf16.gmra.mrb[0].mxu0 %v1130
        %v1288 = vpop.f32.mrb[0].mxu0
        %v1289 = vadd.f32 0.0, %v1288
        %v1290 = vpop.f32.mrb[0].mxu0
        %v1291 = vadd.f32 0.0, %v1290
        %v1292 = vpop.f32.mrb[0].mxu0
        %v1293 = vadd.f32 0.0, %v1292
        %v1294 = vpop.f32.mrb[0].mxu0
        %v1295 = vadd.f32 0.0, %v1294
        %1296 = vmatprep.mubr.bf16.mxu0 0
        %1297 = vmatmul.mubr.bf16.gmra.mrb[0].mxu0 %v1133
        %v1298 = vpop.f32.mrb[0].mxu0
        %v1299 = vadd.f32 0.0, %v1298
        %v1300 = vpop.f32.mrb[0].mxu0
        %v1301 = vadd.f32 0.0, %v1300
        %v1302 = vpop.f32.mrb[0].mxu0
        %v1303 = vadd.f32 0.0, %v1302
        %v1304 = vpop.f32.mrb[0].mxu0
        %v1305 = vadd.f32 0.0, %v1304
        %1306 = vmatprep.mubr.bf16.mxu0 0
        %1307 = vmatmul.mubr.bf16.gmra.mrb[0].mxu0 %v1136
        %v1308 = vpop.f32.mrb[0].mxu0
        %v1309 = vadd.f32 0.0, %v1308
        %v1310 = vpop.f32.mrb[0].mxu0
        %v1311 = vadd.f32 0.0, %v1310
        %v1312 = vpop.f32.mrb[0].mxu0
        %v1313 = vadd.f32 0.0, %v1312
        %v1314 = vpop.f32.mrb[0].mxu0
        %v1315 = vadd.f32 0.0, %v1314
        %1316 = vmatprep.mubr.bf16.mxu0 0
        %1317 = vmatmul.mubr.bf16.gmra.mrb[0].mxu0 %v1139
        %v1318 = vpop.f32.mrb[0].mxu0
        %v1319 = vadd.f32 0.0, %v1318
        %v1320 = vpop.f32.mrb[0].mxu0
        %v1321 = vadd.f32 0.0, %v1320
        %v1322 = vpop.f32.mrb[0].mxu0
        %v1323 = vadd.f32 0.0, %v1322
        %v1324 = vpop.f32.mrb[0].mxu0
        %v1325 = vadd.f32 0.0, %v1324
        %1326 = vmatprep.mubr.bf16.mxu0 0
        %1327 = vmatmul.mubr.bf16.gmra.mrb[0].mxu0 %v1142
        %v1328 = vpop.f32.mrb[0].mxu0
        %v1329 = vadd.f32 0.0, %v1328
        %v1330 = vpop.f32.mrb[0].mxu0
        %v1331 = vadd.f32 0.0, %v1330
        %v1332 = vpop.f32.mrb[0].mxu0
        %v1333 = vadd.f32 0.0, %v1332
        %v1334 = vpop.f32.mrb[0].mxu0
        %v1335 = vadd.f32 0.0, %v1334
        %1336 = vdwg.mxu0
        %v1337 = vld [vmem:[#allocation2] sm:$0xff]
        %v1338 = vld [vmem:[#allocation2 + $0x8] sm:$0xff]
        %v1339 = vld [vmem:[#allocation2 + $0x10] sm:$0xff]
        %v1340 = vld [vmem:[#allocation2 + $0x18] sm:$0xff]
        %v1341 = vld [vmem:[#allocation2 + $0x20] sm:$0xff]
        %v1342 = vld [vmem:[#allocation2 + $0x28] sm:$0xff]
        %v1343 = vld [vmem:[#allocation2 + $0x30] sm:$0xff]
        %v1344 = vld [vmem:[#allocation2 + $0x38] sm:$0xff]
        %v1345 = vld [vmem:[#allocation2 + $0x40] sm:$0xff]
        %v1346 = vld [vmem:[#allocation2 + $0x48] sm:$0xff]
        %v1347 = vld [vmem:[#allocation2 + $0x50] sm:$0xff]
        %v1348 = vld [vmem:[#allocation2 + $0x58] sm:$0xff]
        %v1349 = vld [vmem:[#allocation2 + $0x60] sm:$0xff]
        %v1350 = vld [vmem:[#allocation2 + $0x68] sm:$0xff]
        %v1351 = vld [vmem:[#allocation2 + $0x70] sm:$0xff]
        %v1352 = vld [vmem:[#allocation2 + $0x78] sm:$0xff]
        %v1353 = vld [vmem:[#allocation2 + $0x80] sm:$0xff]
        %v1354 = vld [vmem:[#allocation2 + $0x88] sm:$0xff]
        %v1355 = vld [vmem:[#allocation2 + $0x90] sm:$0xff]
        %v1356 = vld [vmem:[#allocation2 + $0x98] sm:$0xff]
        %v1357 = vld [vmem:[#allocation2 + $0xa0] sm:$0xff]
        %v1358 = vld [vmem:[#allocation2 + $0xa8] sm:$0xff]
        %v1359 = vld [vmem:[#allocation2 + $0xb0] sm:$0xff]
        %v1360 = vld [vmem:[#allocation2 + $0xb8] sm:$0xff]
        %v1361 = vld [vmem:[#allocation2 + $0xc0] sm:$0xff]
        %v1362 = vld [vmem:[#allocation2 + $0xc8] sm:$0xff]
        %v1363 = vld [vmem:[#allocation2 + $0xd0] sm:$0xff]
        %v1364 = vld [vmem:[#allocation2 + $0xd8] sm:$0xff]
        %v1365 = vld [vmem:[#allocation2 + $0xe0] sm:$0xff]
        %v1366 = vld [vmem:[#allocation2 + $0xe8] sm:$0xff]
        %v1367 = vld [vmem:[#allocation2 + $0xf0] sm:$0xff]
        %v1368 = vld [vmem:[#allocation2 + $0xf8] sm:$0xff]
        %v1369 = vld [vmem:[#allocation2 + $0x100] sm:$0xff]
        %v1370 = vld [vmem:[#allocation2 + $0x108] sm:$0xff]
        %v1371 = vld [vmem:[#allocation2 + $0x110] sm:$0xff]
        %v1372 = vld [vmem:[#allocation2 + $0x118] sm:$0xff]
        %v1373 = vld [vmem:[#allocation2 + $0x120] sm:$0xff]
        %v1374 = vld [vmem:[#allocation2 + $0x128] sm:$0xff]
        %v1375 = vld [vmem:[#allocation2 + $0x130] sm:$0xff]
        %v1376 = vld [vmem:[#allocation2 + $0x138] sm:$0xff]
        %v1377 = vld [vmem:[#allocation2 + $0x140] sm:$0xff]
        %v1378 = vld [vmem:[#allocation2 + $0x148] sm:$0xff]
        %v1379 = vld [vmem:[#allocation2 + $0x150] sm:$0xff]
        %v1380 = vld [vmem:[#allocation2 + $0x158] sm:$0xff]
        %v1381 = vld [vmem:[#allocation2 + $0x160] sm:$0xff]
        %v1382 = vld [vmem:[#allocation2 + $0x168] sm:$0xff]
        %v1383 = vld [vmem:[#allocation2 + $0x170] sm:$0xff]
        %v1384 = vld [vmem:[#allocation2 + $0x178] sm:$0xff]
        %v1385 = vld [vmem:[#allocation2 + $0x180] sm:$0xff]
        %v1386 = vld [vmem:[#allocation2 + $0x188] sm:$0xff]
        %v1387 = vld [vmem:[#allocation2 + $0x190] sm:$0xff]
        %v1388 = vld [vmem:[#allocation2 + $0x198] sm:$0xff]
        %v1389 = vld [vmem:[#allocation2 + $0x1a0] sm:$0xff]
        %v1390 = vld [vmem:[#allocation2 + $0x1a8] sm:$0xff]
        %v1391 = vld [vmem:[#allocation2 + $0x1b0] sm:$0xff]
        %v1392 = vld [vmem:[#allocation2 + $0x1b8] sm:$0xff]
        %v1393 = vld [vmem:[#allocation2 + $0x1c0] sm:$0xff]
        %v1394 = vld [vmem:[#allocation2 + $0x1c8] sm:$0xff]
        %v1395 = vld [vmem:[#allocation2 + $0x1d0] sm:$0xff]
        %v1396 = vld [vmem:[#allocation2 + $0x1d8] sm:$0xff]
        %v1397 = vld [vmem:[#allocation2 + $0x1e0] sm:$0xff]
        %v1398 = vld [vmem:[#allocation2 + $0x1e8] sm:$0xff]
        %v1399 = vld [vmem:[#allocation2 + $0x1f0] sm:$0xff]
        %v1400 = vld [vmem:[#allocation2 + $0x1f8] sm:$0xff]
        %v1401 = vadd.f32 %v1337, %v1179
        %v1402 = vadd.f32 %v1338, %v1181
        %v1403 = vadd.f32 %v1339, %v1183
        %v1404 = vadd.f32 %v1340, %v1185
        %v1405 = vadd.f32 %v1341, %v1189
        %v1406 = vadd.f32 %v1342, %v1191
        %v1407 = vadd.f32 %v1343, %v1193
        %v1408 = vadd.f32 %v1344, %v1195
        %v1409 = vadd.f32 %v1345, %v1199
        %v1410 = vadd.f32 %v1346, %v1201
        %v1411 = vadd.f32 %v1347, %v1203
        %v1412 = vadd.f32 %v1348, %v1205
        %v1413 = vadd.f32 %v1349, %v1209
        %v1414 = vadd.f32 %v1350, %v1211
        %v1415 = vadd.f32 %v1351, %v1213
        %v1416 = vadd.f32 %v1352, %v1215
        %v1417 = vadd.f32 %v1353, %v1219
        %v1418 = vadd.f32 %v1354, %v1221
        %v1419 = vadd.f32 %v1355, %v1223
        %v1420 = vadd.f32 %v1356, %v1225
        %v1421 = vadd.f32 %v1357, %v1229
        %v1422 = vadd.f32 %v1358, %v1231
        %v1423 = vadd.f32 %v1359, %v1233
        %v1424 = vadd.f32 %v1360, %v1235
        %v1425 = vadd.f32 %v1361, %v1239
        %v1426 = vadd.f32 %v1362, %v1241
        %v1427 = vadd.f32 %v1363, %v1243
        %v1428 = vadd.f32 %v1364, %v1245
        %v1429 = vadd.f32 %v1365, %v1249
        %v1430 = vadd.f32 %v1366, %v1251
        %v1431 = vadd.f32 %v1367, %v1253
        %v1432 = vadd.f32 %v1368, %v1255
        %v1433 = vadd.f32 %v1369, %v1259
        %v1434 = vadd.f32 %v1370, %v1261
        %v1435 = vadd.f32 %v1371, %v1263
        %v1436 = vadd.f32 %v1372, %v1265
        %v1437 = vadd.f32 %v1373, %v1269
        %v1438 = vadd.f32 %v1374, %v1271
        %v1439 = vadd.f32 %v1375, %v1273
        %v1440 = vadd.f32 %v1376, %v1275
        %v1441 = vadd.f32 %v1377, %v1279
        %v1442 = vadd.f32 %v1378, %v1281
        %v1443 = vadd.f32 %v1379, %v1283
        %v1444 = vadd.f32 %v1380, %v1285
        %v1445 = vadd.f32 %v1381, %v1289
        %v1446 = vadd.f32 %v1382, %v1291
        %v1447 = vadd.f32 %v1383, %v1293
        %v1448 = vadd.f32 %v1384, %v1295
        %v1449 = vadd.f32 %v1385, %v1299
        %v1450 = vadd.f32 %v1386, %v1301
        %v1451 = vadd.f32 %v1387, %v1303
        %v1452 = vadd.f32 %v1388, %v1305
        %v1453 = vadd.f32 %v1389, %v1309
        %v1454 = vadd.f32 %v1390, %v1311
        %v1455 = vadd.f32 %v1391, %v1313
        %v1456 = vadd.f32 %v1392, %v1315
        %v1457 = vadd.f32 %v1393, %v1319
        %v1458 = vadd.f32 %v1394, %v1321
        %v1459 = vadd.f32 %v1395, %v1323
        %v1460 = vadd.f32 %v1396, %v1325
        %v1461 = vadd.f32 %v1397, %v1329
        %v1462 = vadd.f32 %v1398, %v1331
        %v1463 = vadd.f32 %v1399, %v1333
        %v1464 = vadd.f32 %v1400, %v1335
        %1465 = vst [vmem:[#allocation2] sm:$0xff] %v1401
        %1466 = vst.msk [vmem:[#allocation2 + $0x8] sm:$0xff] %vm625, %v1402
        %1467 = vst [vmem:[#allocation2 + $0x10] sm:$0xff] %v1403
        %1468 = vst.msk [vmem:[#allocation2 + $0x18] sm:$0xff] %vm625, %v1404
        %1469 = vst [vmem:[#allocation2 + $0x20] sm:$0xff] %v1405
        %1470 = vst.msk [vmem:[#allocation2 + $0x28] sm:$0xff] %vm625, %v1406
        %1471 = vst [vmem:[#allocation2 + $0x30] sm:$0xff] %v1407
        %1472 = vst.msk [vmem:[#allocation2 + $0x38] sm:$0xff] %vm625, %v1408
        %1473 = vst [vmem:[#allocation2 + $0x40] sm:$0xff] %v1409
        %1474 = vst.msk [vmem:[#allocation2 + $0x48] sm:$0xff] %vm625, %v1410
        %1475 = vst [vmem:[#allocation2 + $0x50] sm:$0xff] %v1411
        %1476 = vst.msk [vmem:[#allocation2 + $0x58] sm:$0xff] %vm625, %v1412
        %1477 = vst [vmem:[#allocation2 + $0x60] sm:$0xff] %v1413
        %1478 = vst.msk [vmem:[#allocation2 + $0x68] sm:$0xff] %vm625, %v1414
        %1479 = vst [vmem:[#allocation2 + $0x70] sm:$0xff] %v1415
        %1480 = vst.msk [vmem:[#allocation2 + $0x78] sm:$0xff] %vm625, %v1416
        %1481 = vst [vmem:[#allocation2 + $0x80] sm:$0xff] %v1417
        %1482 = vst.msk [vmem:[#allocation2 + $0x88] sm:$0xff] %vm625, %v1418
        %1483 = vst [vmem:[#allocation2 + $0x90] sm:$0xff] %v1419
        %1484 = vst.msk [vmem:[#allocation2 + $0x98] sm:$0xff] %vm625, %v1420
        %1485 = vst [vmem:[#allocation2 + $0xa0] sm:$0xff] %v1421
        %1486 = vst.msk [vmem:[#allocation2 + $0xa8] sm:$0xff] %vm625, %v1422
        %1487 = vst [vmem:[#allocation2 + $0xb0] sm:$0xff] %v1423
        %1488 = vst.msk [vmem:[#allocation2 + $0xb8] sm:$0xff] %vm625, %v1424
        %1489 = vst [vmem:[#allocation2 + $0xc0] sm:$0xff] %v1425
        %1490 = vst.msk [vmem:[#allocation2 + $0xc8] sm:$0xff] %vm625, %v1426
        %1491 = vst [vmem:[#allocation2 + $0xd0] sm:$0xff] %v1427
        %1492 = vst.msk [vmem:[#allocation2 + $0xd8] sm:$0xff] %vm625, %v1428
        %1493 = vst [vmem:[#allocation2 + $0xe0] sm:$0xff] %v1429
        %1494 = vst.msk [vmem:[#allocation2 + $0xe8] sm:$0xff] %vm625, %v1430
        %1495 = vst [vmem:[#allocation2 + $0xf0] sm:$0xff] %v1431
        %1496 = vst.msk [vmem:[#allocation2 + $0xf8] sm:$0xff] %vm625, %v1432
        %1497 = vst [vmem:[#allocation2 + $0x100] sm:$0xff] %v1433
        %1498 = vst.msk [vmem:[#allocation2 + $0x108] sm:$0xff] %vm625, %v1434
        %1499 = vst [vmem:[#allocation2 + $0x110] sm:$0xff] %v1435
        %1500 = vst.msk [vmem:[#allocation2 + $0x118] sm:$0xff] %vm625, %v1436
        %1501 = vst [vmem:[#allocation2 + $0x120] sm:$0xff] %v1437
        %1502 = vst.msk [vmem:[#allocation2 + $0x128] sm:$0xff] %vm625, %v1438
        %1503 = vst [vmem:[#allocation2 + $0x130] sm:$0xff] %v1439
        %1504 = vst.msk [vmem:[#allocation2 + $0x138] sm:$0xff] %vm625, %v1440
        %1505 = vst [vmem:[#allocation2 + $0x140] sm:$0xff] %v1441
        %1506 = vst.msk [vmem:[#allocation2 + $0x148] sm:$0xff] %vm625, %v1442
        %1507 = vst [vmem:[#allocation2 + $0x150] sm:$0xff] %v1443
        %1508 = vst.msk [vmem:[#allocation2 + $0x158] sm:$0xff] %vm625, %v1444
        %1509 = vst [vmem:[#allocation2 + $0x160] sm:$0xff] %v1445
        %1510 = vst.msk [vmem:[#allocation2 + $0x168] sm:$0xff] %vm625, %v1446
        %1511 = vst [vmem:[#allocation2 + $0x170] sm:$0xff] %v1447
        %1512 = vst.msk [vmem:[#allocation2 + $0x178] sm:$0xff] %vm625, %v1448
        %1513 = vst [vmem:[#allocation2 + $0x180] sm:$0xff] %v1449
        %1514 = vst.msk [vmem:[#allocation2 + $0x188] sm:$0xff] %vm625, %v1450
        %1515 = vst [vmem:[#allocation2 + $0x190] sm:$0xff] %v1451
        %1516 = vst.msk [vmem:[#allocation2 + $0x198] sm:$0xff] %vm625, %v1452
        %1517 = vst [vmem:[#allocation2 + $0x1a0] sm:$0xff] %v1453
        %1518 = vst.msk [vmem:[#allocation2 + $0x1a8] sm:$0xff] %vm625, %v1454
        %1519 = vst [vmem:[#allocation2 + $0x1b0] sm:$0xff] %v1455
        %1520 = vst.msk [vmem:[#allocation2 + $0x1b8] sm:$0xff] %vm625, %v1456
        %1521 = vst [vmem:[#allocation2 + $0x1c0] sm:$0xff] %v1457
        %1522 = vst.msk [vmem:[#allocation2 + $0x1c8] sm:$0xff] %vm625, %v1458
        %1523 = vst [vmem:[#allocation2 + $0x1d0] sm:$0xff] %v1459
        %1524 = vst.msk [vmem:[#allocation2 + $0x1d8] sm:$0xff] %vm625, %v1460
        %1525 = vst [vmem:[#allocation2 + $0x1e0] sm:$0xff] %v1461
        %1526 = vst.msk [vmem:[#allocation2 + $0x1e8] sm:$0xff] %vm625, %v1462
        %1527 = vst [vmem:[#allocation2 + $0x1f0] sm:$0xff] %v1463
        %1528 = vst.msk [vmem:[#allocation2 + $0x1f8] sm:$0xff] %vm625, %v1464
        %s1529 = sadd.s32 %s461, 2
        %s1530 = smul.u32 %s1529, 4
        %s1531 = smul.addr %s1530, 4
        %s1532 = scalar_lea.vmem %s388, %s1531 [#allocation3]
        %v1533 = vld [vmem:[%s1532] sm:$0xf]
        %v1534 = vld [vmem:[%s1532 + $0x4] sm:$0xf]
        %v1535 = vld [vmem:[%s1532 + $0x8] sm:$0xf]
        %v1536 = vld [vmem:[%s1532 + $0xc] sm:$0xf]
        %v1537 = vld [vmem:[%s1532 + $0x10] sm:$0xf]
        %v1538 = vld [vmem:[%s1532 + $0x14] sm:$0xf]
        %v1539 = vld [vmem:[%s1532 + $0x18] sm:$0xf]
        %v1540 = vld [vmem:[%s1532 + $0x1c] sm:$0xf]
        %v1541 = vld [vmem:[%s1532 + $0x20] sm:$0xf]
        %v1542 = vld [vmem:[%s1532 + $0x24] sm:$0xf]
        %v1543 = vld [vmem:[%s1532 + $0x28] sm:$0xf]
        %v1544 = vld [vmem:[%s1532 + $0x2c] sm:$0xf]
        %v1545 = vld [vmem:[%s1532 + $0x30] sm:$0xf]
        %v1546 = vld [vmem:[%s1532 + $0x34] sm:$0xf]
        %v1547 = vld [vmem:[%s1532 + $0x38] sm:$0xf]
        %v1548 = vld [vmem:[%s1532 + $0x3c] sm:$0xf]
        %v1549 = vld [vmem:[%s1532 + $0x40] sm:$0xf]
        %v1550 = vld [vmem:[%s1532 + $0x44] sm:$0xf]
        %v1551 = vld [vmem:[%s1532 + $0x48] sm:$0xf]
        %v1552 = vld [vmem:[%s1532 + $0x4c] sm:$0xf]
        %v1553 = vld [vmem:[%s1532 + $0x50] sm:$0xf]
        %v1554 = vld [vmem:[%s1532 + $0x54] sm:$0xf]
        %v1555 = vld [vmem:[%s1532 + $0x58] sm:$0xf]
        %v1556 = vld [vmem:[%s1532 + $0x5c] sm:$0xf]
        %v1557 = vld [vmem:[%s1532 + $0x60] sm:$0xf]
        %v1558 = vld [vmem:[%s1532 + $0x64] sm:$0xf]
        %v1559 = vld [vmem:[%s1532 + $0x68] sm:$0xf]
        %v1560 = vld [vmem:[%s1532 + $0x6c] sm:$0xf]
        %v1561 = vld [vmem:[%s1532 + $0x70] sm:$0xf]
        %v1562 = vld [vmem:[%s1532 + $0x74] sm:$0xf]
        %v1563 = vld [vmem:[%s1532 + $0x78] sm:$0xf]
        %v1564 = vld [vmem:[%s1532 + $0x7c] sm:$0xf]
        %s1565 = scalar_lea.vmem [#allocation8], 128
        %v1566 = vld [vmem:[%s1565] sm:$0xff]
        %v1567 = vld [vmem:[%s1565 + $0x8] sm:$0xff]
        %v1568 = vld [vmem:[%s1565 + $0x10] sm:$0xff]
        %v1569 = vld [vmem:[%s1565 + $0x18] sm:$0xff]
        %v1570 = vld [vmem:[%s1565 + $0x20] sm:$0xff]
        %v1571 = vld [vmem:[%s1565 + $0x28] sm:$0xff]
        %v1572 = vld [vmem:[%s1565 + $0x30] sm:$0xff]
        %v1573 = vld [vmem:[%s1565 + $0x38] sm:$0xff]
        %v1606 = vunpack.c.l.b16 %v1533
        %v1607 = vunpack.c.l.b16 %v1534
        %v1608 = vunpack.c.l.b16 %v1535
        %v1609 = vunpack.c.l.b16 %v1536
        %v1610 = vunpack.c.l.b16 %v1537
        %v1611 = vunpack.c.l.b16 %v1538
        %v1612 = vunpack.c.l.b16 %v1539
        %v1613 = vunpack.c.l.b16 %v1540
        %v1614 = vunpack.c.l.b16 %v1541
        %v1615 = vunpack.c.l.b16 %v1542
        %v1616 = vunpack.c.l.b16 %v1543
        %v1617 = vunpack.c.l.b16 %v1544
        %v1618 = vunpack.c.l.b16 %v1545
        %v1619 = vunpack.c.l.b16 %v1546
        %v1620 = vunpack.c.l.b16 %v1547
        %v1621 = vunpack.c.l.b16 %v1548
        %v1622 = vunpack.c.l.b16 %v1549
        %v1623 = vunpack.c.l.b16 %v1550
        %v1624 = vunpack.c.l.b16 %v1551
        %v1625 = vunpack.c.l.b16 %v1552
        %v1626 = vunpack.c.l.b16 %v1553
        %v1627 = vunpack.c.l.b16 %v1554
        %v1628 = vunpack.c.l.b16 %v1555
        %v1629 = vunpack.c.l.b16 %v1556
        %v1630 = vunpack.c.l.b16 %v1557
        %v1631 = vunpack.c.l.b16 %v1558
        %v1632 = vunpack.c.l.b16 %v1559
        %v1633 = vunpack.c.l.b16 %v1560
        %v1634 = vunpack.c.l.b16 %v1561
        %v1635 = vunpack.c.l.b16 %v1562
        %v1636 = vunpack.c.l.b16 %v1563
        %v1637 = vunpack.c.l.b16 %v1564
        %v1638 = vpack.c.b16 %v1607, %v1606
        %v1639 = vpack.c.b16 %v1609, %v1608
        %v1640 = vpack.c.b16 %v1611, %v1610
        %v1641 = vpack.c.b16 %v1613, %v1612
        %v1642 = vpack.c.b16 %v1615, %v1614
        %v1643 = vpack.c.b16 %v1617, %v1616
        %v1644 = vpack.c.b16 %v1619, %v1618
        %v1645 = vpack.c.b16 %v1621, %v1620
        %v1646 = vpack.c.b16 %v1623, %v1622
        %v1647 = vpack.c.b16 %v1625, %v1624
        %v1648 = vpack.c.b16 %v1627, %v1626
        %v1649 = vpack.c.b16 %v1629, %v1628
        %v1650 = vpack.c.b16 %v1631, %v1630
        %v1651 = vpack.c.b16 %v1633, %v1632
        %v1652 = vpack.c.b16 %v1635, %v1634
        %v1653 = vpack.c.b16 %v1637, %v1636
        %v1662 = vunpack.c.l.b16 %v1566
        %v1663 = vunpack.c.h.b16 %v1566
        %v1664 = vunpack.c.l.b16 %v1567
        %v1665 = vunpack.c.h.b16 %v1567
        %v1666 = vunpack.c.l.b16 %v1568
        %v1667 = vunpack.c.h.b16 %v1568
        %v1668 = vunpack.c.l.b16 %v1569
        %v1669 = vunpack.c.h.b16 %v1569
        %v1670 = vunpack.c.l.b16 %v1570
        %v1671 = vunpack.c.h.b16 %v1570
        %v1672 = vunpack.c.l.b16 %v1571
        %v1673 = vunpack.c.h.b16 %v1571
        %v1674 = vunpack.c.l.b16 %v1572
        %v1675 = vunpack.c.h.b16 %v1572
        %v1676 = vunpack.c.l.b16 %v1573
        %v1677 = vunpack.c.h.b16 %v1573
        %v1678 = vpack.c.b16 %v1664, %v1662
        %v1679 = vpack.c.b16 %v1665, %v1663
        %v1680 = vpack.c.b16 %v1668, %v1666
        %v1681 = vpack.c.b16 %v1669, %v1667
        %v1682 = vpack.c.b16 %v1672, %v1670
        %v1683 = vpack.c.b16 %v1673, %v1671
        %v1684 = vpack.c.b16 %v1676, %v1674
        %v1685 = vpack.c.b16 %v1677, %v1675
        %v1695 = vsel %vm625, %v1638, 0
        %v1698 = vsel %vm625, %v1639, 0
        %v1701 = vsel %vm625, %v1640, 0
        %v1704 = vsel %vm625, %v1641, 0
        %v1707 = vsel %vm625, %v1642, 0
        %v1710 = vsel %vm625, %v1643, 0
        %v1713 = vsel %vm625, %v1644, 0
        %v1716 = vsel %vm625, %v1645, 0
        %v1719 = vsel %vm625, %v1646, 0
        %v1722 = vsel %vm625, %v1647, 0
        %v1725 = vsel %vm625, %v1648, 0
        %v1728 = vsel %vm625, %v1649, 0
        %v1731 = vsel %vm625, %v1650, 0
        %v1734 = vsel %vm625, %v1651, 0
        %v1737 = vsel %vm625, %v1652, 0
        %v1740 = vsel %vm625, %v1653, 0
        %1742 = vmatprep.subr.bf16.mxu0 %v1679
        %1743 = vmatpush1.bf16.msra.mxu0 %v1678
        %1744 = vmatprep.subr.bf16.mxu0 %v1681
        %1745 = vmatpush1.bf16.msra.mxu0 %v1680
        %1746 = vmatprep.subr.bf16.mxu0 %v1683
        %1747 = vmatpush1.bf16.msra.mxu0 %v1682
        %1748 = vmatprep.subr.bf16.mxu0 %v1685
        %1749 = vmatpush1.bf16.msra.mxu0 %v1684
        %1750 = vmatprep.subr.bf16.mxu0 0
        %1751 = vmatpush1.bf16.msra.mxu0 0
        %1752 = vmatprep.subr.bf16.mxu0 0
        %1753 = vmatpush1.bf16.msra.mxu0 0
        %1754 = vmatprep.subr.bf16.mxu0 0
        %1755 = vmatpush1.bf16.msra.mxu0 0
        %1756 = vmatprep.subr.bf16.mxu0 0
        %1757 = vmatpush1.bf16.msra.mxu0 0
        %1758 = vmatprep.subr.bf16.mxu0 0
        %1759 = vmatpush1.bf16.msra.mxu0 0
        %1760 = vmatprep.subr.bf16.mxu0 0
        %1761 = vmatpush1.bf16.msra.mxu0 0
        %1762 = vmatprep.subr.bf16.mxu0 0
        %1763 = vmatpush1.bf16.msra.mxu0 0
        %1764 = vmatprep.subr.bf16.mxu0 0
        %1765 = vmatpush1.bf16.msra.mxu0 0
        %1766 = vmatprep.subr.bf16.mxu0 0
        %1767 = vmatpush1.bf16.msra.mxu0 0
        %1768 = vmatprep.subr.bf16.mxu0 0
        %1769 = vmatpush1.bf16.msra.mxu0 0
        %1770 = vmatprep.subr.bf16.mxu0 0
        %1771 = vmatpush1.bf16.msra.mxu0 0
        %1772 = vmatprep.subr.bf16.mxu0 0
        %1773 = vmatpush1.bf16.msra.mxu0 0
        %1774 = vmatprep.mubr.bf16.mxu0 0
        %1775 = vmatmul.mubr.bf16.gmra.mrb[0].mxu0 %v1695
        %v1776 = vpop.f32.mrb[0].mxu0
        %v1777 = vadd.f32 0.0, %v1776
        %v1778 = vpop.f32.mrb[0].mxu0
        %v1779 = vadd.f32 0.0, %v1778
        %v1780 = vpop.f32.mrb[0].mxu0
        %v1781 = vadd.f32 0.0, %v1780
        %v1782 = vpop.f32.mrb[0].mxu0
        %v1783 = vadd.f32 0.0, %v1782
        %1784 = vmatprep.mubr.bf16.mxu0 0
        %1785 = vmatmul.mubr.bf16.gmra.mrb[0].mxu0 %v1698
        %v1786 = vpop.f32.mrb[0].mxu0
        %v1787 = vadd.f32 0.0, %v1786
        %v1788 = vpop.f32.mrb[0].mxu0
        %v1789 = vadd.f32 0.0, %v1788
        %v1790 = vpop.f32.mrb[0].mxu0
        %v1791 = vadd.f32 0.0, %v1790
        %v1792 = vpop.f32.mrb[0].mxu0
        %v1793 = vadd.f32 0.0, %v1792
        %1794 = vmatprep.mubr.bf16.mxu0 0
        %1795 = vmatmul.mubr.bf16.gmra.mrb[0].mxu0 %v1701
        %v1796 = vpop.f32.mrb[0].mxu0
        %v1797 = vadd.f32 0.0, %v1796
        %v1798 = vpop.f32.mrb[0].mxu0
        %v1799 = vadd.f32 0.0, %v1798
        %v1800 = vpop.f32.mrb[0].mxu0
        %v1801 = vadd.f32 0.0, %v1800
        %v1802 = vpop.f32.mrb[0].mxu0
        %v1803 = vadd.f32 0.0, %v1802
        %1804 = vmatprep.mubr.bf16.mxu0 0
        %1805 = vmatmul.mubr.bf16.gmra.mrb[0].mxu0 %v1704
        %v1806 = vpop.f32.mrb[0].mxu0
        %v1807 = vadd.f32 0.0, %v1806
        %v1808 = vpop.f32.mrb[0].mxu0
        %v1809 = vadd.f32 0.0, %v1808
        %v1810 = vpop.f32.mrb[0].mxu0
        %v1811 = vadd.f32 0.0, %v1810
        %v1812 = vpop.f32.mrb[0].mxu0
        %v1813 = vadd.f32 0.0, %v1812
        %1814 = vmatprep.mubr.bf16.mxu0 0
        %1815 = vmatmul.mubr.bf16.gmra.mrb[0].mxu0 %v1707
        %v1816 = vpop.f32.mrb[0].mxu0
        %v1817 = vadd.f32 0.0, %v1816
        %v1818 = vpop.f32.mrb[0].mxu0
        %v1819 = vadd.f32 0.0, %v1818
        %v1820 = vpop.f32.mrb[0].mxu0
        %v1821 = vadd.f32 0.0, %v1820
        %v1822 = vpop.f32.mrb[0].mxu0
        %v1823 = vadd.f32 0.0, %v1822
        %1824 = vmatprep.mubr.bf16.mxu0 0
        %1825 = vmatmul.mubr.bf16.gmra.mrb[0].mxu0 %v1710
        %v1826 = vpop.f32.mrb[0].mxu0
        %v1827 = vadd.f32 0.0, %v1826
        %v1828 = vpop.f32.mrb[0].mxu0
        %v1829 = vadd.f32 0.0, %v1828
        %v1830 = vpop.f32.mrb[0].mxu0
        %v1831 = vadd.f32 0.0, %v1830
        %v1832 = vpop.f32.mrb[0].mxu0
        %v1833 = vadd.f32 0.0, %v1832
        %1834 = vmatprep.mubr.bf16.mxu0 0
        %1835 = vmatmul.mubr.bf16.gmra.mrb[0].mxu0 %v1713
        %v1836 = vpop.f32.mrb[0].mxu0
        %v1837 = vadd.f32 0.0, %v1836
        %v1838 = vpop.f32.mrb[0].mxu0
        %v1839 = vadd.f32 0.0, %v1838
        %v1840 = vpop.f32.mrb[0].mxu0
        %v1841 = vadd.f32 0.0, %v1840
        %v1842 = vpop.f32.mrb[0].mxu0
        %v1843 = vadd.f32 0.0, %v1842
        %1844 = vmatprep.mubr.bf16.mxu0 0
        %1845 = vmatmul.mubr.bf16.gmra.mrb[0].mxu0 %v1716
        %v1846 = vpop.f32.mrb[0].mxu0
        %v1847 = vadd.f32 0.0, %v1846
        %v1848 = vpop.f32.mrb[0].mxu0
        %v1849 = vadd.f32 0.0, %v1848
        %v1850 = vpop.f32.mrb[0].mxu0
        %v1851 = vadd.f32 0.0, %v1850
        %v1852 = vpop.f32.mrb[0].mxu0
        %v1853 = vadd.f32 0.0, %v1852
        %1854 = vmatprep.mubr.bf16.mxu0 0
        %1855 = vmatmul.mubr.bf16.gmra.mrb[0].mxu0 %v1719
        %v1856 = vpop.f32.mrb[0].mxu0
        %v1857 = vadd.f32 0.0, %v1856
        %v1858 = vpop.f32.mrb[0].mxu0
        %v1859 = vadd.f32 0.0, %v1858
        %v1860 = vpop.f32.mrb[0].mxu0
        %v1861 = vadd.f32 0.0, %v1860
        %v1862 = vpop.f32.mrb[0].mxu0
        %v1863 = vadd.f32 0.0, %v1862
        %1864 = vmatprep.mubr.bf16.mxu0 0
        %1865 = vmatmul.mubr.bf16.gmra.mrb[0].mxu0 %v1722
        %v1866 = vpop.f32.mrb[0].mxu0
        %v1867 = vadd.f32 0.0, %v1866
        %v1868 = vpop.f32.mrb[0].mxu0
        %v1869 = vadd.f32 0.0, %v1868
        %v1870 = vpop.f32.mrb[0].mxu0
        %v1871 = vadd.f32 0.0, %v1870
        %v1872 = vpop.f32.mrb[0].mxu0
        %v1873 = vadd.f32 0.0, %v1872
        %1874 = vmatprep.mubr.bf16.mxu0 0
        %1875 = vmatmul.mubr.bf16.gmra.mrb[0].mxu0 %v1725
        %v1876 = vpop.f32.mrb[0].mxu0
        %v1877 = vadd.f32 0.0, %v1876
        %v1878 = vpop.f32.mrb[0].mxu0
        %v1879 = vadd.f32 0.0, %v1878
        %v1880 = vpop.f32.mrb[0].mxu0
        %v1881 = vadd.f32 0.0, %v1880
        %v1882 = vpop.f32.mrb[0].mxu0
        %v1883 = vadd.f32 0.0, %v1882
        %1884 = vmatprep.mubr.bf16.mxu0 0
        %1885 = vmatmul.mubr.bf16.gmra.mrb[0].mxu0 %v1728
        %v1886 = vpop.f32.mrb[0].mxu0
        %v1887 = vadd.f32 0.0, %v1886
        %v1888 = vpop.f32.mrb[0].mxu0
        %v1889 = vadd.f32 0.0, %v1888
        %v1890 = vpop.f32.mrb[0].mxu0
        %v1891 = vadd.f32 0.0, %v1890
        %v1892 = vpop.f32.mrb[0].mxu0
        %v1893 = vadd.f32 0.0, %v1892
        %1894 = vmatprep.mubr.bf16.mxu0 0
        %1895 = vmatmul.mubr.bf16.gmra.mrb[0].mxu0 %v1731
        %v1896 = vpop.f32.mrb[0].mxu0
        %v1897 = vadd.f32 0.0, %v1896
        %v1898 = vpop.f32.mrb[0].mxu0
        %v1899 = vadd.f32 0.0, %v1898
        %v1900 = vpop.f32.mrb[0].mxu0
        %v1901 = vadd.f32 0.0, %v1900
        %v1902 = vpop.f32.mrb[0].mxu0
        %v1903 = vadd.f32 0.0, %v1902
        %1904 = vmatprep.mubr.bf16.mxu0 0
        %1905 = vmatmul.mubr.bf16.gmra.mrb[0].mxu0 %v1734
        %v1906 = vpop.f32.mrb[0].mxu0
        %v1907 = vadd.f32 0.0, %v1906
        %v1908 = vpop.f32.mrb[0].mxu0
        %v1909 = vadd.f32 0.0, %v1908
        %v1910 = vpop.f32.mrb[0].mxu0
        %v1911 = vadd.f32 0.0, %v1910
        %v1912 = vpop.f32.mrb[0].mxu0
        %v1913 = vadd.f32 0.0, %v1912
        %1914 = vmatprep.mubr.bf16.mxu0 0
        %1915 = vmatmul.mubr.bf16.gmra.mrb[0].mxu0 %v1737
        %v1916 = vpop.f32.mrb[0].mxu0
        %v1917 = vadd.f32 0.0, %v1916
        %v1918 = vpop.f32.mrb[0].mxu0
        %v1919 = vadd.f32 0.0, %v1918
        %v1920 = vpop.f32.mrb[0].mxu0
        %v1921 = vadd.f32 0.0, %v1920
        %v1922 = vpop.f32.mrb[0].mxu0
        %v1923 = vadd.f32 0.0, %v1922
        %1924 = vmatprep.mubr.bf16.mxu0 0
        %1925 = vmatmul.mubr.bf16.gmra.mrb[0].mxu0 %v1740
        %v1926 = vpop.f32.mrb[0].mxu0
        %v1927 = vadd.f32 0.0, %v1926
        %v1928 = vpop.f32.mrb[0].mxu0
        %v1929 = vadd.f32 0.0, %v1928
        %v1930 = vpop.f32.mrb[0].mxu0
        %v1931 = vadd.f32 0.0, %v1930
        %v1932 = vpop.f32.mrb[0].mxu0
        %v1933 = vadd.f32 0.0, %v1932
        %1934 = vdwg.mxu0
        %v1935 = vld [vmem:[#allocation2] sm:$0xff]
        %v1936 = vld [vmem:[#allocation2 + $0x8] sm:$0xff]
        %v1937 = vld [vmem:[#allocation2 + $0x10] sm:$0xff]
        %v1938 = vld [vmem:[#allocation2 + $0x18] sm:$0xff]
        %v1939 = vld [vmem:[#allocation2 + $0x20] sm:$0xff]
        %v1940 = vld [vmem:[#allocation2 + $0x28] sm:$0xff]
        %v1941 = vld [vmem:[#allocation2 + $0x30] sm:$0xff]
        %v1942 = vld [vmem:[#allocation2 + $0x38] sm:$0xff]
        %v1943 = vld [vmem:[#allocation2 + $0x40] sm:$0xff]
        %v1944 = vld [vmem:[#allocation2 + $0x48] sm:$0xff]
        %v1945 = vld [vmem:[#allocation2 + $0x50] sm:$0xff]
        %v1946 = vld [vmem:[#allocation2 + $0x58] sm:$0xff]
        %v1947 = vld [vmem:[#allocation2 + $0x60] sm:$0xff]
        %v1948 = vld [vmem:[#allocation2 + $0x68] sm:$0xff]
        %v1949 = vld [vmem:[#allocation2 + $0x70] sm:$0xff]
        %v1950 = vld [vmem:[#allocation2 + $0x78] sm:$0xff]
        %v1951 = vld [vmem:[#allocation2 + $0x80] sm:$0xff]
        %v1952 = vld [vmem:[#allocation2 + $0x88] sm:$0xff]
        %v1953 = vld [vmem:[#allocation2 + $0x90] sm:$0xff]
        %v1954 = vld [vmem:[#allocation2 + $0x98] sm:$0xff]
        %v1955 = vld [vmem:[#allocation2 + $0xa0] sm:$0xff]
        %v1956 = vld [vmem:[#allocation2 + $0xa8] sm:$0xff]
        %v1957 = vld [vmem:[#allocation2 + $0xb0] sm:$0xff]
        %v1958 = vld [vmem:[#allocation2 + $0xb8] sm:$0xff]
        %v1959 = vld [vmem:[#allocation2 + $0xc0] sm:$0xff]
        %v1960 = vld [vmem:[#allocation2 + $0xc8] sm:$0xff]
        %v1961 = vld [vmem:[#allocation2 + $0xd0] sm:$0xff]
        %v1962 = vld [vmem:[#allocation2 + $0xd8] sm:$0xff]
        %v1963 = vld [vmem:[#allocation2 + $0xe0] sm:$0xff]
        %v1964 = vld [vmem:[#allocation2 + $0xe8] sm:$0xff]
        %v1965 = vld [vmem:[#allocation2 + $0xf0] sm:$0xff]
        %v1966 = vld [vmem:[#allocation2 + $0xf8] sm:$0xff]
        %v1967 = vld [vmem:[#allocation2 + $0x100] sm:$0xff]
        %v1968 = vld [vmem:[#allocation2 + $0x108] sm:$0xff]
        %v1969 = vld [vmem:[#allocation2 + $0x110] sm:$0xff]
        %v1970 = vld [vmem:[#allocation2 + $0x118] sm:$0xff]
        %v1971 = vld [vmem:[#allocation2 + $0x120] sm:$0xff]
        %v1972 = vld [vmem:[#allocation2 + $0x128] sm:$0xff]
        %v1973 = vld [vmem:[#allocation2 + $0x130] sm:$0xff]
        %v1974 = vld [vmem:[#allocation2 + $0x138] sm:$0xff]
        %v1975 = vld [vmem:[#allocation2 + $0x140] sm:$0xff]
        %v1976 = vld [vmem:[#allocation2 + $0x148] sm:$0xff]
        %v1977 = vld [vmem:[#allocation2 + $0x150] sm:$0xff]
        %v1978 = vld [vmem:[#allocation2 + $0x158] sm:$0xff]
        %v1979 = vld [vmem:[#allocation2 + $0x160] sm:$0xff]
        %v1980 = vld [vmem:[#allocation2 + $0x168] sm:$0xff]
        %v1981 = vld [vmem:[#allocation2 + $0x170] sm:$0xff]
        %v1982 = vld [vmem:[#allocation2 + $0x178] sm:$0xff]
        %v1983 = vld [vmem:[#allocation2 + $0x180] sm:$0xff]
        %v1984 = vld [vmem:[#allocation2 + $0x188] sm:$0xff]
        %v1985 = vld [vmem:[#allocation2 + $0x190] sm:$0xff]
        %v1986 = vld [vmem:[#allocation2 + $0x198] sm:$0xff]
        %v1987 = vld [vmem:[#allocation2 + $0x1a0] sm:$0xff]
        %v1988 = vld [vmem:[#allocation2 + $0x1a8] sm:$0xff]
        %v1989 = vld [vmem:[#allocation2 + $0x1b0] sm:$0xff]
        %v1990 = vld [vmem:[#allocation2 + $0x1b8] sm:$0xff]
        %v1991 = vld [vmem:[#allocation2 + $0x1c0] sm:$0xff]
        %v1992 = vld [vmem:[#allocation2 + $0x1c8] sm:$0xff]
        %v1993 = vld [vmem:[#allocation2 + $0x1d0] sm:$0xff]
        %v1994 = vld [vmem:[#allocation2 + $0x1d8] sm:$0xff]
        %v1995 = vld [vmem:[#allocation2 + $0x1e0] sm:$0xff]
        %v1996 = vld [vmem:[#allocation2 + $0x1e8] sm:$0xff]
        %v1997 = vld [vmem:[#allocation2 + $0x1f0] sm:$0xff]
        %v1998 = vld [vmem:[#allocation2 + $0x1f8] sm:$0xff]
        %v1999 = vadd.f32 %v1935, %v1777
        %v2000 = vadd.f32 %v1936, %v1779
        %v2001 = vadd.f32 %v1937, %v1781
        %v2002 = vadd.f32 %v1938, %v1783
        %v2003 = vadd.f32 %v1939, %v1787
        %v2004 = vadd.f32 %v1940, %v1789
        %v2005 = vadd.f32 %v1941, %v1791
        %v2006 = vadd.f32 %v1942, %v1793
        %v2007 = vadd.f32 %v1943, %v1797
        %v2008 = vadd.f32 %v1944, %v1799
        %v2009 = vadd.f32 %v1945, %v1801
        %v2010 = vadd.f32 %v1946, %v1803
        %v2011 = vadd.f32 %v1947, %v1807
        %v2012 = vadd.f32 %v1948, %v1809
        %v2013 = vadd.f32 %v1949, %v1811
        %v2014 = vadd.f32 %v1950, %v1813
        %v2015 = vadd.f32 %v1951, %v1817
        %v2016 = vadd.f32 %v1952, %v1819
        %v2017 = vadd.f32 %v1953, %v1821
        %v2018 = vadd.f32 %v1954, %v1823
        %v2019 = vadd.f32 %v1955, %v1827
        %v2020 = vadd.f32 %v1956, %v1829
        %v2021 = vadd.f32 %v1957, %v1831
        %v2022 = vadd.f32 %v1958, %v1833
        %v2023 = vadd.f32 %v1959, %v1837
        %v2024 = vadd.f32 %v1960, %v1839
        %v2025 = vadd.f32 %v1961, %v1841
        %v2026 = vadd.f32 %v1962, %v1843
        %v2027 = vadd.f32 %v1963, %v1847
        %v2028 = vadd.f32 %v1964, %v1849
        %v2029 = vadd.f32 %v1965, %v1851
        %v2030 = vadd.f32 %v1966, %v1853
        %v2031 = vadd.f32 %v1967, %v1857
        %v2032 = vadd.f32 %v1968, %v1859
        %v2033 = vadd.f32 %v1969, %v1861
        %v2034 = vadd.f32 %v1970, %v1863
        %v2035 = vadd.f32 %v1971, %v1867
        %v2036 = vadd.f32 %v1972, %v1869
        %v2037 = vadd.f32 %v1973, %v1871
        %v2038 = vadd.f32 %v1974, %v1873
        %v2039 = vadd.f32 %v1975, %v1877
        %v2040 = vadd.f32 %v1976, %v1879
        %v2041 = vadd.f32 %v1977, %v1881
        %v2042 = vadd.f32 %v1978, %v1883
        %v2043 = vadd.f32 %v1979, %v1887
        %v2044 = vadd.f32 %v1980, %v1889
        %v2045 = vadd.f32 %v1981, %v1891
        %v2046 = vadd.f32 %v1982, %v1893
        %v2047 = vadd.f32 %v1983, %v1897
        %v2048 = vadd.f32 %v1984, %v1899
        %v2049 = vadd.f32 %v1985, %v1901
        %v2050 = vadd.f32 %v1986, %v1903
        %v2051 = vadd.f32 %v1987, %v1907
        %v2052 = vadd.f32 %v1988, %v1909
        %v2053 = vadd.f32 %v1989, %v1911
        %v2054 = vadd.f32 %v1990, %v1913
        %v2055 = vadd.f32 %v1991, %v1917
        %v2056 = vadd.f32 %v1992, %v1919
        %v2057 = vadd.f32 %v1993, %v1921
        %v2058 = vadd.f32 %v1994, %v1923
        %v2059 = vadd.f32 %v1995, %v1927
        %v2060 = vadd.f32 %v1996, %v1929
        %v2061 = vadd.f32 %v1997, %v1931
        %v2062 = vadd.f32 %v1998, %v1933
        %2063 = vst [vmem:[#allocation2] sm:$0xff] %v1999
        %2064 = vst.msk [vmem:[#allocation2 + $0x8] sm:$0xff] %vm625, %v2000
        %2065 = vst [vmem:[#allocation2 + $0x10] sm:$0xff] %v2001
        %2066 = vst.msk [vmem:[#allocation2 + $0x18] sm:$0xff] %vm625, %v2002
        %2067 = vst [vmem:[#allocation2 + $0x20] sm:$0xff] %v2003
        %2068 = vst.msk [vmem:[#allocation2 + $0x28] sm:$0xff] %vm625, %v2004
        %2069 = vst [vmem:[#allocation2 + $0x30] sm:$0xff] %v2005
        %2070 = vst.msk [vmem:[#allocation2 + $0x38] sm:$0xff] %vm625, %v2006
        %2071 = vst [vmem:[#allocation2 + $0x40] sm:$0xff] %v2007
        %2072 = vst.msk [vmem:[#allocation2 + $0x48] sm:$0xff] %vm625, %v2008
        %2073 = vst [vmem:[#allocation2 + $0x50] sm:$0xff] %v2009
        %2074 = vst.msk [vmem:[#allocation2 + $0x58] sm:$0xff] %vm625, %v2010
        %2075 = vst [vmem:[#allocation2 + $0x60] sm:$0xff] %v2011
        %2076 = vst.msk [vmem:[#allocation2 + $0x68] sm:$0xff] %vm625, %v2012
        %2077 = vst [vmem:[#allocation2 + $0x70] sm:$0xff] %v2013
        %2078 = vst.msk [vmem:[#allocation2 + $0x78] sm:$0xff] %vm625, %v2014
        %2079 = vst [vmem:[#allocation2 + $0x80] sm:$0xff] %v2015
        %2080 = vst.msk [vmem:[#allocation2 + $0x88] sm:$0xff] %vm625, %v2016
        %2081 = vst [vmem:[#allocation2 + $0x90] sm:$0xff] %v2017
        %2082 = vst.msk [vmem:[#allocation2 + $0x98] sm:$0xff] %vm625, %v2018
        %2083 = vst [vmem:[#allocation2 + $0xa0] sm:$0xff] %v2019
        %2084 = vst.msk [vmem:[#allocation2 + $0xa8] sm:$0xff] %vm625, %v2020
        %2085 = vst [vmem:[#allocation2 + $0xb0] sm:$0xff] %v2021
        %2086 = vst.msk [vmem:[#allocation2 + $0xb8] sm:$0xff] %vm625, %v2022
        %2087 = vst [vmem:[#allocation2 + $0xc0] sm:$0xff] %v2023
        %2088 = vst.msk [vmem:[#allocation2 + $0xc8] sm:$0xff] %vm625, %v2024
        %2089 = vst [vmem:[#allocation2 + $0xd0] sm:$0xff] %v2025
        %2090 = vst.msk [vmem:[#allocation2 + $0xd8] sm:$0xff] %vm625, %v2026
        %2091 = vst [vmem:[#allocation2 + $0xe0] sm:$0xff] %v2027
        %2092 = vst.msk [vmem:[#allocation2 + $0xe8] sm:$0xff] %vm625, %v2028
        %2093 = vst [vmem:[#allocation2 + $0xf0] sm:$0xff] %v2029
        %2094 = vst.msk [vmem:[#allocation2 + $0xf8] sm:$0xff] %vm625, %v2030
        %2095 = vst [vmem:[#allocation2 + $0x100] sm:$0xff] %v2031
        %2096 = vst.msk [vmem:[#allocation2 + $0x108] sm:$0xff] %vm625, %v2032
        %2097 = vst [vmem:[#allocation2 + $0x110] sm:$0xff] %v2033
        %2098 = vst.msk [vmem:[#allocation2 + $0x118] sm:$0xff] %vm625, %v2034
        %2099 = vst [vmem:[#allocation2 + $0x120] sm:$0xff] %v2035
        %2100 = vst.msk [vmem:[#allocation2 + $0x128] sm:$0xff] %vm625, %v2036
        %2101 = vst [vmem:[#allocation2 + $0x130] sm:$0xff] %v2037
        %2102 = vst.msk [vmem:[#allocation2 + $0x138] sm:$0xff] %vm625, %v2038
        %2103 = vst [vmem:[#allocation2 + $0x140] sm:$0xff] %v2039
        %2104 = vst.msk [vmem:[#allocation2 + $0x148] sm:$0xff] %vm625, %v2040
        %2105 = vst [vmem:[#allocation2 + $0x150] sm:$0xff] %v2041
        %2106 = vst.msk [vmem:[#allocation2 + $0x158] sm:$0xff] %vm625, %v2042
        %2107 = vst [vmem:[#allocation2 + $0x160] sm:$0xff] %v2043
        %2108 = vst.msk [vmem:[#allocation2 + $0x168] sm:$0xff] %vm625, %v2044
        %2109 = vst [vmem:[#allocation2 + $0x170] sm:$0xff] %v2045
        %2110 = vst.msk [vmem:[#allocation2 + $0x178] sm:$0xff] %vm625, %v2046
        %2111 = vst [vmem:[#allocation2 + $0x180] sm:$0xff] %v2047
        %2112 = vst.msk [vmem:[#allocation2 + $0x188] sm:$0xff] %vm625, %v2048
        %2113 = vst [vmem:[#allocation2 + $0x190] sm:$0xff] %v2049
        %2114 = vst.msk [vmem:[#allocation2 + $0x198] sm:$0xff] %vm625, %v2050
        %2115 = vst [vmem:[#allocation2 + $0x1a0] sm:$0xff] %v2051
        %2116 = vst.msk [vmem:[#allocation2 + $0x1a8] sm:$0xff] %vm625, %v2052
        %2117 = vst [vmem:[#allocation2 + $0x1b0] sm:$0xff] %v2053
        %2118 = vst.msk [vmem:[#allocation2 + $0x1b8] sm:$0xff] %vm625, %v2054
        %2119 = vst [vmem:[#allocation2 + $0x1c0] sm:$0xff] %v2055
        %2120 = vst.msk [vmem:[#allocation2 + $0x1c8] sm:$0xff] %vm625, %v2056
        %2121 = vst [vmem:[#allocation2 + $0x1d0] sm:$0xff] %v2057
        %2122 = vst.msk [vmem:[#allocation2 + $0x1d8] sm:$0xff] %vm625, %v2058
        %2123 = vst [vmem:[#allocation2 + $0x1e0] sm:$0xff] %v2059
        %2124 = vst.msk [vmem:[#allocation2 + $0x1e8] sm:$0xff] %vm625, %v2060
        %2125 = vst [vmem:[#allocation2 + $0x1f0] sm:$0xff] %v2061
        %2126 = vst.msk [vmem:[#allocation2 + $0x1f8] sm:$0xff] %vm625, %v2062
        %s2127 = smul.addr %s462, 4
        %s2128 = scalar_lea.vmem %s397, %s2127 [#allocation6]
        %v2129 = vld [vmem:[%s2128] sm:$0xf]
        %v2130 = vld [vmem:[%s2128 + $0x4] sm:$0xf]
        %v2131 = vld [vmem:[%s2128 + $0x8] sm:$0xf]
        %v2132 = vld [vmem:[%s2128 + $0xc] sm:$0xf]
        %v2133 = vld [vmem:[%s2128 + $0x10] sm:$0xf]
        %v2134 = vld [vmem:[%s2128 + $0x14] sm:$0xf]
        %v2135 = vld [vmem:[%s2128 + $0x18] sm:$0xf]
        %v2136 = vld [vmem:[%s2128 + $0x1c] sm:$0xf]
        %v2137 = vld [vmem:[%s2128 + $0x20] sm:$0xf]
        %v2138 = vld [vmem:[%s2128 + $0x24] sm:$0xf]
        %v2139 = vld [vmem:[%s2128 + $0x28] sm:$0xf]
        %v2140 = vld [vmem:[%s2128 + $0x2c] sm:$0xf]
        %v2141 = vld [vmem:[%s2128 + $0x30] sm:$0xf]
        %v2142 = vld [vmem:[%s2128 + $0x34] sm:$0xf]
        %v2143 = vld [vmem:[%s2128 + $0x38] sm:$0xf]
        %v2144 = vld [vmem:[%s2128 + $0x3c] sm:$0xf]
        %v2145 = vld [vmem:[%s2128 + $0x40] sm:$0xf]
        %v2146 = vld [vmem:[%s2128 + $0x44] sm:$0xf]
        %v2147 = vld [vmem:[%s2128 + $0x48] sm:$0xf]
        %v2148 = vld [vmem:[%s2128 + $0x4c] sm:$0xf]
        %v2149 = vld [vmem:[%s2128 + $0x50] sm:$0xf]
        %v2150 = vld [vmem:[%s2128 + $0x54] sm:$0xf]
        %v2151 = vld [vmem:[%s2128 + $0x58] sm:$0xf]
        %v2152 = vld [vmem:[%s2128 + $0x5c] sm:$0xf]
        %v2153 = vld [vmem:[%s2128 + $0x60] sm:$0xf]
        %v2154 = vld [vmem:[%s2128 + $0x64] sm:$0xf]
        %v2155 = vld [vmem:[%s2128 + $0x68] sm:$0xf]
        %v2156 = vld [vmem:[%s2128 + $0x6c] sm:$0xf]
        %v2157 = vld [vmem:[%s2128 + $0x70] sm:$0xf]
        %v2158 = vld [vmem:[%s2128 + $0x74] sm:$0xf]
        %v2159 = vld [vmem:[%s2128 + $0x78] sm:$0xf]
        %v2160 = vld [vmem:[%s2128 + $0x7c] sm:$0xf]
        %v2161 = vld [vmem:[#allocation9] sm:$0xff]
        %v2162 = vld [vmem:[#allocation9 + $0x8] sm:$0xff]
        %v2163 = vld [vmem:[#allocation9 + $0x10] sm:$0xff]
        %v2164 = vld [vmem:[#allocation9 + $0x18] sm:$0xff]
        %v2165 = vld [vmem:[#allocation9 + $0x20] sm:$0xff]
        %v2166 = vld [vmem:[#allocation9 + $0x28] sm:$0xff]
        %v2167 = vld [vmem:[#allocation9 + $0x30] sm:$0xff]
        %v2168 = vld [vmem:[#allocation9 + $0x38] sm:$0xff]
        %v2201 = vunpack.c.l.b16 %v2129
        %v2202 = vunpack.c.l.b16 %v2130
        %v2203 = vunpack.c.l.b16 %v2131
        %v2204 = vunpack.c.l.b16 %v2132
        %v2205 = vunpack.c.l.b16 %v2133
        %v2206 = vunpack.c.l.b16 %v2134
        %v2207 = vunpack.c.l.b16 %v2135
        %v2208 = vunpack.c.l.b16 %v2136
        %v2209 = vunpack.c.l.b16 %v2137
        %v2210 = vunpack.c.l.b16 %v2138
        %v2211 = vunpack.c.l.b16 %v2139
        %v2212 = vunpack.c.l.b16 %v2140
        %v2213 = vunpack.c.l.b16 %v2141
        %v2214 = vunpack.c.l.b16 %v2142
        %v2215 = vunpack.c.l.b16 %v2143
        %v2216 = vunpack.c.l.b16 %v2144
        %v2217 = vunpack.c.l.b16 %v2145
        %v2218 = vunpack.c.l.b16 %v2146
        %v2219 = vunpack.c.l.b16 %v2147
        %v2220 = vunpack.c.l.b16 %v2148
        %v2221 = vunpack.c.l.b16 %v2149
        %v2222 = vunpack.c.l.b16 %v2150
        %v2223 = vunpack.c.l.b16 %v2151
        %v2224 = vunpack.c.l.b16 %v2152
        %v2225 = vunpack.c.l.b16 %v2153
        %v2226 = vunpack.c.l.b16 %v2154
        %v2227 = vunpack.c.l.b16 %v2155
        %v2228 = vunpack.c.l.b16 %v2156
        %v2229 = vunpack.c.l.b16 %v2157
        %v2230 = vunpack.c.l.b16 %v2158
        %v2231 = vunpack.c.l.b16 %v2159
        %v2232 = vunpack.c.l.b16 %v2160
        %v2233 = vpack.c.b16 %v2202, %v2201
        %v2234 = vpack.c.b16 %v2204, %v2203
        %v2235 = vpack.c.b16 %v2206, %v2205
        %v2236 = vpack.c.b16 %v2208, %v2207
        %v2237 = vpack.c.b16 %v2210, %v2209
        %v2238 = vpack.c.b16 %v2212, %v2211
        %v2239 = vpack.c.b16 %v2214, %v2213
        %v2240 = vpack.c.b16 %v2216, %v2215
        %v2241 = vpack.c.b16 %v2218, %v2217
        %v2242 = vpack.c.b16 %v2220, %v2219
        %v2243 = vpack.c.b16 %v2222, %v2221
        %v2244 = vpack.c.b16 %v2224, %v2223
        %v2245 = vpack.c.b16 %v2226, %v2225
        %v2246 = vpack.c.b16 %v2228, %v2227
        %v2247 = vpack.c.b16 %v2230, %v2229
        %v2248 = vpack.c.b16 %v2232, %v2231
        %v2257 = vunpack.c.l.b16 %v2161
        %v2258 = vunpack.c.h.b16 %v2161
        %v2259 = vunpack.c.l.b16 %v2162
        %v2260 = vunpack.c.h.b16 %v2162
        %v2261 = vunpack.c.l.b16 %v2163
        %v2262 = vunpack.c.h.b16 %v2163
        %v2263 = vunpack.c.l.b16 %v2164
        %v2264 = vunpack.c.h.b16 %v2164
        %v2265 = vunpack.c.l.b16 %v2165
        %v2266 = vunpack.c.h.b16 %v2165
        %v2267 = vunpack.c.l.b16 %v2166
        %v2268 = vunpack.c.h.b16 %v2166
        %v2269 = vunpack.c.l.b16 %v2167
        %v2270 = vunpack.c.h.b16 %v2167
        %v2271 = vunpack.c.l.b16 %v2168
        %v2272 = vunpack.c.h.b16 %v2168
        %v2273 = vpack.c.b16 %v2259, %v2257
        %v2274 = vpack.c.b16 %v2260, %v2258
        %v2275 = vpack.c.b16 %v2263, %v2261
        %v2276 = vpack.c.b16 %v2264, %v2262
        %v2277 = vpack.c.b16 %v2267, %v2265
        %v2278 = vpack.c.b16 %v2268, %v2266
        %v2279 = vpack.c.b16 %v2271, %v2269
        %v2280 = vpack.c.b16 %v2272, %v2270
        %v2290 = vsel %vm625, %v2233, 0
        %v2293 = vsel %vm625, %v2234, 0
        %v2296 = vsel %vm625, %v2235, 0
        %v2299 = vsel %vm625, %v2236, 0
        %v2302 = vsel %vm625, %v2237, 0
        %v2305 = vsel %vm625, %v2238, 0
        %v2308 = vsel %vm625, %v2239, 0
        %v2311 = vsel %vm625, %v2240, 0
        %v2314 = vsel %vm625, %v2241, 0
        %v2317 = vsel %vm625, %v2242, 0
        %v2320 = vsel %vm625, %v2243, 0
        %v2323 = vsel %vm625, %v2244, 0
        %v2326 = vsel %vm625, %v2245, 0
        %v2329 = vsel %vm625, %v2246, 0
        %v2332 = vsel %vm625, %v2247, 0
        %v2335 = vsel %vm625, %v2248, 0
        %2337 = vmatprep.subr.bf16.mxu0 %v2274
        %2338 = vmatpush1.bf16.msra.mxu0 %v2273
        %2339 = vmatprep.subr.bf16.mxu0 %v2276
        %2340 = vmatpush1.bf16.msra.mxu0 %v2275
        %2341 = vmatprep.subr.bf16.mxu0 %v2278
        %2342 = vmatpush1.bf16.msra.mxu0 %v2277
        %2343 = vmatprep.subr.bf16.mxu0 %v2280
        %2344 = vmatpush1.bf16.msra.mxu0 %v2279
        %2345 = vmatprep.subr.bf16.mxu0 0
        %2346 = vmatpush1.bf16.msra.mxu0 0
        %2347 = vmatprep.subr.bf16.mxu0 0
        %2348 = vmatpush1.bf16.msra.mxu0 0
        %2349 = vmatprep.subr.bf16.mxu0 0
        %2350 = vmatpush1.bf16.msra.mxu0 0
        %2351 = vmatprep.subr.bf16.mxu0 0
        %2352 = vmatpush1.bf16.msra.mxu0 0
        %2353 = vmatprep.subr.bf16.mxu0 0
        %2354 = vmatpush1.bf16.msra.mxu0 0
        %2355 = vmatprep.subr.bf16.mxu0 0
        %2356 = vmatpush1.bf16.msra.mxu0 0
        %2357 = vmatprep.subr.bf16.mxu0 0
        %2358 = vmatpush1.bf16.msra.mxu0 0
        %2359 = vmatprep.subr.bf16.mxu0 0
        %2360 = vmatpush1.bf16.msra.mxu0 0
        %2361 = vmatprep.subr.bf16.mxu0 0
        %2362 = vmatpush1.bf16.msra.mxu0 0
        %2363 = vmatprep.subr.bf16.mxu0 0
        %2364 = vmatpush1.bf16.msra.mxu0 0
        %2365 = vmatprep.subr.bf16.mxu0 0
        %2366 = vmatpush1.bf16.msra.mxu0 0
        %2367 = vmatprep.subr.bf16.mxu0 0
        %2368 = vmatpush1.bf16.msra.mxu0 0
        %2369 = vmatprep.mubr.bf16.mxu0 0
        %2370 = vmatmul.mubr.bf16.gmra.mrb[0].mxu0 %v2290
        %v2371 = vpop.f32.mrb[0].mxu0
        %v2372 = vadd.f32 0.0, %v2371
        %v2373 = vpop.f32.mrb[0].mxu0
        %v2374 = vadd.f32 0.0, %v2373
        %v2375 = vpop.f32.mrb[0].mxu0
        %v2376 = vadd.f32 0.0, %v2375
        %v2377 = vpop.f32.mrb[0].mxu0
        %v2378 = vadd.f32 0.0, %v2377
        %2379 = vmatprep.mubr.bf16.mxu0 0
        %2380 = vmatmul.mubr.bf16.gmra.mrb[0].mxu0 %v2293
        %v2381 = vpop.f32.mrb[0].mxu0
        %v2382 = vadd.f32 0.0, %v2381
        %v2383 = vpop.f32.mrb[0].mxu0
        %v2384 = vadd.f32 0.0, %v2383
        %v2385 = vpop.f32.mrb[0].mxu0
        %v2386 = vadd.f32 0.0, %v2385
        %v2387 = vpop.f32.mrb[0].mxu0
        %v2388 = vadd.f32 0.0, %v2387
        %2389 = vmatprep.mubr.bf16.mxu0 0
        %2390 = vmatmul.mubr.bf16.gmra.mrb[0].mxu0 %v2296
        %v2391 = vpop.f32.mrb[0].mxu0
        %v2392 = vadd.f32 0.0, %v2391
        %v2393 = vpop.f32.mrb[0].mxu0
        %v2394 = vadd.f32 0.0, %v2393
        %v2395 = vpop.f32.mrb[0].mxu0
        %v2396 = vadd.f32 0.0, %v2395
        %v2397 = vpop.f32.mrb[0].mxu0
        %v2398 = vadd.f32 0.0, %v2397
        %2399 = vmatprep.mubr.bf16.mxu0 0
        %2400 = vmatmul.mubr.bf16.gmra.mrb[0].mxu0 %v2299
        %v2401 = vpop.f32.mrb[0].mxu0
        %v2402 = vadd.f32 0.0, %v2401
        %v2403 = vpop.f32.mrb[0].mxu0
        %v2404 = vadd.f32 0.0, %v2403
        %v2405 = vpop.f32.mrb[0].mxu0
        %v2406 = vadd.f32 0.0, %v2405
        %v2407 = vpop.f32.mrb[0].mxu0
        %v2408 = vadd.f32 0.0, %v2407
        %2409 = vmatprep.mubr.bf16.mxu0 0
        %2410 = vmatmul.mubr.bf16.gmra.mrb[0].mxu0 %v2302
        %v2411 = vpop.f32.mrb[0].mxu0
        %v2412 = vadd.f32 0.0, %v2411
        %v2413 = vpop.f32.mrb[0].mxu0
        %v2414 = vadd.f32 0.0, %v2413
        %v2415 = vpop.f32.mrb[0].mxu0
        %v2416 = vadd.f32 0.0, %v2415
        %v2417 = vpop.f32.mrb[0].mxu0
        %v2418 = vadd.f32 0.0, %v2417
        %2419 = vmatprep.mubr.bf16.mxu0 0
        %2420 = vmatmul.mubr.bf16.gmra.mrb[0].mxu0 %v2305
        %v2421 = vpop.f32.mrb[0].mxu0
        %v2422 = vadd.f32 0.0, %v2421
        %v2423 = vpop.f32.mrb[0].mxu0
        %v2424 = vadd.f32 0.0, %v2423
        %v2425 = vpop.f32.mrb[0].mxu0
        %v2426 = vadd.f32 0.0, %v2425
        %v2427 = vpop.f32.mrb[0].mxu0
        %v2428 = vadd.f32 0.0, %v2427
        %2429 = vmatprep.mubr.bf16.mxu0 0
        %2430 = vmatmul.mubr.bf16.gmra.mrb[0].mxu0 %v2308
        %v2431 = vpop.f32.mrb[0].mxu0
        %v2432 = vadd.f32 0.0, %v2431
        %v2433 = vpop.f32.mrb[0].mxu0
        %v2434 = vadd.f32 0.0, %v2433
        %v2435 = vpop.f32.mrb[0].mxu0
        %v2436 = vadd.f32 0.0, %v2435
        %v2437 = vpop.f32.mrb[0].mxu0
        %v2438 = vadd.f32 0.0, %v2437
        %2439 = vmatprep.mubr.bf16.mxu0 0
        %2440 = vmatmul.mubr.bf16.gmra.mrb[0].mxu0 %v2311
        %v2441 = vpop.f32.mrb[0].mxu0
        %v2442 = vadd.f32 0.0, %v2441
        %v2443 = vpop.f32.mrb[0].mxu0
        %v2444 = vadd.f32 0.0, %v2443
        %v2445 = vpop.f32.mrb[0].mxu0
        %v2446 = vadd.f32 0.0, %v2445
        %v2447 = vpop.f32.mrb[0].mxu0
        %v2448 = vadd.f32 0.0, %v2447
        %2449 = vmatprep.mubr.bf16.mxu0 0
        %2450 = vmatmul.mubr.bf16.gmra.mrb[0].mxu0 %v2314
        %v2451 = vpop.f32.mrb[0].mxu0
        %v2452 = vadd.f32 0.0, %v2451
        %v2453 = vpop.f32.mrb[0].mxu0
        %v2454 = vadd.f32 0.0, %v2453
        %v2455 = vpop.f32.mrb[0].mxu0
        %v2456 = vadd.f32 0.0, %v2455
        %v2457 = vpop.f32.mrb[0].mxu0
        %v2458 = vadd.f32 0.0, %v2457
        %2459 = vmatprep.mubr.bf16.mxu0 0
        %2460 = vmatmul.mubr.bf16.gmra.mrb[0].mxu0 %v2317
        %v2461 = vpop.f32.mrb[0].mxu0
        %v2462 = vadd.f32 0.0, %v2461
        %v2463 = vpop.f32.mrb[0].mxu0
        %v2464 = vadd.f32 0.0, %v2463
        %v2465 = vpop.f32.mrb[0].mxu0
        %v2466 = vadd.f32 0.0, %v2465
        %v2467 = vpop.f32.mrb[0].mxu0
        %v2468 = vadd.f32 0.0, %v2467
        %2469 = vmatprep.mubr.bf16.mxu0 0
        %2470 = vmatmul.mubr.bf16.gmra.mrb[0].mxu0 %v2320
        %v2471 = vpop.f32.mrb[0].mxu0
        %v2472 = vadd.f32 0.0, %v2471
        %v2473 = vpop.f32.mrb[0].mxu0
        %v2474 = vadd.f32 0.0, %v2473
        %v2475 = vpop.f32.mrb[0].mxu0
        %v2476 = vadd.f32 0.0, %v2475
        %v2477 = vpop.f32.mrb[0].mxu0
        %v2478 = vadd.f32 0.0, %v2477
        %2479 = vmatprep.mubr.bf16.mxu0 0
        %2480 = vmatmul.mubr.bf16.gmra.mrb[0].mxu0 %v2323
        %v2481 = vpop.f32.mrb[0].mxu0
        %v2482 = vadd.f32 0.0, %v2481
        %v2483 = vpop.f32.mrb[0].mxu0
        %v2484 = vadd.f32 0.0, %v2483
        %v2485 = vpop.f32.mrb[0].mxu0
        %v2486 = vadd.f32 0.0, %v2485
        %v2487 = vpop.f32.mrb[0].mxu0
        %v2488 = vadd.f32 0.0, %v2487
        %2489 = vmatprep.mubr.bf16.mxu0 0
        %2490 = vmatmul.mubr.bf16.gmra.mrb[0].mxu0 %v2326
        %v2491 = vpop.f32.mrb[0].mxu0
        %v2492 = vadd.f32 0.0, %v2491
        %v2493 = vpop.f32.mrb[0].mxu0
        %v2494 = vadd.f32 0.0, %v2493
        %v2495 = vpop.f32.mrb[0].mxu0
        %v2496 = vadd.f32 0.0, %v2495
        %v2497 = vpop.f32.mrb[0].mxu0
        %v2498 = vadd.f32 0.0, %v2497
        %2499 = vmatprep.mubr.bf16.mxu0 0
        %2500 = vmatmul.mubr.bf16.gmra.mrb[0].mxu0 %v2329
        %v2501 = vpop.f32.mrb[0].mxu0
        %v2502 = vadd.f32 0.0, %v2501
        %v2503 = vpop.f32.mrb[0].mxu0
        %v2504 = vadd.f32 0.0, %v2503
        %v2505 = vpop.f32.mrb[0].mxu0
        %v2506 = vadd.f32 0.0, %v2505
        %v2507 = vpop.f32.mrb[0].mxu0
        %v2508 = vadd.f32 0.0, %v2507
        %2509 = vmatprep.mubr.bf16.mxu0 0
        %2510 = vmatmul.mubr.bf16.gmra.mrb[0].mxu0 %v2332
        %v2511 = vpop.f32.mrb[0].mxu0
        %v2512 = vadd.f32 0.0, %v2511
        %v2513 = vpop.f32.mrb[0].mxu0
        %v2514 = vadd.f32 0.0, %v2513
        %v2515 = vpop.f32.mrb[0].mxu0
        %v2516 = vadd.f32 0.0, %v2515
        %v2517 = vpop.f32.mrb[0].mxu0
        %v2518 = vadd.f32 0.0, %v2517
        %2519 = vmatprep.mubr.bf16.mxu0 0
        %2520 = vmatmul.mubr.bf16.gmra.mrb[0].mxu0 %v2335
        %v2521 = vpop.f32.mrb[0].mxu0
        %v2522 = vadd.f32 0.0, %v2521
        %v2523 = vpop.f32.mrb[0].mxu0
        %v2524 = vadd.f32 0.0, %v2523
        %v2525 = vpop.f32.mrb[0].mxu0
        %v2526 = vadd.f32 0.0, %v2525
        %v2527 = vpop.f32.mrb[0].mxu0
        %v2528 = vadd.f32 0.0, %v2527
        %2529 = vdwg.mxu0
        %v2530 = vld [vmem:[#allocation2] sm:$0xff]
        %v2531 = vld [vmem:[#allocation2 + $0x8] sm:$0xff]
        %v2532 = vld [vmem:[#allocation2 + $0x10] sm:$0xff]
        %v2533 = vld [vmem:[#allocation2 + $0x18] sm:$0xff]
        %v2534 = vld [vmem:[#allocation2 + $0x20] sm:$0xff]
        %v2535 = vld [vmem:[#allocation2 + $0x28] sm:$0xff]
        %v2536 = vld [vmem:[#allocation2 + $0x30] sm:$0xff]
        %v2537 = vld [vmem:[#allocation2 + $0x38] sm:$0xff]
        %v2538 = vld [vmem:[#allocation2 + $0x40] sm:$0xff]
        %v2539 = vld [vmem:[#allocation2 + $0x48] sm:$0xff]
        %v2540 = vld [vmem:[#allocation2 + $0x50] sm:$0xff]
        %v2541 = vld [vmem:[#allocation2 + $0x58] sm:$0xff]
        %v2542 = vld [vmem:[#allocation2 + $0x60] sm:$0xff]
        %v2543 = vld [vmem:[#allocation2 + $0x68] sm:$0xff]
        %v2544 = vld [vmem:[#allocation2 + $0x70] sm:$0xff]
        %v2545 = vld [vmem:[#allocation2 + $0x78] sm:$0xff]
        %v2546 = vld [vmem:[#allocation2 + $0x80] sm:$0xff]
        %v2547 = vld [vmem:[#allocation2 + $0x88] sm:$0xff]
        %v2548 = vld [vmem:[#allocation2 + $0x90] sm:$0xff]
        %v2549 = vld [vmem:[#allocation2 + $0x98] sm:$0xff]
        %v2550 = vld [vmem:[#allocation2 + $0xa0] sm:$0xff]
        %v2551 = vld [vmem:[#allocation2 + $0xa8] sm:$0xff]
        %v2552 = vld [vmem:[#allocation2 + $0xb0] sm:$0xff]
        %v2553 = vld [vmem:[#allocation2 + $0xb8] sm:$0xff]
        %v2554 = vld [vmem:[#allocation2 + $0xc0] sm:$0xff]
        %v2555 = vld [vmem:[#allocation2 + $0xc8] sm:$0xff]
        %v2556 = vld [vmem:[#allocation2 + $0xd0] sm:$0xff]
        %v2557 = vld [vmem:[#allocation2 + $0xd8] sm:$0xff]
        %v2558 = vld [vmem:[#allocation2 + $0xe0] sm:$0xff]
        %v2559 = vld [vmem:[#allocation2 + $0xe8] sm:$0xff]
        %v2560 = vld [vmem:[#allocation2 + $0xf0] sm:$0xff]
        %v2561 = vld [vmem:[#allocation2 + $0xf8] sm:$0xff]
        %v2562 = vld [vmem:[#allocation2 + $0x100] sm:$0xff]
        %v2563 = vld [vmem:[#allocation2 + $0x108] sm:$0xff]
        %v2564 = vld [vmem:[#allocation2 + $0x110] sm:$0xff]
        %v2565 = vld [vmem:[#allocation2 + $0x118] sm:$0xff]
        %v2566 = vld [vmem:[#allocation2 + $0x120] sm:$0xff]
        %v2567 = vld [vmem:[#allocation2 + $0x128] sm:$0xff]
        %v2568 = vld [vmem:[#allocation2 + $0x130] sm:$0xff]
        %v2569 = vld [vmem:[#allocation2 + $0x138] sm:$0xff]
        %v2570 = vld [vmem:[#allocation2 + $0x140] sm:$0xff]
        %v2571 = vld [vmem:[#allocation2 + $0x148] sm:$0xff]
        %v2572 = vld [vmem:[#allocation2 + $0x150] sm:$0xff]
        %v2573 = vld [vmem:[#allocation2 + $0x158] sm:$0xff]
        %v2574 = vld [vmem:[#allocation2 + $0x160] sm:$0xff]
        %v2575 = vld [vmem:[#allocation2 + $0x168] sm:$0xff]
        %v2576 = vld [vmem:[#allocation2 + $0x170] sm:$0xff]
        %v2577 = vld [vmem:[#allocation2 + $0x178] sm:$0xff]
        %v2578 = vld [vmem:[#allocation2 + $0x180] sm:$0xff]
        %v2579 = vld [vmem:[#allocation2 + $0x188] sm:$0xff]
        %v2580 = vld [vmem:[#allocation2 + $0x190] sm:$0xff]
        %v2581 = vld [vmem:[#allocation2 + $0x198] sm:$0xff]
        %v2582 = vld [vmem:[#allocation2 + $0x1a0] sm:$0xff]
        %v2583 = vld [vmem:[#allocation2 + $0x1a8] sm:$0xff]
        %v2584 = vld [vmem:[#allocation2 + $0x1b0] sm:$0xff]
        %v2585 = vld [vmem:[#allocation2 + $0x1b8] sm:$0xff]
        %v2586 = vld [vmem:[#allocation2 + $0x1c0] sm:$0xff]
        %v2587 = vld [vmem:[#allocation2 + $0x1c8] sm:$0xff]
        %v2588 = vld [vmem:[#allocation2 + $0x1d0] sm:$0xff]
        %v2589 = vld [vmem:[#allocation2 + $0x1d8] sm:$0xff]
        %v2590 = vld [vmem:[#allocation2 + $0x1e0] sm:$0xff]
        %v2591 = vld [vmem:[#allocation2 + $0x1e8] sm:$0xff]
        %v2592 = vld [vmem:[#allocation2 + $0x1f0] sm:$0xff]
        %v2593 = vld [vmem:[#allocation2 + $0x1f8] sm:$0xff]
        %v2594 = vadd.f32 %v2530, %v2372
        %v2595 = vadd.f32 %v2531, %v2374
        %v2596 = vadd.f32 %v2532, %v2376
        %v2597 = vadd.f32 %v2533, %v2378
        %v2598 = vadd.f32 %v2534, %v2382
        %v2599 = vadd.f32 %v2535, %v2384
        %v2600 = vadd.f32 %v2536, %v2386
        %v2601 = vadd.f32 %v2537, %v2388
        %v2602 = vadd.f32 %v2538, %v2392
        %v2603 = vadd.f32 %v2539, %v2394
        %v2604 = vadd.f32 %v2540, %v2396
        %v2605 = vadd.f32 %v2541, %v2398
        %v2606 = vadd.f32 %v2542, %v2402
        %v2607 = vadd.f32 %v2543, %v2404
        %v2608 = vadd.f32 %v2544, %v2406
        %v2609 = vadd.f32 %v2545, %v2408
        %v2610 = vadd.f32 %v2546, %v2412
        %v2611 = vadd.f32 %v2547, %v2414
        %v2612 = vadd.f32 %v2548, %v2416
        %v2613 = vadd.f32 %v2549, %v2418
        %v2614 = vadd.f32 %v2550, %v2422
        %v2615 = vadd.f32 %v2551, %v2424
        %v2616 = vadd.f32 %v2552, %v2426
        %v2617 = vadd.f32 %v2553, %v2428
        %v2618 = vadd.f32 %v2554, %v2432
        %v2619 = vadd.f32 %v2555, %v2434
        %v2620 = vadd.f32 %v2556, %v2436
        %v2621 = vadd.f32 %v2557, %v2438
        %v2622 = vadd.f32 %v2558, %v2442
        %v2623 = vadd.f32 %v2559, %v2444
        %v2624 = vadd.f32 %v2560, %v2446
        %v2625 = vadd.f32 %v2561, %v2448
        %v2626 = vadd.f32 %v2562, %v2452
        %v2627 = vadd.f32 %v2563, %v2454
        %v2628 = vadd.f32 %v2564, %v2456
        %v2629 = vadd.f32 %v2565, %v2458
        %v2630 = vadd.f32 %v2566, %v2462
        %v2631 = vadd.f32 %v2567, %v2464
        %v2632 = vadd.f32 %v2568, %v2466
        %v2633 = vadd.f32 %v2569, %v2468
        %v2634 = vadd.f32 %v2570, %v2472
        %v2635 = vadd.f32 %v2571, %v2474
        %v2636 = vadd.f32 %v2572, %v2476
        %v2637 = vadd.f32 %v2573, %v2478
        %v2638 = vadd.f32 %v2574, %v2482
        %v2639 = vadd.f32 %v2575, %v2484
        %v2640 = vadd.f32 %v2576, %v2486
        %v2641 = vadd.f32 %v2577, %v2488
        %v2642 = vadd.f32 %v2578, %v2492
        %v2643 = vadd.f32 %v2579, %v2494
        %v2644 = vadd.f32 %v2580, %v2496
        %v2645 = vadd.f32 %v2581, %v2498
        %v2646 = vadd.f32 %v2582, %v2502
        %v2647 = vadd.f32 %v2583, %v2504
        %v2648 = vadd.f32 %v2584, %v2506
        %v2649 = vadd.f32 %v2585, %v2508
        %v2650 = vadd.f32 %v2586, %v2512
        %v2651 = vadd.f32 %v2587, %v2514
        %v2652 = vadd.f32 %v2588, %v2516
        %v2653 = vadd.f32 %v2589, %v2518
        %v2654 = vadd.f32 %v2590, %v2522
        %v2655 = vadd.f32 %v2591, %v2524
        %v2656 = vadd.f32 %v2592, %v2526
        %v2657 = vadd.f32 %v2593, %v2528
        %2658 = vst [vmem:[#allocation2] sm:$0xff] %v2594
        %2659 = vst.msk [vmem:[#allocation2 + $0x8] sm:$0xff] %vm625, %v2595
        %2660 = vst [vmem:[#allocation2 + $0x10] sm:$0xff] %v2596
        %2661 = vst.msk [vmem:[#allocation2 + $0x18] sm:$0xff] %vm625, %v2597
        %2662 = vst [vmem:[#allocation2 + $0x20] sm:$0xff] %v2598
        %2663 = vst.msk [vmem:[#allocation2 + $0x28] sm:$0xff] %vm625, %v2599
        %2664 = vst [vmem:[#allocation2 + $0x30] sm:$0xff] %v2600
        %2665 = vst.msk [vmem:[#allocation2 + $0x38] sm:$0xff] %vm625, %v2601
        %2666 = vst [vmem:[#allocation2 + $0x40] sm:$0xff] %v2602
        %2667 = vst.msk [vmem:[#allocation2 + $0x48] sm:$0xff] %vm625, %v2603
        %2668 = vst [vmem:[#allocation2 + $0x50] sm:$0xff] %v2604
        %2669 = vst.msk [vmem:[#allocation2 + $0x58] sm:$0xff] %vm625, %v2605
        %2670 = vst [vmem:[#allocation2 + $0x60] sm:$0xff] %v2606
        %2671 = vst.msk [vmem:[#allocation2 + $0x68] sm:$0xff] %vm625, %v2607
        %2672 = vst [vmem:[#allocation2 + $0x70] sm:$0xff] %v2608
        %2673 = vst.msk [vmem:[#allocation2 + $0x78] sm:$0xff] %vm625, %v2609
        %2674 = vst [vmem:[#allocation2 + $0x80] sm:$0xff] %v2610
        %2675 = vst.msk [vmem:[#allocation2 + $0x88] sm:$0xff] %vm625, %v2611
        %2676 = vst [vmem:[#allocation2 + $0x90] sm:$0xff] %v2612
        %2677 = vst.msk [vmem:[#allocation2 + $0x98] sm:$0xff] %vm625, %v2613
        %2678 = vst [vmem:[#allocation2 + $0xa0] sm:$0xff] %v2614
        %2679 = vst.msk [vmem:[#allocation2 + $0xa8] sm:$0xff] %vm625, %v2615
        %2680 = vst [vmem:[#allocation2 + $0xb0] sm:$0xff] %v2616
        %2681 = vst.msk [vmem:[#allocation2 + $0xb8] sm:$0xff] %vm625, %v2617
        %2682 = vst [vmem:[#allocation2 + $0xc0] sm:$0xff] %v2618
        %2683 = vst.msk [vmem:[#allocation2 + $0xc8] sm:$0xff] %vm625, %v2619
        %2684 = vst [vmem:[#allocation2 + $0xd0] sm:$0xff] %v2620
        %2685 = vst.msk [vmem:[#allocation2 + $0xd8] sm:$0xff] %vm625, %v2621
        %2686 = vst [vmem:[#allocation2 + $0xe0] sm:$0xff] %v2622
        %2687 = vst.msk [vmem:[#allocation2 + $0xe8] sm:$0xff] %vm625, %v2623
        %2688 = vst [vmem:[#allocation2 + $0xf0] sm:$0xff] %v2624
        %2689 = vst.msk [vmem:[#allocation2 + $0xf8] sm:$0xff] %vm625, %v2625
        %2690 = vst [vmem:[#allocation2 + $0x100] sm:$0xff] %v2626
        %2691 = vst.msk [vmem:[#allocation2 + $0x108] sm:$0xff] %vm625, %v2627
        %2692 = vst [vmem:[#allocation2 + $0x110] sm:$0xff] %v2628
        %2693 = vst.msk [vmem:[#allocation2 + $0x118] sm:$0xff] %vm625, %v2629
        %2694 = vst [vmem:[#allocation2 + $0x120] sm:$0xff] %v2630
        %2695 = vst.msk [vmem:[#allocation2 + $0x128] sm:$0xff] %vm625, %v2631
        %2696 = vst [vmem:[#allocation2 + $0x130] sm:$0xff] %v2632
        %2697 = vst.msk [vmem:[#allocation2 + $0x138] sm:$0xff] %vm625, %v2633
        %2698 = vst [vmem:[#allocation2 + $0x140] sm:$0xff] %v2634
        %2699 = vst.msk [vmem:[#allocation2 + $0x148] sm:$0xff] %vm625, %v2635
        %2700 = vst [vmem:[#allocation2 + $0x150] sm:$0xff] %v2636
        %2701 = vst.msk [vmem:[#allocation2 + $0x158] sm:$0xff] %vm625, %v2637
        %2702 = vst [vmem:[#allocation2 + $0x160] sm:$0xff] %v2638
        %2703 = vst.msk [vmem:[#allocation2 + $0x168] sm:$0xff] %vm625, %v2639
        %2704 = vst [vmem:[#allocation2 + $0x170] sm:$0xff] %v2640
        %2705 = vst.msk [vmem:[#allocation2 + $0x178] sm:$0xff] %vm625, %v2641
        %2706 = vst [vmem:[#allocation2 + $0x180] sm:$0xff] %v2642
        %2707 = vst.msk [vmem:[#allocation2 + $0x188] sm:$0xff] %vm625, %v2643
        %2708 = vst [vmem:[#allocation2 + $0x190] sm:$0xff] %v2644
        %2709 = vst.msk [vmem:[#allocation2 + $0x198] sm:$0xff] %vm625, %v2645
        %2710 = vst [vmem:[#allocation2 + $0x1a0] sm:$0xff] %v2646
        %2711 = vst.msk [vmem:[#allocation2 + $0x1a8] sm:$0xff] %vm625, %v2647
        %2712 = vst [vmem:[#allocation2 + $0x1b0] sm:$0xff] %v2648
        %2713 = vst.msk [vmem:[#allocation2 + $0x1b8] sm:$0xff] %vm625, %v2649
        %2714 = vst [vmem:[#allocation2 + $0x1c0] sm:$0xff] %v2650
        %2715 = vst.msk [vmem:[#allocation2 + $0x1c8] sm:$0xff] %vm625, %v2651
        %2716 = vst [vmem:[#allocation2 + $0x1d0] sm:$0xff] %v2652
        %2717 = vst.msk [vmem:[#allocation2 + $0x1d8] sm:$0xff] %vm625, %v2653
        %2718 = vst [vmem:[#allocation2 + $0x1e0] sm:$0xff] %v2654
        %2719 = vst.msk [vmem:[#allocation2 + $0x1e8] sm:$0xff] %vm625, %v2655
        %2720 = vst [vmem:[#allocation2 + $0x1f0] sm:$0xff] %v2656
        %2721 = vst.msk [vmem:[#allocation2 + $0x1f8] sm:$0xff] %vm625, %v2657
        %s2722 = smul.addr %s932, 4
        %s2723 = scalar_lea.vmem %s397, %s2722 [#allocation6]
        %v2724 = vld [vmem:[%s2723] sm:$0xf]
        %v2725 = vld [vmem:[%s2723 + $0x4] sm:$0xf]
        %v2726 = vld [vmem:[%s2723 + $0x8] sm:$0xf]
        %v2727 = vld [vmem:[%s2723 + $0xc] sm:$0xf]
        %v2728 = vld [vmem:[%s2723 + $0x10] sm:$0xf]
        %v2729 = vld [vmem:[%s2723 + $0x14] sm:$0xf]
        %v2730 = vld [vmem:[%s2723 + $0x18] sm:$0xf]
        %v2731 = vld [vmem:[%s2723 + $0x1c] sm:$0xf]
        %v2732 = vld [vmem:[%s2723 + $0x20] sm:$0xf]
        %v2733 = vld [vmem:[%s2723 + $0x24] sm:$0xf]
        %v2734 = vld [vmem:[%s2723 + $0x28] sm:$0xf]
        %v2735 = vld [vmem:[%s2723 + $0x2c] sm:$0xf]
        %v2736 = vld [vmem:[%s2723 + $0x30] sm:$0xf]
        %v2737 = vld [vmem:[%s2723 + $0x34] sm:$0xf]
        %v2738 = vld [vmem:[%s2723 + $0x38] sm:$0xf]
        %v2739 = vld [vmem:[%s2723 + $0x3c] sm:$0xf]
        %v2740 = vld [vmem:[%s2723 + $0x40] sm:$0xf]
        %v2741 = vld [vmem:[%s2723 + $0x44] sm:$0xf]
        %v2742 = vld [vmem:[%s2723 + $0x48] sm:$0xf]
        %v2743 = vld [vmem:[%s2723 + $0x4c] sm:$0xf]
        %v2744 = vld [vmem:[%s2723 + $0x50] sm:$0xf]
        %v2745 = vld [vmem:[%s2723 + $0x54] sm:$0xf]
        %v2746 = vld [vmem:[%s2723 + $0x58] sm:$0xf]
        %v2747 = vld [vmem:[%s2723 + $0x5c] sm:$0xf]
        %v2748 = vld [vmem:[%s2723 + $0x60] sm:$0xf]
        %v2749 = vld [vmem:[%s2723 + $0x64] sm:$0xf]
        %v2750 = vld [vmem:[%s2723 + $0x68] sm:$0xf]
        %v2751 = vld [vmem:[%s2723 + $0x6c] sm:$0xf]
        %v2752 = vld [vmem:[%s2723 + $0x70] sm:$0xf]
        %v2753 = vld [vmem:[%s2723 + $0x74] sm:$0xf]
        %v2754 = vld [vmem:[%s2723 + $0x78] sm:$0xf]
        %v2755 = vld [vmem:[%s2723 + $0x7c] sm:$0xf]
        %s2756 = scalar_lea.vmem [#allocation9], 64
        %v2757 = vld [vmem:[%s2756] sm:$0xff]
        %v2758 = vld [vmem:[%s2756 + $0x8] sm:$0xff]
        %v2759 = vld [vmem:[%s2756 + $0x10] sm:$0xff]
        %v2760 = vld [vmem:[%s2756 + $0x18] sm:$0xff]
        %v2761 = vld [vmem:[%s2756 + $0x20] sm:$0xff]
        %v2762 = vld [vmem:[%s2756 + $0x28] sm:$0xff]
        %v2763 = vld [vmem:[%s2756 + $0x30] sm:$0xff]
        %v2764 = vld [vmem:[%s2756 + $0x38] sm:$0xff]
        %v2797 = vunpack.c.l.b16 %v2724
        %v2798 = vunpack.c.l.b16 %v2725
        %v2799 = vunpack.c.l.b16 %v2726
        %v2800 = vunpack.c.l.b16 %v2727
        %v2801 = vunpack.c.l.b16 %v2728
        %v2802 = vunpack.c.l.b16 %v2729
        %v2803 = vunpack.c.l.b16 %v2730
        %v2804 = vunpack.c.l.b16 %v2731
        %v2805 = vunpack.c.l.b16 %v2732
        %v2806 = vunpack.c.l.b16 %v2733
        %v2807 = vunpack.c.l.b16 %v2734
        %v2808 = vunpack.c.l.b16 %v2735
        %v2809 = vunpack.c.l.b16 %v2736
        %v2810 = vunpack.c.l.b16 %v2737
        %v2811 = vunpack.c.l.b16 %v2738
        %v2812 = vunpack.c.l.b16 %v2739
        %v2813 = vunpack.c.l.b16 %v2740
        %v2814 = vunpack.c.l.b16 %v2741
        %v2815 = vunpack.c.l.b16 %v2742
        %v2816 = vunpack.c.l.b16 %v2743
        %v2817 = vunpack.c.l.b16 %v2744
        %v2818 = vunpack.c.l.b16 %v2745
        %v2819 = vunpack.c.l.b16 %v2746
        %v2820 = vunpack.c.l.b16 %v2747
        %v2821 = vunpack.c.l.b16 %v2748
        %v2822 = vunpack.c.l.b16 %v2749
        %v2823 = vunpack.c.l.b16 %v2750
        %v2824 = vunpack.c.l.b16 %v2751
        %v2825 = vunpack.c.l.b16 %v2752
        %v2826 = vunpack.c.l.b16 %v2753
        %v2827 = vunpack.c.l.b16 %v2754
        %v2828 = vunpack.c.l.b16 %v2755
        %v2829 = vpack.c.b16 %v2798, %v2797
        %v2830 = vpack.c.b16 %v2800, %v2799
        %v2831 = vpack.c.b16 %v2802, %v2801
        %v2832 = vpack.c.b16 %v2804, %v2803
        %v2833 = vpack.c.b16 %v2806, %v2805
        %v2834 = vpack.c.b16 %v2808, %v2807
        %v2835 = vpack.c.b16 %v2810, %v2809
        %v2836 = vpack.c.b16 %v2812, %v2811
        %v2837 = vpack.c.b16 %v2814, %v2813
        %v2838 = vpack.c.b16 %v2816, %v2815
        %v2839 = vpack.c.b16 %v2818, %v2817
        %v2840 = vpack.c.b16 %v2820, %v2819
        %v2841 = vpack.c.b16 %v2822, %v2821
        %v2842 = vpack.c.b16 %v2824, %v2823
        %v2843 = vpack.c.b16 %v2826, %v2825
        %v2844 = vpack.c.b16 %v2828, %v2827
        %v2853 = vunpack.c.l.b16 %v2757
        %v2854 = vunpack.c.h.b16 %v2757
        %v2855 = vunpack.c.l.b16 %v2758
        %v2856 = vunpack.c.h.b16 %v2758
        %v2857 = vunpack.c.l.b16 %v2759
        %v2858 = vunpack.c.h.b16 %v2759
        %v2859 = vunpack.c.l.b16 %v2760
        %v2860 = vunpack.c.h.b16 %v2760
        %v2861 = vunpack.c.l.b16 %v2761
        %v2862 = vunpack.c.h.b16 %v2761
        %v2863 = vunpack.c.l.b16 %v2762
        %v2864 = vunpack.c.h.b16 %v2762
        %v2865 = vunpack.c.l.b16 %v2763
        %v2866 = vunpack.c.h.b16 %v2763
        %v2867 = vunpack.c.l.b16 %v2764
        %v2868 = vunpack.c.h.b16 %v2764
        %v2869 = vpack.c.b16 %v2855, %v2853
        %v2870 = vpack.c.b16 %v2856, %v2854
        %v2871 = vpack.c.b16 %v2859, %v2857
        %v2872 = vpack.c.b16 %v2860, %v2858
        %v2873 = vpack.c.b16 %v2863, %v2861
        %v2874 = vpack.c.b16 %v2864, %v2862
        %v2875 = vpack.c.b16 %v2867, %v2865
        %v2876 = vpack.c.b16 %v2868, %v2866
        %v2886 = vsel %vm625, %v2829, 0
        %v2889 = vsel %vm625, %v2830, 0
        %v2892 = vsel %vm625, %v2831, 0
        %v2895 = vsel %vm625, %v2832, 0
        %v2898 = vsel %vm625, %v2833, 0
        %v2901 = vsel %vm625, %v2834, 0
        %v2904 = vsel %vm625, %v2835, 0
        %v2907 = vsel %vm625, %v2836, 0
        %v2910 = vsel %vm625, %v2837, 0
        %v2913 = vsel %vm625, %v2838, 0
        %v2916 = vsel %vm625, %v2839, 0
        %v2919 = vsel %vm625, %v2840, 0
        %v2922 = vsel %vm625, %v2841, 0
        %v2925 = vsel %vm625, %v2842, 0
        %v2928 = vsel %vm625, %v2843, 0
        %v2931 = vsel %vm625, %v2844, 0
        %2933 = vmatprep.subr.bf16.mxu0 %v2870
        %2934 = vmatpush1.bf16.msra.mxu0 %v2869
        %2935 = vmatprep.subr.bf16.mxu0 %v2872
        %2936 = vmatpush1.bf16.msra.mxu0 %v2871
        %2937 = vmatprep.subr.bf16.mxu0 %v2874
        %2938 = vmatpush1.bf16.msra.mxu0 %v2873
        %2939 = vmatprep.subr.bf16.mxu0 %v2876
        %2940 = vmatpush1.bf16.msra.mxu0 %v2875
        %2941 = vmatprep.subr.bf16.mxu0 0
        %2942 = vmatpush1.bf16.msra.mxu0 0
        %2943 = vmatprep.subr.bf16.mxu0 0
        %2944 = vmatpush1.bf16.msra.mxu0 0
        %2945 = vmatprep.subr.bf16.mxu0 0
        %2946 = vmatpush1.bf16.msra.mxu0 0
        %2947 = vmatprep.subr.bf16.mxu0 0
        %2948 = vmatpush1.bf16.msra.mxu0 0
        %2949 = vmatprep.subr.bf16.mxu0 0
        %2950 = vmatpush1.bf16.msra.mxu0 0
        %2951 = vmatprep.subr.bf16.mxu0 0
        %2952 = vmatpush1.bf16.msra.mxu0 0
        %2953 = vmatprep.subr.bf16.mxu0 0
        %2954 = vmatpush1.bf16.msra.mxu0 0
        %2955 = vmatprep.subr.bf16.mxu0 0
        %2956 = vmatpush1.bf16.msra.mxu0 0
        %2957 = vmatprep.subr.bf16.mxu0 0
        %2958 = vmatpush1.bf16.msra.mxu0 0
        %2959 = vmatprep.subr.bf16.mxu0 0
        %2960 = vmatpush1.bf16.msra.mxu0 0
        %2961 = vmatprep.subr.bf16.mxu0 0
        %2962 = vmatpush1.bf16.msra.mxu0 0
        %2963 = vmatprep.subr.bf16.mxu0 0
        %2964 = vmatpush1.bf16.msra.mxu0 0
        %2965 = vmatprep.mubr.bf16.mxu0 0
        %2966 = vmatmul.mubr.bf16.gmra.mrb[0].mxu0 %v2886
        %v2967 = vpop.f32.mrb[0].mxu0
        %v2968 = vadd.f32 0.0, %v2967
        %v2969 = vpop.f32.mrb[0].mxu0
        %v2970 = vadd.f32 0.0, %v2969
        %v2971 = vpop.f32.mrb[0].mxu0
        %v2972 = vadd.f32 0.0, %v2971
        %v2973 = vpop.f32.mrb[0].mxu0
        %v2974 = vadd.f32 0.0, %v2973
        %2975 = vmatprep.mubr.bf16.mxu0 0
        %2976 = vmatmul.mubr.bf16.gmra.mrb[0].mxu0 %v2889
        %v2977 = vpop.f32.mrb[0].mxu0
        %v2978 = vadd.f32 0.0, %v2977
        %v2979 = vpop.f32.mrb[0].mxu0
        %v2980 = vadd.f32 0.0, %v2979
        %v2981 = vpop.f32.mrb[0].mxu0
        %v2982 = vadd.f32 0.0, %v2981
        %v2983 = vpop.f32.mrb[0].mxu0
        %v2984 = vadd.f32 0.0, %v2983
        %2985 = vmatprep.mubr.bf16.mxu0 0
        %2986 = vmatmul.mubr.bf16.gmra.mrb[0].mxu0 %v2892
        %v2987 = vpop.f32.mrb[0].mxu0
        %v2988 = vadd.f32 0.0, %v2987
        %v2989 = vpop.f32.mrb[0].mxu0
        %v2990 = vadd.f32 0.0, %v2989
        %v2991 = vpop.f32.mrb[0].mxu0
        %v2992 = vadd.f32 0.0, %v2991
        %v2993 = vpop.f32.mrb[0].mxu0
        %v2994 = vadd.f32 0.0, %v2993
        %2995 = vmatprep.mubr.bf16.mxu0 0
        %2996 = vmatmul.mubr.bf16.gmra.mrb[0].mxu0 %v2895
        %v2997 = vpop.f32.mrb[0].mxu0
        %v2998 = vadd.f32 0.0, %v2997
        %v2999 = vpop.f32.mrb[0].mxu0
        %v3000 = vadd.f32 0.0, %v2999
        %v3001 = vpop.f32.mrb[0].mxu0
        %v3002 = vadd.f32 0.0, %v3001
        %v3003 = vpop.f32.mrb[0].mxu0
        %v3004 = vadd.f32 0.0, %v3003
        %3005 = vmatprep.mubr.bf16.mxu0 0
        %3006 = vmatmul.mubr.bf16.gmra.mrb[0].mxu0 %v2898
        %v3007 = vpop.f32.mrb[0].mxu0
        %v3008 = vadd.f32 0.0, %v3007
        %v3009 = vpop.f32.mrb[0].mxu0
        %v3010 = vadd.f32 0.0, %v3009
        %v3011 = vpop.f32.mrb[0].mxu0
        %v3012 = vadd.f32 0.0, %v3011
        %v3013 = vpop.f32.mrb[0].mxu0
        %v3014 = vadd.f32 0.0, %v3013
        %3015 = vmatprep.mubr.bf16.mxu0 0
        %3016 = vmatmul.mubr.bf16.gmra.mrb[0].mxu0 %v2901
        %v3017 = vpop.f32.mrb[0].mxu0
        %v3018 = vadd.f32 0.0, %v3017
        %v3019 = vpop.f32.mrb[0].mxu0
        %v3020 = vadd.f32 0.0, %v3019
        %v3021 = vpop.f32.mrb[0].mxu0
        %v3022 = vadd.f32 0.0, %v3021
        %v3023 = vpop.f32.mrb[0].mxu0
        %v3024 = vadd.f32 0.0, %v3023
        %3025 = vmatprep.mubr.bf16.mxu0 0
        %3026 = vmatmul.mubr.bf16.gmra.mrb[0].mxu0 %v2904
        %v3027 = vpop.f32.mrb[0].mxu0
        %v3028 = vadd.f32 0.0, %v3027
        %v3029 = vpop.f32.mrb[0].mxu0
        %v3030 = vadd.f32 0.0, %v3029
        %v3031 = vpop.f32.mrb[0].mxu0
        %v3032 = vadd.f32 0.0, %v3031
        %v3033 = vpop.f32.mrb[0].mxu0
        %v3034 = vadd.f32 0.0, %v3033
        %3035 = vmatprep.mubr.bf16.mxu0 0
        %3036 = vmatmul.mubr.bf16.gmra.mrb[0].mxu0 %v2907
        %v3037 = vpop.f32.mrb[0].mxu0
        %v3038 = vadd.f32 0.0, %v3037
        %v3039 = vpop.f32.mrb[0].mxu0
        %v3040 = vadd.f32 0.0, %v3039
        %v3041 = vpop.f32.mrb[0].mxu0
        %v3042 = vadd.f32 0.0, %v3041
        %v3043 = vpop.f32.mrb[0].mxu0
        %v3044 = vadd.f32 0.0, %v3043
        %3045 = vmatprep.mubr.bf16.mxu0 0
        %3046 = vmatmul.mubr.bf16.gmra.mrb[0].mxu0 %v2910
        %v3047 = vpop.f32.mrb[0].mxu0
        %v3048 = vadd.f32 0.0, %v3047
        %v3049 = vpop.f32.mrb[0].mxu0
        %v3050 = vadd.f32 0.0, %v3049
        %v3051 = vpop.f32.mrb[0].mxu0
        %v3052 = vadd.f32 0.0, %v3051
        %v3053 = vpop.f32.mrb[0].mxu0
        %v3054 = vadd.f32 0.0, %v3053
        %3055 = vmatprep.mubr.bf16.mxu0 0
        %3056 = vmatmul.mubr.bf16.gmra.mrb[0].mxu0 %v2913
        %v3057 = vpop.f32.mrb[0].mxu0
        %v3058 = vadd.f32 0.0, %v3057
        %v3059 = vpop.f32.mrb[0].mxu0
        %v3060 = vadd.f32 0.0, %v3059
        %v3061 = vpop.f32.mrb[0].mxu0
        %v3062 = vadd.f32 0.0, %v3061
        %v3063 = vpop.f32.mrb[0].mxu0
        %v3064 = vadd.f32 0.0, %v3063
        %3065 = vmatprep.mubr.bf16.mxu0 0
        %3066 = vmatmul.mubr.bf16.gmra.mrb[0].mxu0 %v2916
        %v3067 = vpop.f32.mrb[0].mxu0
        %v3068 = vadd.f32 0.0, %v3067
        %v3069 = vpop.f32.mrb[0].mxu0
        %v3070 = vadd.f32 0.0, %v3069
        %v3071 = vpop.f32.mrb[0].mxu0
        %v3072 = vadd.f32 0.0, %v3071
        %v3073 = vpop.f32.mrb[0].mxu0
        %v3074 = vadd.f32 0.0, %v3073
        %3075 = vmatprep.mubr.bf16.mxu0 0
        %3076 = vmatmul.mubr.bf16.gmra.mrb[0].mxu0 %v2919
        %v3077 = vpop.f32.mrb[0].mxu0
        %v3078 = vadd.f32 0.0, %v3077
        %v3079 = vpop.f32.mrb[0].mxu0
        %v3080 = vadd.f32 0.0, %v3079
        %v3081 = vpop.f32.mrb[0].mxu0
        %v3082 = vadd.f32 0.0, %v3081
        %v3083 = vpop.f32.mrb[0].mxu0
        %v3084 = vadd.f32 0.0, %v3083
        %3085 = vmatprep.mubr.bf16.mxu0 0
        %3086 = vmatmul.mubr.bf16.gmra.mrb[0].mxu0 %v2922
        %v3087 = vpop.f32.mrb[0].mxu0
        %v3088 = vadd.f32 0.0, %v3087
        %v3089 = vpop.f32.mrb[0].mxu0
        %v3090 = vadd.f32 0.0, %v3089
        %v3091 = vpop.f32.mrb[0].mxu0
        %v3092 = vadd.f32 0.0, %v3091
        %v3093 = vpop.f32.mrb[0].mxu0
        %v3094 = vadd.f32 0.0, %v3093
        %3095 = vmatprep.mubr.bf16.mxu0 0
        %3096 = vmatmul.mubr.bf16.gmra.mrb[0].mxu0 %v2925
        %v3097 = vpop.f32.mrb[0].mxu0
        %v3098 = vadd.f32 0.0, %v3097
        %v3099 = vpop.f32.mrb[0].mxu0
        %v3100 = vadd.f32 0.0, %v3099
        %v3101 = vpop.f32.mrb[0].mxu0
        %v3102 = vadd.f32 0.0, %v3101
        %v3103 = vpop.f32.mrb[0].mxu0
        %v3104 = vadd.f32 0.0, %v3103
        %3105 = vmatprep.mubr.bf16.mxu0 0
        %3106 = vmatmul.mubr.bf16.gmra.mrb[0].mxu0 %v2928
        %v3107 = vpop.f32.mrb[0].mxu0
        %v3108 = vadd.f32 0.0, %v3107
        %v3109 = vpop.f32.mrb[0].mxu0
        %v3110 = vadd.f32 0.0, %v3109
        %v3111 = vpop.f32.mrb[0].mxu0
        %v3112 = vadd.f32 0.0, %v3111
        %v3113 = vpop.f32.mrb[0].mxu0
        %v3114 = vadd.f32 0.0, %v3113
        %3115 = vmatprep.mubr.bf16.mxu0 0
        %3116 = vmatmul.mubr.bf16.gmra.mrb[0].mxu0 %v2931
        %v3117 = vpop.f32.mrb[0].mxu0
        %v3118 = vadd.f32 0.0, %v3117
        %v3119 = vpop.f32.mrb[0].mxu0
        %v3120 = vadd.f32 0.0, %v3119
        %v3121 = vpop.f32.mrb[0].mxu0
        %v3122 = vadd.f32 0.0, %v3121
        %v3123 = vpop.f32.mrb[0].mxu0
        %v3124 = vadd.f32 0.0, %v3123
        %3125 = vdwg.mxu0
        %v3126 = vld [vmem:[#allocation2] sm:$0xff]
        %v3127 = vld [vmem:[#allocation2 + $0x8] sm:$0xff]
        %v3128 = vld [vmem:[#allocation2 + $0x10] sm:$0xff]
        %v3129 = vld [vmem:[#allocation2 + $0x18] sm:$0xff]
        %v3130 = vld [vmem:[#allocation2 + $0x20] sm:$0xff]
        %v3131 = vld [vmem:[#allocation2 + $0x28] sm:$0xff]
        %v3132 = vld [vmem:[#allocation2 + $0x30] sm:$0xff]
        %v3133 = vld [vmem:[#allocation2 + $0x38] sm:$0xff]
        %v3134 = vld [vmem:[#allocation2 + $0x40] sm:$0xff]
        %v3135 = vld [vmem:[#allocation2 + $0x48] sm:$0xff]
        %v3136 = vld [vmem:[#allocation2 + $0x50] sm:$0xff]
        %v3137 = vld [vmem:[#allocation2 + $0x58] sm:$0xff]
        %v3138 = vld [vmem:[#allocation2 + $0x60] sm:$0xff]
        %v3139 = vld [vmem:[#allocation2 + $0x68] sm:$0xff]
        %v3140 = vld [vmem:[#allocation2 + $0x70] sm:$0xff]
        %v3141 = vld [vmem:[#allocation2 + $0x78] sm:$0xff]
        %v3142 = vld [vmem:[#allocation2 + $0x80] sm:$0xff]
        %v3143 = vld [vmem:[#allocation2 + $0x88] sm:$0xff]
        %v3144 = vld [vmem:[#allocation2 + $0x90] sm:$0xff]
        %v3145 = vld [vmem:[#allocation2 + $0x98] sm:$0xff]
        %v3146 = vld [vmem:[#allocation2 + $0xa0] sm:$0xff]
        %v3147 = vld [vmem:[#allocation2 + $0xa8] sm:$0xff]
        %v3148 = vld [vmem:[#allocation2 + $0xb0] sm:$0xff]
        %v3149 = vld [vmem:[#allocation2 + $0xb8] sm:$0xff]
        %v3150 = vld [vmem:[#allocation2 + $0xc0] sm:$0xff]
        %v3151 = vld [vmem:[#allocation2 + $0xc8] sm:$0xff]
        %v3152 = vld [vmem:[#allocation2 + $0xd0] sm:$0xff]
        %v3153 = vld [vmem:[#allocation2 + $0xd8] sm:$0xff]
        %v3154 = vld [vmem:[#allocation2 + $0xe0] sm:$0xff]
        %v3155 = vld [vmem:[#allocation2 + $0xe8] sm:$0xff]
        %v3156 = vld [vmem:[#allocation2 + $0xf0] sm:$0xff]
        %v3157 = vld [vmem:[#allocation2 + $0xf8] sm:$0xff]
        %v3158 = vld [vmem:[#allocation2 + $0x100] sm:$0xff]
        %v3159 = vld [vmem:[#allocation2 + $0x108] sm:$0xff]
        %v3160 = vld [vmem:[#allocation2 + $0x110] sm:$0xff]
        %v3161 = vld [vmem:[#allocation2 + $0x118] sm:$0xff]
        %v3162 = vld [vmem:[#allocation2 + $0x120] sm:$0xff]
        %v3163 = vld [vmem:[#allocation2 + $0x128] sm:$0xff]
        %v3164 = vld [vmem:[#allocation2 + $0x130] sm:$0xff]
        %v3165 = vld [vmem:[#allocation2 + $0x138] sm:$0xff]
        %v3166 = vld [vmem:[#allocation2 + $0x140] sm:$0xff]
        %v3167 = vld [vmem:[#allocation2 + $0x148] sm:$0xff]
        %v3168 = vld [vmem:[#allocation2 + $0x150] sm:$0xff]
        %v3169 = vld [vmem:[#allocation2 + $0x158] sm:$0xff]
        %v3170 = vld [vmem:[#allocation2 + $0x160] sm:$0xff]
        %v3171 = vld [vmem:[#allocation2 + $0x168] sm:$0xff]
        %v3172 = vld [vmem:[#allocation2 + $0x170] sm:$0xff]
        %v3173 = vld [vmem:[#allocation2 + $0x178] sm:$0xff]
        %v3174 = vld [vmem:[#allocation2 + $0x180] sm:$0xff]
        %v3175 = vld [vmem:[#allocation2 + $0x188] sm:$0xff]
        %v3176 = vld [vmem:[#allocation2 + $0x190] sm:$0xff]
        %v3177 = vld [vmem:[#allocation2 + $0x198] sm:$0xff]
        %v3178 = vld [vmem:[#allocation2 + $0x1a0] sm:$0xff]
        %v3179 = vld [vmem:[#allocation2 + $0x1a8] sm:$0xff]
        %v3180 = vld [vmem:[#allocation2 + $0x1b0] sm:$0xff]
        %v3181 = vld [vmem:[#allocation2 + $0x1b8] sm:$0xff]
        %v3182 = vld [vmem:[#allocation2 + $0x1c0] sm:$0xff]
        %v3183 = vld [vmem:[#allocation2 + $0x1c8] sm:$0xff]
        %v3184 = vld [vmem:[#allocation2 + $0x1d0] sm:$0xff]
        %v3185 = vld [vmem:[#allocation2 + $0x1d8] sm:$0xff]
        %v3186 = vld [vmem:[#allocation2 + $0x1e0] sm:$0xff]
        %v3187 = vld [vmem:[#allocation2 + $0x1e8] sm:$0xff]
        %v3188 = vld [vmem:[#allocation2 + $0x1f0] sm:$0xff]
        %v3189 = vld [vmem:[#allocation2 + $0x1f8] sm:$0xff]
        %v3190 = vadd.f32 %v3126, %v2968
        %v3191 = vadd.f32 %v3127, %v2970
        %v3192 = vadd.f32 %v3128, %v2972
        %v3193 = vadd.f32 %v3129, %v2974
        %v3194 = vadd.f32 %v3130, %v2978
        %v3195 = vadd.f32 %v3131, %v2980
        %v3196 = vadd.f32 %v3132, %v2982
        %v3197 = vadd.f32 %v3133, %v2984
        %v3198 = vadd.f32 %v3134, %v2988
        %v3199 = vadd.f32 %v3135, %v2990
        %v3200 = vadd.f32 %v3136, %v2992
        %v3201 = vadd.f32 %v3137, %v2994
        %v3202 = vadd.f32 %v3138, %v2998
        %v3203 = vadd.f32 %v3139, %v3000
        %v3204 = vadd.f32 %v3140, %v3002
        %v3205 = vadd.f32 %v3141, %v3004
        %v3206 = vadd.f32 %v3142, %v3008
        %v3207 = vadd.f32 %v3143, %v3010
        %v3208 = vadd.f32 %v3144, %v3012
        %v3209 = vadd.f32 %v3145, %v3014
        %v3210 = vadd.f32 %v3146, %v3018
        %v3211 = vadd.f32 %v3147, %v3020
        %v3212 = vadd.f32 %v3148, %v3022
        %v3213 = vadd.f32 %v3149, %v3024
        %v3214 = vadd.f32 %v3150, %v3028
        %v3215 = vadd.f32 %v3151, %v3030
        %v3216 = vadd.f32 %v3152, %v3032
        %v3217 = vadd.f32 %v3153, %v3034
        %v3218 = vadd.f32 %v3154, %v3038
        %v3219 = vadd.f32 %v3155, %v3040
        %v3220 = vadd.f32 %v3156, %v3042
        %v3221 = vadd.f32 %v3157, %v3044
        %v3222 = vadd.f32 %v3158, %v3048
        %v3223 = vadd.f32 %v3159, %v3050
        %v3224 = vadd.f32 %v3160, %v3052
        %v3225 = vadd.f32 %v3161, %v3054
        %v3226 = vadd.f32 %v3162, %v3058
        %v3227 = vadd.f32 %v3163, %v3060
        %v3228 = vadd.f32 %v3164, %v3062
        %v3229 = vadd.f32 %v3165, %v3064
        %v3230 = vadd.f32 %v3166, %v3068
        %v3231 = vadd.f32 %v3167, %v3070
        %v3232 = vadd.f32 %v3168, %v3072
        %v3233 = vadd.f32 %v3169, %v3074
        %v3234 = vadd.f32 %v3170, %v3078
        %v3235 = vadd.f32 %v3171, %v3080
        %v3236 = vadd.f32 %v3172, %v3082
        %v3237 = vadd.f32 %v3173, %v3084
        %v3238 = vadd.f32 %v3174, %v3088
        %v3239 = vadd.f32 %v3175, %v3090
        %v3240 = vadd.f32 %v3176, %v3092
        %v3241 = vadd.f32 %v3177, %v3094
        %v3242 = vadd.f32 %v3178, %v3098
        %v3243 = vadd.f32 %v3179, %v3100
        %v3244 = vadd.f32 %v3180, %v3102
        %v3245 = vadd.f32 %v3181, %v3104
        %v3246 = vadd.f32 %v3182, %v3108
        %v3247 = vadd.f32 %v3183, %v3110
        %v3248 = vadd.f32 %v3184, %v3112
        %v3249 = vadd.f32 %v3185, %v3114
        %v3250 = vadd.f32 %v3186, %v3118
        %v3251 = vadd.f32 %v3187, %v3120
        %v3252 = vadd.f32 %v3188, %v3122
        %v3253 = vadd.f32 %v3189, %v3124
        %3254 = vst [vmem:[#allocation2] sm:$0xff] %v3190
        %3255 = vst.msk [vmem:[#allocation2 + $0x8] sm:$0xff] %vm625, %v3191
        %3256 = vst [vmem:[#allocation2 + $0x10] sm:$0xff] %v3192
        %3257 = vst.msk [vmem:[#allocation2 + $0x18] sm:$0xff] %vm625, %v3193
        %3258 = vst [vmem:[#allocation2 + $0x20] sm:$0xff] %v3194
        %3259 = vst.msk [vmem:[#allocation2 + $0x28] sm:$0xff] %vm625, %v3195
        %3260 = vst [vmem:[#allocation2 + $0x30] sm:$0xff] %v3196
        %3261 = vst.msk [vmem:[#allocation2 + $0x38] sm:$0xff] %vm625, %v3197
        %3262 = vst [vmem:[#allocation2 + $0x40] sm:$0xff] %v3198
        %3263 = vst.msk [vmem:[#allocation2 + $0x48] sm:$0xff] %vm625, %v3199
        %3264 = vst [vmem:[#allocation2 + $0x50] sm:$0xff] %v3200
        %3265 = vst.msk [vmem:[#allocation2 + $0x58] sm:$0xff] %vm625, %v3201
        %3266 = vst [vmem:[#allocation2 + $0x60] sm:$0xff] %v3202
        %3267 = vst.msk [vmem:[#allocation2 + $0x68] sm:$0xff] %vm625, %v3203
        %3268 = vst [vmem:[#allocation2 + $0x70] sm:$0xff] %v3204
        %3269 = vst.msk [vmem:[#allocation2 + $0x78] sm:$0xff] %vm625, %v3205
        %3270 = vst [vmem:[#allocation2 + $0x80] sm:$0xff] %v3206
        %3271 = vst.msk [vmem:[#allocation2 + $0x88] sm:$0xff] %vm625, %v3207
        %3272 = vst [vmem:[#allocation2 + $0x90] sm:$0xff] %v3208
        %3273 = vst.msk [vmem:[#allocation2 + $0x98] sm:$0xff] %vm625, %v3209
        %3274 = vst [vmem:[#allocation2 + $0xa0] sm:$0xff] %v3210
        %3275 = vst.msk [vmem:[#allocation2 + $0xa8] sm:$0xff] %vm625, %v3211
        %3276 = vst [vmem:[#allocation2 + $0xb0] sm:$0xff] %v3212
        %3277 = vst.msk [vmem:[#allocation2 + $0xb8] sm:$0xff] %vm625, %v3213
        %3278 = vst [vmem:[#allocation2 + $0xc0] sm:$0xff] %v3214
        %3279 = vst.msk [vmem:[#allocation2 + $0xc8] sm:$0xff] %vm625, %v3215
        %3280 = vst [vmem:[#allocation2 + $0xd0] sm:$0xff] %v3216
        %3281 = vst.msk [vmem:[#allocation2 + $0xd8] sm:$0xff] %vm625, %v3217
        %3282 = vst [vmem:[#allocation2 + $0xe0] sm:$0xff] %v3218
        %3283 = vst.msk [vmem:[#allocation2 + $0xe8] sm:$0xff] %vm625, %v3219
        %3284 = vst [vmem:[#allocation2 + $0xf0] sm:$0xff] %v3220
        %3285 = vst.msk [vmem:[#allocation2 + $0xf8] sm:$0xff] %vm625, %v3221
        %3286 = vst [vmem:[#allocation2 + $0x100] sm:$0xff] %v3222
        %3287 = vst.msk [vmem:[#allocation2 + $0x108] sm:$0xff] %vm625, %v3223
        %3288 = vst [vmem:[#allocation2 + $0x110] sm:$0xff] %v3224
        %3289 = vst.msk [vmem:[#allocation2 + $0x118] sm:$0xff] %vm625, %v3225
        %3290 = vst [vmem:[#allocation2 + $0x120] sm:$0xff] %v3226
        %3291 = vst.msk [vmem:[#allocation2 + $0x128] sm:$0xff] %vm625, %v3227
        %3292 = vst [vmem:[#allocation2 + $0x130] sm:$0xff] %v3228
        %3293 = vst.msk [vmem:[#allocation2 + $0x138] sm:$0xff] %vm625, %v3229
        %3294 = vst [vmem:[#allocation2 + $0x140] sm:$0xff] %v3230
        %3295 = vst.msk [vmem:[#allocation2 + $0x148] sm:$0xff] %vm625, %v3231
        %3296 = vst [vmem:[#allocation2 + $0x150] sm:$0xff] %v3232
        %3297 = vst.msk [vmem:[#allocation2 + $0x158] sm:$0xff] %vm625, %v3233
        %3298 = vst [vmem:[#allocation2 + $0x160] sm:$0xff] %v3234
        %3299 = vst.msk [vmem:[#allocation2 + $0x168] sm:$0xff] %vm625, %v3235
        %3300 = vst [vmem:[#allocation2 + $0x170] sm:$0xff] %v3236
        %3301 = vst.msk [vmem:[#allocation2 + $0x178] sm:$0xff] %vm625, %v3237
        %3302 = vst [vmem:[#allocation2 + $0x180] sm:$0xff] %v3238
        %3303 = vst.msk [vmem:[#allocation2 + $0x188] sm:$0xff] %vm625, %v3239
        %3304 = vst [vmem:[#allocation2 + $0x190] sm:$0xff] %v3240
        %3305 = vst.msk [vmem:[#allocation2 + $0x198] sm:$0xff] %vm625, %v3241
        %3306 = vst [vmem:[#allocation2 + $0x1a0] sm:$0xff] %v3242
        %3307 = vst.msk [vmem:[#allocation2 + $0x1a8] sm:$0xff] %vm625, %v3243
        %3308 = vst [vmem:[#allocation2 + $0x1b0] sm:$0xff] %v3244
        %3309 = vst.msk [vmem:[#allocation2 + $0x1b8] sm:$0xff] %vm625, %v3245
        %3310 = vst [vmem:[#allocation2 + $0x1c0] sm:$0xff] %v3246
        %3311 = vst.msk [vmem:[#allocation2 + $0x1c8] sm:$0xff] %vm625, %v3247
        %3312 = vst [vmem:[#allocation2 + $0x1d0] sm:$0xff] %v3248
        %3313 = vst.msk [vmem:[#allocation2 + $0x1d8] sm:$0xff] %vm625, %v3249
        %3314 = vst [vmem:[#allocation2 + $0x1e0] sm:$0xff] %v3250
        %3315 = vst.msk [vmem:[#allocation2 + $0x1e8] sm:$0xff] %vm625, %v3251
        %3316 = vst [vmem:[#allocation2 + $0x1f0] sm:$0xff] %v3252
        %3317 = vst.msk [vmem:[#allocation2 + $0x1f8] sm:$0xff] %vm625, %v3253
        %s3318 = smul.addr %s1530, 4
        %s3319 = scalar_lea.vmem %s397, %s3318 [#allocation6]
        %v3320 = vld [vmem:[%s3319] sm:$0xf]
        %v3321 = vld [vmem:[%s3319 + $0x4] sm:$0xf]
        %v3322 = vld [vmem:[%s3319 + $0x8] sm:$0xf]
        %v3323 = vld [vmem:[%s3319 + $0xc] sm:$0xf]
        %v3324 = vld [vmem:[%s3319 + $0x10] sm:$0xf]
        %v3325 = vld [vmem:[%s3319 + $0x14] sm:$0xf]
        %v3326 = vld [vmem:[%s3319 + $0x18] sm:$0xf]
        %v3327 = vld [vmem:[%s3319 + $0x1c] sm:$0xf]
        %v3328 = vld [vmem:[%s3319 + $0x20] sm:$0xf]
        %v3329 = vld [vmem:[%s3319 + $0x24] sm:$0xf]
        %v3330 = vld [vmem:[%s3319 + $0x28] sm:$0xf]
        %v3331 = vld [vmem:[%s3319 + $0x2c] sm:$0xf]
        %v3332 = vld [vmem:[%s3319 + $0x30] sm:$0xf]
        %v3333 = vld [vmem:[%s3319 + $0x34] sm:$0xf]
        %v3334 = vld [vmem:[%s3319 + $0x38] sm:$0xf]
        %v3335 = vld [vmem:[%s3319 + $0x3c] sm:$0xf]
        %v3336 = vld [vmem:[%s3319 + $0x40] sm:$0xf]
        %v3337 = vld [vmem:[%s3319 + $0x44] sm:$0xf]
        %v3338 = vld [vmem:[%s3319 + $0x48] sm:$0xf]
        %v3339 = vld [vmem:[%s3319 + $0x4c] sm:$0xf]
        %v3340 = vld [vmem:[%s3319 + $0x50] sm:$0xf]
        %v3341 = vld [vmem:[%s3319 + $0x54] sm:$0xf]
        %v3342 = vld [vmem:[%s3319 + $0x58] sm:$0xf]
        %v3343 = vld [vmem:[%s3319 + $0x5c] sm:$0xf]
        %v3344 = vld [vmem:[%s3319 + $0x60] sm:$0xf]
        %v3345 = vld [vmem:[%s3319 + $0x64] sm:$0xf]
        %v3346 = vld [vmem:[%s3319 + $0x68] sm:$0xf]
        %v3347 = vld [vmem:[%s3319 + $0x6c] sm:$0xf]
        %v3348 = vld [vmem:[%s3319 + $0x70] sm:$0xf]
        %v3349 = vld [vmem:[%s3319 + $0x74] sm:$0xf]
        %v3350 = vld [vmem:[%s3319 + $0x78] sm:$0xf]
        %v3351 = vld [vmem:[%s3319 + $0x7c] sm:$0xf]
        %s3352 = scalar_lea.vmem [#allocation9], 128
        %v3353 = vld [vmem:[%s3352] sm:$0xff]
        %v3354 = vld [vmem:[%s3352 + $0x8] sm:$0xff]
        %v3355 = vld [vmem:[%s3352 + $0x10] sm:$0xff]
        %v3356 = vld [vmem:[%s3352 + $0x18] sm:$0xff]
        %v3357 = vld [vmem:[%s3352 + $0x20] sm:$0xff]
        %v3358 = vld [vmem:[%s3352 + $0x28] sm:$0xff]
        %v3359 = vld [vmem:[%s3352 + $0x30] sm:$0xff]
        %v3360 = vld [vmem:[%s3352 + $0x38] sm:$0xff]
        %v3393 = vunpack.c.l.b16 %v3320
        %v3394 = vunpack.c.l.b16 %v3321
        %v3395 = vunpack.c.l.b16 %v3322
        %v3396 = vunpack.c.l.b16 %v3323
        %v3397 = vunpack.c.l.b16 %v3324
        %v3398 = vunpack.c.l.b16 %v3325
        %v3399 = vunpack.c.l.b16 %v3326
        %v3400 = vunpack.c.l.b16 %v3327
        %v3401 = vunpack.c.l.b16 %v3328
        %v3402 = vunpack.c.l.b16 %v3329
        %v3403 = vunpack.c.l.b16 %v3330
        %v3404 = vunpack.c.l.b16 %v3331
        %v3405 = vunpack.c.l.b16 %v3332
        %v3406 = vunpack.c.l.b16 %v3333
        %v3407 = vunpack.c.l.b16 %v3334
        %v3408 = vunpack.c.l.b16 %v3335
        %v3409 = vunpack.c.l.b16 %v3336
        %v3410 = vunpack.c.l.b16 %v3337
        %v3411 = vunpack.c.l.b16 %v3338
        %v3412 = vunpack.c.l.b16 %v3339
        %v3413 = vunpack.c.l.b16 %v3340
        %v3414 = vunpack.c.l.b16 %v3341
        %v3415 = vunpack.c.l.b16 %v3342
        %v3416 = vunpack.c.l.b16 %v3343
        %v3417 = vunpack.c.l.b16 %v3344
        %v3418 = vunpack.c.l.b16 %v3345
        %v3419 = vunpack.c.l.b16 %v3346
        %v3420 = vunpack.c.l.b16 %v3347
        %v3421 = vunpack.c.l.b16 %v3348
        %v3422 = vunpack.c.l.b16 %v3349
        %v3423 = vunpack.c.l.b16 %v3350
        %v3424 = vunpack.c.l.b16 %v3351
        %v3425 = vpack.c.b16 %v3394, %v3393
        %v3426 = vpack.c.b16 %v3396, %v3395
        %v3427 = vpack.c.b16 %v3398, %v3397
        %v3428 = vpack.c.b16 %v3400, %v3399
        %v3429 = vpack.c.b16 %v3402, %v3401
        %v3430 = vpack.c.b16 %v3404, %v3403
        %v3431 = vpack.c.b16 %v3406, %v3405
        %v3432 = vpack.c.b16 %v3408, %v3407
        %v3433 = vpack.c.b16 %v3410, %v3409
        %v3434 = vpack.c.b16 %v3412, %v3411
        %v3435 = vpack.c.b16 %v3414, %v3413
        %v3436 = vpack.c.b16 %v3416, %v3415
        %v3437 = vpack.c.b16 %v3418, %v3417
        %v3438 = vpack.c.b16 %v3420, %v3419
        %v3439 = vpack.c.b16 %v3422, %v3421
        %v3440 = vpack.c.b16 %v3424, %v3423
        %v3449 = vunpack.c.l.b16 %v3353
        %v3450 = vunpack.c.h.b16 %v3353
        %v3451 = vunpack.c.l.b16 %v3354
        %v3452 = vunpack.c.h.b16 %v3354
        %v3453 = vunpack.c.l.b16 %v3355
        %v3454 = vunpack.c.h.b16 %v3355
        %v3455 = vunpack.c.l.b16 %v3356
        %v3456 = vunpack.c.h.b16 %v3356
        %v3457 = vunpack.c.l.b16 %v3357
        %v3458 = vunpack.c.h.b16 %v3357
        %v3459 = vunpack.c.l.b16 %v3358
        %v3460 = vunpack.c.h.b16 %v3358
        %v3461 = vunpack.c.l.b16 %v3359
        %v3462 = vunpack.c.h.b16 %v3359
        %v3463 = vunpack.c.l.b16 %v3360
        %v3464 = vunpack.c.h.b16 %v3360
        %v3465 = vpack.c.b16 %v3451, %v3449
        %v3466 = vpack.c.b16 %v3452, %v3450
        %v3467 = vpack.c.b16 %v3455, %v3453
        %v3468 = vpack.c.b16 %v3456, %v3454
        %v3469 = vpack.c.b16 %v3459, %v3457
        %v3470 = vpack.c.b16 %v3460, %v3458
        %v3471 = vpack.c.b16 %v3463, %v3461
        %v3472 = vpack.c.b16 %v3464, %v3462
        %v3482 = vsel %vm625, %v3425, 0
        %v3485 = vsel %vm625, %v3426, 0
        %v3488 = vsel %vm625, %v3427, 0
        %v3491 = vsel %vm625, %v3428, 0
        %v3494 = vsel %vm625, %v3429, 0
        %v3497 = vsel %vm625, %v3430, 0
        %v3500 = vsel %vm625, %v3431, 0
        %v3503 = vsel %vm625, %v3432, 0
        %v3506 = vsel %vm625, %v3433, 0
        %v3509 = vsel %vm625, %v3434, 0
        %v3512 = vsel %vm625, %v3435, 0
        %v3515 = vsel %vm625, %v3436, 0
        %v3518 = vsel %vm625, %v3437, 0
        %v3521 = vsel %vm625, %v3438, 0
        %v3524 = vsel %vm625, %v3439, 0
        %v3527 = vsel %vm625, %v3440, 0
        %3529 = vmatprep.subr.bf16.mxu0 %v3466
        %3530 = vmatpush1.bf16.msra.mxu0 %v3465
        %3531 = vmatprep.subr.bf16.mxu0 %v3468
        %3532 = vmatpush1.bf16.msra.mxu0 %v3467
        %3533 = vmatprep.subr.bf16.mxu0 %v3470
        %3534 = vmatpush1.bf16.msra.mxu0 %v3469
        %3535 = vmatprep.subr.bf16.mxu0 %v3472
        %3536 = vmatpush1.bf16.msra.mxu0 %v3471
        %3537 = vmatprep.subr.bf16.mxu0 0
        %3538 = vmatpush1.bf16.msra.mxu0 0
        %3539 = vmatprep.subr.bf16.mxu0 0
        %3540 = vmatpush1.bf16.msra.mxu0 0
        %3541 = vmatprep.subr.bf16.mxu0 0
        %3542 = vmatpush1.bf16.msra.mxu0 0
        %3543 = vmatprep.subr.bf16.mxu0 0
        %3544 = vmatpush1.bf16.msra.mxu0 0
        %3545 = vmatprep.subr.bf16.mxu0 0
        %3546 = vmatpush1.bf16.msra.mxu0 0
        %3547 = vmatprep.subr.bf16.mxu0 0
        %3548 = vmatpush1.bf16.msra.mxu0 0
        %3549 = vmatprep.subr.bf16.mxu0 0
        %3550 = vmatpush1.bf16.msra.mxu0 0
        %3551 = vmatprep.subr.bf16.mxu0 0
        %3552 = vmatpush1.bf16.msra.mxu0 0
        %3553 = vmatprep.subr.bf16.mxu0 0
        %3554 = vmatpush1.bf16.msra.mxu0 0
        %3555 = vmatprep.subr.bf16.mxu0 0
        %3556 = vmatpush1.bf16.msra.mxu0 0
        %3557 = vmatprep.subr.bf16.mxu0 0
        %3558 = vmatpush1.bf16.msra.mxu0 0
        %3559 = vmatprep.subr.bf16.mxu0 0
        %3560 = vmatpush1.bf16.msra.mxu0 0
        %3561 = vmatprep.mubr.bf16.mxu0 0
        %3562 = vmatmul.mubr.bf16.gmra.mrb[0].mxu0 %v3482
        %v3563 = vpop.f32.mrb[0].mxu0
        %v3564 = vadd.f32 0.0, %v3563
        %v3565 = vpop.f32.mrb[0].mxu0
        %v3566 = vadd.f32 0.0, %v3565
        %v3567 = vpop.f32.mrb[0].mxu0
        %v3568 = vadd.f32 0.0, %v3567
        %v3569 = vpop.f32.mrb[0].mxu0
        %v3570 = vadd.f32 0.0, %v3569
        %3571 = vmatprep.mubr.bf16.mxu0 0
        %3572 = vmatmul.mubr.bf16.gmra.mrb[0].mxu0 %v3485
        %v3573 = vpop.f32.mrb[0].mxu0
        %v3574 = vadd.f32 0.0, %v3573
        %v3575 = vpop.f32.mrb[0].mxu0
        %v3576 = vadd.f32 0.0, %v3575
        %v3577 = vpop.f32.mrb[0].mxu0
        %v3578 = vadd.f32 0.0, %v3577
        %v3579 = vpop.f32.mrb[0].mxu0
        %v3580 = vadd.f32 0.0, %v3579
        %3581 = vmatprep.mubr.bf16.mxu0 0
        %3582 = vmatmul.mubr.bf16.gmra.mrb[0].mxu0 %v3488
        %v3583 = vpop.f32.mrb[0].mxu0
        %v3584 = vadd.f32 0.0, %v3583
        %v3585 = vpop.f32.mrb[0].mxu0
        %v3586 = vadd.f32 0.0, %v3585
        %v3587 = vpop.f32.mrb[0].mxu0
        %v3588 = vadd.f32 0.0, %v3587
        %v3589 = vpop.f32.mrb[0].mxu0
        %v3590 = vadd.f32 0.0, %v3589
        %3591 = vmatprep.mubr.bf16.mxu0 0
        %3592 = vmatmul.mubr.bf16.gmra.mrb[0].mxu0 %v3491
        %v3593 = vpop.f32.mrb[0].mxu0
        %v3594 = vadd.f32 0.0, %v3593
        %v3595 = vpop.f32.mrb[0].mxu0
        %v3596 = vadd.f32 0.0, %v3595
        %v3597 = vpop.f32.mrb[0].mxu0
        %v3598 = vadd.f32 0.0, %v3597
        %v3599 = vpop.f32.mrb[0].mxu0
        %v3600 = vadd.f32 0.0, %v3599
        %3601 = vmatprep.mubr.bf16.mxu0 0
        %3602 = vmatmul.mubr.bf16.gmra.mrb[0].mxu0 %v3494
        %v3603 = vpop.f32.mrb[0].mxu0
        %v3604 = vadd.f32 0.0, %v3603
        %v3605 = vpop.f32.mrb[0].mxu0
        %v3606 = vadd.f32 0.0, %v3605
        %v3607 = vpop.f32.mrb[0].mxu0
        %v3608 = vadd.f32 0.0, %v3607
        %v3609 = vpop.f32.mrb[0].mxu0
        %v3610 = vadd.f32 0.0, %v3609
        %3611 = vmatprep.mubr.bf16.mxu0 0
        %3612 = vmatmul.mubr.bf16.gmra.mrb[0].mxu0 %v3497
        %v3613 = vpop.f32.mrb[0].mxu0
        %v3614 = vadd.f32 0.0, %v3613
        %v3615 = vpop.f32.mrb[0].mxu0
        %v3616 = vadd.f32 0.0, %v3615
        %v3617 = vpop.f32.mrb[0].mxu0
        %v3618 = vadd.f32 0.0, %v3617
        %v3619 = vpop.f32.mrb[0].mxu0
        %v3620 = vadd.f32 0.0, %v3619
        %3621 = vmatprep.mubr.bf16.mxu0 0
        %3622 = vmatmul.mubr.bf16.gmra.mrb[0].mxu0 %v3500
        %v3623 = vpop.f32.mrb[0].mxu0
        %v3624 = vadd.f32 0.0, %v3623
        %v3625 = vpop.f32.mrb[0].mxu0
        %v3626 = vadd.f32 0.0, %v3625
        %v3627 = vpop.f32.mrb[0].mxu0
        %v3628 = vadd.f32 0.0, %v3627
        %v3629 = vpop.f32.mrb[0].mxu0
        %v3630 = vadd.f32 0.0, %v3629
        %3631 = vmatprep.mubr.bf16.mxu0 0
        %3632 = vmatmul.mubr.bf16.gmra.mrb[0].mxu0 %v3503
        %v3633 = vpop.f32.mrb[0].mxu0
        %v3634 = vadd.f32 0.0, %v3633
        %v3635 = vpop.f32.mrb[0].mxu0
        %v3636 = vadd.f32 0.0, %v3635
        %v3637 = vpop.f32.mrb[0].mxu0
        %v3638 = vadd.f32 0.0, %v3637
        %v3639 = vpop.f32.mrb[0].mxu0
        %v3640 = vadd.f32 0.0, %v3639
        %3641 = vmatprep.mubr.bf16.mxu0 0
        %3642 = vmatmul.mubr.bf16.gmra.mrb[0].mxu0 %v3506
        %v3643 = vpop.f32.mrb[0].mxu0
        %v3644 = vadd.f32 0.0, %v3643
        %v3645 = vpop.f32.mrb[0].mxu0
        %v3646 = vadd.f32 0.0, %v3645
        %v3647 = vpop.f32.mrb[0].mxu0
        %v3648 = vadd.f32 0.0, %v3647
        %v3649 = vpop.f32.mrb[0].mxu0
        %v3650 = vadd.f32 0.0, %v3649
        %3651 = vmatprep.mubr.bf16.mxu0 0
        %3652 = vmatmul.mubr.bf16.gmra.mrb[0].mxu0 %v3509
        %v3653 = vpop.f32.mrb[0].mxu0
        %v3654 = vadd.f32 0.0, %v3653
        %v3655 = vpop.f32.mrb[0].mxu0
        %v3656 = vadd.f32 0.0, %v3655
        %v3657 = vpop.f32.mrb[0].mxu0
        %v3658 = vadd.f32 0.0, %v3657
        %v3659 = vpop.f32.mrb[0].mxu0
        %v3660 = vadd.f32 0.0, %v3659
        %3661 = vmatprep.mubr.bf16.mxu0 0
        %3662 = vmatmul.mubr.bf16.gmra.mrb[0].mxu0 %v3512
        %v3663 = vpop.f32.mrb[0].mxu0
        %v3664 = vadd.f32 0.0, %v3663
        %v3665 = vpop.f32.mrb[0].mxu0
        %v3666 = vadd.f32 0.0, %v3665
        %v3667 = vpop.f32.mrb[0].mxu0
        %v3668 = vadd.f32 0.0, %v3667
        %v3669 = vpop.f32.mrb[0].mxu0
        %v3670 = vadd.f32 0.0, %v3669
        %3671 = vmatprep.mubr.bf16.mxu0 0
        %3672 = vmatmul.mubr.bf16.gmra.mrb[0].mxu0 %v3515
        %v3673 = vpop.f32.mrb[0].mxu0
        %v3674 = vadd.f32 0.0, %v3673
        %v3675 = vpop.f32.mrb[0].mxu0
        %v3676 = vadd.f32 0.0, %v3675
        %v3677 = vpop.f32.mrb[0].mxu0
        %v3678 = vadd.f32 0.0, %v3677
        %v3679 = vpop.f32.mrb[0].mxu0
        %v3680 = vadd.f32 0.0, %v3679
        %3681 = vmatprep.mubr.bf16.mxu0 0
        %3682 = vmatmul.mubr.bf16.gmra.mrb[0].mxu0 %v3518
        %v3683 = vpop.f32.mrb[0].mxu0
        %v3684 = vadd.f32 0.0, %v3683
        %v3685 = vpop.f32.mrb[0].mxu0
        %v3686 = vadd.f32 0.0, %v3685
        %v3687 = vpop.f32.mrb[0].mxu0
        %v3688 = vadd.f32 0.0, %v3687
        %v3689 = vpop.f32.mrb[0].mxu0
        %v3690 = vadd.f32 0.0, %v3689
        %3691 = vmatprep.mubr.bf16.mxu0 0
        %3692 = vmatmul.mubr.bf16.gmra.mrb[0].mxu0 %v3521
        %v3693 = vpop.f32.mrb[0].mxu0
        %v3694 = vadd.f32 0.0, %v3693
        %v3695 = vpop.f32.mrb[0].mxu0
        %v3696 = vadd.f32 0.0, %v3695
        %v3697 = vpop.f32.mrb[0].mxu0
        %v3698 = vadd.f32 0.0, %v3697
        %v3699 = vpop.f32.mrb[0].mxu0
        %v3700 = vadd.f32 0.0, %v3699
        %3701 = vmatprep.mubr.bf16.mxu0 0
        %3702 = vmatmul.mubr.bf16.gmra.mrb[0].mxu0 %v3524
        %v3703 = vpop.f32.mrb[0].mxu0
        %v3704 = vadd.f32 0.0, %v3703
        %v3705 = vpop.f32.mrb[0].mxu0
        %v3706 = vadd.f32 0.0, %v3705
        %v3707 = vpop.f32.mrb[0].mxu0
        %v3708 = vadd.f32 0.0, %v3707
        %v3709 = vpop.f32.mrb[0].mxu0
        %v3710 = vadd.f32 0.0, %v3709
        %3711 = vmatprep.mubr.bf16.mxu0 0
        %3712 = vmatmul.mubr.bf16.gmra.mrb[0].mxu0 %v3527
        %v3713 = vpop.f32.mrb[0].mxu0
        %v3714 = vadd.f32 0.0, %v3713
        %v3715 = vpop.f32.mrb[0].mxu0
        %v3716 = vadd.f32 0.0, %v3715
        %v3717 = vpop.f32.mrb[0].mxu0
        %v3718 = vadd.f32 0.0, %v3717
        %v3719 = vpop.f32.mrb[0].mxu0
        %v3720 = vadd.f32 0.0, %v3719
        %3721 = vdwg.mxu0
        %v3722 = vld [vmem:[#allocation2] sm:$0xff]
        %v3723 = vld [vmem:[#allocation2 + $0x8] sm:$0xff]
        %v3724 = vld [vmem:[#allocation2 + $0x10] sm:$0xff]
        %v3725 = vld [vmem:[#allocation2 + $0x18] sm:$0xff]
        %v3726 = vld [vmem:[#allocation2 + $0x20] sm:$0xff]
        %v3727 = vld [vmem:[#allocation2 + $0x28] sm:$0xff]
        %v3728 = vld [vmem:[#allocation2 + $0x30] sm:$0xff]
        %v3729 = vld [vmem:[#allocation2 + $0x38] sm:$0xff]
        %v3730 = vld [vmem:[#allocation2 + $0x40] sm:$0xff]
        %v3731 = vld [vmem:[#allocation2 + $0x48] sm:$0xff]
        %v3732 = vld [vmem:[#allocation2 + $0x50] sm:$0xff]
        %v3733 = vld [vmem:[#allocation2 + $0x58] sm:$0xff]
        %v3734 = vld [vmem:[#allocation2 + $0x60] sm:$0xff]
        %v3735 = vld [vmem:[#allocation2 + $0x68] sm:$0xff]
        %v3736 = vld [vmem:[#allocation2 + $0x70] sm:$0xff]
        %v3737 = vld [vmem:[#allocation2 + $0x78] sm:$0xff]
        %v3738 = vld [vmem:[#allocation2 + $0x80] sm:$0xff]
        %v3739 = vld [vmem:[#allocation2 + $0x88] sm:$0xff]
        %v3740 = vld [vmem:[#allocation2 + $0x90] sm:$0xff]
        %v3741 = vld [vmem:[#allocation2 + $0x98] sm:$0xff]
        %v3742 = vld [vmem:[#allocation2 + $0xa0] sm:$0xff]
        %v3743 = vld [vmem:[#allocation2 + $0xa8] sm:$0xff]
        %v3744 = vld [vmem:[#allocation2 + $0xb0] sm:$0xff]
        %v3745 = vld [vmem:[#allocation2 + $0xb8] sm:$0xff]
        %v3746 = vld [vmem:[#allocation2 + $0xc0] sm:$0xff]
        %v3747 = vld [vmem:[#allocation2 + $0xc8] sm:$0xff]
        %v3748 = vld [vmem:[#allocation2 + $0xd0] sm:$0xff]
        %v3749 = vld [vmem:[#allocation2 + $0xd8] sm:$0xff]
        %v3750 = vld [vmem:[#allocation2 + $0xe0] sm:$0xff]
        %v3751 = vld [vmem:[#allocation2 + $0xe8] sm:$0xff]
        %v3752 = vld [vmem:[#allocation2 + $0xf0] sm:$0xff]
        %v3753 = vld [vmem:[#allocation2 + $0xf8] sm:$0xff]
        %v3754 = vld [vmem:[#allocation2 + $0x100] sm:$0xff]
        %v3755 = vld [vmem:[#allocation2 + $0x108] sm:$0xff]
        %v3756 = vld [vmem:[#allocation2 + $0x110] sm:$0xff]
        %v3757 = vld [vmem:[#allocation2 + $0x118] sm:$0xff]
        %v3758 = vld [vmem:[#allocation2 + $0x120] sm:$0xff]
        %v3759 = vld [vmem:[#allocation2 + $0x128] sm:$0xff]
        %v3760 = vld [vmem:[#allocation2 + $0x130] sm:$0xff]
        %v3761 = vld [vmem:[#allocation2 + $0x138] sm:$0xff]
        %v3762 = vld [vmem:[#allocation2 + $0x140] sm:$0xff]
        %v3763 = vld [vmem:[#allocation2 + $0x148] sm:$0xff]
        %v3764 = vld [vmem:[#allocation2 + $0x150] sm:$0xff]
        %v3765 = vld [vmem:[#allocation2 + $0x158] sm:$0xff]
        %v3766 = vld [vmem:[#allocation2 + $0x160] sm:$0xff]
        %v3767 = vld [vmem:[#allocation2 + $0x168] sm:$0xff]
        %v3768 = vld [vmem:[#allocation2 + $0x170] sm:$0xff]
        %v3769 = vld [vmem:[#allocation2 + $0x178] sm:$0xff]
        %v3770 = vld [vmem:[#allocation2 + $0x180] sm:$0xff]
        %v3771 = vld [vmem:[#allocation2 + $0x188] sm:$0xff]
        %v3772 = vld [vmem:[#allocation2 + $0x190] sm:$0xff]
        %v3773 = vld [vmem:[#allocation2 + $0x198] sm:$0xff]
        %v3774 = vld [vmem:[#allocation2 + $0x1a0] sm:$0xff]
        %v3775 = vld [vmem:[#allocation2 + $0x1a8] sm:$0xff]
        %v3776 = vld [vmem:[#allocation2 + $0x1b0] sm:$0xff]
        %v3777 = vld [vmem:[#allocation2 + $0x1b8] sm:$0xff]
        %v3778 = vld [vmem:[#allocation2 + $0x1c0] sm:$0xff]
        %v3779 = vld [vmem:[#allocation2 + $0x1c8] sm:$0xff]
        %v3780 = vld [vmem:[#allocation2 + $0x1d0] sm:$0xff]
        %v3781 = vld [vmem:[#allocation2 + $0x1d8] sm:$0xff]
        %v3782 = vld [vmem:[#allocation2 + $0x1e0] sm:$0xff]
        %v3783 = vld [vmem:[#allocation2 + $0x1e8] sm:$0xff]
        %v3784 = vld [vmem:[#allocation2 + $0x1f0] sm:$0xff]
        %v3785 = vld [vmem:[#allocation2 + $0x1f8] sm:$0xff]
        %v3786 = vadd.f32 %v3722, %v3564
        %v3787 = vadd.f32 %v3723, %v3566
        %v3788 = vadd.f32 %v3724, %v3568
        %v3789 = vadd.f32 %v3725, %v3570
        %v3790 = vadd.f32 %v3726, %v3574
        %v3791 = vadd.f32 %v3727, %v3576
        %v3792 = vadd.f32 %v3728, %v3578
        %v3793 = vadd.f32 %v3729, %v3580
        %v3794 = vadd.f32 %v3730, %v3584
        %v3795 = vadd.f32 %v3731, %v3586
        %v3796 = vadd.f32 %v3732, %v3588
        %v3797 = vadd.f32 %v3733, %v3590
        %v3798 = vadd.f32 %v3734, %v3594
        %v3799 = vadd.f32 %v3735, %v3596
        %v3800 = vadd.f32 %v3736, %v3598
        %v3801 = vadd.f32 %v3737, %v3600
        %v3802 = vadd.f32 %v3738, %v3604
        %v3803 = vadd.f32 %v3739, %v3606
        %v3804 = vadd.f32 %v3740, %v3608
        %v3805 = vadd.f32 %v3741, %v3610
        %v3806 = vadd.f32 %v3742, %v3614
        %v3807 = vadd.f32 %v3743, %v3616
        %v3808 = vadd.f32 %v3744, %v3618
        %v3809 = vadd.f32 %v3745, %v3620
        %v3810 = vadd.f32 %v3746, %v3624
        %v3811 = vadd.f32 %v3747, %v3626
        %v3812 = vadd.f32 %v3748, %v3628
        %v3813 = vadd.f32 %v3749, %v3630
        %v3814 = vadd.f32 %v3750, %v3634
        %v3815 = vadd.f32 %v3751, %v3636
        %v3816 = vadd.f32 %v3752, %v3638
        %v3817 = vadd.f32 %v3753, %v3640
        %v3818 = vadd.f32 %v3754, %v3644
        %v3819 = vadd.f32 %v3755, %v3646
        %v3820 = vadd.f32 %v3756, %v3648
        %v3821 = vadd.f32 %v3757, %v3650
        %v3822 = vadd.f32 %v3758, %v3654
        %v3823 = vadd.f32 %v3759, %v3656
        %v3824 = vadd.f32 %v3760, %v3658
        %v3825 = vadd.f32 %v3761, %v3660
        %v3826 = vadd.f32 %v3762, %v3664
        %v3827 = vadd.f32 %v3763, %v3666
        %v3828 = vadd.f32 %v3764, %v3668
        %v3829 = vadd.f32 %v3765, %v3670
        %v3830 = vadd.f32 %v3766, %v3674
        %v3831 = vadd.f32 %v3767, %v3676
        %v3832 = vadd.f32 %v3768, %v3678
        %v3833 = vadd.f32 %v3769, %v3680
        %v3834 = vadd.f32 %v3770, %v3684
        %v3835 = vadd.f32 %v3771, %v3686
        %v3836 = vadd.f32 %v3772, %v3688
        %v3837 = vadd.f32 %v3773, %v3690
        %v3838 = vadd.f32 %v3774, %v3694
        %v3839 = vadd.f32 %v3775, %v3696
        %v3840 = vadd.f32 %v3776, %v3698
        %v3841 = vadd.f32 %v3777, %v3700
        %v3842 = vadd.f32 %v3778, %v3704
        %v3843 = vadd.f32 %v3779, %v3706
        %v3844 = vadd.f32 %v3780, %v3708
        %v3845 = vadd.f32 %v3781, %v3710
        %v3846 = vadd.f32 %v3782, %v3714
        %v3847 = vadd.f32 %v3783, %v3716
        %v3848 = vadd.f32 %v3784, %v3718
        %v3849 = vadd.f32 %v3785, %v3720
        %3850 = vst [vmem:[#allocation2] sm:$0xff] %v3786
        %3851 = vst.msk [vmem:[#allocation2 + $0x8] sm:$0xff] %vm625, %v3787
        %3852 = vst [vmem:[#allocation2 + $0x10] sm:$0xff] %v3788
        %3853 = vst.msk [vmem:[#allocation2 + $0x18] sm:$0xff] %vm625, %v3789
        %3854 = vst [vmem:[#allocation2 + $0x20] sm:$0xff] %v3790
        %3855 = vst.msk [vmem:[#allocation2 + $0x28] sm:$0xff] %vm625, %v3791
        %3856 = vst [vmem:[#allocation2 + $0x30] sm:$0xff] %v3792
        %3857 = vst.msk [vmem:[#allocation2 + $0x38] sm:$0xff] %vm625, %v3793
        %3858 = vst [vmem:[#allocation2 + $0x40] sm:$0xff] %v3794
        %3859 = vst.msk [vmem:[#allocation2 + $0x48] sm:$0xff] %vm625, %v3795
        %3860 = vst [vmem:[#allocation2 + $0x50] sm:$0xff] %v3796
        %3861 = vst.msk [vmem:[#allocation2 + $0x58] sm:$0xff] %vm625, %v3797
        %3862 = vst [vmem:[#allocation2 + $0x60] sm:$0xff] %v3798
        %3863 = vst.msk [vmem:[#allocation2 + $0x68] sm:$0xff] %vm625, %v3799
        %3864 = vst [vmem:[#allocation2 + $0x70] sm:$0xff] %v3800
        %3865 = vst.msk [vmem:[#allocation2 + $0x78] sm:$0xff] %vm625, %v3801
        %3866 = vst [vmem:[#allocation2 + $0x80] sm:$0xff] %v3802
        %3867 = vst.msk [vmem:[#allocation2 + $0x88] sm:$0xff] %vm625, %v3803
        %3868 = vst [vmem:[#allocation2 + $0x90] sm:$0xff] %v3804
        %3869 = vst.msk [vmem:[#allocation2 + $0x98] sm:$0xff] %vm625, %v3805
        %3870 = vst [vmem:[#allocation2 + $0xa0] sm:$0xff] %v3806
        %3871 = vst.msk [vmem:[#allocation2 + $0xa8] sm:$0xff] %vm625, %v3807
        %3872 = vst [vmem:[#allocation2 + $0xb0] sm:$0xff] %v3808
        %3873 = vst.msk [vmem:[#allocation2 + $0xb8] sm:$0xff] %vm625, %v3809
        %3874 = vst [vmem:[#allocation2 + $0xc0] sm:$0xff] %v3810
        %3875 = vst.msk [vmem:[#allocation2 + $0xc8] sm:$0xff] %vm625, %v3811
        %3876 = vst [vmem:[#allocation2 + $0xd0] sm:$0xff] %v3812
        %3877 = vst.msk [vmem:[#allocation2 + $0xd8] sm:$0xff] %vm625, %v3813
        %3878 = vst [vmem:[#allocation2 + $0xe0] sm:$0xff] %v3814
        %3879 = vst.msk [vmem:[#allocation2 + $0xe8] sm:$0xff] %vm625, %v3815
        %3880 = vst [vmem:[#allocation2 + $0xf0] sm:$0xff] %v3816
        %3881 = vst.msk [vmem:[#allocation2 + $0xf8] sm:$0xff] %vm625, %v3817
        %3882 = vst [vmem:[#allocation2 + $0x100] sm:$0xff] %v3818
        %3883 = vst.msk [vmem:[#allocation2 + $0x108] sm:$0xff] %vm625, %v3819
        %3884 = vst [vmem:[#allocation2 + $0x110] sm:$0xff] %v3820
        %3885 = vst.msk [vmem:[#allocation2 + $0x118] sm:$0xff] %vm625, %v3821
        %3886 = vst [vmem:[#allocation2 + $0x120] sm:$0xff] %v3822
        %3887 = vst.msk [vmem:[#allocation2 + $0x128] sm:$0xff] %vm625, %v3823
        %3888 = vst [vmem:[#allocation2 + $0x130] sm:$0xff] %v3824
        %3889 = vst.msk [vmem:[#allocation2 + $0x138] sm:$0xff] %vm625, %v3825
        %3890 = vst [vmem:[#allocation2 + $0x140] sm:$0xff] %v3826
        %3891 = vst.msk [vmem:[#allocation2 + $0x148] sm:$0xff] %vm625, %v3827
        %3892 = vst [vmem:[#allocation2 + $0x150] sm:$0xff] %v3828
        %3893 = vst.msk [vmem:[#allocation2 + $0x158] sm:$0xff] %vm625, %v3829
        %3894 = vst [vmem:[#allocation2 + $0x160] sm:$0xff] %v3830
        %3895 = vst.msk [vmem:[#allocation2 + $0x168] sm:$0xff] %vm625, %v3831
        %3896 = vst [vmem:[#allocation2 + $0x170] sm:$0xff] %v3832
        %3897 = vst.msk [vmem:[#allocation2 + $0x178] sm:$0xff] %vm625, %v3833
        %3898 = vst [vmem:[#allocation2 + $0x180] sm:$0xff] %v3834
        %3899 = vst.msk [vmem:[#allocation2 + $0x188] sm:$0xff] %vm625, %v3835
        %3900 = vst [vmem:[#allocation2 + $0x190] sm:$0xff] %v3836
        %3901 = vst.msk [vmem:[#allocation2 + $0x198] sm:$0xff] %vm625, %v3837
        %3902 = vst [vmem:[#allocation2 + $0x1a0] sm:$0xff] %v3838
        %3903 = vst.msk [vmem:[#allocation2 + $0x1a8] sm:$0xff] %vm625, %v3839
        %3904 = vst [vmem:[#allocation2 + $0x1b0] sm:$0xff] %v3840
        %3905 = vst.msk [vmem:[#allocation2 + $0x1b8] sm:$0xff] %vm625, %v3841
        %3906 = vst [vmem:[#allocation2 + $0x1c0] sm:$0xff] %v3842
        %3907 = vst.msk [vmem:[#allocation2 + $0x1c8] sm:$0xff] %vm625, %v3843
        %3908 = vst [vmem:[#allocation2 + $0x1d0] sm:$0xff] %v3844
        %3909 = vst.msk [vmem:[#allocation2 + $0x1d8] sm:$0xff] %vm625, %v3845
        %3910 = vst [vmem:[#allocation2 + $0x1e0] sm:$0xff] %v3846
        %3911 = vst.msk [vmem:[#allocation2 + $0x1e8] sm:$0xff] %vm625, %v3847
        %3912 = vst [vmem:[#allocation2 + $0x1f0] sm:$0xff] %v3848
        %3913 = vst.msk [vmem:[#allocation2 + $0x1f8] sm:$0xff] %vm625, %v3849
        %v3914 = vld [vmem:[#allocation2] sm:$0xff]
        %v3915 = vld [vmem:[#allocation2 + $0x8] sm:$0xff]
        %v3916 = vld [vmem:[#allocation2 + $0x10] sm:$0xff]
        %v3917 = vld [vmem:[#allocation2 + $0x18] sm:$0xff]
        %v3918 = vld [vmem:[#allocation2 + $0x20] sm:$0xff]
        %v3919 = vld [vmem:[#allocation2 + $0x28] sm:$0xff]
        %v3920 = vld [vmem:[#allocation2 + $0x30] sm:$0xff]
        %v3921 = vld [vmem:[#allocation2 + $0x38] sm:$0xff]
        %v3922 = vld [vmem:[#allocation2 + $0x40] sm:$0xff]
        %v3923 = vld [vmem:[#allocation2 + $0x48] sm:$0xff]
        %v3924 = vld [vmem:[#allocation2 + $0x50] sm:$0xff]
        %v3925 = vld [vmem:[#allocation2 + $0x58] sm:$0xff]
        %v3926 = vld [vmem:[#allocation2 + $0x60] sm:$0xff]
        %v3927 = vld [vmem:[#allocation2 + $0x68] sm:$0xff]
        %v3928 = vld [vmem:[#allocation2 + $0x70] sm:$0xff]
        %v3929 = vld [vmem:[#allocation2 + $0x78] sm:$0xff]
        %v3930 = vld [vmem:[#allocation2 + $0x80] sm:$0xff]
        %v3931 = vld [vmem:[#allocation2 + $0x88] sm:$0xff]
        %v3932 = vld [vmem:[#allocation2 + $0x90] sm:$0xff]
        %v3933 = vld [vmem:[#allocation2 + $0x98] sm:$0xff]
        %v3934 = vld [vmem:[#allocation2 + $0xa0] sm:$0xff]
        %v3935 = vld [vmem:[#allocation2 + $0xa8] sm:$0xff]
        %v3936 = vld [vmem:[#allocation2 + $0xb0] sm:$0xff]
        %v3937 = vld [vmem:[#allocation2 + $0xb8] sm:$0xff]
        %v3938 = vld [vmem:[#allocation2 + $0xc0] sm:$0xff]
        %v3939 = vld [vmem:[#allocation2 + $0xc8] sm:$0xff]
        %v3940 = vld [vmem:[#allocation2 + $0xd0] sm:$0xff]
        %v3941 = vld [vmem:[#allocation2 + $0xd8] sm:$0xff]
        %v3942 = vld [vmem:[#allocation2 + $0xe0] sm:$0xff]
        %v3943 = vld [vmem:[#allocation2 + $0xe8] sm:$0xff]
        %v3944 = vld [vmem:[#allocation2 + $0xf0] sm:$0xff]
        %v3945 = vld [vmem:[#allocation2 + $0xf8] sm:$0xff]
        %v3946 = vld [vmem:[#allocation2 + $0x100] sm:$0xff]
        %v3947 = vld [vmem:[#allocation2 + $0x108] sm:$0xff]
        %v3948 = vld [vmem:[#allocation2 + $0x110] sm:$0xff]
        %v3949 = vld [vmem:[#allocation2 + $0x118] sm:$0xff]
        %v3950 = vld [vmem:[#allocation2 + $0x120] sm:$0xff]
        %v3951 = vld [vmem:[#allocation2 + $0x128] sm:$0xff]
        %v3952 = vld [vmem:[#allocation2 + $0x130] sm:$0xff]
        %v3953 = vld [vmem:[#allocation2 + $0x138] sm:$0xff]
        %v3954 = vld [vmem:[#allocation2 + $0x140] sm:$0xff]
        %v3955 = vld [vmem:[#allocation2 + $0x148] sm:$0xff]
        %v3956 = vld [vmem:[#allocation2 + $0x150] sm:$0xff]
        %v3957 = vld [vmem:[#allocation2 + $0x158] sm:$0xff]
        %v3958 = vld [vmem:[#allocation2 + $0x160] sm:$0xff]
        %v3959 = vld [vmem:[#allocation2 + $0x168] sm:$0xff]
        %v3960 = vld [vmem:[#allocation2 + $0x170] sm:$0xff]
        %v3961 = vld [vmem:[#allocation2 + $0x178] sm:$0xff]
        %v3962 = vld [vmem:[#allocation2 + $0x180] sm:$0xff]
        %v3963 = vld [vmem:[#allocation2 + $0x188] sm:$0xff]
        %v3964 = vld [vmem:[#allocation2 + $0x190] sm:$0xff]
        %v3965 = vld [vmem:[#allocation2 + $0x198] sm:$0xff]
        %v3966 = vld [vmem:[#allocation2 + $0x1a0] sm:$0xff]
        %v3967 = vld [vmem:[#allocation2 + $0x1a8] sm:$0xff]
        %v3968 = vld [vmem:[#allocation2 + $0x1b0] sm:$0xff]
        %v3969 = vld [vmem:[#allocation2 + $0x1b8] sm:$0xff]
        %v3970 = vld [vmem:[#allocation2 + $0x1c0] sm:$0xff]
        %v3971 = vld [vmem:[#allocation2 + $0x1c8] sm:$0xff]
        %v3972 = vld [vmem:[#allocation2 + $0x1d0] sm:$0xff]
        %v3973 = vld [vmem:[#allocation2 + $0x1d8] sm:$0xff]
        %v3974 = vld [vmem:[#allocation2 + $0x1e0] sm:$0xff]
        %v3975 = vld [vmem:[#allocation2 + $0x1e8] sm:$0xff]
        %v3976 = vld [vmem:[#allocation2 + $0x1f0] sm:$0xff]
        %v3977 = vld [vmem:[#allocation2 + $0x1f8] sm:$0xff]
        %v3978 = vpack.c.bf16 %v3916, %v3914
        %v3979 = vpack.c.bf16 %v3920, %v3918
        %v3980 = vpack.c.bf16 %v3924, %v3922
        %v3981 = vpack.c.bf16 %v3928, %v3926
        %v3982 = vpack.c.bf16 %v3932, %v3930
        %v3983 = vpack.c.bf16 %v3936, %v3934
        %v3984 = vpack.c.bf16 %v3940, %v3938
        %v3985 = vpack.c.bf16 %v3944, %v3942
        %v3986 = vpack.c.bf16 %v3948, %v3946
        %v3987 = vpack.c.bf16 %v3952, %v3950
        %v3988 = vpack.c.bf16 %v3956, %v3954
        %v3989 = vpack.c.bf16 %v3960, %v3958
        %v3990 = vpack.c.bf16 %v3964, %v3962
        %v3991 = vpack.c.bf16 %v3968, %v3966
        %v3992 = vpack.c.bf16 %v3972, %v3970
        %v3993 = vpack.c.bf16 %v3976, %v3974
        %v3994 = vpack.c.bf16 %v3917, %v3915
        %v3995 = vpack.c.bf16 %v3921, %v3919
        %v3996 = vpack.c.bf16 %v3925, %v3923
        %v3997 = vpack.c.bf16 %v3929, %v3927
        %v3998 = vpack.c.bf16 %v3933, %v3931
        %v3999 = vpack.c.bf16 %v3937, %v3935
        %v4000 = vpack.c.bf16 %v3941, %v3939
        %v4001 = vpack.c.bf16 %v3945, %v3943
        %v4002 = vpack.c.bf16 %v3949, %v3947
        %v4003 = vpack.c.bf16 %v3953, %v3951
        %v4004 = vpack.c.bf16 %v3957, %v3955
        %v4005 = vpack.c.bf16 %v3961, %v3959
        %v4006 = vpack.c.bf16 %v3965, %v3963
        %v4007 = vpack.c.bf16 %v3969, %v3967
        %v4008 = vpack.c.bf16 %v3973, %v3971
        %v4009 = vpack.c.bf16 %v3977, %v3975
        %v4010 = vld [vmem:[#allocation11] sm:$0xff]
        %v4011 = vld [vmem:[#allocation11 + $0x8] sm:$0xff]
        %v4012 = vld [vmem:[#allocation11 + $0x10] sm:$0xff]
        %v4013 = vld [vmem:[#allocation11 + $0x18] sm:$0xff]
        %v4014 = vld [vmem:[#allocation11 + $0x20] sm:$0xff]
        %v4015 = vld [vmem:[#allocation11 + $0x28] sm:$0xff]
        %v4016 = vld [vmem:[#allocation11 + $0x30] sm:$0xff]
        %v4017 = vld [vmem:[#allocation11 + $0x38] sm:$0xff]
        %v4018 = vld [vmem:[#allocation11 + $0x40] sm:$0xff]
        %v4019 = vld [vmem:[#allocation11 + $0x48] sm:$0xff]
        %v4020 = vld [vmem:[#allocation11 + $0x50] sm:$0xff]
        %v4021 = vld [vmem:[#allocation11 + $0x58] sm:$0xff]
        %v4022 = vld [vmem:[#allocation11 + $0x60] sm:$0xff]
        %v4023 = vld [vmem:[#allocation11 + $0x68] sm:$0xff]
        %v4024 = vld [vmem:[#allocation11 + $0x70] sm:$0xff]
        %v4025 = vld [vmem:[#allocation11 + $0x78] sm:$0xff]
        %v4026 = vld [vmem:[#allocation11 + $0x80] sm:$0xff]
        %v4027 = vld [vmem:[#allocation11 + $0x88] sm:$0xff]
        %v4028 = vld [vmem:[#allocation11 + $0x90] sm:$0xff]
        %v4029 = vld [vmem:[#allocation11 + $0x98] sm:$0xff]
        %v4030 = vld [vmem:[#allocation11 + $0xa0] sm:$0xff]
        %v4031 = vld [vmem:[#allocation11 + $0xa8] sm:$0xff]
        %v4032 = vld [vmem:[#allocation11 + $0xb0] sm:$0xff]
        %v4033 = vld [vmem:[#allocation11 + $0xb8] sm:$0xff]
        %v4034 = vld [vmem:[#allocation11 + $0xc0] sm:$0xff]
        %v4035 = vld [vmem:[#allocation11 + $0xc8] sm:$0xff]
        %v4036 = vld [vmem:[#allocation11 + $0xd0] sm:$0xff]
        %v4037 = vld [vmem:[#allocation11 + $0xd8] sm:$0xff]
        %v4038 = vld [vmem:[#allocation11 + $0xe0] sm:$0xff]
        %v4039 = vld [vmem:[#allocation11 + $0xe8] sm:$0xff]
        %v4040 = vld [vmem:[#allocation11 + $0xf0] sm:$0xff]
        %v4041 = vld [vmem:[#allocation11 + $0xf8] sm:$0xff]
        %v4074 = vunpack.c.l.b16 %v4010
        %v4075 = vunpack.c.h.b16 %v4010
        %v4076 = vunpack.c.l.b16 %v4011
        %v4077 = vunpack.c.h.b16 %v4011
        %v4078 = vunpack.c.l.b16 %v4012
        %v4079 = vunpack.c.h.b16 %v4012
        %v4080 = vunpack.c.l.b16 %v4013
        %v4081 = vunpack.c.h.b16 %v4013
        %v4082 = vunpack.c.l.b16 %v4014
        %v4083 = vunpack.c.h.b16 %v4014
        %v4084 = vunpack.c.l.b16 %v4015
        %v4085 = vunpack.c.h.b16 %v4015
        %v4086 = vunpack.c.l.b16 %v4016
        %v4087 = vunpack.c.h.b16 %v4016
        %v4088 = vunpack.c.l.b16 %v4017
        %v4089 = vunpack.c.h.b16 %v4017
        %v4090 = vunpack.c.l.b16 %v4018
        %v4091 = vunpack.c.h.b16 %v4018
        %v4092 = vunpack.c.l.b16 %v4019
        %v4093 = vunpack.c.h.b16 %v4019
        %v4094 = vunpack.c.l.b16 %v4020
        %v4095 = vunpack.c.h.b16 %v4020
        %v4096 = vunpack.c.l.b16 %v4021
        %v4097 = vunpack.c.h.b16 %v4021
        %v4098 = vunpack.c.l.b16 %v4022
        %v4099 = vunpack.c.h.b16 %v4022
        %v4100 = vunpack.c.l.b16 %v4023
        %v4101 = vunpack.c.h.b16 %v4023
        %v4102 = vunpack.c.l.b16 %v4024
        %v4103 = vunpack.c.h.b16 %v4024
        %v4104 = vunpack.c.l.b16 %v4025
        %v4105 = vunpack.c.h.b16 %v4025
        %v4106 = vunpack.c.l.b16 %v4026
        %v4107 = vunpack.c.h.b16 %v4026
        %v4108 = vunpack.c.l.b16 %v4027
        %v4109 = vunpack.c.h.b16 %v4027
        %v4110 = vunpack.c.l.b16 %v4028
        %v4111 = vunpack.c.h.b16 %v4028
        %v4112 = vunpack.c.l.b16 %v4029
        %v4113 = vunpack.c.h.b16 %v4029
        %v4114 = vunpack.c.l.b16 %v4030
        %v4115 = vunpack.c.h.b16 %v4030
        %v4116 = vunpack.c.l.b16 %v4031
        %v4117 = vunpack.c.h.b16 %v4031
        %v4118 = vunpack.c.l.b16 %v4032
        %v4119 = vunpack.c.h.b16 %v4032
        %v4120 = vunpack.c.l.b16 %v4033
        %v4121 = vunpack.c.h.b16 %v4033
        %v4122 = vunpack.c.l.b16 %v4034
        %v4123 = vunpack.c.h.b16 %v4034
        %v4124 = vunpack.c.l.b16 %v4035
        %v4125 = vunpack.c.h.b16 %v4035
        %v4126 = vunpack.c.l.b16 %v4036
        %v4127 = vunpack.c.h.b16 %v4036
        %v4128 = vunpack.c.l.b16 %v4037
        %v4129 = vunpack.c.h.b16 %v4037
        %v4130 = vunpack.c.l.b16 %v4038
        %v4131 = vunpack.c.h.b16 %v4038
        %v4132 = vunpack.c.l.b16 %v4039
        %v4133 = vunpack.c.h.b16 %v4039
        %v4134 = vunpack.c.l.b16 %v4040
        %v4135 = vunpack.c.h.b16 %v4040
        %v4136 = vunpack.c.l.b16 %v4041
        %v4137 = vunpack.c.h.b16 %v4041
        %v4138 = vpack.c.b16 %v4076, %v4074
        %v4139 = vpack.c.b16 %v4077, %v4075
        %v4140 = vpack.c.b16 %v4080, %v4078
        %v4141 = vpack.c.b16 %v4081, %v4079
        %v4142 = vpack.c.b16 %v4084, %v4082
        %v4143 = vpack.c.b16 %v4085, %v4083
        %v4144 = vpack.c.b16 %v4088, %v4086
        %v4145 = vpack.c.b16 %v4089, %v4087
        %v4146 = vpack.c.b16 %v4092, %v4090
        %v4147 = vpack.c.b16 %v4093, %v4091
        %v4148 = vpack.c.b16 %v4096, %v4094
        %v4149 = vpack.c.b16 %v4097, %v4095
        %v4150 = vpack.c.b16 %v4100, %v4098
        %v4151 = vpack.c.b16 %v4101, %v4099
        %v4152 = vpack.c.b16 %v4104, %v4102
        %v4153 = vpack.c.b16 %v4105, %v4103
        %v4154 = vpack.c.b16 %v4108, %v4106
        %v4155 = vpack.c.b16 %v4109, %v4107
        %v4156 = vpack.c.b16 %v4112, %v4110
        %v4157 = vpack.c.b16 %v4113, %v4111
        %v4158 = vpack.c.b16 %v4116, %v4114
        %v4159 = vpack.c.b16 %v4117, %v4115
        %v4160 = vpack.c.b16 %v4120, %v4118
        %v4161 = vpack.c.b16 %v4121, %v4119
        %v4162 = vpack.c.b16 %v4124, %v4122
        %v4163 = vpack.c.b16 %v4125, %v4123
        %v4164 = vpack.c.b16 %v4128, %v4126
        %v4165 = vpack.c.b16 %v4129, %v4127
        %v4166 = vpack.c.b16 %v4132, %v4130
        %v4167 = vpack.c.b16 %v4133, %v4131
        %v4168 = vpack.c.b16 %v4136, %v4134
        %v4169 = vpack.c.b16 %v4137, %v4135
        %4202 = vmatprep.subr.bf16.mxu0 0
        %4203 = vmatpush1.bf16.msra.mxu0 %v3978
        %4204 = vmatprep.subr.bf16.mxu0 0
        %4205 = vmatpush1.bf16.msra.mxu0 %v3979
        %4206 = vmatprep.subr.bf16.mxu0 0
        %4207 = vmatpush1.bf16.msra.mxu0 %v3980
        %4208 = vmatprep.subr.bf16.mxu0 0
        %4209 = vmatpush1.bf16.msra.mxu0 %v3981
        %4210 = vmatprep.subr.bf16.mxu0 0
        %4211 = vmatpush1.bf16.msra.mxu0 %v3982
        %4212 = vmatprep.subr.bf16.mxu0 0
        %4213 = vmatpush1.bf16.msra.mxu0 %v3983
        %4214 = vmatprep.subr.bf16.mxu0 0
        %4215 = vmatpush1.bf16.msra.mxu0 %v3984
        %4216 = vmatprep.subr.bf16.mxu0 0
        %4217 = vmatpush1.bf16.msra.mxu0 %v3985
        %4218 = vmatprep.subr.bf16.mxu0 0
        %4219 = vmatpush1.bf16.msra.mxu0 %v3986
        %4220 = vmatprep.subr.bf16.mxu0 0
        %4221 = vmatpush1.bf16.msra.mxu0 %v3987
        %4222 = vmatprep.subr.bf16.mxu0 0
        %4223 = vmatpush1.bf16.msra.mxu0 %v3988
        %4224 = vmatprep.subr.bf16.mxu0 0
        %4225 = vmatpush1.bf16.msra.mxu0 %v3989
        %4226 = vmatprep.subr.bf16.mxu0 0
        %4227 = vmatpush1.bf16.msra.mxu0 %v3990
        %4228 = vmatprep.subr.bf16.mxu0 0
        %4229 = vmatpush1.bf16.msra.mxu0 %v3991
        %4230 = vmatprep.subr.bf16.mxu0 0
        %4231 = vmatpush1.bf16.msra.mxu0 %v3992
        %4232 = vmatprep.subr.bf16.mxu0 0
        %4233 = vmatpush1.bf16.msra.mxu0 %v3993
        %4234 = vmatprep.mubr.bf16.mxu0 %v4139
        %4235 = vmatmul.mubr.bf16.gmra.mrb[0].mxu0 %v4138
        %v4236 = vpop.f32.mrb[0].mxu0
        %v4237 = vadd.f32 0.0, %v4236
        %v4238 = vpop.f32.mrb[0].mxu0
        %v4239 = vpop.f32.mrb[0].mxu0
        %v4240 = vadd.f32 0.0, %v4239
        %v4241 = vpop.f32.mrb[0].mxu0
        %4242 = vmatprep.mubr.bf16.mxu0 %v4141
        %4243 = vmatmul.mubr.bf16.gmra.mrb[0].mxu0 %v4140
        %v4244 = vpop.f32.mrb[0].mxu0
        %v4245 = vadd.f32 0.0, %v4244
        %v4246 = vpop.f32.mrb[0].mxu0
        %v4247 = vpop.f32.mrb[0].mxu0
        %v4248 = vadd.f32 0.0, %v4247
        %v4249 = vpop.f32.mrb[0].mxu0
        %4250 = vmatprep.mubr.bf16.mxu0 %v4143
        %4251 = vmatmul.mubr.bf16.gmra.mrb[0].mxu0 %v4142
        %v4252 = vpop.f32.mrb[0].mxu0
        %v4253 = vadd.f32 0.0, %v4252
        %v4254 = vpop.f32.mrb[0].mxu0
        %v4255 = vpop.f32.mrb[0].mxu0
        %v4256 = vadd.f32 0.0, %v4255
        %v4257 = vpop.f32.mrb[0].mxu0
        %4258 = vmatprep.mubr.bf16.mxu0 %v4145
        %4259 = vmatmul.mubr.bf16.gmra.mrb[0].mxu0 %v4144
        %v4260 = vpop.f32.mrb[0].mxu0
        %v4261 = vadd.f32 0.0, %v4260
        %v4262 = vpop.f32.mrb[0].mxu0
        %v4263 = vpop.f32.mrb[0].mxu0
        %v4264 = vadd.f32 0.0, %v4263
        %v4265 = vpop.f32.mrb[0].mxu0
        %4266 = vmatprep.mubr.bf16.mxu0 %v4147
        %4267 = vmatmul.mubr.bf16.gmra.mrb[0].mxu0 %v4146
        %v4268 = vpop.f32.mrb[0].mxu0
        %v4269 = vadd.f32 0.0, %v4268
        %v4270 = vpop.f32.mrb[0].mxu0
        %v4271 = vpop.f32.mrb[0].mxu0
        %v4272 = vadd.f32 0.0, %v4271
        %v4273 = vpop.f32.mrb[0].mxu0
        %4274 = vmatprep.mubr.bf16.mxu0 %v4149
        %4275 = vmatmul.mubr.bf16.gmra.mrb[0].mxu0 %v4148
        %v4276 = vpop.f32.mrb[0].mxu0
        %v4277 = vadd.f32 0.0, %v4276
        %v4278 = vpop.f32.mrb[0].mxu0
        %v4279 = vpop.f32.mrb[0].mxu0
        %v4280 = vadd.f32 0.0, %v4279
        %v4281 = vpop.f32.mrb[0].mxu0
        %4282 = vmatprep.mubr.bf16.mxu0 %v4151
        %4283 = vmatmul.mubr.bf16.gmra.mrb[0].mxu0 %v4150
        %v4284 = vpop.f32.mrb[0].mxu0
        %v4285 = vadd.f32 0.0, %v4284
        %v4286 = vpop.f32.mrb[0].mxu0
        %v4287 = vpop.f32.mrb[0].mxu0
        %v4288 = vadd.f32 0.0, %v4287
        %v4289 = vpop.f32.mrb[0].mxu0
        %4290 = vmatprep.mubr.bf16.mxu0 %v4153
        %4291 = vmatmul.mubr.bf16.gmra.mrb[0].mxu0 %v4152
        %v4292 = vpop.f32.mrb[0].mxu0
        %v4293 = vadd.f32 0.0, %v4292
        %v4294 = vpop.f32.mrb[0].mxu0
        %v4295 = vpop.f32.mrb[0].mxu0
        %v4296 = vadd.f32 0.0, %v4295
        %v4297 = vpop.f32.mrb[0].mxu0
        %4298 = vmatprep.mubr.bf16.mxu0 %v4155
        %4299 = vmatmul.mubr.bf16.gmra.mrb[0].mxu0 %v4154
        %v4300 = vpop.f32.mrb[0].mxu0
        %v4301 = vadd.f32 0.0, %v4300
        %v4302 = vpop.f32.mrb[0].mxu0
        %v4303 = vpop.f32.mrb[0].mxu0
        %v4304 = vadd.f32 0.0, %v4303
        %v4305 = vpop.f32.mrb[0].mxu0
        %4306 = vmatprep.mubr.bf16.mxu0 %v4157
        %4307 = vmatmul.mubr.bf16.gmra.mrb[0].mxu0 %v4156
        %v4308 = vpop.f32.mrb[0].mxu0
        %v4309 = vadd.f32 0.0, %v4308
        %v4310 = vpop.f32.mrb[0].mxu0
        %v4311 = vpop.f32.mrb[0].mxu0
        %v4312 = vadd.f32 0.0, %v4311
        %v4313 = vpop.f32.mrb[0].mxu0
        %4314 = vmatprep.mubr.bf16.mxu0 %v4159
        %4315 = vmatmul.mubr.bf16.gmra.mrb[0].mxu0 %v4158
        %v4316 = vpop.f32.mrb[0].mxu0
        %v4317 = vadd.f32 0.0, %v4316
        %v4318 = vpop.f32.mrb[0].mxu0
        %v4319 = vpop.f32.mrb[0].mxu0
        %v4320 = vadd.f32 0.0, %v4319
        %v4321 = vpop.f32.mrb[0].mxu0
        %4322 = vmatprep.mubr.bf16.mxu0 %v4161
        %4323 = vmatmul.mubr.bf16.gmra.mrb[0].mxu0 %v4160
        %v4324 = vpop.f32.mrb[0].mxu0
        %v4325 = vadd.f32 0.0, %v4324
        %v4326 = vpop.f32.mrb[0].mxu0
        %v4327 = vpop.f32.mrb[0].mxu0
        %v4328 = vadd.f32 0.0, %v4327
        %v4329 = vpop.f32.mrb[0].mxu0
        %4330 = vmatprep.mubr.bf16.mxu0 %v4163
        %4331 = vmatmul.mubr.bf16.gmra.mrb[0].mxu0 %v4162
        %v4332 = vpop.f32.mrb[0].mxu0
        %v4333 = vadd.f32 0.0, %v4332
        %v4334 = vpop.f32.mrb[0].mxu0
        %v4335 = vpop.f32.mrb[0].mxu0
        %v4336 = vadd.f32 0.0, %v4335
        %v4337 = vpop.f32.mrb[0].mxu0
        %4338 = vmatprep.mubr.bf16.mxu0 %v4165
        %4339 = vmatmul.mubr.bf16.gmra.mrb[0].mxu0 %v4164
        %v4340 = vpop.f32.mrb[0].mxu0
        %v4341 = vadd.f32 0.0, %v4340
        %v4342 = vpop.f32.mrb[0].mxu0
        %v4343 = vpop.f32.mrb[0].mxu0
        %v4344 = vadd.f32 0.0, %v4343
        %v4345 = vpop.f32.mrb[0].mxu0
        %4346 = vmatprep.mubr.bf16.mxu0 %v4167
        %4347 = vmatmul.mubr.bf16.gmra.mrb[0].mxu0 %v4166
        %v4348 = vpop.f32.mrb[0].mxu0
        %v4349 = vadd.f32 0.0, %v4348
        %v4350 = vpop.f32.mrb[0].mxu0
        %v4351 = vpop.f32.mrb[0].mxu0
        %v4352 = vadd.f32 0.0, %v4351
        %v4353 = vpop.f32.mrb[0].mxu0
        %4354 = vmatprep.mubr.bf16.mxu0 %v4169
        %4355 = vmatmul.mubr.bf16.gmra.mrb[0].mxu0 %v4168
        %v4356 = vpop.f32.mrb[0].mxu0
        %v4357 = vadd.f32 0.0, %v4356
        %v4358 = vpop.f32.mrb[0].mxu0
        %v4359 = vpop.f32.mrb[0].mxu0
        %v4360 = vadd.f32 0.0, %v4359
        %v4361 = vpop.f32.mrb[0].mxu0
        %4362 = vdwg.mxu0
        %4395 = vrot.lane.b32.xlu0 %v4237, 64
        %v4396 = vpop.permute.xlu0 %4395
        %4397 = vrot.lane.b32.xlu0 %v4240, 64
        %v4398 = vpop.permute.xlu0 %4397
        %4399 = vrot.lane.b32.xlu0 %v4245, 64
        %v4400 = vpop.permute.xlu0 %4399
        %4401 = vrot.lane.b32.xlu0 %v4248, 64
        %v4402 = vpop.permute.xlu0 %4401
        %4403 = vrot.lane.b32.xlu0 %v4253, 64
        %v4404 = vpop.permute.xlu0 %4403
        %4405 = vrot.lane.b32.xlu0 %v4256, 64
        %v4406 = vpop.permute.xlu0 %4405
        %4407 = vrot.lane.b32.xlu0 %v4261, 64
        %v4408 = vpop.permute.xlu0 %4407
        %4409 = vrot.lane.b32.xlu0 %v4264, 64
        %v4410 = vpop.permute.xlu0 %4409
        %4411 = vrot.lane.b32.xlu0 %v4269, 64
        %v4412 = vpop.permute.xlu0 %4411
        %4413 = vrot.lane.b32.xlu0 %v4272, 64
        %v4414 = vpop.permute.xlu0 %4413
        %4415 = vrot.lane.b32.xlu0 %v4277, 64
        %v4416 = vpop.permute.xlu0 %4415
        %4417 = vrot.lane.b32.xlu0 %v4280, 64
        %v4418 = vpop.permute.xlu0 %4417
        %4419 = vrot.lane.b32.xlu0 %v4285, 64
        %v4420 = vpop.permute.xlu0 %4419
        %4421 = vrot.lane.b32.xlu0 %v4288, 64
        %v4422 = vpop.permute.xlu0 %4421
        %4423 = vrot.lane.b32.xlu0 %v4293, 64
        %v4424 = vpop.permute.xlu0 %4423
        %4425 = vrot.lane.b32.xlu0 %v4296, 64
        %v4426 = vpop.permute.xlu0 %4425
        %4427 = vrot.lane.b32.xlu0 %v4301, 64
        %v4428 = vpop.permute.xlu0 %4427
        %4429 = vrot.lane.b32.xlu0 %v4304, 64
        %v4430 = vpop.permute.xlu0 %4429
        %4431 = vrot.lane.b32.xlu0 %v4309, 64
        %v4432 = vpop.permute.xlu0 %4431
        %4433 = vrot.lane.b32.xlu0 %v4312, 64
        %v4434 = vpop.permute.xlu0 %4433
        %4435 = vrot.lane.b32.xlu0 %v4317, 64
        %v4436 = vpop.permute.xlu0 %4435
        %4437 = vrot.lane.b32.xlu0 %v4320, 64
        %v4438 = vpop.permute.xlu0 %4437
        %4439 = vrot.lane.b32.xlu0 %v4325, 64
        %v4440 = vpop.permute.xlu0 %4439
        %4441 = vrot.lane.b32.xlu0 %v4328, 64
        %v4442 = vpop.permute.xlu0 %4441
        %4443 = vrot.lane.b32.xlu0 %v4333, 64
        %v4444 = vpop.permute.xlu0 %4443
        %4445 = vrot.lane.b32.xlu0 %v4336, 64
        %v4446 = vpop.permute.xlu0 %4445
        %4447 = vrot.lane.b32.xlu0 %v4341, 64
        %v4448 = vpop.permute.xlu0 %4447
        %4449 = vrot.lane.b32.xlu0 %v4344, 64
        %v4450 = vpop.permute.xlu0 %4449
        %4451 = vrot.lane.b32.xlu0 %v4349, 64
        %v4452 = vpop.permute.xlu0 %4451
        %4453 = vrot.lane.b32.xlu0 %v4352, 64
        %v4454 = vpop.permute.xlu0 %4453
        %4455 = vrot.lane.b32.xlu0 %v4357, 64
        %v4456 = vpop.permute.xlu0 %4455
        %4457 = vrot.lane.b32.xlu0 %v4360, 64
        %v4458 = vpop.permute.xlu0 %4457
        %v4491 = vadd.f32 %v3914, %v4396
        %v4492 = vadd.f32 %v3916, %v4398
        %v4493 = vadd.f32 %v3918, %v4400
        %v4494 = vadd.f32 %v3920, %v4402
        %v4495 = vadd.f32 %v3922, %v4404
        %v4496 = vadd.f32 %v3924, %v4406
        %v4497 = vadd.f32 %v3926, %v4408
        %v4498 = vadd.f32 %v3928, %v4410
        %v4499 = vadd.f32 %v3930, %v4412
        %v4500 = vadd.f32 %v3932, %v4414
        %v4501 = vadd.f32 %v3934, %v4416
        %v4502 = vadd.f32 %v3936, %v4418
        %v4503 = vadd.f32 %v3938, %v4420
        %v4504 = vadd.f32 %v3940, %v4422
        %v4505 = vadd.f32 %v3942, %v4424
        %v4506 = vadd.f32 %v3944, %v4426
        %v4507 = vadd.f32 %v3946, %v4428
        %v4508 = vadd.f32 %v3948, %v4430
        %v4509 = vadd.f32 %v3950, %v4432
        %v4510 = vadd.f32 %v3952, %v4434
        %v4511 = vadd.f32 %v3954, %v4436
        %v4512 = vadd.f32 %v3956, %v4438
        %v4513 = vadd.f32 %v3958, %v4440
        %v4514 = vadd.f32 %v3960, %v4442
        %v4515 = vadd.f32 %v3962, %v4444
        %v4516 = vadd.f32 %v3964, %v4446
        %v4517 = vadd.f32 %v3966, %v4448
        %v4518 = vadd.f32 %v3968, %v4450
        %v4519 = vadd.f32 %v3970, %v4452
        %v4520 = vadd.f32 %v3972, %v4454
        %v4521 = vadd.f32 %v3974, %v4456
        %v4522 = vadd.f32 %v3976, %v4458
        %s4523 = scalar_lea.vmem [#allocation11], 256
        %v4524 = vld [vmem:[%s4523] sm:$0xff]
        %v4525 = vld [vmem:[%s4523 + $0x8] sm:$0xff]
        %v4526 = vld [vmem:[%s4523 + $0x10] sm:$0xff]
        %v4527 = vld [vmem:[%s4523 + $0x18] sm:$0xff]
        %v4528 = vld [vmem:[%s4523 + $0x20] sm:$0xff]
        %v4529 = vld [vmem:[%s4523 + $0x28] sm:$0xff]
        %v4530 = vld [vmem:[%s4523 + $0x30] sm:$0xff]
        %v4531 = vld [vmem:[%s4523 + $0x38] sm:$0xff]
        %v4532 = vld [vmem:[%s4523 + $0x40] sm:$0xff]
        %v4533 = vld [vmem:[%s4523 + $0x48] sm:$0xff]
        %v4534 = vld [vmem:[%s4523 + $0x50] sm:$0xff]
        %v4535 = vld [vmem:[%s4523 + $0x58] sm:$0xff]
        %v4536 = vld [vmem:[%s4523 + $0x60] sm:$0xff]
        %v4537 = vld [vmem:[%s4523 + $0x68] sm:$0xff]
        %v4538 = vld [vmem:[%s4523 + $0x70] sm:$0xff]
        %v4539 = vld [vmem:[%s4523 + $0x78] sm:$0xff]
        %v4540 = vld [vmem:[%s4523 + $0x80] sm:$0xff]
        %v4541 = vld [vmem:[%s4523 + $0x88] sm:$0xff]
        %v4542 = vld [vmem:[%s4523 + $0x90] sm:$0xff]
        %v4543 = vld [vmem:[%s4523 + $0x98] sm:$0xff]
        %v4544 = vld [vmem:[%s4523 + $0xa0] sm:$0xff]
        %v4545 = vld [vmem:[%s4523 + $0xa8] sm:$0xff]
        %v4546 = vld [vmem:[%s4523 + $0xb0] sm:$0xff]
        %v4547 = vld [vmem:[%s4523 + $0xb8] sm:$0xff]
        %v4548 = vld [vmem:[%s4523 + $0xc0] sm:$0xff]
        %v4549 = vld [vmem:[%s4523 + $0xc8] sm:$0xff]
        %v4550 = vld [vmem:[%s4523 + $0xd0] sm:$0xff]
        %v4551 = vld [vmem:[%s4523 + $0xd8] sm:$0xff]
        %v4552 = vld [vmem:[%s4523 + $0xe0] sm:$0xff]
        %v4553 = vld [vmem:[%s4523 + $0xe8] sm:$0xff]
        %v4554 = vld [vmem:[%s4523 + $0xf0] sm:$0xff]
        %v4555 = vld [vmem:[%s4523 + $0xf8] sm:$0xff]
        %v4588 = vunpack.c.l.b16 %v4524
        %v4589 = vunpack.c.h.b16 %v4524
        %v4590 = vunpack.c.l.b16 %v4525
        %v4591 = vunpack.c.h.b16 %v4525
        %v4592 = vunpack.c.l.b16 %v4526
        %v4593 = vunpack.c.h.b16 %v4526
        %v4594 = vunpack.c.l.b16 %v4527
        %v4595 = vunpack.c.h.b16 %v4527
        %v4596 = vunpack.c.l.b16 %v4528
        %v4597 = vunpack.c.h.b16 %v4528
        %v4598 = vunpack.c.l.b16 %v4529
        %v4599 = vunpack.c.h.b16 %v4529
        %v4600 = vunpack.c.l.b16 %v4530
        %v4601 = vunpack.c.h.b16 %v4530
        %v4602 = vunpack.c.l.b16 %v4531
        %v4603 = vunpack.c.h.b16 %v4531
        %v4604 = vunpack.c.l.b16 %v4532
        %v4605 = vunpack.c.h.b16 %v4532
        %v4606 = vunpack.c.l.b16 %v4533
        %v4607 = vunpack.c.h.b16 %v4533
        %v4608 = vunpack.c.l.b16 %v4534
        %v4609 = vunpack.c.h.b16 %v4534
        %v4610 = vunpack.c.l.b16 %v4535
        %v4611 = vunpack.c.h.b16 %v4535
        %v4612 = vunpack.c.l.b16 %v4536
        %v4613 = vunpack.c.h.b16 %v4536
        %v4614 = vunpack.c.l.b16 %v4537
        %v4615 = vunpack.c.h.b16 %v4537
        %v4616 = vunpack.c.l.b16 %v4538
        %v4617 = vunpack.c.h.b16 %v4538
        %v4618 = vunpack.c.l.b16 %v4539
        %v4619 = vunpack.c.h.b16 %v4539
        %v4620 = vunpack.c.l.b16 %v4540
        %v4621 = vunpack.c.h.b16 %v4540
        %v4622 = vunpack.c.l.b16 %v4541
        %v4623 = vunpack.c.h.b16 %v4541
        %v4624 = vunpack.c.l.b16 %v4542
        %v4625 = vunpack.c.h.b16 %v4542
        %v4626 = vunpack.c.l.b16 %v4543
        %v4627 = vunpack.c.h.b16 %v4543
        %v4628 = vunpack.c.l.b16 %v4544
        %v4629 = vunpack.c.h.b16 %v4544
        %v4630 = vunpack.c.l.b16 %v4545
        %v4631 = vunpack.c.h.b16 %v4545
        %v4632 = vunpack.c.l.b16 %v4546
        %v4633 = vunpack.c.h.b16 %v4546
        %v4634 = vunpack.c.l.b16 %v4547
        %v4635 = vunpack.c.h.b16 %v4547
        %v4636 = vunpack.c.l.b16 %v4548
        %v4637 = vunpack.c.h.b16 %v4548
        %v4638 = vunpack.c.l.b16 %v4549
        %v4639 = vunpack.c.h.b16 %v4549
        %v4640 = vunpack.c.l.b16 %v4550
        %v4641 = vunpack.c.h.b16 %v4550
        %v4642 = vunpack.c.l.b16 %v4551
        %v4643 = vunpack.c.h.b16 %v4551
        %v4644 = vunpack.c.l.b16 %v4552
        %v4645 = vunpack.c.h.b16 %v4552
        %v4646 = vunpack.c.l.b16 %v4553
        %v4647 = vunpack.c.h.b16 %v4553
        %v4648 = vunpack.c.l.b16 %v4554
        %v4649 = vunpack.c.h.b16 %v4554
        %v4650 = vunpack.c.l.b16 %v4555
        %v4651 = vunpack.c.h.b16 %v4555
        %v4652 = vpack.c.b16 %v4590, %v4588
        %v4653 = vpack.c.b16 %v4591, %v4589
        %v4654 = vpack.c.b16 %v4594, %v4592
        %v4655 = vpack.c.b16 %v4595, %v4593
        %v4656 = vpack.c.b16 %v4598, %v4596
        %v4657 = vpack.c.b16 %v4599, %v4597
        %v4658 = vpack.c.b16 %v4602, %v4600
        %v4659 = vpack.c.b16 %v4603, %v4601
        %v4660 = vpack.c.b16 %v4606, %v4604
        %v4661 = vpack.c.b16 %v4607, %v4605
        %v4662 = vpack.c.b16 %v4610, %v4608
        %v4663 = vpack.c.b16 %v4611, %v4609
        %v4664 = vpack.c.b16 %v4614, %v4612
        %v4665 = vpack.c.b16 %v4615, %v4613
        %v4666 = vpack.c.b16 %v4618, %v4616
        %v4667 = vpack.c.b16 %v4619, %v4617
        %v4668 = vpack.c.b16 %v4622, %v4620
        %v4669 = vpack.c.b16 %v4623, %v4621
        %v4670 = vpack.c.b16 %v4626, %v4624
        %v4671 = vpack.c.b16 %v4627, %v4625
        %v4672 = vpack.c.b16 %v4630, %v4628
        %v4673 = vpack.c.b16 %v4631, %v4629
        %v4674 = vpack.c.b16 %v4634, %v4632
        %v4675 = vpack.c.b16 %v4635, %v4633
        %v4676 = vpack.c.b16 %v4638, %v4636
        %v4677 = vpack.c.b16 %v4639, %v4637
        %v4678 = vpack.c.b16 %v4642, %v4640
        %v4679 = vpack.c.b16 %v4643, %v4641
        %v4680 = vpack.c.b16 %v4646, %v4644
        %v4681 = vpack.c.b16 %v4647, %v4645
        %v4682 = vpack.c.b16 %v4650, %v4648
        %v4683 = vpack.c.b16 %v4651, %v4649
        %4716 = vmatprep.subr.bf16.mxu0 0
        %4717 = vmatpush1.bf16.msra.mxu0 %v3994
        %4718 = vmatprep.subr.bf16.mxu0 0
        %4719 = vmatpush1.bf16.msra.mxu0 %v3995
        %4720 = vmatprep.subr.bf16.mxu0 0
        %4721 = vmatpush1.bf16.msra.mxu0 %v3996
        %4722 = vmatprep.subr.bf16.mxu0 0
        %4723 = vmatpush1.bf16.msra.mxu0 %v3997
        %4724 = vmatprep.subr.bf16.mxu0 0
        %4725 = vmatpush1.bf16.msra.mxu0 %v3998
        %4726 = vmatprep.subr.bf16.mxu0 0
        %4727 = vmatpush1.bf16.msra.mxu0 %v3999
        %4728 = vmatprep.subr.bf16.mxu0 0
        %4729 = vmatpush1.bf16.msra.mxu0 %v4000
        %4730 = vmatprep.subr.bf16.mxu0 0
        %4731 = vmatpush1.bf16.msra.mxu0 %v4001
        %4732 = vmatprep.subr.bf16.mxu0 0
        %4733 = vmatpush1.bf16.msra.mxu0 %v4002
        %4734 = vmatprep.subr.bf16.mxu0 0
        %4735 = vmatpush1.bf16.msra.mxu0 %v4003
        %4736 = vmatprep.subr.bf16.mxu0 0
        %4737 = vmatpush1.bf16.msra.mxu0 %v4004
        %4738 = vmatprep.subr.bf16.mxu0 0
        %4739 = vmatpush1.bf16.msra.mxu0 %v4005
        %4740 = vmatprep.subr.bf16.mxu0 0
        %4741 = vmatpush1.bf16.msra.mxu0 %v4006
        %4742 = vmatprep.subr.bf16.mxu0 0
        %4743 = vmatpush1.bf16.msra.mxu0 %v4007
        %4744 = vmatprep.subr.bf16.mxu0 0
        %4745 = vmatpush1.bf16.msra.mxu0 %v4008
        %4746 = vmatprep.subr.bf16.mxu0 0
        %4747 = vmatpush1.bf16.msra.mxu0 %v4009
        %4748 = vmatprep.mubr.bf16.mxu0 %v4653
        %4749 = vmatmul.mubr.bf16.gmra.mrb[0].mxu0 %v4652
        %v4750 = vpop.f32.mrb[0].mxu0
        %v4751 = vadd.f32 0.0, %v4750
        %v4752 = vpop.f32.mrb[0].mxu0
        %v4753 = vpop.f32.mrb[0].mxu0
        %v4754 = vadd.f32 0.0, %v4753
        %v4755 = vpop.f32.mrb[0].mxu0
        %4756 = vmatprep.mubr.bf16.mxu0 %v4655
        %4757 = vmatmul.mubr.bf16.gmra.mrb[0].mxu0 %v4654
        %v4758 = vpop.f32.mrb[0].mxu0
        %v4759 = vadd.f32 0.0, %v4758
        %v4760 = vpop.f32.mrb[0].mxu0
        %v4761 = vpop.f32.mrb[0].mxu0
        %v4762 = vadd.f32 0.0, %v4761
        %v4763 = vpop.f32.mrb[0].mxu0
        %4764 = vmatprep.mubr.bf16.mxu0 %v4657
        %4765 = vmatmul.mubr.bf16.gmra.mrb[0].mxu0 %v4656
        %v4766 = vpop.f32.mrb[0].mxu0
        %v4767 = vadd.f32 0.0, %v4766
        %v4768 = vpop.f32.mrb[0].mxu0
        %v4769 = vpop.f32.mrb[0].mxu0
        %v4770 = vadd.f32 0.0, %v4769
        %v4771 = vpop.f32.mrb[0].mxu0
        %4772 = vmatprep.mubr.bf16.mxu0 %v4659
        %4773 = vmatmul.mubr.bf16.gmra.mrb[0].mxu0 %v4658
        %v4774 = vpop.f32.mrb[0].mxu0
        %v4775 = vadd.f32 0.0, %v4774
        %v4776 = vpop.f32.mrb[0].mxu0
        %v4777 = vpop.f32.mrb[0].mxu0
        %v4778 = vadd.f32 0.0, %v4777
        %v4779 = vpop.f32.mrb[0].mxu0
        %4780 = vmatprep.mubr.bf16.mxu0 %v4661
        %4781 = vmatmul.mubr.bf16.gmra.mrb[0].mxu0 %v4660
        %v4782 = vpop.f32.mrb[0].mxu0
        %v4783 = vadd.f32 0.0, %v4782
        %v4784 = vpop.f32.mrb[0].mxu0
        %v4785 = vpop.f32.mrb[0].mxu0
        %v4786 = vadd.f32 0.0, %v4785
        %v4787 = vpop.f32.mrb[0].mxu0
        %4788 = vmatprep.mubr.bf16.mxu0 %v4663
        %4789 = vmatmul.mubr.bf16.gmra.mrb[0].mxu0 %v4662
        %v4790 = vpop.f32.mrb[0].mxu0
        %v4791 = vadd.f32 0.0, %v4790
        %v4792 = vpop.f32.mrb[0].mxu0
        %v4793 = vpop.f32.mrb[0].mxu0
        %v4794 = vadd.f32 0.0, %v4793
        %v4795 = vpop.f32.mrb[0].mxu0
        %4796 = vmatprep.mubr.bf16.mxu0 %v4665
        %4797 = vmatmul.mubr.bf16.gmra.mrb[0].mxu0 %v4664
        %v4798 = vpop.f32.mrb[0].mxu0
        %v4799 = vadd.f32 0.0, %v4798
        %v4800 = vpop.f32.mrb[0].mxu0
        %v4801 = vpop.f32.mrb[0].mxu0
        %v4802 = vadd.f32 0.0, %v4801
        %v4803 = vpop.f32.mrb[0].mxu0
        %4804 = vmatprep.mubr.bf16.mxu0 %v4667
        %4805 = vmatmul.mubr.bf16.gmra.mrb[0].mxu0 %v4666
        %v4806 = vpop.f32.mrb[0].mxu0
        %v4807 = vadd.f32 0.0, %v4806
        %v4808 = vpop.f32.mrb[0].mxu0
        %v4809 = vpop.f32.mrb[0].mxu0
        %v4810 = vadd.f32 0.0, %v4809
        %v4811 = vpop.f32.mrb[0].mxu0
        %4812 = vmatprep.mubr.bf16.mxu0 %v4669
        %4813 = vmatmul.mubr.bf16.gmra.mrb[0].mxu0 %v4668
        %v4814 = vpop.f32.mrb[0].mxu0
        %v4815 = vadd.f32 0.0, %v4814
        %v4816 = vpop.f32.mrb[0].mxu0
        %v4817 = vpop.f32.mrb[0].mxu0
        %v4818 = vadd.f32 0.0, %v4817
        %v4819 = vpop.f32.mrb[0].mxu0
        %4820 = vmatprep.mubr.bf16.mxu0 %v4671
        %4821 = vmatmul.mubr.bf16.gmra.mrb[0].mxu0 %v4670
        %v4822 = vpop.f32.mrb[0].mxu0
        %v4823 = vadd.f32 0.0, %v4822
        %v4824 = vpop.f32.mrb[0].mxu0
        %v4825 = vpop.f32.mrb[0].mxu0
        %v4826 = vadd.f32 0.0, %v4825
        %v4827 = vpop.f32.mrb[0].mxu0
        %4828 = vmatprep.mubr.bf16.mxu0 %v4673
        %4829 = vmatmul.mubr.bf16.gmra.mrb[0].mxu0 %v4672
        %v4830 = vpop.f32.mrb[0].mxu0
        %v4831 = vadd.f32 0.0, %v4830
        %v4832 = vpop.f32.mrb[0].mxu0
        %v4833 = vpop.f32.mrb[0].mxu0
        %v4834 = vadd.f32 0.0, %v4833
        %v4835 = vpop.f32.mrb[0].mxu0
        %4836 = vmatprep.mubr.bf16.mxu0 %v4675
        %4837 = vmatmul.mubr.bf16.gmra.mrb[0].mxu0 %v4674
        %v4838 = vpop.f32.mrb[0].mxu0
        %v4839 = vadd.f32 0.0, %v4838
        %v4840 = vpop.f32.mrb[0].mxu0
        %v4841 = vpop.f32.mrb[0].mxu0
        %v4842 = vadd.f32 0.0, %v4841
        %v4843 = vpop.f32.mrb[0].mxu0
        %4844 = vmatprep.mubr.bf16.mxu0 %v4677
        %4845 = vmatmul.mubr.bf16.gmra.mrb[0].mxu0 %v4676
        %v4846 = vpop.f32.mrb[0].mxu0
        %v4847 = vadd.f32 0.0, %v4846
        %v4848 = vpop.f32.mrb[0].mxu0
        %v4849 = vpop.f32.mrb[0].mxu0
        %v4850 = vadd.f32 0.0, %v4849
        %v4851 = vpop.f32.mrb[0].mxu0
        %4852 = vmatprep.mubr.bf16.mxu0 %v4679
        %4853 = vmatmul.mubr.bf16.gmra.mrb[0].mxu0 %v4678
        %v4854 = vpop.f32.mrb[0].mxu0
        %v4855 = vadd.f32 0.0, %v4854
        %v4856 = vpop.f32.mrb[0].mxu0
        %v4857 = vpop.f32.mrb[0].mxu0
        %v4858 = vadd.f32 0.0, %v4857
        %v4859 = vpop.f32.mrb[0].mxu0
        %4860 = vmatprep.mubr.bf16.mxu0 %v4681
        %4861 = vmatmul.mubr.bf16.gmra.mrb[0].mxu0 %v4680
        %v4862 = vpop.f32.mrb[0].mxu0
        %v4863 = vadd.f32 0.0, %v4862
        %v4864 = vpop.f32.mrb[0].mxu0
        %v4865 = vpop.f32.mrb[0].mxu0
        %v4866 = vadd.f32 0.0, %v4865
        %v4867 = vpop.f32.mrb[0].mxu0
        %4868 = vmatprep.mubr.bf16.mxu0 %v4683
        %4869 = vmatmul.mubr.bf16.gmra.mrb[0].mxu0 %v4682
        %v4870 = vpop.f32.mrb[0].mxu0
        %v4871 = vadd.f32 0.0, %v4870
        %v4872 = vpop.f32.mrb[0].mxu0
        %v4873 = vpop.f32.mrb[0].mxu0
        %v4874 = vadd.f32 0.0, %v4873
        %v4875 = vpop.f32.mrb[0].mxu0
        %4876 = vdwg.mxu0
        %4909 = vrot.lane.b32.xlu0 %v4751, 64
        %v4910 = vpop.permute.xlu0 %4909
        %4911 = vrot.lane.b32.xlu0 %v4754, 64
        %v4912 = vpop.permute.xlu0 %4911
        %4913 = vrot.lane.b32.xlu0 %v4759, 64
        %v4914 = vpop.permute.xlu0 %4913
        %4915 = vrot.lane.b32.xlu0 %v4762, 64
        %v4916 = vpop.permute.xlu0 %4915
        %4917 = vrot.lane.b32.xlu0 %v4767, 64
        %v4918 = vpop.permute.xlu0 %4917
        %4919 = vrot.lane.b32.xlu0 %v4770, 64
        %v4920 = vpop.permute.xlu0 %4919
        %4921 = vrot.lane.b32.xlu0 %v4775, 64
        %v4922 = vpop.permute.xlu0 %4921
        %4923 = vrot.lane.b32.xlu0 %v4778, 64
        %v4924 = vpop.permute.xlu0 %4923
        %4925 = vrot.lane.b32.xlu0 %v4783, 64
        %v4926 = vpop.permute.xlu0 %4925
        %4927 = vrot.lane.b32.xlu0 %v4786, 64
        %v4928 = vpop.permute.xlu0 %4927
        %4929 = vrot.lane.b32.xlu0 %v4791, 64
        %v4930 = vpop.permute.xlu0 %4929
        %4931 = vrot.lane.b32.xlu0 %v4794, 64
        %v4932 = vpop.permute.xlu0 %4931
        %4933 = vrot.lane.b32.xlu0 %v4799, 64
        %v4934 = vpop.permute.xlu0 %4933
        %4935 = vrot.lane.b32.xlu0 %v4802, 64
        %v4936 = vpop.permute.xlu0 %4935
        %4937 = vrot.lane.b32.xlu0 %v4807, 64
        %v4938 = vpop.permute.xlu0 %4937
        %4939 = vrot.lane.b32.xlu0 %v4810, 64
        %v4940 = vpop.permute.xlu0 %4939
        %4941 = vrot.lane.b32.xlu0 %v4815, 64
        %v4942 = vpop.permute.xlu0 %4941
        %4943 = vrot.lane.b32.xlu0 %v4818, 64
        %v4944 = vpop.permute.xlu0 %4943
        %4945 = vrot.lane.b32.xlu0 %v4823, 64
        %v4946 = vpop.permute.xlu0 %4945
        %4947 = vrot.lane.b32.xlu0 %v4826, 64
        %v4948 = vpop.permute.xlu0 %4947
        %4949 = vrot.lane.b32.xlu0 %v4831, 64
        %v4950 = vpop.permute.xlu0 %4949
        %4951 = vrot.lane.b32.xlu0 %v4834, 64
        %v4952 = vpop.permute.xlu0 %4951
        %4953 = vrot.lane.b32.xlu0 %v4839, 64
        %v4954 = vpop.permute.xlu0 %4953
        %4955 = vrot.lane.b32.xlu0 %v4842, 64
        %v4956 = vpop.permute.xlu0 %4955
        %4957 = vrot.lane.b32.xlu0 %v4847, 64
        %v4958 = vpop.permute.xlu0 %4957
        %4959 = vrot.lane.b32.xlu0 %v4850, 64
        %v4960 = vpop.permute.xlu0 %4959
        %4961 = vrot.lane.b32.xlu0 %v4855, 64
        %v4962 = vpop.permute.xlu0 %4961
        %4963 = vrot.lane.b32.xlu0 %v4858, 64
        %v4964 = vpop.permute.xlu0 %4963
        %4965 = vrot.lane.b32.xlu0 %v4863, 64
        %v4966 = vpop.permute.xlu0 %4965
        %4967 = vrot.lane.b32.xlu0 %v4866, 64
        %v4968 = vpop.permute.xlu0 %4967
        %4969 = vrot.lane.b32.xlu0 %v4871, 64
        %v4970 = vpop.permute.xlu0 %4969
        %4971 = vrot.lane.b32.xlu0 %v4874, 64
        %v4972 = vpop.permute.xlu0 %4971
        %v5005 = vadd.f32 %v4491, %v4910
        %v5006 = vadd.f32 %v4492, %v4912
        %v5007 = vadd.f32 %v4493, %v4914
        %v5008 = vadd.f32 %v4494, %v4916
        %v5009 = vadd.f32 %v4495, %v4918
        %v5010 = vadd.f32 %v4496, %v4920
        %v5011 = vadd.f32 %v4497, %v4922
        %v5012 = vadd.f32 %v4498, %v4924
        %v5013 = vadd.f32 %v4499, %v4926
        %v5014 = vadd.f32 %v4500, %v4928
        %v5015 = vadd.f32 %v4501, %v4930
        %v5016 = vadd.f32 %v4502, %v4932
        %v5017 = vadd.f32 %v4503, %v4934
        %v5018 = vadd.f32 %v4504, %v4936
        %v5019 = vadd.f32 %v4505, %v4938
        %v5020 = vadd.f32 %v4506, %v4940
        %v5021 = vadd.f32 %v4507, %v4942
        %v5022 = vadd.f32 %v4508, %v4944
        %v5023 = vadd.f32 %v4509, %v4946
        %v5024 = vadd.f32 %v4510, %v4948
        %v5025 = vadd.f32 %v4511, %v4950
        %v5026 = vadd.f32 %v4512, %v4952
        %v5027 = vadd.f32 %v4513, %v4954
        %v5028 = vadd.f32 %v4514, %v4956
        %v5029 = vadd.f32 %v4515, %v4958
        %v5030 = vadd.f32 %v4516, %v4960
        %v5031 = vadd.f32 %v4517, %v4962
        %v5032 = vadd.f32 %v4518, %v4964
        %v5033 = vadd.f32 %v4519, %v4966
        %v5034 = vadd.f32 %v4520, %v4968
        %v5035 = vadd.f32 %v4521, %v4970
        %v5036 = vadd.f32 %v4522, %v4972
        %v5037 = vld [vmem:[#allocation12] sm:$0x1]
        %v5039 = vlaneseq
        %v5040 = vshrl.u32 %v5039, 7
        %v5041 = vsub.s32 0, %v5040
        %v5042 = vrot.slane %v5037, %v5041
        %5043 = vrot.lane.b32.xlu0 %v5042, 64
        %v5044 = vpop.permute.xlu0 %5043
        %v5046 = vmul.f32 %v5005, %v5044
        %v5047 = vmul.f32 %v5006, %v5044
        %v5048 = vmul.f32 %v5007, %v5044
        %v5049 = vmul.f32 %v5008, %v5044
        %v5050 = vmul.f32 %v5009, %v5044
        %v5051 = vmul.f32 %v5010, %v5044
        %v5052 = vmul.f32 %v5011, %v5044
        %v5053 = vmul.f32 %v5012, %v5044
        %v5054 = vmul.f32 %v5013, %v5044
        %v5055 = vmul.f32 %v5014, %v5044
        %v5056 = vmul.f32 %v5015, %v5044
        %v5057 = vmul.f32 %v5016, %v5044
        %v5058 = vmul.f32 %v5017, %v5044
        %v5059 = vmul.f32 %v5018, %v5044
        %v5060 = vmul.f32 %v5019, %v5044
        %v5061 = vmul.f32 %v5020, %v5044
        %v5062 = vmul.f32 %v5021, %v5044
        %v5063 = vmul.f32 %v5022, %v5044
        %v5064 = vmul.f32 %v5023, %v5044
        %v5065 = vmul.f32 %v5024, %v5044
        %v5066 = vmul.f32 %v5025, %v5044
        %v5067 = vmul.f32 %v5026, %v5044
        %v5068 = vmul.f32 %v5027, %v5044
        %v5069 = vmul.f32 %v5028, %v5044
        %v5070 = vmul.f32 %v5029, %v5044
        %v5071 = vmul.f32 %v5030, %v5044
        %v5072 = vmul.f32 %v5031, %v5044
        %v5073 = vmul.f32 %v5032, %v5044
        %v5074 = vmul.f32 %v5033, %v5044
        %v5075 = vmul.f32 %v5034, %v5044
        %v5076 = vmul.f32 %v5035, %v5044
        %v5077 = vmul.f32 %v5036, %v5044
        %v5078 = vld [vmem:[#allocation14] sm:$0x1]
        %v5080 = vlaneseq
        %v5081 = vshrl.u32 %v5080, 7
        %v5082 = vsub.s32 0, %v5081
        %v5083 = vrot.slane %v5078, %v5082
        %5084 = vrot.lane.b32.xlu0 %v5083, 64
        %v5085 = vpop.permute.xlu0 %5084
        %v5087 = vadd.f32 %v5046, %v5085
        %v5088 = vadd.f32 %v5047, %v5085
        %v5089 = vadd.f32 %v5048, %v5085
        %v5090 = vadd.f32 %v5049, %v5085
        %v5091 = vadd.f32 %v5050, %v5085
        %v5092 = vadd.f32 %v5051, %v5085
        %v5093 = vadd.f32 %v5052, %v5085
        %v5094 = vadd.f32 %v5053, %v5085
        %v5095 = vadd.f32 %v5054, %v5085
        %v5096 = vadd.f32 %v5055, %v5085
        %v5097 = vadd.f32 %v5056, %v5085
        %v5098 = vadd.f32 %v5057, %v5085
        %v5099 = vadd.f32 %v5058, %v5085
        %v5100 = vadd.f32 %v5059, %v5085
        %v5101 = vadd.f32 %v5060, %v5085
        %v5102 = vadd.f32 %v5061, %v5085
        %v5103 = vadd.f32 %v5062, %v5085
        %v5104 = vadd.f32 %v5063, %v5085
        %v5105 = vadd.f32 %v5064, %v5085
        %v5106 = vadd.f32 %v5065, %v5085
        %v5107 = vadd.f32 %v5066, %v5085
        %v5108 = vadd.f32 %v5067, %v5085
        %v5109 = vadd.f32 %v5068, %v5085
        %v5110 = vadd.f32 %v5069, %v5085
        %v5111 = vadd.f32 %v5070, %v5085
        %v5112 = vadd.f32 %v5071, %v5085
        %v5113 = vadd.f32 %v5072, %v5085
        %v5114 = vadd.f32 %v5073, %v5085
        %v5115 = vadd.f32 %v5074, %v5085
        %v5116 = vadd.f32 %v5075, %v5085
        %v5117 = vadd.f32 %v5076, %v5085
        %v5118 = vadd.f32 %v5077, %v5085
        %vm5119 = vcmp.gt.f32.partialorder %v5087, 0.0
        %vm5120 = vcmp.gt.f32.partialorder %v5088, 0.0
        %vm5121 = vcmp.gt.f32.partialorder %v5089, 0.0
        %vm5122 = vcmp.gt.f32.partialorder %v5090, 0.0
        %vm5123 = vcmp.gt.f32.partialorder %v5091, 0.0
        %vm5124 = vcmp.gt.f32.partialorder %v5092, 0.0
        %vm5125 = vcmp.gt.f32.partialorder %v5093, 0.0
        %vm5126 = vcmp.gt.f32.partialorder %v5094, 0.0
        %vm5127 = vcmp.gt.f32.partialorder %v5095, 0.0
        %vm5128 = vcmp.gt.f32.partialorder %v5096, 0.0
        %vm5129 = vcmp.gt.f32.partialorder %v5097, 0.0
        %vm5130 = vcmp.gt.f32.partialorder %v5098, 0.0
        %vm5131 = vcmp.gt.f32.partialorder %v5099, 0.0
        %vm5132 = vcmp.gt.f32.partialorder %v5100, 0.0
        %vm5133 = vcmp.gt.f32.partialorder %v5101, 0.0
        %vm5134 = vcmp.gt.f32.partialorder %v5102, 0.0
        %vm5135 = vcmp.gt.f32.partialorder %v5103, 0.0
        %vm5136 = vcmp.gt.f32.partialorder %v5104, 0.0
        %vm5137 = vcmp.gt.f32.partialorder %v5105, 0.0
        %vm5138 = vcmp.gt.f32.partialorder %v5106, 0.0
        %vm5139 = vcmp.gt.f32.partialorder %v5107, 0.0
        %vm5140 = vcmp.gt.f32.partialorder %v5108, 0.0
        %vm5141 = vcmp.gt.f32.partialorder %v5109, 0.0
        %vm5142 = vcmp.gt.f32.partialorder %v5110, 0.0
        %vm5143 = vcmp.gt.f32.partialorder %v5111, 0.0
        %vm5144 = vcmp.gt.f32.partialorder %v5112, 0.0
        %vm5145 = vcmp.gt.f32.partialorder %v5113, 0.0
        %vm5146 = vcmp.gt.f32.partialorder %v5114, 0.0
        %vm5147 = vcmp.gt.f32.partialorder %v5115, 0.0
        %vm5148 = vcmp.gt.f32.partialorder %v5116, 0.0
        %vm5149 = vcmp.gt.f32.partialorder %v5117, 0.0
        %vm5150 = vcmp.gt.f32.partialorder %v5118, 0.0
        %v5151 = vld [vmem:[#allocation15] sm:$0x1]
        %v5153 = vlaneseq
        %v5154 = vshrl.u32 %v5153, 7
        %v5155 = vsub.s32 0, %v5154
        %v5156 = vrot.slane %v5151, %v5155
        %5190 = vrot.lane.b32.xlu0 %v5087, 64
        %v5191 = vpop.permute.xlu0 %5190
        %5192 = vrot.lane.b32.xlu0 %v5088, 64
        %v5193 = vpop.permute.xlu0 %5192
        %5194 = vrot.lane.b32.xlu0 %v5089, 64
        %v5195 = vpop.permute.xlu0 %5194
        %5196 = vrot.lane.b32.xlu0 %v5090, 64
        %v5197 = vpop.permute.xlu0 %5196
        %5198 = vrot.lane.b32.xlu0 %v5091, 64
        %v5199 = vpop.permute.xlu0 %5198
        %5200 = vrot.lane.b32.xlu0 %v5092, 64
        %v5201 = vpop.permute.xlu0 %5200
        %5202 = vrot.lane.b32.xlu0 %v5093, 64
        %v5203 = vpop.permute.xlu0 %5202
        %5204 = vrot.lane.b32.xlu0 %v5094, 64
        %v5205 = vpop.permute.xlu0 %5204
        %5206 = vrot.lane.b32.xlu0 %v5095, 64
        %v5207 = vpop.permute.xlu0 %5206
        %5208 = vrot.lane.b32.xlu0 %v5096, 64
        %v5209 = vpop.permute.xlu0 %5208
        %5210 = vrot.lane.b32.xlu0 %v5097, 64
        %v5211 = vpop.permute.xlu0 %5210
        %5212 = vrot.lane.b32.xlu0 %v5098, 64
        %v5213 = vpop.permute.xlu0 %5212
        %5214 = vrot.lane.b32.xlu0 %v5099, 64
        %v5215 = vpop.permute.xlu0 %5214
        %5216 = vrot.lane.b32.xlu0 %v5100, 64
        %v5217 = vpop.permute.xlu0 %5216
        %5218 = vrot.lane.b32.xlu0 %v5101, 64
        %v5219 = vpop.permute.xlu0 %5218
        %5220 = vrot.lane.b32.xlu0 %v5102, 64
        %v5221 = vpop.permute.xlu0 %5220
        %5222 = vrot.lane.b32.xlu0 %v5103, 64
        %v5223 = vpop.permute.xlu0 %5222
        %5224 = vrot.lane.b32.xlu0 %v5104, 64
        %v5225 = vpop.permute.xlu0 %5224
        %5226 = vrot.lane.b32.xlu0 %v5105, 64
        %v5227 = vpop.permute.xlu0 %5226
        %5228 = vrot.lane.b32.xlu0 %v5106, 64
        %v5229 = vpop.permute.xlu0 %5228
        %5230 = vrot.lane.b32.xlu0 %v5107, 64
        %v5231 = vpop.permute.xlu0 %5230
        %5232 = vrot.lane.b32.xlu0 %v5108, 64
        %v5233 = vpop.permute.xlu0 %5232
        %5234 = vrot.lane.b32.xlu0 %v5109, 64
        %v5235 = vpop.permute.xlu0 %5234
        %5236 = vrot.lane.b32.xlu0 %v5110, 64
        %v5237 = vpop.permute.xlu0 %5236
        %5238 = vrot.lane.b32.xlu0 %v5111, 64
        %v5239 = vpop.permute.xlu0 %5238
        %5240 = vrot.lane.b32.xlu0 %v5112, 64
        %v5241 = vpop.permute.xlu0 %5240
        %5242 = vrot.lane.b32.xlu0 %v5113, 64
        %v5243 = vpop.permute.xlu0 %5242
        %5244 = vrot.lane.b32.xlu0 %v5114, 64
        %v5245 = vpop.permute.xlu0 %5244
        %5246 = vrot.lane.b32.xlu0 %v5115, 64
        %v5247 = vpop.permute.xlu0 %5246
        %5248 = vrot.lane.b32.xlu0 %v5116, 64
        %v5249 = vpop.permute.xlu0 %5248
        %5250 = vrot.lane.b32.xlu0 %v5117, 64
        %v5251 = vpop.permute.xlu0 %5250
        %5252 = vrot.lane.b32.xlu0 %v5118, 64
        %v5253 = vpop.permute.xlu0 %5252
        %v5286 = vmul.f32 %v5156, %v5191
        %v5287 = vmul.f32 %v5156, %v5193
        %v5288 = vmul.f32 %v5156, %v5195
        %v5289 = vmul.f32 %v5156, %v5197
        %v5290 = vmul.f32 %v5156, %v5199
        %v5291 = vmul.f32 %v5156, %v5201
        %v5292 = vmul.f32 %v5156, %v5203
        %v5293 = vmul.f32 %v5156, %v5205
        %v5294 = vmul.f32 %v5156, %v5207
        %v5295 = vmul.f32 %v5156, %v5209
        %v5296 = vmul.f32 %v5156, %v5211
        %v5297 = vmul.f32 %v5156, %v5213
        %v5298 = vmul.f32 %v5156, %v5215
        %v5299 = vmul.f32 %v5156, %v5217
        %v5300 = vmul.f32 %v5156, %v5219
        %v5301 = vmul.f32 %v5156, %v5221
        %v5302 = vmul.f32 %v5156, %v5223
        %v5303 = vmul.f32 %v5156, %v5225
        %v5304 = vmul.f32 %v5156, %v5227
        %v5305 = vmul.f32 %v5156, %v5229
        %v5306 = vmul.f32 %v5156, %v5231
        %v5307 = vmul.f32 %v5156, %v5233
        %v5308 = vmul.f32 %v5156, %v5235
        %v5309 = vmul.f32 %v5156, %v5237
        %v5310 = vmul.f32 %v5156, %v5239
        %v5311 = vmul.f32 %v5156, %v5241
        %v5312 = vmul.f32 %v5156, %v5243
        %v5313 = vmul.f32 %v5156, %v5245
        %v5314 = vmul.f32 %v5156, %v5247
        %v5315 = vmul.f32 %v5156, %v5249
        %v5316 = vmul.f32 %v5156, %v5251
        %v5317 = vmul.f32 %v5156, %v5253
        %5350 = vrot.lane.b32.xlu0 %v5286, 64
        %v5351 = vpop.permute.xlu0 %5350
        %5352 = vrot.lane.b32.xlu0 %v5287, 64
        %v5353 = vpop.permute.xlu0 %5352
        %5354 = vrot.lane.b32.xlu0 %v5288, 64
        %v5355 = vpop.permute.xlu0 %5354
        %5356 = vrot.lane.b32.xlu0 %v5289, 64
        %v5357 = vpop.permute.xlu0 %5356
        %5358 = vrot.lane.b32.xlu0 %v5290, 64
        %v5359 = vpop.permute.xlu0 %5358
        %5360 = vrot.lane.b32.xlu0 %v5291, 64
        %v5361 = vpop.permute.xlu0 %5360
        %5362 = vrot.lane.b32.xlu0 %v5292, 64
        %v5363 = vpop.permute.xlu0 %5362
        %5364 = vrot.lane.b32.xlu0 %v5293, 64
        %v5365 = vpop.permute.xlu0 %5364
        %5366 = vrot.lane.b32.xlu0 %v5294, 64
        %v5367 = vpop.permute.xlu0 %5366
        %5368 = vrot.lane.b32.xlu0 %v5295, 64
        %v5369 = vpop.permute.xlu0 %5368
        %5370 = vrot.lane.b32.xlu0 %v5296, 64
        %v5371 = vpop.permute.xlu0 %5370
        %5372 = vrot.lane.b32.xlu0 %v5297, 64
        %v5373 = vpop.permute.xlu0 %5372
        %5374 = vrot.lane.b32.xlu0 %v5298, 64
        %v5375 = vpop.permute.xlu0 %5374
        %5376 = vrot.lane.b32.xlu0 %v5299, 64
        %v5377 = vpop.permute.xlu0 %5376
        %5378 = vrot.lane.b32.xlu0 %v5300, 64
        %v5379 = vpop.permute.xlu0 %5378
        %5380 = vrot.lane.b32.xlu0 %v5301, 64
        %v5381 = vpop.permute.xlu0 %5380
        %5382 = vrot.lane.b32.xlu0 %v5302, 64
        %v5383 = vpop.permute.xlu0 %5382
        %5384 = vrot.lane.b32.xlu0 %v5303, 64
        %v5385 = vpop.permute.xlu0 %5384
        %5386 = vrot.lane.b32.xlu0 %v5304, 64
        %v5387 = vpop.permute.xlu0 %5386
        %5388 = vrot.lane.b32.xlu0 %v5305, 64
        %v5389 = vpop.permute.xlu0 %5388
        %5390 = vrot.lane.b32.xlu0 %v5306, 64
        %v5391 = vpop.permute.xlu0 %5390
        %5392 = vrot.lane.b32.xlu0 %v5307, 64
        %v5393 = vpop.permute.xlu0 %5392
        %5394 = vrot.lane.b32.xlu0 %v5308, 64
        %v5395 = vpop.permute.xlu0 %5394
        %5396 = vrot.lane.b32.xlu0 %v5309, 64
        %v5397 = vpop.permute.xlu0 %5396
        %5398 = vrot.lane.b32.xlu0 %v5310, 64
        %v5399 = vpop.permute.xlu0 %5398
        %5400 = vrot.lane.b32.xlu0 %v5311, 64
        %v5401 = vpop.permute.xlu0 %5400
        %5402 = vrot.lane.b32.xlu0 %v5312, 64
        %v5403 = vpop.permute.xlu0 %5402
        %5404 = vrot.lane.b32.xlu0 %v5313, 64
        %v5405 = vpop.permute.xlu0 %5404
        %5406 = vrot.lane.b32.xlu0 %v5314, 64
        %v5407 = vpop.permute.xlu0 %5406
        %5408 = vrot.lane.b32.xlu0 %v5315, 64
        %v5409 = vpop.permute.xlu0 %5408
        %5410 = vrot.lane.b32.xlu0 %v5316, 64
        %v5411 = vpop.permute.xlu0 %5410
        %5412 = vrot.lane.b32.xlu0 %v5317, 64
        %v5413 = vpop.permute.xlu0 %5412
        %v5446 = vsel %vm5119, %v5087, %v5351
        %v5447 = vsel %vm5120, %v5088, %v5353
        %v5448 = vsel %vm5121, %v5089, %v5355
        %v5449 = vsel %vm5122, %v5090, %v5357
        %v5450 = vsel %vm5123, %v5091, %v5359
        %v5451 = vsel %vm5124, %v5092, %v5361
        %v5452 = vsel %vm5125, %v5093, %v5363
        %v5453 = vsel %vm5126, %v5094, %v5365
        %v5454 = vsel %vm5127, %v5095, %v5367
        %v5455 = vsel %vm5128, %v5096, %v5369
        %v5456 = vsel %vm5129, %v5097, %v5371
        %v5457 = vsel %vm5130, %v5098, %v5373
        %v5458 = vsel %vm5131, %v5099, %v5375
        %v5459 = vsel %vm5132, %v5100, %v5377
        %v5460 = vsel %vm5133, %v5101, %v5379
        %v5461 = vsel %vm5134, %v5102, %v5381
        %v5462 = vsel %vm5135, %v5103, %v5383
        %v5463 = vsel %vm5136, %v5104, %v5385
        %v5464 = vsel %vm5137, %v5105, %v5387
        %v5465 = vsel %vm5138, %v5106, %v5389
        %v5466 = vsel %vm5139, %v5107, %v5391
        %v5467 = vsel %vm5140, %v5108, %v5393
        %v5468 = vsel %vm5141, %v5109, %v5395
        %v5469 = vsel %vm5142, %v5110, %v5397
        %v5470 = vsel %vm5143, %v5111, %v5399
        %v5471 = vsel %vm5144, %v5112, %v5401
        %v5472 = vsel %vm5145, %v5113, %v5403
        %v5473 = vsel %vm5146, %v5114, %v5405
        %v5474 = vsel %vm5147, %v5115, %v5407
        %v5475 = vsel %vm5148, %v5116, %v5409
        %v5476 = vsel %vm5149, %v5117, %v5411
        %v5477 = vsel %vm5150, %v5118, %v5413
        %v5478 = vpack.c.bf16 %v5447, %v5446
        %v5479 = vpack.c.bf16 %v5449, %v5448
        %v5480 = vpack.c.bf16 %v5451, %v5450
        %v5481 = vpack.c.bf16 %v5453, %v5452
        %v5482 = vpack.c.bf16 %v5455, %v5454
        %v5483 = vpack.c.bf16 %v5457, %v5456
        %v5484 = vpack.c.bf16 %v5459, %v5458
        %v5485 = vpack.c.bf16 %v5461, %v5460
        %v5486 = vpack.c.bf16 %v5463, %v5462
        %v5487 = vpack.c.bf16 %v5465, %v5464
        %v5488 = vpack.c.bf16 %v5467, %v5466
        %v5489 = vpack.c.bf16 %v5469, %v5468
        %v5490 = vpack.c.bf16 %v5471, %v5470
        %v5491 = vpack.c.bf16 %v5473, %v5472
        %v5492 = vpack.c.bf16 %v5475, %v5474
        %v5493 = vpack.c.bf16 %v5477, %v5476
        %v5510 = vunpack.c.l.b16 %v5478
        %v5511 = vunpack.c.h.b16 %v5478
        %v5512 = vunpack.c.l.b16 %v5479
        %v5513 = vunpack.c.h.b16 %v5479
        %v5514 = vunpack.c.l.b16 %v5480
        %v5515 = vunpack.c.h.b16 %v5480
        %v5516 = vunpack.c.l.b16 %v5481
        %v5517 = vunpack.c.h.b16 %v5481
        %v5518 = vunpack.c.l.b16 %v5482
        %v5519 = vunpack.c.h.b16 %v5482
        %v5520 = vunpack.c.l.b16 %v5483
        %v5521 = vunpack.c.h.b16 %v5483
        %v5522 = vunpack.c.l.b16 %v5484
        %v5523 = vunpack.c.h.b16 %v5484
        %v5524 = vunpack.c.l.b16 %v5485
        %v5525 = vunpack.c.h.b16 %v5485
        %v5526 = vunpack.c.l.b16 %v5486
        %v5527 = vunpack.c.h.b16 %v5486
        %v5528 = vunpack.c.l.b16 %v5487
        %v5529 = vunpack.c.h.b16 %v5487
        %v5530 = vunpack.c.l.b16 %v5488
        %v5531 = vunpack.c.h.b16 %v5488
        %v5532 = vunpack.c.l.b16 %v5489
        %v5533 = vunpack.c.h.b16 %v5489
        %v5534 = vunpack.c.l.b16 %v5490
        %v5535 = vunpack.c.h.b16 %v5490
        %v5536 = vunpack.c.l.b16 %v5491
        %v5537 = vunpack.c.h.b16 %v5491
        %v5538 = vunpack.c.l.b16 %v5492
        %v5539 = vunpack.c.h.b16 %v5492
        %v5540 = vunpack.c.l.b16 %v5493
        %v5541 = vunpack.c.h.b16 %v5493
        %v5542 = vpack.c.b16 %v5510, %v5510
        %v5543 = vpack.c.b16 %v5511, %v5511
        %v5544 = vpack.c.b16 %v5512, %v5512
        %v5545 = vpack.c.b16 %v5513, %v5513
        %v5546 = vpack.c.b16 %v5514, %v5514
        %v5547 = vpack.c.b16 %v5515, %v5515
        %v5548 = vpack.c.b16 %v5516, %v5516
        %v5549 = vpack.c.b16 %v5517, %v5517
        %v5550 = vpack.c.b16 %v5518, %v5518
        %v5551 = vpack.c.b16 %v5519, %v5519
        %v5552 = vpack.c.b16 %v5520, %v5520
        %v5553 = vpack.c.b16 %v5521, %v5521
        %v5554 = vpack.c.b16 %v5522, %v5522
        %v5555 = vpack.c.b16 %v5523, %v5523
        %v5556 = vpack.c.b16 %v5524, %v5524
        %v5557 = vpack.c.b16 %v5525, %v5525
        %v5558 = vpack.c.b16 %v5526, %v5526
        %v5559 = vpack.c.b16 %v5527, %v5527
        %v5560 = vpack.c.b16 %v5528, %v5528
        %v5561 = vpack.c.b16 %v5529, %v5529
        %v5562 = vpack.c.b16 %v5530, %v5530
        %v5563 = vpack.c.b16 %v5531, %v5531
        %v5564 = vpack.c.b16 %v5532, %v5532
        %v5565 = vpack.c.b16 %v5533, %v5533
        %v5566 = vpack.c.b16 %v5534, %v5534
        %v5567 = vpack.c.b16 %v5535, %v5535
        %v5568 = vpack.c.b16 %v5536, %v5536
        %v5569 = vpack.c.b16 %v5537, %v5537
        %v5570 = vpack.c.b16 %v5538, %v5538
        %v5571 = vpack.c.b16 %v5539, %v5539
        %v5572 = vpack.c.b16 %v5540, %v5540
        %v5573 = vpack.c.b16 %v5541, %v5541
        %5574 = vrot.lane.b32.xlu0 %v5542, 64
        %v5575 = vpop.permute.xlu0 %5574
        %5576 = vrot.lane.b32.xlu0 %v5543, 64
        %v5577 = vpop.permute.xlu0 %5576
        %5578 = vrot.lane.b32.xlu0 %v5544, 64
        %v5579 = vpop.permute.xlu0 %5578
        %5580 = vrot.lane.b32.xlu0 %v5545, 64
        %v5581 = vpop.permute.xlu0 %5580
        %5582 = vrot.lane.b32.xlu0 %v5546, 64
        %v5583 = vpop.permute.xlu0 %5582
        %5584 = vrot.lane.b32.xlu0 %v5547, 64
        %v5585 = vpop.permute.xlu0 %5584
        %5586 = vrot.lane.b32.xlu0 %v5548, 64
        %v5587 = vpop.permute.xlu0 %5586
        %5588 = vrot.lane.b32.xlu0 %v5549, 64
        %v5589 = vpop.permute.xlu0 %5588
        %5590 = vrot.lane.b32.xlu0 %v5550, 64
        %v5591 = vpop.permute.xlu0 %5590
        %5592 = vrot.lane.b32.xlu0 %v5551, 64
        %v5593 = vpop.permute.xlu0 %5592
        %5594 = vrot.lane.b32.xlu0 %v5552, 64
        %v5595 = vpop.permute.xlu0 %5594
        %5596 = vrot.lane.b32.xlu0 %v5553, 64
        %v5597 = vpop.permute.xlu0 %5596
        %5598 = vrot.lane.b32.xlu0 %v5554, 64
        %v5599 = vpop.permute.xlu0 %5598
        %5600 = vrot.lane.b32.xlu0 %v5555, 64
        %v5601 = vpop.permute.xlu0 %5600
        %5602 = vrot.lane.b32.xlu0 %v5556, 64
        %v5603 = vpop.permute.xlu0 %5602
        %5604 = vrot.lane.b32.xlu0 %v5557, 64
        %v5605 = vpop.permute.xlu0 %5604
        %5606 = vrot.lane.b32.xlu0 %v5558, 64
        %v5607 = vpop.permute.xlu0 %5606
        %5608 = vrot.lane.b32.xlu0 %v5559, 64
        %v5609 = vpop.permute.xlu0 %5608
        %5610 = vrot.lane.b32.xlu0 %v5560, 64
        %v5611 = vpop.permute.xlu0 %5610
        %5612 = vrot.lane.b32.xlu0 %v5561, 64
        %v5613 = vpop.permute.xlu0 %5612
        %5614 = vrot.lane.b32.xlu0 %v5562, 64
        %v5615 = vpop.permute.xlu0 %5614
        %5616 = vrot.lane.b32.xlu0 %v5563, 64
        %v5617 = vpop.permute.xlu0 %5616
        %5618 = vrot.lane.b32.xlu0 %v5564, 64
        %v5619 = vpop.permute.xlu0 %5618
        %5620 = vrot.lane.b32.xlu0 %v5565, 64
        %v5621 = vpop.permute.xlu0 %5620
        %5622 = vrot.lane.b32.xlu0 %v5566, 64
        %v5623 = vpop.permute.xlu0 %5622
        %5624 = vrot.lane.b32.xlu0 %v5567, 64
        %v5625 = vpop.permute.xlu0 %5624
        %5626 = vrot.lane.b32.xlu0 %v5568, 64
        %v5627 = vpop.permute.xlu0 %5626
        %5628 = vrot.lane.b32.xlu0 %v5569, 64
        %v5629 = vpop.permute.xlu0 %5628
        %5630 = vrot.lane.b32.xlu0 %v5570, 64
        %v5631 = vpop.permute.xlu0 %5630
        %5632 = vrot.lane.b32.xlu0 %v5571, 64
        %v5633 = vpop.permute.xlu0 %5632
        %5634 = vrot.lane.b32.xlu0 %v5572, 64
        %v5635 = vpop.permute.xlu0 %5634
        %5636 = vrot.lane.b32.xlu0 %v5573, 64
        %v5637 = vpop.permute.xlu0 %5636
        %vm5670 = vcmask 519168
        %5671 = vst.msk [vmem:[%s458] sm:$0xf] %vm5670, %v5575
        %5672 = vst.msk [vmem:[%s458 + $0x4] sm:$0xf] %vm5670, %v5577
        %5673 = vst.msk [vmem:[%s458 + $0x8] sm:$0xf] %vm5670, %v5579
        %5674 = vst.msk [vmem:[%s458 + $0xc] sm:$0xf] %vm5670, %v5581
        %5675 = vst.msk [vmem:[%s458 + $0x10] sm:$0xf] %vm5670, %v5583
        %5676 = vst.msk [vmem:[%s458 + $0x14] sm:$0xf] %vm5670, %v5585
        %5677 = vst.msk [vmem:[%s458 + $0x18] sm:$0xf] %vm5670, %v5587
        %5678 = vst.msk [vmem:[%s458 + $0x1c] sm:$0xf] %vm5670, %v5589
        %5679 = vst.msk [vmem:[%s458 + $0x20] sm:$0xf] %vm5670, %v5591
        %5680 = vst.msk [vmem:[%s458 + $0x24] sm:$0xf] %vm5670, %v5593
        %5681 = vst.msk [vmem:[%s458 + $0x28] sm:$0xf] %vm5670, %v5595
        %5682 = vst.msk [vmem:[%s458 + $0x2c] sm:$0xf] %vm5670, %v5597
        %5683 = vst.msk [vmem:[%s458 + $0x30] sm:$0xf] %vm5670, %v5599
        %5684 = vst.msk [vmem:[%s458 + $0x34] sm:$0xf] %vm5670, %v5601
        %5685 = vst.msk [vmem:[%s458 + $0x38] sm:$0xf] %vm5670, %v5603
        %5686 = vst.msk [vmem:[%s458 + $0x3c] sm:$0xf] %vm5670, %v5605
        %5687 = vst.msk [vmem:[%s458 + $0x40] sm:$0xf] %vm5670, %v5607
        %5688 = vst.msk [vmem:[%s458 + $0x44] sm:$0xf] %vm5670, %v5609
        %5689 = vst.msk [vmem:[%s458 + $0x48] sm:$0xf] %vm5670, %v5611
        %5690 = vst.msk [vmem:[%s458 + $0x4c] sm:$0xf] %vm5670, %v5613
        %5691 = vst.msk [vmem:[%s458 + $0x50] sm:$0xf] %vm5670, %v5615
        %5692 = vst.msk [vmem:[%s458 + $0x54] sm:$0xf] %vm5670, %v5617
        %5693 = vst.msk [vmem:[%s458 + $0x58] sm:$0xf] %vm5670, %v5619
        %5694 = vst.msk [vmem:[%s458 + $0x5c] sm:$0xf] %vm5670, %v5621
        %5695 = vst.msk [vmem:[%s458 + $0x60] sm:$0xf] %vm5670, %v5623
        %5696 = vst.msk [vmem:[%s458 + $0x64] sm:$0xf] %vm5670, %v5625
        %5697 = vst.msk [vmem:[%s458 + $0x68] sm:$0xf] %vm5670, %v5627
        %5698 = vst.msk [vmem:[%s458 + $0x6c] sm:$0xf] %vm5670, %v5629
        %5699 = vst.msk [vmem:[%s458 + $0x70] sm:$0xf] %vm5670, %v5631
        %5700 = vst.msk [vmem:[%s458 + $0x74] sm:$0xf] %vm5670, %v5633
        %5701 = vst.msk [vmem:[%s458 + $0x78] sm:$0xf] %vm5670, %v5635
        %5702 = vst.msk [vmem:[%s458 + $0x7c] sm:$0xf] %vm5670, %v5637
        %s5703 = sand.u32 %s231, 1
        %s5704 = scalar_lea.sflag [#allocation5], %s5703
        %s5705 = sand.u32 %s231, 1
        %s5706 = smul.addr %s5705, 128
        %s5707 = scalar_lea.vmem [#allocation17], %s5706
        // Predicated region
        $region85: #{deconv_forward.4} parent=51 // pred_check
          %p5708 = pneg %p241
        $region86: #{deconv_forward.4} parent=51 // pred_check_branch
          %5710 = sbr.rel (%p5708) target = $region88
        $region87: #{deconv_forward.4} parent=51 // pred_region
          %s5711 = smul.u32 8, %s36
          %s5713 = ssub.s32 2048, 2048
          %5714 = vsyncadd %s5704, %s5713
          %s5715 = smul.addr %s5711, 4
          %s5716 = smul.addr %s35, 128
          %s5717 = sadd.s32 %s5715, %s5716
          %s5718 = smul.addr %s5717, 64
          %s5719 = scalar_lea.hbm %s8, %s5718
          %s5720 = sshll.u32 %s5707, 4
          %s5721 = int_to_ptr.vmem [resolvable:$true] %s5720
          %5726 = dma.vmem_to_hbm [thread:$0]  %s5721, 2048, %s5719, %s5704, 64, 64, 4
        $region88: #{deconv_forward.4} parent=51 // pred_fallthru
          _
      $region52: #{deconv_forward.4} parent=5 // pred_fallthru
        _
      %p5727 = scmp.le.s32.totalorder 2, %s26
      // Predicated region
      $region89: #{deconv_forward.4} parent=5 // pred_check
        %p5728 = pneg %p5727
      $region90: #{deconv_forward.4} parent=5 // pred_check_branch
        %5730 = sbr.rel (%p5728) target = $region92
      $region91: #{deconv_forward.4} parent=5 // pred_region
        %s5731 = ssub.s32 %s26, 2
        // Predicated region
        $region93: #{deconv_forward.4} parent=91 // pred_check
          %p5732 = pneg %p247
        $region94: #{deconv_forward.4} parent=91 // pred_check_branch
          %5734 = sbr.rel (%p5732) target = $region96
        $region95: #{deconv_forward.4} parent=91 // pred_region
          %s5735 = sand.u32 %s232, 1
          %s5736 = scalar_lea.sflag [#allocation5], %s5735
          %s5737 = sand.u32 %s232, 1
          %s5738 = smul.addr %s5737, 128
          %s5739 = scalar_lea.vmem [#allocation17], %s5738
          %5740 = dma.done %s5736, 2048
        $region96: #{deconv_forward.4} parent=91 // pred_fallthru
          _
      $region92: #{deconv_forward.4} parent=5 // pred_fallthru
        _
    $region6: #{deconv_forward.4} parent=1 // loop_footer
      %s30 = sadd.s32 1, %s26
    $region7: #{deconv_forward.4} parent=1 // loop_footer_branch
      %25 = sbr.rel target = $region3
    $region8: #{deconv_forward.4} parent=1 // loop_exit
      _
    %5741 = vsyncpa [#allocation4], 1
    %s5742 = scalar_lea.sflag [#allocation4], 1
    %5743 = vsyncpa %s5742, 1
    %5744 = vsyncpa [#allocation7], 1
    %s5745 = scalar_lea.sflag [#allocation7], 1
    %5746 = vsyncpa %s5745, 1
    %5747 = vsyncpa [#allocation10], 1
    %5748 = vsyncpa [#allocation13], 1
    %5749 = vsyncpa [#allocation16], 1
    %5750 = vsyncpa [#allocation5], 1
    %s5751 = scalar_lea.sflag [#allocation5], 1
    %5752 = vsyncpa %s5751, 1

// kernel: deconv_forward.5
$region0: #{deconv_forward.5}
  #allocation0 [shape = 'u32[]', space=smem, size = 0x4, offset = 0x4, fixed_abs, tag = 'smem constant byte address 0x4 - core index']
  #allocation1 [shape = 'u32[144,128]{1,0:T(1,128)}', space=vmem, size = 0x12000, scoped, tag = 'internal scratch']
  #allocation2 [shape = 'f32[256,192]{1,0:T(8,128)}', space=vmem, size = 0x40000, scoped, tag = 'scratch operand']
  %s0 = inlined_call_operand.hbm [shape: bf16[2,34,32,64], index: 0, kind: input, shape index: {}]
  %s1 = inlined_call_operand.hbm [shape: bf16[3,64,192], index: 1, kind: input, shape index: {}]
  %s2 = inlined_call_operand.hbm [shape: bf16[2,256,256], index: 2, kind: input, shape index: {}]
  %s3 = inlined_call_operand.hbm [shape: f32[1,64], index: 3, kind: input, shape index: {}]
  %s4 = inlined_call_operand.hbm [shape: f32[1,64], index: 4, kind: input, shape index: {}]
  %s5 = inlined_call_operand.hbm [shape: f32[1,64], index: 5, kind: input, shape index: {}]
  %s6 = inlined_call_operand.hbm [shape: f32[2,32,32,64], index: 6, kind: output, shape index: {}]
  %s7 = sld [smem:[#allocation0]]
  $region81: #{deconv_forward.5} parent=0
    _
  %s9 = ssub.s32 1, %s7
  %s10 = scalar_select 0, %s9, %s7
  $region1: #{deconv_forward.5} parent=0
    #allocation3 [shape = 'u8[557056]{0}', space=vmem, size = 0x88000, scoped, tag = 'input window, operand 0']
    #allocation4 [shape = 's32[2]{0}', space=sflag, size = 0x8, scoped, tag = 'scoped memory for deconv_forward.5']
    #allocation5 [shape = 's32[2]{0}', space=sflag, size = 0x8, scoped, tag = 'scoped memory for deconv_forward.5']
    #allocation6 [shape = 'u8[98304]{0}', space=vmem, size = 0x18000, scoped, tag = 'input window, operand 1, single buffered']
    #allocation7 [shape = 's32[1]{0}', space=sflag, size = 0x4, scoped, tag = 'scoped memory for deconv_forward.5']
    #allocation8 [shape = 'u8[262144]{0}', space=vmem, size = 0x40000, scoped, tag = 'input window, operand 2, single buffered']
    #allocation9 [shape = 'u8[512]{0}', space=vmem, size = 0x400, scoped, tag = 'input window, operand 3, single buffered']
    #allocation10 [shape = 's32[1]{0}', space=sflag, size = 0x4, scoped, tag = 'scoped memory for deconv_forward.5']
    #allocation11 [shape = 'u8[512]{0}', space=vmem, size = 0x400, scoped, tag = 'input window, operand 4, single buffered']
    #allocation12 [shape = 'u8[512]{0}', space=vmem, size = 0x400, scoped, tag = 'input window, operand 5, single buffered']
    #allocation13 [shape = 's32[1]{0}', space=sflag, size = 0x4, scoped, tag = 'scoped memory for deconv_forward.5']
    #allocation14 [shape = 'u8[262144]{0}', space=vmem, size = 0x40000, scoped, tag = 'output window, operand 0']
    %11 = vsyncpa [#allocation4], 0
    %s12 = scalar_lea.sflag [#allocation4], 1
    %13 = vsyncpa %s12, 0
    %14 = vsyncpa [#allocation7], 0
    %15 = vsyncpa [#allocation10], 0
    %16 = vsyncpa [#allocation13], 0
    %17 = vsyncpa [#allocation5], 0
    %s18 = scalar_lea.sflag [#allocation5], 1
    %19 = vsyncpa %s18, 0
    loop: start=0, step=1, limit=10
    $region2: #{deconv_forward.5} parent=1 // loop_pre_header
      _
    $region3: #{deconv_forward.5} parent=1 // loop_header
      %s21 = sphi 0, %s25
      %p22 = scmp.ge.s32.totalorder %s21, 10
      %s28 = sphi 0, %s40
      %s29 = sphi 0, %s36
      %s30 = sphi 0, %s28
      %s31 = sphi 0, %s29
      %s32 = sphi 0, %s30
      %s33 = sphi 0, %s31
      %s43 = sphi 0, %s45
      %s46 = sphi 0, %s43
      %s47 = sphi 0, %s46
      %s63 = sphi 0, %s47
      %s67 = sphi 0, %s67
      %s69 = sphi 0, %s67
      %s70 = sphi 0, %s69
      %s84 = sphi 0, %s70
      %s88 = sphi 0, %s88
      %s90 = sphi 0, %s88
      %s91 = sphi 0, %s90
      %s105 = sphi 0, %s91
      %s109 = sphi 0, %s109
      %s111 = sphi 0, %s109
      %s112 = sphi 0, %s111
      %s126 = sphi 0, %s112
      %s130 = sphi 0, %s130
      %s132 = sphi 0, %s130
      %s133 = sphi 0, %s132
      %s147 = sphi 0, %s133
      %s151 = sphi 0, %s151
      %s153 = sphi 0, %s151
      %s154 = sphi 0, %s153
      %s168 = sphi 0, %s154
      %s176 = sphi 0, %s178
      %s179 = sphi 0, %s176
      %s180 = sphi 0, %s179
      %s196 = sphi 0, %s180
    $region4: #{deconv_forward.5} parent=1 // loop_header_branch
      %24 = sbr.rel (%p22) target = $region8
    $region5: #{deconv_forward.5} parent=1 // loop_body
      %s26 = ssub.s32 %s21, 1
      %s27 = ssub.s32 %s21, 2
      %s34 = sadd.s32 1, %s29
      %p35 = scmp.ge.s32.totalorder %s34, 4
      %s36 = scalar_select %p35, 0, %s34
      %s37 = sadd.s32 1, %s28
      %s38 = scalar_select %p35, %s37, %s28
      %p39 = scmp.ge.s32.totalorder %s38, 2
      %s40 = scalar_select %p39, 0, %s38
      %s41 = ssub.s32 %s28, %s40
      %p42 = scmp.eq.s32.totalorder %s41, 0
      %s44 = sadd.s32 %s43, 1
      %s45 = scalar_select %p42, %s43, %s44
      %p48 = pneg %p42
      %p49 = scmp.eq.s32.totalorder %s21, 7
      %p50 = por %p48, %p49
      %p51 = scmp.ne.s32.totalorder %s43, %s46
      %p52 = scmp.eq.s32.totalorder %s21, 0
      %p53 = por %p51, %p52
      %p54 = scmp.ne.s32.totalorder %s43, %s46
      %p55 = scmp.eq.s32.totalorder %s26, 7
      %p56 = por %p54, %p55
      %p57 = scmp.ne.s32.totalorder %s46, %s47
      %p58 = scmp.eq.s32.totalorder %s26, 0
      %p59 = por %p57, %p58
      %p60 = scmp.ne.s32.totalorder %s46, %s47
      %p61 = scmp.eq.s32.totalorder %s27, 7
      %p62 = por %p60, %p61
      %p64 = scmp.ne.s32.totalorder %s47, %s63
      %p65 = scmp.eq.s32.totalorder %s27, 0
      %p66 = por %p64, %p65
      %s68 = sadd.s32 %s67, 1
      %p71 = scmp.eq.s32.totalorder %s21, 7
      %p72 = scmp.ne.s32.totalorder %s67, %s69
      %p73 = scmp.eq.s32.totalorder %s21, 0
      %p74 = por %p72, %p73
      %p75 = scmp.ne.s32.totalorder %s67, %s69
      %p76 = scmp.eq.s32.totalorder %s26, 7
      %p77 = por %p75, %p76
      %p78 = scmp.ne.s32.totalorder %s69, %s70
      %p79 = scmp.eq.s32.totalorder %s26, 0
      %p80 = por %p78, %p79
      %p81 = scmp.ne.s32.totalorder %s69, %s70
      %p82 = scmp.eq.s32.totalorder %s27, 7
      %p83 = por %p81, %p82
      %p85 = scmp.ne.s32.totalorder %s70, %s84
      %p86 = scmp.eq.s32.totalorder %s27, 0
      %p87 = por %p85, %p86
      %s89 = sadd.s32 %s88, 1
      %p92 = scmp.eq.s32.totalorder %s21, 7
      %p93 = scmp.ne.s32.totalorder %s88, %s90
      %p94 = scmp.eq.s32.totalorder %s21, 0
      %p95 = por %p93, %p94
      %p96 = scmp.ne.s32.totalorder %s88, %s90
      %p97 = scmp.eq.s32.totalorder %s26, 7
      %p98 = por %p96, %p97
      %p99 = scmp.ne.s32.totalorder %s90, %s91
      %p100 = scmp.eq.s32.totalorder %s26, 0
      %p101 = por %p99, %p100
      %p102 = scmp.ne.s32.totalorder %s90, %s91
      %p103 = scmp.eq.s32.totalorder %s27, 7
      %p104 = por %p102, %p103
      %p106 = scmp.ne.s32.totalorder %s91, %s105
      %p107 = scmp.eq.s32.totalorder %s27, 0
      %p108 = por %p106, %p107
      %s110 = sadd.s32 %s109, 1
      %p113 = scmp.eq.s32.totalorder %s21, 7
      %p114 = scmp.ne.s32.totalorder %s109, %s111
      %p115 = scmp.eq.s32.totalorder %s21, 0
      %p116 = por %p114, %p115
      %p117 = scmp.ne.s32.totalorder %s109, %s111
      %p118 = scmp.eq.s32.totalorder %s26, 7
      %p119 = por %p117, %p118
      %p120 = scmp.ne.s32.totalorder %s111, %s112
      %p121 = scmp.eq.s32.totalorder %s26, 0
      %p122 = por %p120, %p121
      %p123 = scmp.ne.s32.totalorder %s111, %s112
      %p124 = scmp.eq.s32.totalorder %s27, 7
      %p125 = por %p123, %p124
      %p127 = scmp.ne.s32.totalorder %s112, %s126
      %p128 = scmp.eq.s32.totalorder %s27, 0
      %p129 = por %p127, %p128
      %s131 = sadd.s32 %s130, 1
      %p134 = scmp.eq.s32.totalorder %s21, 7
      %p135 = scmp.ne.s32.totalorder %s130, %s132
      %p136 = scmp.eq.s32.totalorder %s21, 0
      %p137 = por %p135, %p136
      %p138 = scmp.ne.s32.totalorder %s130, %s132
      %p139 = scmp.eq.s32.totalorder %s26, 7
      %p140 = por %p138, %p139
      %p141 = scmp.ne.s32.totalorder %s132, %s133
      %p142 = scmp.eq.s32.totalorder %s26, 0
      %p143 = por %p141, %p142
      %p144 = scmp.ne.s32.totalorder %s132, %s133
      %p145 = scmp.eq.s32.totalorder %s27, 7
      %p146 = por %p144, %p145
      %p148 = scmp.ne.s32.totalorder %s133, %s147
      %p149 = scmp.eq.s32.totalorder %s27, 0
      %p150 = por %p148, %p149
      %s152 = sadd.s32 %s151, 1
      %p155 = scmp.eq.s32.totalorder %s21, 7
      %p156 = scmp.ne.s32.totalorder %s151, %s153
      %p157 = scmp.eq.s32.totalorder %s21, 0
      %p158 = por %p156, %p157
      %p159 = scmp.ne.s32.totalorder %s151, %s153
      %p160 = scmp.eq.s32.totalorder %s26, 7
      %p161 = por %p159, %p160
      %p162 = scmp.ne.s32.totalorder %s153, %s154
      %p163 = scmp.eq.s32.totalorder %s26, 0
      %p164 = por %p162, %p163
      %p165 = scmp.ne.s32.totalorder %s153, %s154
      %p166 = scmp.eq.s32.totalorder %s27, 7
      %p167 = por %p165, %p166
      %p169 = scmp.ne.s32.totalorder %s154, %s168
      %p170 = scmp.eq.s32.totalorder %s27, 0
      %p171 = por %p169, %p170
      %s172 = ssub.s32 %s28, %s40
      %s173 = ssub.s32 %s29, %s36
      %s174 = sor.u32 %s172, %s173
      %p175 = scmp.eq.s32.totalorder %s174, 0
      %s177 = sadd.s32 %s176, 1
      %s178 = scalar_select %p175, %s176, %s177
      %p181 = pneg %p175
      %p182 = scmp.eq.s32.totalorder %s21, 7
      %p183 = por %p181, %p182
      %p184 = scmp.ne.s32.totalorder %s176, %s179
      %p185 = scmp.eq.s32.totalorder %s21, 0
      %p186 = por %p184, %p185
      %p187 = scmp.ne.s32.totalorder %s176, %s179
      %p188 = scmp.eq.s32.totalorder %s26, 7
      %p189 = por %p187, %p188
      %p190 = scmp.ne.s32.totalorder %s179, %s180
      %p191 = scmp.eq.s32.totalorder %s26, 0
      %p192 = por %p190, %p191
      %p193 = scmp.ne.s32.totalorder %s179, %s180
      %p194 = scmp.eq.s32.totalorder %s27, 7
      %p195 = por %p193, %p194
      %p197 = scmp.ne.s32.totalorder %s180, %s196
      %p198 = scmp.eq.s32.totalorder %s27, 0
      %p199 = por %p197, %p198
      %p200 = scmp.le.s32.totalorder 1, %s21
      %p201 = scmp.lt.s32.totalorder %s21, 9
      %p202 = pnand %p200, %p201
      %p203 = pneg %p202
      // Predicated region
      $region9: #{deconv_forward.5} parent=5 // pred_check
        _
      $region10: #{deconv_forward.5} parent=5 // pred_check_branch
        %205 = sbr.rel (%p202) target = $region12
      $region11: #{deconv_forward.5} parent=5 // pred_region
        %s206 = ssub.s32 %s21, 1
        // Predicated region
        $region13: #{deconv_forward.5} parent=11 // pred_check
          %p207 = pneg %p80
        $region14: #{deconv_forward.5} parent=11 // pred_check_branch
          %209 = sbr.rel (%p207) target = $region16
        $region15: #{deconv_forward.5} parent=11 // pred_region
          %s211 = ssub.s32 3072, 3072
          %212 = vsyncadd [#allocation7], %s211
          %s213 = sshll.u32 [#allocation6], 4
          %s214 = int_to_ptr.vmem [resolvable:$true] %s213
          %219 = dma.hbm_to_vmem [thread:$0]  %s1, 3072, %s214, [#allocation7], 128, 128, 8
        $region16: #{deconv_forward.5} parent=11 // pred_fallthru
          _
        // Predicated region
        $region17: #{deconv_forward.5} parent=11 // pred_check
          %p220 = pneg %p101
        $region18: #{deconv_forward.5} parent=11 // pred_check_branch
          %222 = sbr.rel (%p220) target = $region20
        $region19: #{deconv_forward.5} parent=11 // pred_region
          %s224 = ssub.s32 8192, 8192
          %225 = vsyncadd [#allocation7], %s224
          %s226 = sshll.u32 [#allocation8], 4
          %s227 = int_to_ptr.vmem [resolvable:$true] %s226
          %232 = dma.hbm_to_vmem [thread:$0]  %s2, 8192, %s227, [#allocation7], 128, 128, 8
        $region20: #{deconv_forward.5} parent=11 // pred_fallthru
          _
        // Predicated region
        $region21: #{deconv_forward.5} parent=11 // pred_check
          %p233 = pneg %p122
        $region22: #{deconv_forward.5} parent=11 // pred_check_branch
          %235 = sbr.rel (%p233) target = $region24
        $region23: #{deconv_forward.5} parent=11 // pred_region
          %s237 = ssub.s32 16, 16
          %238 = vsyncadd [#allocation10], %s237
          %s240 = sshll.u32 [#allocation9], 4
          %s241 = int_to_ptr.vmem [resolvable:$true] %s240
          %243 = dma.hbm_to_vmem [thread:$0]  %s3, 16, %s241, [#allocation10]
        $region24: #{deconv_forward.5} parent=11 // pred_fallthru
          _
        // Predicated region
        $region25: #{deconv_forward.5} parent=11 // pred_check
          %p244 = pneg %p143
        $region26: #{deconv_forward.5} parent=11 // pred_check_branch
          %246 = sbr.rel (%p244) target = $region28
        $region27: #{deconv_forward.5} parent=11 // pred_region
          %s248 = ssub.s32 16, 16
          %249 = vsyncadd [#allocation10], %s248
          %s251 = sshll.u32 [#allocation11], 4
          %s252 = int_to_ptr.vmem [resolvable:$true] %s251
          %254 = dma.hbm_to_vmem [thread:$0]  %s4, 16, %s252, [#allocation10]
        $region28: #{deconv_forward.5} parent=11 // pred_fallthru
          _
        // Predicated region
        $region29: #{deconv_forward.5} parent=11 // pred_check
          %p255 = pneg %p164
        $region30: #{deconv_forward.5} parent=11 // pred_check_branch
          %257 = sbr.rel (%p255) target = $region32
        $region31: #{deconv_forward.5} parent=11 // pred_region
          %s259 = ssub.s32 16, 16
          %260 = vsyncadd [#allocation13], %s259
          %s262 = sshll.u32 [#allocation12], 4
          %s263 = int_to_ptr.vmem [resolvable:$true] %s262
          %265 = dma.hbm_to_vmem [thread:$0]  %s5, 16, %s263, [#allocation13]
        $region32: #{deconv_forward.5} parent=11 // pred_fallthru
          _
      $region12: #{deconv_forward.5} parent=5 // pred_fallthru
        _
      %p266 = scmp.lt.s32.totalorder %s21, 8
      // Predicated region
      $region33: #{deconv_forward.5} parent=5 // pred_check
        %p267 = pneg %p266
      $region34: #{deconv_forward.5} parent=5 // pred_check_branch
        %269 = sbr.rel (%p267) target = $region36
      $region35: #{deconv_forward.5} parent=5 // pred_region
        // Predicated region
        $region37: #{deconv_forward.5} parent=35 // pred_check
          %p270 = pneg %p53
        $region38: #{deconv_forward.5} parent=35 // pred_check_branch
          %272 = sbr.rel (%p270) target = $region40
        $region39: #{deconv_forward.5} parent=35 // pred_region
          %s273 = sand.u32 %s43, 1
          %s274 = scalar_lea.sflag [#allocation4], %s273
          %s275 = sand.u32 %s43, 1
          %s276 = smul.addr %s275, 544
          %s277 = scalar_lea.vmem [#allocation3], %s276
          %s279 = ssub.s32 8704, 8704
          %280 = vsyncadd %s274, %s279
          %s281 = smul.addr %s28, 136
          %s282 = smul.addr %s281, 64
          %s283 = scalar_lea.hbm %s0, %s282
          %s284 = sshll.u32 %s277, 4
          %s285 = int_to_ptr.vmem [resolvable:$true] %s284
          %290 = dma.hbm_to_vmem [thread:$0]  %s283, 8704, %s285, %s274, 64, 64, 4
        $region40: #{deconv_forward.5} parent=35 // pred_fallthru
          _
      $region36: #{deconv_forward.5} parent=5 // pred_fallthru
        _
      %p291 = scmp.le.s32.totalorder 1, %s21
      %p292 = scmp.lt.s32.totalorder %s21, 9
      %p293 = pnand %p291, %p292
      %p294 = pneg %p293
      // Predicated region
      $region41: #{deconv_forward.5} parent=5 // pred_check
        _
      $region42: #{deconv_forward.5} parent=5 // pred_check_branch
        %296 = sbr.rel (%p293) target = $region44
      $region43: #{deconv_forward.5} parent=5 // pred_region
        %s297 = ssub.s32 %s21, 1
        %s298 = sand.u32 %s46, 1
        %s299 = scalar_lea.sflag [#allocation4], %s298
        %s300 = sand.u32 %s46, 1
        %s301 = smul.addr %s300, 544
        %s302 = scalar_lea.vmem [#allocation3], %s301
        // Predicated region
        $region45: #{deconv_forward.5} parent=43 // pred_check
          %p303 = pneg %p59
        $region46: #{deconv_forward.5} parent=43 // pred_check_branch
          %305 = sbr.rel (%p303) target = $region48
        $region47: #{deconv_forward.5} parent=43 // pred_region
          %306 = dma.done %s299, 8704
        $region48: #{deconv_forward.5} parent=43 // pred_fallthru
          _
        // Predicated region
        $region49: #{deconv_forward.5} parent=43 // pred_check
          %p307 = pneg %p80
        $region50: #{deconv_forward.5} parent=43 // pred_check_branch
          %309 = sbr.rel (%p307) target = $region52
        $region51: #{deconv_forward.5} parent=43 // pred_region
          %310 = dma.done [#allocation7], 3072
        $region52: #{deconv_forward.5} parent=43 // pred_fallthru
          _
        // Predicated region
        $region53: #{deconv_forward.5} parent=43 // pred_check
          %p311 = pneg %p101
        $region54: #{deconv_forward.5} parent=43 // pred_check_branch
          %313 = sbr.rel (%p311) target = $region56
        $region55: #{deconv_forward.5} parent=43 // pred_region
          %314 = dma.done [#allocation7], 8192
        $region56: #{deconv_forward.5} parent=43 // pred_fallthru
          _
        // Predicated region
        $region57: #{deconv_forward.5} parent=43 // pred_check
          %p315 = pneg %p122
        $region58: #{deconv_forward.5} parent=43 // pred_check_branch
          %317 = sbr.rel (%p315) target = $region60
        $region59: #{deconv_forward.5} parent=43 // pred_region
          %318 = dma.done [#allocation10], 16
        $region60: #{deconv_forward.5} parent=43 // pred_fallthru
          _
        // Predicated region
        $region61: #{deconv_forward.5} parent=43 // pred_check
          %p319 = pneg %p143
        $region62: #{deconv_forward.5} parent=43 // pred_check_branch
          %321 = sbr.rel (%p319) target = $region64
        $region63: #{deconv_forward.5} parent=43 // pred_region
          %322 = dma.done [#allocation10], 16
        $region64: #{deconv_forward.5} parent=43 // pred_fallthru
          _
        // Predicated region
        $region65: #{deconv_forward.5} parent=43 // pred_check
          %p323 = pneg %p164
        $region66: #{deconv_forward.5} parent=43 // pred_check_branch
          %325 = sbr.rel (%p323) target = $region68
        $region67: #{deconv_forward.5} parent=43 // pred_region
          %326 = dma.done [#allocation13], 16
        $region68: #{deconv_forward.5} parent=43 // pred_fallthru
          _
        %s327 = sand.u32 %s46, 1
        %s328 = scalar_lea.sflag [#allocation4], %s327
        %s329 = sand.u32 %s46, 1
        %s330 = smul.addr %s329, 544
        %s331 = scalar_lea.vmem [#allocation3], %s330
        %p332 = pneg %p59
        %p333 = pneg %p56
        %p334 = pneg %p80
        %p335 = pneg %p77
        %p336 = pneg %p101
        %p337 = pneg %p98
        %p338 = pneg %p122
        %p339 = pneg %p119
        %p340 = pneg %p143
        %p341 = pneg %p140
        %p342 = pneg %p164
        %p343 = pneg %p161
        %p344 = pneg %p192
        %p345 = pneg %p189
        %s346 = sand.u32 %s179, 1
        %s347 = scalar_lea.sflag [#allocation5], %s346
        %s348 = sand.u32 %s179, 1
        %s349 = smul.addr %s348, 256
        %s350 = scalar_lea.vmem [#allocation14], %s349
        %s351 = smul.u32 8, %s31
        %s353 = smul.u32 %s31, 8
        %s354 = smul.u32 %s353, 4
        %s355 = smul.addr %s354, 4
        %s356 = scalar_lea.vmem %s302, %s355 [#allocation3]
        %v357 = vld [vmem:[%s356] sm:$0xf]
        %v358 = vld [vmem:[%s356 + $0x4] sm:$0xf]
        %v359 = vld [vmem:[%s356 + $0x8] sm:$0xf]
        %v360 = vld [vmem:[%s356 + $0xc] sm:$0xf]
        %v361 = vld [vmem:[%s356 + $0x10] sm:$0xf]
        %v362 = vld [vmem:[%s356 + $0x14] sm:$0xf]
        %v363 = vld [vmem:[%s356 + $0x18] sm:$0xf]
        %v364 = vld [vmem:[%s356 + $0x1c] sm:$0xf]
        %v365 = vld [vmem:[%s356 + $0x20] sm:$0xf]
        %v366 = vld [vmem:[%s356 + $0x24] sm:$0xf]
        %v367 = vld [vmem:[%s356 + $0x28] sm:$0xf]
        %v368 = vld [vmem:[%s356 + $0x2c] sm:$0xf]
        %v369 = vld [vmem:[%s356 + $0x30] sm:$0xf]
        %v370 = vld [vmem:[%s356 + $0x34] sm:$0xf]
        %v371 = vld [vmem:[%s356 + $0x38] sm:$0xf]
        %v372 = vld [vmem:[%s356 + $0x3c] sm:$0xf]
        %v373 = vld [vmem:[%s356 + $0x40] sm:$0xf]
        %v374 = vld [vmem:[%s356 + $0x44] sm:$0xf]
        %v375 = vld [vmem:[%s356 + $0x48] sm:$0xf]
        %v376 = vld [vmem:[%s356 + $0x4c] sm:$0xf]
        %v377 = vld [vmem:[%s356 + $0x50] sm:$0xf]
        %v378 = vld [vmem:[%s356 + $0x54] sm:$0xf]
        %v379 = vld [vmem:[%s356 + $0x58] sm:$0xf]
        %v380 = vld [vmem:[%s356 + $0x5c] sm:$0xf]
        %v381 = vld [vmem:[%s356 + $0x60] sm:$0xf]
        %v382 = vld [vmem:[%s356 + $0x64] sm:$0xf]
        %v383 = vld [vmem:[%s356 + $0x68] sm:$0xf]
        %v384 = vld [vmem:[%s356 + $0x6c] sm:$0xf]
        %v385 = vld [vmem:[%s356 + $0x70] sm:$0xf]
        %v386 = vld [vmem:[%s356 + $0x74] sm:$0xf]
        %v387 = vld [vmem:[%s356 + $0x78] sm:$0xf]
        %v388 = vld [vmem:[%s356 + $0x7c] sm:$0xf]
        %v389 = vld [vmem:[#allocation6] sm:$0xff]
        %v390 = vld [vmem:[#allocation6 + $0x8] sm:$0xff]
        %v391 = vld [vmem:[#allocation6 + $0x10] sm:$0xff]
        %v392 = vld [vmem:[#allocation6 + $0x18] sm:$0xff]
        %v393 = vld [vmem:[#allocation6 + $0x20] sm:$0xff]
        %v394 = vld [vmem:[#allocation6 + $0x28] sm:$0xff]
        %v395 = vld [vmem:[#allocation6 + $0x30] sm:$0xff]
        %v396 = vld [vmem:[#allocation6 + $0x38] sm:$0xff]
        %v429 = vunpack.c.l.b16 %v357
        %v430 = vunpack.c.l.b16 %v358
        %v431 = vunpack.c.l.b16 %v359
        %v432 = vunpack.c.l.b16 %v360
        %v433 = vunpack.c.l.b16 %v361
        %v434 = vunpack.c.l.b16 %v362
        %v435 = vunpack.c.l.b16 %v363
        %v436 = vunpack.c.l.b16 %v364
        %v437 = vunpack.c.l.b16 %v365
        %v438 = vunpack.c.l.b16 %v366
        %v439 = vunpack.c.l.b16 %v367
        %v440 = vunpack.c.l.b16 %v368
        %v441 = vunpack.c.l.b16 %v369
        %v442 = vunpack.c.l.b16 %v370
        %v443 = vunpack.c.l.b16 %v371
        %v444 = vunpack.c.l.b16 %v372
        %v445 = vunpack.c.l.b16 %v373
        %v446 = vunpack.c.l.b16 %v374
        %v447 = vunpack.c.l.b16 %v375
        %v448 = vunpack.c.l.b16 %v376
        %v449 = vunpack.c.l.b16 %v377
        %v450 = vunpack.c.l.b16 %v378
        %v451 = vunpack.c.l.b16 %v379
        %v452 = vunpack.c.l.b16 %v380
        %v453 = vunpack.c.l.b16 %v381
        %v454 = vunpack.c.l.b16 %v382
        %v455 = vunpack.c.l.b16 %v383
        %v456 = vunpack.c.l.b16 %v384
        %v457 = vunpack.c.l.b16 %v385
        %v458 = vunpack.c.l.b16 %v386
        %v459 = vunpack.c.l.b16 %v387
        %v460 = vunpack.c.l.b16 %v388
        %v461 = vpack.c.b16 %v430, %v429
        %v462 = vpack.c.b16 %v432, %v431
        %v463 = vpack.c.b16 %v434, %v433
        %v464 = vpack.c.b16 %v436, %v435
        %v465 = vpack.c.b16 %v438, %v437
        %v466 = vpack.c.b16 %v440, %v439
        %v467 = vpack.c.b16 %v442, %v441
        %v468 = vpack.c.b16 %v444, %v443
        %v469 = vpack.c.b16 %v446, %v445
        %v470 = vpack.c.b16 %v448, %v447
        %v471 = vpack.c.b16 %v450, %v449
        %v472 = vpack.c.b16 %v452, %v451
        %v473 = vpack.c.b16 %v454, %v453
        %v474 = vpack.c.b16 %v456, %v455
        %v475 = vpack.c.b16 %v458, %v457
        %v476 = vpack.c.b16 %v460, %v459
        %v485 = vunpack.c.l.b16 %v389
        %v486 = vunpack.c.h.b16 %v389
        %v487 = vunpack.c.l.b16 %v390
        %v488 = vunpack.c.h.b16 %v390
        %v489 = vunpack.c.l.b16 %v391
        %v490 = vunpack.c.h.b16 %v391
        %v491 = vunpack.c.l.b16 %v392
        %v492 = vunpack.c.h.b16 %v392
        %v493 = vunpack.c.l.b16 %v393
        %v494 = vunpack.c.h.b16 %v393
        %v495 = vunpack.c.l.b16 %v394
        %v496 = vunpack.c.h.b16 %v394
        %v497 = vunpack.c.l.b16 %v395
        %v498 = vunpack.c.h.b16 %v395
        %v499 = vunpack.c.l.b16 %v396
        %v500 = vunpack.c.h.b16 %v396
        %v501 = vpack.c.b16 %v487, %v485
        %v502 = vpack.c.b16 %v488, %v486
        %v503 = vpack.c.b16 %v491, %v489
        %v504 = vpack.c.b16 %v492, %v490
        %v505 = vpack.c.b16 %v495, %v493
        %v506 = vpack.c.b16 %v496, %v494
        %v507 = vpack.c.b16 %v499, %v497
        %v508 = vpack.c.b16 %v500, %v498
        %vm517 = vcmask 523264
        %v519 = vsel %vm517, %v461, 0
        %v522 = vsel %vm517, %v462, 0
        %v525 = vsel %vm517, %v463, 0
        %v528 = vsel %vm517, %v464, 0
        %v531 = vsel %vm517, %v465, 0
        %v534 = vsel %vm517, %v466, 0
        %v537 = vsel %vm517, %v467, 0
        %v540 = vsel %vm517, %v468, 0
        %v543 = vsel %vm517, %v469, 0
        %v546 = vsel %vm517, %v470, 0
        %v549 = vsel %vm517, %v471, 0
        %v552 = vsel %vm517, %v472, 0
        %v555 = vsel %vm517, %v473, 0
        %v558 = vsel %vm517, %v474, 0
        %v561 = vsel %vm517, %v475, 0
        %v564 = vsel %vm517, %v476, 0
        %566 = vmatprep.subr.bf16.mxu0 %v502
        %567 = vmatpush1.bf16.msra.mxu0 %v501
        %568 = vmatprep.subr.bf16.mxu0 %v504
        %569 = vmatpush1.bf16.msra.mxu0 %v503
        %570 = vmatprep.subr.bf16.mxu0 %v506
        %571 = vmatpush1.bf16.msra.mxu0 %v505
        %572 = vmatprep.subr.bf16.mxu0 %v508
        %573 = vmatpush1.bf16.msra.mxu0 %v507
        %574 = vmatprep.subr.bf16.mxu0 0
        %575 = vmatpush1.bf16.msra.mxu0 0
        %576 = vmatprep.subr.bf16.mxu0 0
        %577 = vmatpush1.bf16.msra.mxu0 0
        %578 = vmatprep.subr.bf16.mxu0 0
        %579 = vmatpush1.bf16.msra.mxu0 0
        %580 = vmatprep.subr.bf16.mxu0 0
        %581 = vmatpush1.bf16.msra.mxu0 0
        %582 = vmatprep.subr.bf16.mxu0 0
        %583 = vmatpush1.bf16.msra.mxu0 0
        %584 = vmatprep.subr.bf16.mxu0 0
        %585 = vmatpush1.bf16.msra.mxu0 0
        %586 = vmatprep.subr.bf16.mxu0 0
        %587 = vmatpush1.bf16.msra.mxu0 0
        %588 = vmatprep.subr.bf16.mxu0 0
        %589 = vmatpush1.bf16.msra.mxu0 0
        %590 = vmatprep.subr.bf16.mxu0 0
        %591 = vmatpush1.bf16.msra.mxu0 0
        %592 = vmatprep.subr.bf16.mxu0 0
        %593 = vmatpush1.bf16.msra.mxu0 0
        %594 = vmatprep.subr.bf16.mxu0 0
        %595 = vmatpush1.bf16.msra.mxu0 0
        %596 = vmatprep.subr.bf16.mxu0 0
        %597 = vmatpush1.bf16.msra.mxu0 0
        %598 = vmatprep.mubr.bf16.mxu0 0
        %599 = vmatmul.mubr.bf16.gmra.mrb[0].mxu0 %v519
        %v600 = vpop.f32.mrb[0].mxu0
        %v601 = vadd.f32 0.0, %v600
        %v602 = vpop.f32.mrb[0].mxu0
        %v603 = vadd.f32 0.0, %v602
        %v604 = vpop.f32.mrb[0].mxu0
        %v605 = vadd.f32 0.0, %v604
        %v606 = vpop.f32.mrb[0].mxu0
        %v607 = vadd.f32 0.0, %v606
        %608 = vmatprep.mubr.bf16.mxu0 0
        %609 = vmatmul.mubr.bf16.gmra.mrb[0].mxu0 %v522
        %v610 = vpop.f32.mrb[0].mxu0
        %v611 = vadd.f32 0.0, %v610
        %v612 = vpop.f32.mrb[0].mxu0
        %v613 = vadd.f32 0.0, %v612
        %v614 = vpop.f32.mrb[0].mxu0
        %v615 = vadd.f32 0.0, %v614
        %v616 = vpop.f32.mrb[0].mxu0
        %v617 = vadd.f32 0.0, %v616
        %618 = vmatprep.mubr.bf16.mxu0 0
        %619 = vmatmul.mubr.bf16.gmra.mrb[0].mxu0 %v525
        %v620 = vpop.f32.mrb[0].mxu0
        %v621 = vadd.f32 0.0, %v620
        %v622 = vpop.f32.mrb[0].mxu0
        %v623 = vadd.f32 0.0, %v622
        %v624 = vpop.f32.mrb[0].mxu0
        %v625 = vadd.f32 0.0, %v624
        %v626 = vpop.f32.mrb[0].mxu0
        %v627 = vadd.f32 0.0, %v626
        %628 = vmatprep.mubr.bf16.mxu0 0
        %629 = vmatmul.mubr.bf16.gmra.mrb[0].mxu0 %v528
        %v630 = vpop.f32.mrb[0].mxu0
        %v631 = vadd.f32 0.0, %v630
        %v632 = vpop.f32.mrb[0].mxu0
        %v633 = vadd.f32 0.0, %v632
        %v634 = vpop.f32.mrb[0].mxu0
        %v635 = vadd.f32 0.0, %v634
        %v636 = vpop.f32.mrb[0].mxu0
        %v637 = vadd.f32 0.0, %v636
        %638 = vmatprep.mubr.bf16.mxu0 0
        %639 = vmatmul.mubr.bf16.gmra.mrb[0].mxu0 %v531
        %v640 = vpop.f32.mrb[0].mxu0
        %v641 = vadd.f32 0.0, %v640
        %v642 = vpop.f32.mrb[0].mxu0
        %v643 = vadd.f32 0.0, %v642
        %v644 = vpop.f32.mrb[0].mxu0
        %v645 = vadd.f32 0.0, %v644
        %v646 = vpop.f32.mrb[0].mxu0
        %v647 = vadd.f32 0.0, %v646
        %648 = vmatprep.mubr.bf16.mxu0 0
        %649 = vmatmul.mubr.bf16.gmra.mrb[0].mxu0 %v534
        %v650 = vpop.f32.mrb[0].mxu0
        %v651 = vadd.f32 0.0, %v650
        %v652 = vpop.f32.mrb[0].mxu0
        %v653 = vadd.f32 0.0, %v652
        %v654 = vpop.f32.mrb[0].mxu0
        %v655 = vadd.f32 0.0, %v654
        %v656 = vpop.f32.mrb[0].mxu0
        %v657 = vadd.f32 0.0, %v656
        %658 = vmatprep.mubr.bf16.mxu0 0
        %659 = vmatmul.mubr.bf16.gmra.mrb[0].mxu0 %v537
        %v660 = vpop.f32.mrb[0].mxu0
        %v661 = vadd.f32 0.0, %v660
        %v662 = vpop.f32.mrb[0].mxu0
        %v663 = vadd.f32 0.0, %v662
        %v664 = vpop.f32.mrb[0].mxu0
        %v665 = vadd.f32 0.0, %v664
        %v666 = vpop.f32.mrb[0].mxu0
        %v667 = vadd.f32 0.0, %v666
        %668 = vmatprep.mubr.bf16.mxu0 0
        %669 = vmatmul.mubr.bf16.gmra.mrb[0].mxu0 %v540
        %v670 = vpop.f32.mrb[0].mxu0
        %v671 = vadd.f32 0.0, %v670
        %v672 = vpop.f32.mrb[0].mxu0
        %v673 = vadd.f32 0.0, %v672
        %v674 = vpop.f32.mrb[0].mxu0
        %v675 = vadd.f32 0.0, %v674
        %v676 = vpop.f32.mrb[0].mxu0
        %v677 = vadd.f32 0.0, %v676
        %678 = vmatprep.mubr.bf16.mxu0 0
        %679 = vmatmul.mubr.bf16.gmra.mrb[0].mxu0 %v543
        %v680 = vpop.f32.mrb[0].mxu0
        %v681 = vadd.f32 0.0, %v680
        %v682 = vpop.f32.mrb[0].mxu0
        %v683 = vadd.f32 0.0, %v682
        %v684 = vpop.f32.mrb[0].mxu0
        %v685 = vadd.f32 0.0, %v684
        %v686 = vpop.f32.mrb[0].mxu0
        %v687 = vadd.f32 0.0, %v686
        %688 = vmatprep.mubr.bf16.mxu0 0
        %689 = vmatmul.mubr.bf16.gmra.mrb[0].mxu0 %v546
        %v690 = vpop.f32.mrb[0].mxu0
        %v691 = vadd.f32 0.0, %v690
        %v692 = vpop.f32.mrb[0].mxu0
        %v693 = vadd.f32 0.0, %v692
        %v694 = vpop.f32.mrb[0].mxu0
        %v695 = vadd.f32 0.0, %v694
        %v696 = vpop.f32.mrb[0].mxu0
        %v697 = vadd.f32 0.0, %v696
        %698 = vmatprep.mubr.bf16.mxu0 0
        %699 = vmatmul.mubr.bf16.gmra.mrb[0].mxu0 %v549
        %v700 = vpop.f32.mrb[0].mxu0
        %v701 = vadd.f32 0.0, %v700
        %v702 = vpop.f32.mrb[0].mxu0
        %v703 = vadd.f32 0.0, %v702
        %v704 = vpop.f32.mrb[0].mxu0
        %v705 = vadd.f32 0.0, %v704
        %v706 = vpop.f32.mrb[0].mxu0
        %v707 = vadd.f32 0.0, %v706
        %708 = vmatprep.mubr.bf16.mxu0 0
        %709 = vmatmul.mubr.bf16.gmra.mrb[0].mxu0 %v552
        %v710 = vpop.f32.mrb[0].mxu0
        %v711 = vadd.f32 0.0, %v710
        %v712 = vpop.f32.mrb[0].mxu0
        %v713 = vadd.f32 0.0, %v712
        %v714 = vpop.f32.mrb[0].mxu0
        %v715 = vadd.f32 0.0, %v714
        %v716 = vpop.f32.mrb[0].mxu0
        %v717 = vadd.f32 0.0, %v716
        %718 = vmatprep.mubr.bf16.mxu0 0
        %719 = vmatmul.mubr.bf16.gmra.mrb[0].mxu0 %v555
        %v720 = vpop.f32.mrb[0].mxu0
        %v721 = vadd.f32 0.0, %v720
        %v722 = vpop.f32.mrb[0].mxu0
        %v723 = vadd.f32 0.0, %v722
        %v724 = vpop.f32.mrb[0].mxu0
        %v725 = vadd.f32 0.0, %v724
        %v726 = vpop.f32.mrb[0].mxu0
        %v727 = vadd.f32 0.0, %v726
        %728 = vmatprep.mubr.bf16.mxu0 0
        %729 = vmatmul.mubr.bf16.gmra.mrb[0].mxu0 %v558
        %v730 = vpop.f32.mrb[0].mxu0
        %v731 = vadd.f32 0.0, %v730
        %v732 = vpop.f32.mrb[0].mxu0
        %v733 = vadd.f32 0.0, %v732
        %v734 = vpop.f32.mrb[0].mxu0
        %v735 = vadd.f32 0.0, %v734
        %v736 = vpop.f32.mrb[0].mxu0
        %v737 = vadd.f32 0.0, %v736
        %738 = vmatprep.mubr.bf16.mxu0 0
        %739 = vmatmul.mubr.bf16.gmra.mrb[0].mxu0 %v561
        %v740 = vpop.f32.mrb[0].mxu0
        %v741 = vadd.f32 0.0, %v740
        %v742 = vpop.f32.mrb[0].mxu0
        %v743 = vadd.f32 0.0, %v742
        %v744 = vpop.f32.mrb[0].mxu0
        %v745 = vadd.f32 0.0, %v744
        %v746 = vpop.f32.mrb[0].mxu0
        %v747 = vadd.f32 0.0, %v746
        %748 = vmatprep.mubr.bf16.mxu0 0
        %749 = vmatmul.mubr.bf16.gmra.mrb[0].mxu0 %v564
        %v750 = vpop.f32.mrb[0].mxu0
        %v751 = vadd.f32 0.0, %v750
        %v752 = vpop.f32.mrb[0].mxu0
        %v753 = vadd.f32 0.0, %v752
        %v754 = vpop.f32.mrb[0].mxu0
        %v755 = vadd.f32 0.0, %v754
        %v756 = vpop.f32.mrb[0].mxu0
        %v757 = vadd.f32 0.0, %v756
        %758 = vdwg.mxu0
        %759 = vst [vmem:[#allocation2] sm:$0xff] %v601
        %760 = vst.msk [vmem:[#allocation2 + $0x8] sm:$0xff] %vm517, %v603
        %761 = vst [vmem:[#allocation2 + $0x10] sm:$0xff] %v605
        %762 = vst.msk [vmem:[#allocation2 + $0x18] sm:$0xff] %vm517, %v607
        %763 = vst [vmem:[#allocation2 + $0x20] sm:$0xff] %v611
        %764 = vst.msk [vmem:[#allocation2 + $0x28] sm:$0xff] %vm517, %v613
        %765 = vst [vmem:[#allocation2 + $0x30] sm:$0xff] %v615
        %766 = vst.msk [vmem:[#allocation2 + $0x38] sm:$0xff] %vm517, %v617
        %767 = vst [vmem:[#allocation2 + $0x40] sm:$0xff] %v621
        %768 = vst.msk [vmem:[#allocation2 + $0x48] sm:$0xff] %vm517, %v623
        %769 = vst [vmem:[#allocation2 + $0x50] sm:$0xff] %v625
        %770 = vst.msk [vmem:[#allocation2 + $0x58] sm:$0xff] %vm517, %v627
        %771 = vst [vmem:[#allocation2 + $0x60] sm:$0xff] %v631
        %772 = vst.msk [vmem:[#allocation2 + $0x68] sm:$0xff] %vm517, %v633
        %773 = vst [vmem:[#allocation2 + $0x70] sm:$0xff] %v635
        %774 = vst.msk [vmem:[#allocation2 + $0x78] sm:$0xff] %vm517, %v637
        %775 = vst [vmem:[#allocation2 + $0x80] sm:$0xff] %v641
        %776 = vst.msk [vmem:[#allocation2 + $0x88] sm:$0xff] %vm517, %v643
        %777 = vst [vmem:[#allocation2 + $0x90] sm:$0xff] %v645
        %778 = vst.msk [vmem:[#allocation2 + $0x98] sm:$0xff] %vm517, %v647
        %779 = vst [vmem:[#allocation2 + $0xa0] sm:$0xff] %v651
        %780 = vst.msk [vmem:[#allocation2 + $0xa8] sm:$0xff] %vm517, %v653
        %781 = vst [vmem:[#allocation2 + $0xb0] sm:$0xff] %v655
        %782 = vst.msk [vmem:[#allocation2 + $0xb8] sm:$0xff] %vm517, %v657
        %783 = vst [vmem:[#allocation2 + $0xc0] sm:$0xff] %v661
        %784 = vst.msk [vmem:[#allocation2 + $0xc8] sm:$0xff] %vm517, %v663
        %785 = vst [vmem:[#allocation2 + $0xd0] sm:$0xff] %v665
        %786 = vst.msk [vmem:[#allocation2 + $0xd8] sm:$0xff] %vm517, %v667
        %787 = vst [vmem:[#allocation2 + $0xe0] sm:$0xff] %v671
        %788 = vst.msk [vmem:[#allocation2 + $0xe8] sm:$0xff] %vm517, %v673
        %789 = vst [vmem:[#allocation2 + $0xf0] sm:$0xff] %v675
        %790 = vst.msk [vmem:[#allocation2 + $0xf8] sm:$0xff] %vm517, %v677
        %791 = vst [vmem:[#allocation2 + $0x100] sm:$0xff] %v681
        %792 = vst.msk [vmem:[#allocation2 + $0x108] sm:$0xff] %vm517, %v683
        %793 = vst [vmem:[#allocation2 + $0x110] sm:$0xff] %v685
        %794 = vst.msk [vmem:[#allocation2 + $0x118] sm:$0xff] %vm517, %v687
        %795 = vst [vmem:[#allocation2 + $0x120] sm:$0xff] %v691
        %796 = vst.msk [vmem:[#allocation2 + $0x128] sm:$0xff] %vm517, %v693
        %797 = vst [vmem:[#allocation2 + $0x130] sm:$0xff] %v695
        %798 = vst.msk [vmem:[#allocation2 + $0x138] sm:$0xff] %vm517, %v697
        %799 = vst [vmem:[#allocation2 + $0x140] sm:$0xff] %v701
        %800 = vst.msk [vmem:[#allocation2 + $0x148] sm:$0xff] %vm517, %v703
        %801 = vst [vmem:[#allocation2 + $0x150] sm:$0xff] %v705
        %802 = vst.msk [vmem:[#allocation2 + $0x158] sm:$0xff] %vm517, %v707
        %803 = vst [vmem:[#allocation2 + $0x160] sm:$0xff] %v711
        %804 = vst.msk [vmem:[#allocation2 + $0x168] sm:$0xff] %vm517, %v713
        %805 = vst [vmem:[#allocation2 + $0x170] sm:$0xff] %v715
        %806 = vst.msk [vmem:[#allocation2 + $0x178] sm:$0xff] %vm517, %v717
        %807 = vst [vmem:[#allocation2 + $0x180] sm:$0xff] %v721
        %808 = vst.msk [vmem:[#allocation2 + $0x188] sm:$0xff] %vm517, %v723
        %809 = vst [vmem:[#allocation2 + $0x190] sm:$0xff] %v725
        %810 = vst.msk [vmem:[#allocation2 + $0x198] sm:$0xff] %vm517, %v727
        %811 = vst [vmem:[#allocation2 + $0x1a0] sm:$0xff] %v731
        %812 = vst.msk [vmem:[#allocation2 + $0x1a8] sm:$0xff] %vm517, %v733
        %813 = vst [vmem:[#allocation2 + $0x1b0] sm:$0xff] %v735
        %814 = vst.msk [vmem:[#allocation2 + $0x1b8] sm:$0xff] %vm517, %v737
        %815 = vst [vmem:[#allocation2 + $0x1c0] sm:$0xff] %v741
        %816 = vst.msk [vmem:[#allocation2 + $0x1c8] sm:$0xff] %vm517, %v743
        %817 = vst [vmem:[#allocation2 + $0x1d0] sm:$0xff] %v745
        %818 = vst.msk [vmem:[#allocation2 + $0x1d8] sm:$0xff] %vm517, %v747
        %819 = vst [vmem:[#allocation2 + $0x1e0] sm:$0xff] %v751
        %820 = vst.msk [vmem:[#allocation2 + $0x1e8] sm:$0xff] %vm517, %v753
        %821 = vst [vmem:[#allocation2 + $0x1f0] sm:$0xff] %v755
        %822 = vst.msk [vmem:[#allocation2 + $0x1f8] sm:$0xff] %vm517, %v757
        %s823 = sadd.s32 %s353, 1
        %s824 = smul.u32 %s823, 4
        %s825 = smul.addr %s824, 4
        %s826 = scalar_lea.vmem %s302, %s825 [#allocation3]
        %v827 = vld [vmem:[%s826] sm:$0xf]
        %v828 = vld [vmem:[%s826 + $0x4] sm:$0xf]
        %v829 = vld [vmem:[%s826 + $0x8] sm:$0xf]
        %v830 = vld [vmem:[%s826 + $0xc] sm:$0xf]
        %v831 = vld [vmem:[%s826 + $0x10] sm:$0xf]
        %v832 = vld [vmem:[%s826 + $0x14] sm:$0xf]
        %v833 = vld [vmem:[%s826 + $0x18] sm:$0xf]
        %v834 = vld [vmem:[%s826 + $0x1c] sm:$0xf]
        %v835 = vld [vmem:[%s826 + $0x20] sm:$0xf]
        %v836 = vld [vmem:[%s826 + $0x24] sm:$0xf]
        %v837 = vld [vmem:[%s826 + $0x28] sm:$0xf]
        %v838 = vld [vmem:[%s826 + $0x2c] sm:$0xf]
        %v839 = vld [vmem:[%s826 + $0x30] sm:$0xf]
        %v840 = vld [vmem:[%s826 + $0x34] sm:$0xf]
        %v841 = vld [vmem:[%s826 + $0x38] sm:$0xf]
        %v842 = vld [vmem:[%s826 + $0x3c] sm:$0xf]
        %v843 = vld [vmem:[%s826 + $0x40] sm:$0xf]
        %v844 = vld [vmem:[%s826 + $0x44] sm:$0xf]
        %v845 = vld [vmem:[%s826 + $0x48] sm:$0xf]
        %v846 = vld [vmem:[%s826 + $0x4c] sm:$0xf]
        %v847 = vld [vmem:[%s826 + $0x50] sm:$0xf]
        %v848 = vld [vmem:[%s826 + $0x54] sm:$0xf]
        %v849 = vld [vmem:[%s826 + $0x58] sm:$0xf]
        %v850 = vld [vmem:[%s826 + $0x5c] sm:$0xf]
        %v851 = vld [vmem:[%s826 + $0x60] sm:$0xf]
        %v852 = vld [vmem:[%s826 + $0x64] sm:$0xf]
        %v853 = vld [vmem:[%s826 + $0x68] sm:$0xf]
        %v854 = vld [vmem:[%s826 + $0x6c] sm:$0xf]
        %v855 = vld [vmem:[%s826 + $0x70] sm:$0xf]
        %v856 = vld [vmem:[%s826 + $0x74] sm:$0xf]
        %v857 = vld [vmem:[%s826 + $0x78] sm:$0xf]
        %v858 = vld [vmem:[%s826 + $0x7c] sm:$0xf]
        %s859 = scalar_lea.vmem [#allocation6], 64
        %v860 = vld [vmem:[%s859] sm:$0xff]
        %v861 = vld [vmem:[%s859 + $0x8] sm:$0xff]
        %v862 = vld [vmem:[%s859 + $0x10] sm:$0xff]
        %v863 = vld [vmem:[%s859 + $0x18] sm:$0xff]
        %v864 = vld [vmem:[%s859 + $0x20] sm:$0xff]
        %v865 = vld [vmem:[%s859 + $0x28] sm:$0xff]
        %v866 = vld [vmem:[%s859 + $0x30] sm:$0xff]
        %v867 = vld [vmem:[%s859 + $0x38] sm:$0xff]
        %v900 = vunpack.c.l.b16 %v827
        %v901 = vunpack.c.l.b16 %v828
        %v902 = vunpack.c.l.b16 %v829
        %v903 = vunpack.c.l.b16 %v830
        %v904 = vunpack.c.l.b16 %v831
        %v905 = vunpack.c.l.b16 %v832
        %v906 = vunpack.c.l.b16 %v833
        %v907 = vunpack.c.l.b16 %v834
        %v908 = vunpack.c.l.b16 %v835
        %v909 = vunpack.c.l.b16 %v836
        %v910 = vunpack.c.l.b16 %v837
        %v911 = vunpack.c.l.b16 %v838
        %v912 = vunpack.c.l.b16 %v839
        %v913 = vunpack.c.l.b16 %v840
        %v914 = vunpack.c.l.b16 %v841
        %v915 = vunpack.c.l.b16 %v842
        %v916 = vunpack.c.l.b16 %v843
        %v917 = vunpack.c.l.b16 %v844
        %v918 = vunpack.c.l.b16 %v845
        %v919 = vunpack.c.l.b16 %v846
        %v920 = vunpack.c.l.b16 %v847
        %v921 = vunpack.c.l.b16 %v848
        %v922 = vunpack.c.l.b16 %v849
        %v923 = vunpack.c.l.b16 %v850
        %v924 = vunpack.c.l.b16 %v851
        %v925 = vunpack.c.l.b16 %v852
        %v926 = vunpack.c.l.b16 %v853
        %v927 = vunpack.c.l.b16 %v854
        %v928 = vunpack.c.l.b16 %v855
        %v929 = vunpack.c.l.b16 %v856
        %v930 = vunpack.c.l.b16 %v857
        %v931 = vunpack.c.l.b16 %v858
        %v932 = vpack.c.b16 %v901, %v900
        %v933 = vpack.c.b16 %v903, %v902
        %v934 = vpack.c.b16 %v905, %v904
        %v935 = vpack.c.b16 %v907, %v906
        %v936 = vpack.c.b16 %v909, %v908
        %v937 = vpack.c.b16 %v911, %v910
        %v938 = vpack.c.b16 %v913, %v912
        %v939 = vpack.c.b16 %v915, %v914
        %v940 = vpack.c.b16 %v917, %v916
        %v941 = vpack.c.b16 %v919, %v918
        %v942 = vpack.c.b16 %v921, %v920
        %v943 = vpack.c.b16 %v923, %v922
        %v944 = vpack.c.b16 %v925, %v924
        %v945 = vpack.c.b16 %v927, %v926
        %v946 = vpack.c.b16 %v929, %v928
        %v947 = vpack.c.b16 %v931, %v930
        %v956 = vunpack.c.l.b16 %v860
        %v957 = vunpack.c.h.b16 %v860
        %v958 = vunpack.c.l.b16 %v861
        %v959 = vunpack.c.h.b16 %v861
        %v960 = vunpack.c.l.b16 %v862
        %v961 = vunpack.c.h.b16 %v862
        %v962 = vunpack.c.l.b16 %v863
        %v963 = vunpack.c.h.b16 %v863
        %v964 = vunpack.c.l.b16 %v864
        %v965 = vunpack.c.h.b16 %v864
        %v966 = vunpack.c.l.b16 %v865
        %v967 = vunpack.c.h.b16 %v865
        %v968 = vunpack.c.l.b16 %v866
        %v969 = vunpack.c.h.b16 %v866
        %v970 = vunpack.c.l.b16 %v867
        %v971 = vunpack.c.h.b16 %v867
        %v972 = vpack.c.b16 %v958, %v956
        %v973 = vpack.c.b16 %v959, %v957
        %v974 = vpack.c.b16 %v962, %v960
        %v975 = vpack.c.b16 %v963, %v961
        %v976 = vpack.c.b16 %v966, %v964
        %v977 = vpack.c.b16 %v967, %v965
        %v978 = vpack.c.b16 %v970, %v968
        %v979 = vpack.c.b16 %v971, %v969
        %v989 = vsel %vm517, %v932, 0
        %v992 = vsel %vm517, %v933, 0
        %v995 = vsel %vm517, %v934, 0
        %v998 = vsel %vm517, %v935, 0
        %v1001 = vsel %vm517, %v936, 0
        %v1004 = vsel %vm517, %v937, 0
        %v1007 = vsel %vm517, %v938, 0
        %v1010 = vsel %vm517, %v939, 0
        %v1013 = vsel %vm517, %v940, 0
        %v1016 = vsel %vm517, %v941, 0
        %v1019 = vsel %vm517, %v942, 0
        %v1022 = vsel %vm517, %v943, 0
        %v1025 = vsel %vm517, %v944, 0
        %v1028 = vsel %vm517, %v945, 0
        %v1031 = vsel %vm517, %v946, 0
        %v1034 = vsel %vm517, %v947, 0
        %1036 = vmatprep.subr.bf16.mxu0 %v973
        %1037 = vmatpush1.bf16.msra.mxu0 %v972
        %1038 = vmatprep.subr.bf16.mxu0 %v975
        %1039 = vmatpush1.bf16.msra.mxu0 %v974
        %1040 = vmatprep.subr.bf16.mxu0 %v977
        %1041 = vmatpush1.bf16.msra.mxu0 %v976
        %1042 = vmatprep.subr.bf16.mxu0 %v979
        %1043 = vmatpush1.bf16.msra.mxu0 %v978
        %1044 = vmatprep.subr.bf16.mxu0 0
        %1045 = vmatpush1.bf16.msra.mxu0 0
        %1046 = vmatprep.subr.bf16.mxu0 0
        %1047 = vmatpush1.bf16.msra.mxu0 0
        %1048 = vmatprep.subr.bf16.mxu0 0
        %1049 = vmatpush1.bf16.msra.mxu0 0
        %1050 = vmatprep.subr.bf16.mxu0 0
        %1051 = vmatpush1.bf16.msra.mxu0 0
        %1052 = vmatprep.subr.bf16.mxu0 0
        %1053 = vmatpush1.bf16.msra.mxu0 0
        %1054 = vmatprep.subr.bf16.mxu0 0
        %1055 = vmatpush1.bf16.msra.mxu0 0
        %1056 = vmatprep.subr.bf16.mxu0 0
        %1057 = vmatpush1.bf16.msra.mxu0 0
        %1058 = vmatprep.subr.bf16.mxu0 0
        %1059 = vmatpush1.bf16.msra.mxu0 0
        %1060 = vmatprep.subr.bf16.mxu0 0
        %1061 = vmatpush1.bf16.msra.mxu0 0
        %1062 = vmatprep.subr.bf16.mxu0 0
        %1063 = vmatpush1.bf16.msra.mxu0 0
        %1064 = vmatprep.subr.bf16.mxu0 0
        %1065 = vmatpush1.bf16.msra.mxu0 0
        %1066 = vmatprep.subr.bf16.mxu0 0
        %1067 = vmatpush1.bf16.msra.mxu0 0
        %1068 = vmatprep.mubr.bf16.mxu0 0
        %1069 = vmatmul.mubr.bf16.gmra.mrb[0].mxu0 %v989
        %v1070 = vpop.f32.mrb[0].mxu0
        %v1071 = vadd.f32 0.0, %v1070
        %v1072 = vpop.f32.mrb[0].mxu0
        %v1073 = vadd.f32 0.0, %v1072
        %v1074 = vpop.f32.mrb[0].mxu0
        %v1075 = vadd.f32 0.0, %v1074
        %v1076 = vpop.f32.mrb[0].mxu0
        %v1077 = vadd.f32 0.0, %v1076
        %1078 = vmatprep.mubr.bf16.mxu0 0
        %1079 = vmatmul.mubr.bf16.gmra.mrb[0].mxu0 %v992
        %v1080 = vpop.f32.mrb[0].mxu0
        %v1081 = vadd.f32 0.0, %v1080
        %v1082 = vpop.f32.mrb[0].mxu0
        %v1083 = vadd.f32 0.0, %v1082
        %v1084 = vpop.f32.mrb[0].mxu0
        %v1085 = vadd.f32 0.0, %v1084
        %v1086 = vpop.f32.mrb[0].mxu0
        %v1087 = vadd.f32 0.0, %v1086
        %1088 = vmatprep.mubr.bf16.mxu0 0
        %1089 = vmatmul.mubr.bf16.gmra.mrb[0].mxu0 %v995
        %v1090 = vpop.f32.mrb[0].mxu0
        %v1091 = vadd.f32 0.0, %v1090
        %v1092 = vpop.f32.mrb[0].mxu0
        %v1093 = vadd.f32 0.0, %v1092
        %v1094 = vpop.f32.mrb[0].mxu0
        %v1095 = vadd.f32 0.0, %v1094
        %v1096 = vpop.f32.mrb[0].mxu0
        %v1097 = vadd.f32 0.0, %v1096
        %1098 = vmatprep.mubr.bf16.mxu0 0
        %1099 = vmatmul.mubr.bf16.gmra.mrb[0].mxu0 %v998
        %v1100 = vpop.f32.mrb[0].mxu0
        %v1101 = vadd.f32 0.0, %v1100
        %v1102 = vpop.f32.mrb[0].mxu0
        %v1103 = vadd.f32 0.0, %v1102
        %v1104 = vpop.f32.mrb[0].mxu0
        %v1105 = vadd.f32 0.0, %v1104
        %v1106 = vpop.f32.mrb[0].mxu0
        %v1107 = vadd.f32 0.0, %v1106
        %1108 = vmatprep.mubr.bf16.mxu0 0
        %1109 = vmatmul.mubr.bf16.gmra.mrb[0].mxu0 %v1001
        %v1110 = vpop.f32.mrb[0].mxu0
        %v1111 = vadd.f32 0.0, %v1110
        %v1112 = vpop.f32.mrb[0].mxu0
        %v1113 = vadd.f32 0.0, %v1112
        %v1114 = vpop.f32.mrb[0].mxu0
        %v1115 = vadd.f32 0.0, %v1114
        %v1116 = vpop.f32.mrb[0].mxu0
        %v1117 = vadd.f32 0.0, %v1116
        %1118 = vmatprep.mubr.bf16.mxu0 0
        %1119 = vmatmul.mubr.bf16.gmra.mrb[0].mxu0 %v1004
        %v1120 = vpop.f32.mrb[0].mxu0
        %v1121 = vadd.f32 0.0, %v1120
        %v1122 = vpop.f32.mrb[0].mxu0
        %v1123 = vadd.f32 0.0, %v1122
        %v1124 = vpop.f32.mrb[0].mxu0
        %v1125 = vadd.f32 0.0, %v1124
        %v1126 = vpop.f32.mrb[0].mxu0
        %v1127 = vadd.f32 0.0, %v1126
        %1128 = vmatprep.mubr.bf16.mxu0 0
        %1129 = vmatmul.mubr.bf16.gmra.mrb[0].mxu0 %v1007
        %v1130 = vpop.f32.mrb[0].mxu0
        %v1131 = vadd.f32 0.0, %v1130
        %v1132 = vpop.f32.mrb[0].mxu0
        %v1133 = vadd.f32 0.0, %v1132
        %v1134 = vpop.f32.mrb[0].mxu0
        %v1135 = vadd.f32 0.0, %v1134
        %v1136 = vpop.f32.mrb[0].mxu0
        %v1137 = vadd.f32 0.0, %v1136
        %1138 = vmatprep.mubr.bf16.mxu0 0
        %1139 = vmatmul.mubr.bf16.gmra.mrb[0].mxu0 %v1010
        %v1140 = vpop.f32.mrb[0].mxu0
        %v1141 = vadd.f32 0.0, %v1140
        %v1142 = vpop.f32.mrb[0].mxu0
        %v1143 = vadd.f32 0.0, %v1142
        %v1144 = vpop.f32.mrb[0].mxu0
        %v1145 = vadd.f32 0.0, %v1144
        %v1146 = vpop.f32.mrb[0].mxu0
        %v1147 = vadd.f32 0.0, %v1146
        %1148 = vmatprep.mubr.bf16.mxu0 0
        %1149 = vmatmul.mubr.bf16.gmra.mrb[0].mxu0 %v1013
        %v1150 = vpop.f32.mrb[0].mxu0
        %v1151 = vadd.f32 0.0, %v1150
        %v1152 = vpop.f32.mrb[0].mxu0
        %v1153 = vadd.f32 0.0, %v1152
        %v1154 = vpop.f32.mrb[0].mxu0
        %v1155 = vadd.f32 0.0, %v1154
        %v1156 = vpop.f32.mrb[0].mxu0
        %v1157 = vadd.f32 0.0, %v1156
        %1158 = vmatprep.mubr.bf16.mxu0 0
        %1159 = vmatmul.mubr.bf16.gmra.mrb[0].mxu0 %v1016
        %v1160 = vpop.f32.mrb[0].mxu0
        %v1161 = vadd.f32 0.0, %v1160
        %v1162 = vpop.f32.mrb[0].mxu0
        %v1163 = vadd.f32 0.0, %v1162
        %v1164 = vpop.f32.mrb[0].mxu0
        %v1165 = vadd.f32 0.0, %v1164
        %v1166 = vpop.f32.mrb[0].mxu0
        %v1167 = vadd.f32 0.0, %v1166
        %1168 = vmatprep.mubr.bf16.mxu0 0
        %1169 = vmatmul.mubr.bf16.gmra.mrb[0].mxu0 %v1019
        %v1170 = vpop.f32.mrb[0].mxu0
        %v1171 = vadd.f32 0.0, %v1170
        %v1172 = vpop.f32.mrb[0].mxu0
        %v1173 = vadd.f32 0.0, %v1172
        %v1174 = vpop.f32.mrb[0].mxu0
        %v1175 = vadd.f32 0.0, %v1174
        %v1176 = vpop.f32.mrb[0].mxu0
        %v1177 = vadd.f32 0.0, %v1176
        %1178 = vmatprep.mubr.bf16.mxu0 0
        %1179 = vmatmul.mubr.bf16.gmra.mrb[0].mxu0 %v1022
        %v1180 = vpop.f32.mrb[0].mxu0
        %v1181 = vadd.f32 0.0, %v1180
        %v1182 = vpop.f32.mrb[0].mxu0
        %v1183 = vadd.f32 0.0, %v1182
        %v1184 = vpop.f32.mrb[0].mxu0
        %v1185 = vadd.f32 0.0, %v1184
        %v1186 = vpop.f32.mrb[0].mxu0
        %v1187 = vadd.f32 0.0, %v1186
        %1188 = vmatprep.mubr.bf16.mxu0 0
        %1189 = vmatmul.mubr.bf16.gmra.mrb[0].mxu0 %v1025
        %v1190 = vpop.f32.mrb[0].mxu0
        %v1191 = vadd.f32 0.0, %v1190
        %v1192 = vpop.f32.mrb[0].mxu0
        %v1193 = vadd.f32 0.0, %v1192
        %v1194 = vpop.f32.mrb[0].mxu0
        %v1195 = vadd.f32 0.0, %v1194
        %v1196 = vpop.f32.mrb[0].mxu0
        %v1197 = vadd.f32 0.0, %v1196
        %1198 = vmatprep.mubr.bf16.mxu0 0
        %1199 = vmatmul.mubr.bf16.gmra.mrb[0].mxu0 %v1028
        %v1200 = vpop.f32.mrb[0].mxu0
        %v1201 = vadd.f32 0.0, %v1200
        %v1202 = vpop.f32.mrb[0].mxu0
        %v1203 = vadd.f32 0.0, %v1202
        %v1204 = vpop.f32.mrb[0].mxu0
        %v1205 = vadd.f32 0.0, %v1204
        %v1206 = vpop.f32.mrb[0].mxu0
        %v1207 = vadd.f32 0.0, %v1206
        %1208 = vmatprep.mubr.bf16.mxu0 0
        %1209 = vmatmul.mubr.bf16.gmra.mrb[0].mxu0 %v1031
        %v1210 = vpop.f32.mrb[0].mxu0
        %v1211 = vadd.f32 0.0, %v1210
        %v1212 = vpop.f32.mrb[0].mxu0
        %v1213 = vadd.f32 0.0, %v1212
        %v1214 = vpop.f32.mrb[0].mxu0
        %v1215 = vadd.f32 0.0, %v1214
        %v1216 = vpop.f32.mrb[0].mxu0
        %v1217 = vadd.f32 0.0, %v1216
        %1218 = vmatprep.mubr.bf16.mxu0 0
        %1219 = vmatmul.mubr.bf16.gmra.mrb[0].mxu0 %v1034
        %v1220 = vpop.f32.mrb[0].mxu0
        %v1221 = vadd.f32 0.0, %v1220
        %v1222 = vpop.f32.mrb[0].mxu0
        %v1223 = vadd.f32 0.0, %v1222
        %v1224 = vpop.f32.mrb[0].mxu0
        %v1225 = vadd.f32 0.0, %v1224
        %v1226 = vpop.f32.mrb[0].mxu0
        %v1227 = vadd.f32 0.0, %v1226
        %1228 = vdwg.mxu0
        %v1229 = vld [vmem:[#allocation2] sm:$0xff]
        %v1230 = vld [vmem:[#allocation2 + $0x8] sm:$0xff]
        %v1231 = vld [vmem:[#allocation2 + $0x10] sm:$0xff]
        %v1232 = vld [vmem:[#allocation2 + $0x18] sm:$0xff]
        %v1233 = vld [vmem:[#allocation2 + $0x20] sm:$0xff]
        %v1234 = vld [vmem:[#allocation2 + $0x28] sm:$0xff]
        %v1235 = vld [vmem:[#allocation2 + $0x30] sm:$0xff]
        %v1236 = vld [vmem:[#allocation2 + $0x38] sm:$0xff]
        %v1237 = vld [vmem:[#allocation2 + $0x40] sm:$0xff]
        %v1238 = vld [vmem:[#allocation2 + $0x48] sm:$0xff]
        %v1239 = vld [vmem:[#allocation2 + $0x50] sm:$0xff]
        %v1240 = vld [vmem:[#allocation2 + $0x58] sm:$0xff]
        %v1241 = vld [vmem:[#allocation2 + $0x60] sm:$0xff]
        %v1242 = vld [vmem:[#allocation2 + $0x68] sm:$0xff]
        %v1243 = vld [vmem:[#allocation2 + $0x70] sm:$0xff]
        %v1244 = vld [vmem:[#allocation2 + $0x78] sm:$0xff]
        %v1245 = vld [vmem:[#allocation2 + $0x80] sm:$0xff]
        %v1246 = vld [vmem:[#allocation2 + $0x88] sm:$0xff]
        %v1247 = vld [vmem:[#allocation2 + $0x90] sm:$0xff]
        %v1248 = vld [vmem:[#allocation2 + $0x98] sm:$0xff]
        %v1249 = vld [vmem:[#allocation2 + $0xa0] sm:$0xff]
        %v1250 = vld [vmem:[#allocation2 + $0xa8] sm:$0xff]
        %v1251 = vld [vmem:[#allocation2 + $0xb0] sm:$0xff]
        %v1252 = vld [vmem:[#allocation2 + $0xb8] sm:$0xff]
        %v1253 = vld [vmem:[#allocation2 + $0xc0] sm:$0xff]
        %v1254 = vld [vmem:[#allocation2 + $0xc8] sm:$0xff]
        %v1255 = vld [vmem:[#allocation2 + $0xd0] sm:$0xff]
        %v1256 = vld [vmem:[#allocation2 + $0xd8] sm:$0xff]
        %v1257 = vld [vmem:[#allocation2 + $0xe0] sm:$0xff]
        %v1258 = vld [vmem:[#allocation2 + $0xe8] sm:$0xff]
        %v1259 = vld [vmem:[#allocation2 + $0xf0] sm:$0xff]
        %v1260 = vld [vmem:[#allocation2 + $0xf8] sm:$0xff]
        %v1261 = vld [vmem:[#allocation2 + $0x100] sm:$0xff]
        %v1262 = vld [vmem:[#allocation2 + $0x108] sm:$0xff]
        %v1263 = vld [vmem:[#allocation2 + $0x110] sm:$0xff]
        %v1264 = vld [vmem:[#allocation2 + $0x118] sm:$0xff]
        %v1265 = vld [vmem:[#allocation2 + $0x120] sm:$0xff]
        %v1266 = vld [vmem:[#allocation2 + $0x128] sm:$0xff]
        %v1267 = vld [vmem:[#allocation2 + $0x130] sm:$0xff]
        %v1268 = vld [vmem:[#allocation2 + $0x138] sm:$0xff]
        %v1269 = vld [vmem:[#allocation2 + $0x140] sm:$0xff]
        %v1270 = vld [vmem:[#allocation2 + $0x148] sm:$0xff]
        %v1271 = vld [vmem:[#allocation2 + $0x150] sm:$0xff]
        %v1272 = vld [vmem:[#allocation2 + $0x158] sm:$0xff]
        %v1273 = vld [vmem:[#allocation2 + $0x160] sm:$0xff]
        %v1274 = vld [vmem:[#allocation2 + $0x168] sm:$0xff]
        %v1275 = vld [vmem:[#allocation2 + $0x170] sm:$0xff]
        %v1276 = vld [vmem:[#allocation2 + $0x178] sm:$0xff]
        %v1277 = vld [vmem:[#allocation2 + $0x180] sm:$0xff]
        %v1278 = vld [vmem:[#allocation2 + $0x188] sm:$0xff]
        %v1279 = vld [vmem:[#allocation2 + $0x190] sm:$0xff]
        %v1280 = vld [vmem:[#allocation2 + $0x198] sm:$0xff]
        %v1281 = vld [vmem:[#allocation2 + $0x1a0] sm:$0xff]
        %v1282 = vld [vmem:[#allocation2 + $0x1a8] sm:$0xff]
        %v1283 = vld [vmem:[#allocation2 + $0x1b0] sm:$0xff]
        %v1284 = vld [vmem:[#allocation2 + $0x1b8] sm:$0xff]
        %v1285 = vld [vmem:[#allocation2 + $0x1c0] sm:$0xff]
        %v1286 = vld [vmem:[#allocation2 + $0x1c8] sm:$0xff]
        %v1287 = vld [vmem:[#allocation2 + $0x1d0] sm:$0xff]
        %v1288 = vld [vmem:[#allocation2 + $0x1d8] sm:$0xff]
        %v1289 = vld [vmem:[#allocation2 + $0x1e0] sm:$0xff]
        %v1290 = vld [vmem:[#allocation2 + $0x1e8] sm:$0xff]
        %v1291 = vld [vmem:[#allocation2 + $0x1f0] sm:$0xff]
        %v1292 = vld [vmem:[#allocation2 + $0x1f8] sm:$0xff]
        %v1293 = vadd.f32 %v1229, %v1071
        %v1294 = vadd.f32 %v1230, %v1073
        %v1295 = vadd.f32 %v1231, %v1075
        %v1296 = vadd.f32 %v1232, %v1077
        %v1297 = vadd.f32 %v1233, %v1081
        %v1298 = vadd.f32 %v1234, %v1083
        %v1299 = vadd.f32 %v1235, %v1085
        %v1300 = vadd.f32 %v1236, %v1087
        %v1301 = vadd.f32 %v1237, %v1091
        %v1302 = vadd.f32 %v1238, %v1093
        %v1303 = vadd.f32 %v1239, %v1095
        %v1304 = vadd.f32 %v1240, %v1097
        %v1305 = vadd.f32 %v1241, %v1101
        %v1306 = vadd.f32 %v1242, %v1103
        %v1307 = vadd.f32 %v1243, %v1105
        %v1308 = vadd.f32 %v1244, %v1107
        %v1309 = vadd.f32 %v1245, %v1111
        %v1310 = vadd.f32 %v1246, %v1113
        %v1311 = vadd.f32 %v1247, %v1115
        %v1312 = vadd.f32 %v1248, %v1117
        %v1313 = vadd.f32 %v1249, %v1121
        %v1314 = vadd.f32 %v1250, %v1123
        %v1315 = vadd.f32 %v1251, %v1125
        %v1316 = vadd.f32 %v1252, %v1127
        %v1317 = vadd.f32 %v1253, %v1131
        %v1318 = vadd.f32 %v1254, %v1133
        %v1319 = vadd.f32 %v1255, %v1135
        %v1320 = vadd.f32 %v1256, %v1137
        %v1321 = vadd.f32 %v1257, %v1141
        %v1322 = vadd.f32 %v1258, %v1143
        %v1323 = vadd.f32 %v1259, %v1145
        %v1324 = vadd.f32 %v1260, %v1147
        %v1325 = vadd.f32 %v1261, %v1151
        %v1326 = vadd.f32 %v1262, %v1153
        %v1327 = vadd.f32 %v1263, %v1155
        %v1328 = vadd.f32 %v1264, %v1157
        %v1329 = vadd.f32 %v1265, %v1161
        %v1330 = vadd.f32 %v1266, %v1163
        %v1331 = vadd.f32 %v1267, %v1165
        %v1332 = vadd.f32 %v1268, %v1167
        %v1333 = vadd.f32 %v1269, %v1171
        %v1334 = vadd.f32 %v1270, %v1173
        %v1335 = vadd.f32 %v1271, %v1175
        %v1336 = vadd.f32 %v1272, %v1177
        %v1337 = vadd.f32 %v1273, %v1181
        %v1338 = vadd.f32 %v1274, %v1183
        %v1339 = vadd.f32 %v1275, %v1185
        %v1340 = vadd.f32 %v1276, %v1187
        %v1341 = vadd.f32 %v1277, %v1191
        %v1342 = vadd.f32 %v1278, %v1193
        %v1343 = vadd.f32 %v1279, %v1195
        %v1344 = vadd.f32 %v1280, %v1197
        %v1345 = vadd.f32 %v1281, %v1201
        %v1346 = vadd.f32 %v1282, %v1203
        %v1347 = vadd.f32 %v1283, %v1205
        %v1348 = vadd.f32 %v1284, %v1207
        %v1349 = vadd.f32 %v1285, %v1211
        %v1350 = vadd.f32 %v1286, %v1213
        %v1351 = vadd.f32 %v1287, %v1215
        %v1352 = vadd.f32 %v1288, %v1217
        %v1353 = vadd.f32 %v1289, %v1221
        %v1354 = vadd.f32 %v1290, %v1223
        %v1355 = vadd.f32 %v1291, %v1225
        %v1356 = vadd.f32 %v1292, %v1227
        %1357 = vst [vmem:[#allocation2] sm:$0xff] %v1293
        %1358 = vst.msk [vmem:[#allocation2 + $0x8] sm:$0xff] %vm517, %v1294
        %1359 = vst [vmem:[#allocation2 + $0x10] sm:$0xff] %v1295
        %1360 = vst.msk [vmem:[#allocation2 + $0x18] sm:$0xff] %vm517, %v1296
        %1361 = vst [vmem:[#allocation2 + $0x20] sm:$0xff] %v1297
        %1362 = vst.msk [vmem:[#allocation2 + $0x28] sm:$0xff] %vm517, %v1298
        %1363 = vst [vmem:[#allocation2 + $0x30] sm:$0xff] %v1299
        %1364 = vst.msk [vmem:[#allocation2 + $0x38] sm:$0xff] %vm517, %v1300
        %1365 = vst [vmem:[#allocation2 + $0x40] sm:$0xff] %v1301
        %1366 = vst.msk [vmem:[#allocation2 + $0x48] sm:$0xff] %vm517, %v1302
        %1367 = vst [vmem:[#allocation2 + $0x50] sm:$0xff] %v1303
        %1368 = vst.msk [vmem:[#allocation2 + $0x58] sm:$0xff] %vm517, %v1304
        %1369 = vst [vmem:[#allocation2 + $0x60] sm:$0xff] %v1305
        %1370 = vst.msk [vmem:[#allocation2 + $0x68] sm:$0xff] %vm517, %v1306
        %1371 = vst [vmem:[#allocation2 + $0x70] sm:$0xff] %v1307
        %1372 = vst.msk [vmem:[#allocation2 + $0x78] sm:$0xff] %vm517, %v1308
        %1373 = vst [vmem:[#allocation2 + $0x80] sm:$0xff] %v1309
        %1374 = vst.msk [vmem:[#allocation2 + $0x88] sm:$0xff] %vm517, %v1310
        %1375 = vst [vmem:[#allocation2 + $0x90] sm:$0xff] %v1311
        %1376 = vst.msk [vmem:[#allocation2 + $0x98] sm:$0xff] %vm517, %v1312
        %1377 = vst [vmem:[#allocation2 + $0xa0] sm:$0xff] %v1313
        %1378 = vst.msk [vmem:[#allocation2 + $0xa8] sm:$0xff] %vm517, %v1314
        %1379 = vst [vmem:[#allocation2 + $0xb0] sm:$0xff] %v1315
        %1380 = vst.msk [vmem:[#allocation2 + $0xb8] sm:$0xff] %vm517, %v1316
        %1381 = vst [vmem:[#allocation2 + $0xc0] sm:$0xff] %v1317
        %1382 = vst.msk [vmem:[#allocation2 + $0xc8] sm:$0xff] %vm517, %v1318
        %1383 = vst [vmem:[#allocation2 + $0xd0] sm:$0xff] %v1319
        %1384 = vst.msk [vmem:[#allocation2 + $0xd8] sm:$0xff] %vm517, %v1320
        %1385 = vst [vmem:[#allocation2 + $0xe0] sm:$0xff] %v1321
        %1386 = vst.msk [vmem:[#allocation2 + $0xe8] sm:$0xff] %vm517, %v1322
        %1387 = vst [vmem:[#allocation2 + $0xf0] sm:$0xff] %v1323
        %1388 = vst.msk [vmem:[#allocation2 + $0xf8] sm:$0xff] %vm517, %v1324
        %1389 = vst [vmem:[#allocation2 + $0x100] sm:$0xff] %v1325
        %1390 = vst.msk [vmem:[#allocation2 + $0x108] sm:$0xff] %vm517, %v1326
        %1391 = vst [vmem:[#allocation2 + $0x110] sm:$0xff] %v1327
        %1392 = vst.msk [vmem:[#allocation2 + $0x118] sm:$0xff] %vm517, %v1328
        %1393 = vst [vmem:[#allocation2 + $0x120] sm:$0xff] %v1329
        %1394 = vst.msk [vmem:[#allocation2 + $0x128] sm:$0xff] %vm517, %v1330
        %1395 = vst [vmem:[#allocation2 + $0x130] sm:$0xff] %v1331
        %1396 = vst.msk [vmem:[#allocation2 + $0x138] sm:$0xff] %vm517, %v1332
        %1397 = vst [vmem:[#allocation2 + $0x140] sm:$0xff] %v1333
        %1398 = vst.msk [vmem:[#allocation2 + $0x148] sm:$0xff] %vm517, %v1334
        %1399 = vst [vmem:[#allocation2 + $0x150] sm:$0xff] %v1335
        %1400 = vst.msk [vmem:[#allocation2 + $0x158] sm:$0xff] %vm517, %v1336
        %1401 = vst [vmem:[#allocation2 + $0x160] sm:$0xff] %v1337
        %1402 = vst.msk [vmem:[#allocation2 + $0x168] sm:$0xff] %vm517, %v1338
        %1403 = vst [vmem:[#allocation2 + $0x170] sm:$0xff] %v1339
        %1404 = vst.msk [vmem:[#allocation2 + $0x178] sm:$0xff] %vm517, %v1340
        %1405 = vst [vmem:[#allocation2 + $0x180] sm:$0xff] %v1341
        %1406 = vst.msk [vmem:[#allocation2 + $0x188] sm:$0xff] %vm517, %v1342
        %1407 = vst [vmem:[#allocation2 + $0x190] sm:$0xff] %v1343
        %1408 = vst.msk [vmem:[#allocation2 + $0x198] sm:$0xff] %vm517, %v1344
        %1409 = vst [vmem:[#allocation2 + $0x1a0] sm:$0xff] %v1345
        %1410 = vst.msk [vmem:[#allocation2 + $0x1a8] sm:$0xff] %vm517, %v1346
        %1411 = vst [vmem:[#allocation2 + $0x1b0] sm:$0xff] %v1347
        %1412 = vst.msk [vmem:[#allocation2 + $0x1b8] sm:$0xff] %vm517, %v1348
        %1413 = vst [vmem:[#allocation2 + $0x1c0] sm:$0xff] %v1349
        %1414 = vst.msk [vmem:[#allocation2 + $0x1c8] sm:$0xff] %vm517, %v1350
        %1415 = vst [vmem:[#allocation2 + $0x1d0] sm:$0xff] %v1351
        %1416 = vst.msk [vmem:[#allocation2 + $0x1d8] sm:$0xff] %vm517, %v1352
        %1417 = vst [vmem:[#allocation2 + $0x1e0] sm:$0xff] %v1353
        %1418 = vst.msk [vmem:[#allocation2 + $0x1e8] sm:$0xff] %vm517, %v1354
        %1419 = vst [vmem:[#allocation2 + $0x1f0] sm:$0xff] %v1355
        %1420 = vst.msk [vmem:[#allocation2 + $0x1f8] sm:$0xff] %vm517, %v1356
        %s1421 = sadd.s32 %s353, 2
        %s1422 = smul.u32 %s1421, 4
        %s1423 = smul.addr %s1422, 4
        %s1424 = scalar_lea.vmem %s302, %s1423 [#allocation3]
        %v1425 = vld [vmem:[%s1424] sm:$0xf]
        %v1426 = vld [vmem:[%s1424 + $0x4] sm:$0xf]
        %v1427 = vld [vmem:[%s1424 + $0x8] sm:$0xf]
        %v1428 = vld [vmem:[%s1424 + $0xc] sm:$0xf]
        %v1429 = vld [vmem:[%s1424 + $0x10] sm:$0xf]
        %v1430 = vld [vmem:[%s1424 + $0x14] sm:$0xf]
        %v1431 = vld [vmem:[%s1424 + $0x18] sm:$0xf]
        %v1432 = vld [vmem:[%s1424 + $0x1c] sm:$0xf]
        %v1433 = vld [vmem:[%s1424 + $0x20] sm:$0xf]
        %v1434 = vld [vmem:[%s1424 + $0x24] sm:$0xf]
        %v1435 = vld [vmem:[%s1424 + $0x28] sm:$0xf]
        %v1436 = vld [vmem:[%s1424 + $0x2c] sm:$0xf]
        %v1437 = vld [vmem:[%s1424 + $0x30] sm:$0xf]
        %v1438 = vld [vmem:[%s1424 + $0x34] sm:$0xf]
        %v1439 = vld [vmem:[%s1424 + $0x38] sm:$0xf]
        %v1440 = vld [vmem:[%s1424 + $0x3c] sm:$0xf]
        %v1441 = vld [vmem:[%s1424 + $0x40] sm:$0xf]
        %v1442 = vld [vmem:[%s1424 + $0x44] sm:$0xf]
        %v1443 = vld [vmem:[%s1424 + $0x48] sm:$0xf]
        %v1444 = vld [vmem:[%s1424 + $0x4c] sm:$0xf]
        %v1445 = vld [vmem:[%s1424 + $0x50] sm:$0xf]
        %v1446 = vld [vmem:[%s1424 + $0x54] sm:$0xf]
        %v1447 = vld [vmem:[%s1424 + $0x58] sm:$0xf]
        %v1448 = vld [vmem:[%s1424 + $0x5c] sm:$0xf]
        %v1449 = vld [vmem:[%s1424 + $0x60] sm:$0xf]
        %v1450 = vld [vmem:[%s1424 + $0x64] sm:$0xf]
        %v1451 = vld [vmem:[%s1424 + $0x68] sm:$0xf]
        %v1452 = vld [vmem:[%s1424 + $0x6c] sm:$0xf]
        %v1453 = vld [vmem:[%s1424 + $0x70] sm:$0xf]
        %v1454 = vld [vmem:[%s1424 + $0x74] sm:$0xf]
        %v1455 = vld [vmem:[%s1424 + $0x78] sm:$0xf]
        %v1456 = vld [vmem:[%s1424 + $0x7c] sm:$0xf]
        %s1457 = scalar_lea.vmem [#allocation6], 128
        %v1458 = vld [vmem:[%s1457] sm:$0xff]
        %v1459 = vld [vmem:[%s1457 + $0x8] sm:$0xff]
        %v1460 = vld [vmem:[%s1457 + $0x10] sm:$0xff]
        %v1461 = vld [vmem:[%s1457 + $0x18] sm:$0xff]
        %v1462 = vld [vmem:[%s1457 + $0x20] sm:$0xff]
        %v1463 = vld [vmem:[%s1457 + $0x28] sm:$0xff]
        %v1464 = vld [vmem:[%s1457 + $0x30] sm:$0xff]
        %v1465 = vld [vmem:[%s1457 + $0x38] sm:$0xff]
        %v1498 = vunpack.c.l.b16 %v1425
        %v1499 = vunpack.c.l.b16 %v1426
        %v1500 = vunpack.c.l.b16 %v1427
        %v1501 = vunpack.c.l.b16 %v1428
        %v1502 = vunpack.c.l.b16 %v1429
        %v1503 = vunpack.c.l.b16 %v1430
        %v1504 = vunpack.c.l.b16 %v1431
        %v1505 = vunpack.c.l.b16 %v1432
        %v1506 = vunpack.c.l.b16 %v1433
        %v1507 = vunpack.c.l.b16 %v1434
        %v1508 = vunpack.c.l.b16 %v1435
        %v1509 = vunpack.c.l.b16 %v1436
        %v1510 = vunpack.c.l.b16 %v1437
        %v1511 = vunpack.c.l.b16 %v1438
        %v1512 = vunpack.c.l.b16 %v1439
        %v1513 = vunpack.c.l.b16 %v1440
        %v1514 = vunpack.c.l.b16 %v1441
        %v1515 = vunpack.c.l.b16 %v1442
        %v1516 = vunpack.c.l.b16 %v1443
        %v1517 = vunpack.c.l.b16 %v1444
        %v1518 = vunpack.c.l.b16 %v1445
        %v1519 = vunpack.c.l.b16 %v1446
        %v1520 = vunpack.c.l.b16 %v1447
        %v1521 = vunpack.c.l.b16 %v1448
        %v1522 = vunpack.c.l.b16 %v1449
        %v1523 = vunpack.c.l.b16 %v1450
        %v1524 = vunpack.c.l.b16 %v1451
        %v1525 = vunpack.c.l.b16 %v1452
        %v1526 = vunpack.c.l.b16 %v1453
        %v1527 = vunpack.c.l.b16 %v1454
        %v1528 = vunpack.c.l.b16 %v1455
        %v1529 = vunpack.c.l.b16 %v1456
        %v1530 = vpack.c.b16 %v1499, %v1498
        %v1531 = vpack.c.b16 %v1501, %v1500
        %v1532 = vpack.c.b16 %v1503, %v1502
        %v1533 = vpack.c.b16 %v1505, %v1504
        %v1534 = vpack.c.b16 %v1507, %v1506
        %v1535 = vpack.c.b16 %v1509, %v1508
        %v1536 = vpack.c.b16 %v1511, %v1510
        %v1537 = vpack.c.b16 %v1513, %v1512
        %v1538 = vpack.c.b16 %v1515, %v1514
        %v1539 = vpack.c.b16 %v1517, %v1516
        %v1540 = vpack.c.b16 %v1519, %v1518
        %v1541 = vpack.c.b16 %v1521, %v1520
        %v1542 = vpack.c.b16 %v1523, %v1522
        %v1543 = vpack.c.b16 %v1525, %v1524
        %v1544 = vpack.c.b16 %v1527, %v1526
        %v1545 = vpack.c.b16 %v1529, %v1528
        %v1554 = vunpack.c.l.b16 %v1458
        %v1555 = vunpack.c.h.b16 %v1458
        %v1556 = vunpack.c.l.b16 %v1459
        %v1557 = vunpack.c.h.b16 %v1459
        %v1558 = vunpack.c.l.b16 %v1460
        %v1559 = vunpack.c.h.b16 %v1460
        %v1560 = vunpack.c.l.b16 %v1461
        %v1561 = vunpack.c.h.b16 %v1461
        %v1562 = vunpack.c.l.b16 %v1462
        %v1563 = vunpack.c.h.b16 %v1462
        %v1564 = vunpack.c.l.b16 %v1463
        %v1565 = vunpack.c.h.b16 %v1463
        %v1566 = vunpack.c.l.b16 %v1464
        %v1567 = vunpack.c.h.b16 %v1464
        %v1568 = vunpack.c.l.b16 %v1465
        %v1569 = vunpack.c.h.b16 %v1465
        %v1570 = vpack.c.b16 %v1556, %v1554
        %v1571 = vpack.c.b16 %v1557, %v1555
        %v1572 = vpack.c.b16 %v1560, %v1558
        %v1573 = vpack.c.b16 %v1561, %v1559
        %v1574 = vpack.c.b16 %v1564, %v1562
        %v1575 = vpack.c.b16 %v1565, %v1563
        %v1576 = vpack.c.b16 %v1568, %v1566
        %v1577 = vpack.c.b16 %v1569, %v1567
        %v1587 = vsel %vm517, %v1530, 0
        %v1590 = vsel %vm517, %v1531, 0
        %v1593 = vsel %vm517, %v1532, 0
        %v1596 = vsel %vm517, %v1533, 0
        %v1599 = vsel %vm517, %v1534, 0
        %v1602 = vsel %vm517, %v1535, 0
        %v1605 = vsel %vm517, %v1536, 0
        %v1608 = vsel %vm517, %v1537, 0
        %v1611 = vsel %vm517, %v1538, 0
        %v1614 = vsel %vm517, %v1539, 0
        %v1617 = vsel %vm517, %v1540, 0
        %v1620 = vsel %vm517, %v1541, 0
        %v1623 = vsel %vm517, %v1542, 0
        %v1626 = vsel %vm517, %v1543, 0
        %v1629 = vsel %vm517, %v1544, 0
        %v1632 = vsel %vm517, %v1545, 0
        %1634 = vmatprep.subr.bf16.mxu0 %v1571
        %1635 = vmatpush1.bf16.msra.mxu0 %v1570
        %1636 = vmatprep.subr.bf16.mxu0 %v1573
        %1637 = vmatpush1.bf16.msra.mxu0 %v1572
        %1638 = vmatprep.subr.bf16.mxu0 %v1575
        %1639 = vmatpush1.bf16.msra.mxu0 %v1574
        %1640 = vmatprep.subr.bf16.mxu0 %v1577
        %1641 = vmatpush1.bf16.msra.mxu0 %v1576
        %1642 = vmatprep.subr.bf16.mxu0 0
        %1643 = vmatpush1.bf16.msra.mxu0 0
        %1644 = vmatprep.subr.bf16.mxu0 0
        %1645 = vmatpush1.bf16.msra.mxu0 0
        %1646 = vmatprep.subr.bf16.mxu0 0
        %1647 = vmatpush1.bf16.msra.mxu0 0
        %1648 = vmatprep.subr.bf16.mxu0 0
        %1649 = vmatpush1.bf16.msra.mxu0 0
        %1650 = vmatprep.subr.bf16.mxu0 0
        %1651 = vmatpush1.bf16.msra.mxu0 0
        %1652 = vmatprep.subr.bf16.mxu0 0
        %1653 = vmatpush1.bf16.msra.mxu0 0
        %1654 = vmatprep.subr.bf16.mxu0 0
        %1655 = vmatpush1.bf16.msra.mxu0 0
        %1656 = vmatprep.subr.bf16.mxu0 0
        %1657 = vmatpush1.bf16.msra.mxu0 0
        %1658 = vmatprep.subr.bf16.mxu0 0
        %1659 = vmatpush1.bf16.msra.mxu0 0
        %1660 = vmatprep.subr.bf16.mxu0 0
        %1661 = vmatpush1.bf16.msra.mxu0 0
        %1662 = vmatprep.subr.bf16.mxu0 0
        %1663 = vmatpush1.bf16.msra.mxu0 0
        %1664 = vmatprep.subr.bf16.mxu0 0
        %1665 = vmatpush1.bf16.msra.mxu0 0
        %1666 = vmatprep.mubr.bf16.mxu0 0
        %1667 = vmatmul.mubr.bf16.gmra.mrb[0].mxu0 %v1587
        %v1668 = vpop.f32.mrb[0].mxu0
        %v1669 = vadd.f32 0.0, %v1668
        %v1670 = vpop.f32.mrb[0].mxu0
        %v1671 = vadd.f32 0.0, %v1670
        %v1672 = vpop.f32.mrb[0].mxu0
        %v1673 = vadd.f32 0.0, %v1672
        %v1674 = vpop.f32.mrb[0].mxu0
        %v1675 = vadd.f32 0.0, %v1674
        %1676 = vmatprep.mubr.bf16.mxu0 0
        %1677 = vmatmul.mubr.bf16.gmra.mrb[0].mxu0 %v1590
        %v1678 = vpop.f32.mrb[0].mxu0
        %v1679 = vadd.f32 0.0, %v1678
        %v1680 = vpop.f32.mrb[0].mxu0
        %v1681 = vadd.f32 0.0, %v1680
        %v1682 = vpop.f32.mrb[0].mxu0
        %v1683 = vadd.f32 0.0, %v1682
        %v1684 = vpop.f32.mrb[0].mxu0
        %v1685 = vadd.f32 0.0, %v1684
        %1686 = vmatprep.mubr.bf16.mxu0 0
        %1687 = vmatmul.mubr.bf16.gmra.mrb[0].mxu0 %v1593
        %v1688 = vpop.f32.mrb[0].mxu0
        %v1689 = vadd.f32 0.0, %v1688
        %v1690 = vpop.f32.mrb[0].mxu0
        %v1691 = vadd.f32 0.0, %v1690
        %v1692 = vpop.f32.mrb[0].mxu0
        %v1693 = vadd.f32 0.0, %v1692
        %v1694 = vpop.f32.mrb[0].mxu0
        %v1695 = vadd.f32 0.0, %v1694
        %1696 = vmatprep.mubr.bf16.mxu0 0
        %1697 = vmatmul.mubr.bf16.gmra.mrb[0].mxu0 %v1596
        %v1698 = vpop.f32.mrb[0].mxu0
        %v1699 = vadd.f32 0.0, %v1698
        %v1700 = vpop.f32.mrb[0].mxu0
        %v1701 = vadd.f32 0.0, %v1700
        %v1702 = vpop.f32.mrb[0].mxu0
        %v1703 = vadd.f32 0.0, %v1702
        %v1704 = vpop.f32.mrb[0].mxu0
        %v1705 = vadd.f32 0.0, %v1704
        %1706 = vmatprep.mubr.bf16.mxu0 0
        %1707 = vmatmul.mubr.bf16.gmra.mrb[0].mxu0 %v1599
        %v1708 = vpop.f32.mrb[0].mxu0
        %v1709 = vadd.f32 0.0, %v1708
        %v1710 = vpop.f32.mrb[0].mxu0
        %v1711 = vadd.f32 0.0, %v1710
        %v1712 = vpop.f32.mrb[0].mxu0
        %v1713 = vadd.f32 0.0, %v1712
        %v1714 = vpop.f32.mrb[0].mxu0
        %v1715 = vadd.f32 0.0, %v1714
        %1716 = vmatprep.mubr.bf16.mxu0 0
        %1717 = vmatmul.mubr.bf16.gmra.mrb[0].mxu0 %v1602
        %v1718 = vpop.f32.mrb[0].mxu0
        %v1719 = vadd.f32 0.0, %v1718
        %v1720 = vpop.f32.mrb[0].mxu0
        %v1721 = vadd.f32 0.0, %v1720
        %v1722 = vpop.f32.mrb[0].mxu0
        %v1723 = vadd.f32 0.0, %v1722
        %v1724 = vpop.f32.mrb[0].mxu0
        %v1725 = vadd.f32 0.0, %v1724
        %1726 = vmatprep.mubr.bf16.mxu0 0
        %1727 = vmatmul.mubr.bf16.gmra.mrb[0].mxu0 %v1605
        %v1728 = vpop.f32.mrb[0].mxu0
        %v1729 = vadd.f32 0.0, %v1728
        %v1730 = vpop.f32.mrb[0].mxu0
        %v1731 = vadd.f32 0.0, %v1730
        %v1732 = vpop.f32.mrb[0].mxu0
        %v1733 = vadd.f32 0.0, %v1732
        %v1734 = vpop.f32.mrb[0].mxu0
        %v1735 = vadd.f32 0.0, %v1734
        %1736 = vmatprep.mubr.bf16.mxu0 0
        %1737 = vmatmul.mubr.bf16.gmra.mrb[0].mxu0 %v1608
        %v1738 = vpop.f32.mrb[0].mxu0
        %v1739 = vadd.f32 0.0, %v1738
        %v1740 = vpop.f32.mrb[0].mxu0
        %v1741 = vadd.f32 0.0, %v1740
        %v1742 = vpop.f32.mrb[0].mxu0
        %v1743 = vadd.f32 0.0, %v1742
        %v1744 = vpop.f32.mrb[0].mxu0
        %v1745 = vadd.f32 0.0, %v1744
        %1746 = vmatprep.mubr.bf16.mxu0 0
        %1747 = vmatmul.mubr.bf16.gmra.mrb[0].mxu0 %v1611
        %v1748 = vpop.f32.mrb[0].mxu0
        %v1749 = vadd.f32 0.0, %v1748
        %v1750 = vpop.f32.mrb[0].mxu0
        %v1751 = vadd.f32 0.0, %v1750
        %v1752 = vpop.f32.mrb[0].mxu0
        %v1753 = vadd.f32 0.0, %v1752
        %v1754 = vpop.f32.mrb[0].mxu0
        %v1755 = vadd.f32 0.0, %v1754
        %1756 = vmatprep.mubr.bf16.mxu0 0
        %1757 = vmatmul.mubr.bf16.gmra.mrb[0].mxu0 %v1614
        %v1758 = vpop.f32.mrb[0].mxu0
        %v1759 = vadd.f32 0.0, %v1758
        %v1760 = vpop.f32.mrb[0].mxu0
        %v1761 = vadd.f32 0.0, %v1760
        %v1762 = vpop.f32.mrb[0].mxu0
        %v1763 = vadd.f32 0.0, %v1762
        %v1764 = vpop.f32.mrb[0].mxu0
        %v1765 = vadd.f32 0.0, %v1764
        %1766 = vmatprep.mubr.bf16.mxu0 0
        %1767 = vmatmul.mubr.bf16.gmra.mrb[0].mxu0 %v1617
        %v1768 = vpop.f32.mrb[0].mxu0
        %v1769 = vadd.f32 0.0, %v1768
        %v1770 = vpop.f32.mrb[0].mxu0
        %v1771 = vadd.f32 0.0, %v1770
        %v1772 = vpop.f32.mrb[0].mxu0
        %v1773 = vadd.f32 0.0, %v1772
        %v1774 = vpop.f32.mrb[0].mxu0
        %v1775 = vadd.f32 0.0, %v1774
        %1776 = vmatprep.mubr.bf16.mxu0 0
        %1777 = vmatmul.mubr.bf16.gmra.mrb[0].mxu0 %v1620
        %v1778 = vpop.f32.mrb[0].mxu0
        %v1779 = vadd.f32 0.0, %v1778
        %v1780 = vpop.f32.mrb[0].mxu0
        %v1781 = vadd.f32 0.0, %v1780
        %v1782 = vpop.f32.mrb[0].mxu0
        %v1783 = vadd.f32 0.0, %v1782
        %v1784 = vpop.f32.mrb[0].mxu0
        %v1785 = vadd.f32 0.0, %v1784
        %1786 = vmatprep.mubr.bf16.mxu0 0
        %1787 = vmatmul.mubr.bf16.gmra.mrb[0].mxu0 %v1623
        %v1788 = vpop.f32.mrb[0].mxu0
        %v1789 = vadd.f32 0.0, %v1788
        %v1790 = vpop.f32.mrb[0].mxu0
        %v1791 = vadd.f32 0.0, %v1790
        %v1792 = vpop.f32.mrb[0].mxu0
        %v1793 = vadd.f32 0.0, %v1792
        %v1794 = vpop.f32.mrb[0].mxu0
        %v1795 = vadd.f32 0.0, %v1794
        %1796 = vmatprep.mubr.bf16.mxu0 0
        %1797 = vmatmul.mubr.bf16.gmra.mrb[0].mxu0 %v1626
        %v1798 = vpop.f32.mrb[0].mxu0
        %v1799 = vadd.f32 0.0, %v1798
        %v1800 = vpop.f32.mrb[0].mxu0
        %v1801 = vadd.f32 0.0, %v1800
        %v1802 = vpop.f32.mrb[0].mxu0
        %v1803 = vadd.f32 0.0, %v1802
        %v1804 = vpop.f32.mrb[0].mxu0
        %v1805 = vadd.f32 0.0, %v1804
        %1806 = vmatprep.mubr.bf16.mxu0 0
        %1807 = vmatmul.mubr.bf16.gmra.mrb[0].mxu0 %v1629
        %v1808 = vpop.f32.mrb[0].mxu0
        %v1809 = vadd.f32 0.0, %v1808
        %v1810 = vpop.f32.mrb[0].mxu0
        %v1811 = vadd.f32 0.0, %v1810
        %v1812 = vpop.f32.mrb[0].mxu0
        %v1813 = vadd.f32 0.0, %v1812
        %v1814 = vpop.f32.mrb[0].mxu0
        %v1815 = vadd.f32 0.0, %v1814
        %1816 = vmatprep.mubr.bf16.mxu0 0
        %1817 = vmatmul.mubr.bf16.gmra.mrb[0].mxu0 %v1632
        %v1818 = vpop.f32.mrb[0].mxu0
        %v1819 = vadd.f32 0.0, %v1818
        %v1820 = vpop.f32.mrb[0].mxu0
        %v1821 = vadd.f32 0.0, %v1820
        %v1822 = vpop.f32.mrb[0].mxu0
        %v1823 = vadd.f32 0.0, %v1822
        %v1824 = vpop.f32.mrb[0].mxu0
        %v1825 = vadd.f32 0.0, %v1824
        %1826 = vdwg.mxu0
        %v1827 = vld [vmem:[#allocation2] sm:$0xff]
        %v1828 = vld [vmem:[#allocation2 + $0x8] sm:$0xff]
        %v1829 = vld [vmem:[#allocation2 + $0x10] sm:$0xff]
        %v1830 = vld [vmem:[#allocation2 + $0x18] sm:$0xff]
        %v1831 = vld [vmem:[#allocation2 + $0x20] sm:$0xff]
        %v1832 = vld [vmem:[#allocation2 + $0x28] sm:$0xff]
        %v1833 = vld [vmem:[#allocation2 + $0x30] sm:$0xff]
        %v1834 = vld [vmem:[#allocation2 + $0x38] sm:$0xff]
        %v1835 = vld [vmem:[#allocation2 + $0x40] sm:$0xff]
        %v1836 = vld [vmem:[#allocation2 + $0x48] sm:$0xff]
        %v1837 = vld [vmem:[#allocation2 + $0x50] sm:$0xff]
        %v1838 = vld [vmem:[#allocation2 + $0x58] sm:$0xff]
        %v1839 = vld [vmem:[#allocation2 + $0x60] sm:$0xff]
        %v1840 = vld [vmem:[#allocation2 + $0x68] sm:$0xff]
        %v1841 = vld [vmem:[#allocation2 + $0x70] sm:$0xff]
        %v1842 = vld [vmem:[#allocation2 + $0x78] sm:$0xff]
        %v1843 = vld [vmem:[#allocation2 + $0x80] sm:$0xff]
        %v1844 = vld [vmem:[#allocation2 + $0x88] sm:$0xff]
        %v1845 = vld [vmem:[#allocation2 + $0x90] sm:$0xff]
        %v1846 = vld [vmem:[#allocation2 + $0x98] sm:$0xff]
        %v1847 = vld [vmem:[#allocation2 + $0xa0] sm:$0xff]
        %v1848 = vld [vmem:[#allocation2 + $0xa8] sm:$0xff]
        %v1849 = vld [vmem:[#allocation2 + $0xb0] sm:$0xff]
        %v1850 = vld [vmem:[#allocation2 + $0xb8] sm:$0xff]
        %v1851 = vld [vmem:[#allocation2 + $0xc0] sm:$0xff]
        %v1852 = vld [vmem:[#allocation2 + $0xc8] sm:$0xff]
        %v1853 = vld [vmem:[#allocation2 + $0xd0] sm:$0xff]
        %v1854 = vld [vmem:[#allocation2 + $0xd8] sm:$0xff]
        %v1855 = vld [vmem:[#allocation2 + $0xe0] sm:$0xff]
        %v1856 = vld [vmem:[#allocation2 + $0xe8] sm:$0xff]
        %v1857 = vld [vmem:[#allocation2 + $0xf0] sm:$0xff]
        %v1858 = vld [vmem:[#allocation2 + $0xf8] sm:$0xff]
        %v1859 = vld [vmem:[#allocation2 + $0x100] sm:$0xff]
        %v1860 = vld [vmem:[#allocation2 + $0x108] sm:$0xff]
        %v1861 = vld [vmem:[#allocation2 + $0x110] sm:$0xff]
        %v1862 = vld [vmem:[#allocation2 + $0x118] sm:$0xff]
        %v1863 = vld [vmem:[#allocation2 + $0x120] sm:$0xff]
        %v1864 = vld [vmem:[#allocation2 + $0x128] sm:$0xff]
        %v1865 = vld [vmem:[#allocation2 + $0x130] sm:$0xff]
        %v1866 = vld [vmem:[#allocation2 + $0x138] sm:$0xff]
        %v1867 = vld [vmem:[#allocation2 + $0x140] sm:$0xff]
        %v1868 = vld [vmem:[#allocation2 + $0x148] sm:$0xff]
        %v1869 = vld [vmem:[#allocation2 + $0x150] sm:$0xff]
        %v1870 = vld [vmem:[#allocation2 + $0x158] sm:$0xff]
        %v1871 = vld [vmem:[#allocation2 + $0x160] sm:$0xff]
        %v1872 = vld [vmem:[#allocation2 + $0x168] sm:$0xff]
        %v1873 = vld [vmem:[#allocation2 + $0x170] sm:$0xff]
        %v1874 = vld [vmem:[#allocation2 + $0x178] sm:$0xff]
        %v1875 = vld [vmem:[#allocation2 + $0x180] sm:$0xff]
        %v1876 = vld [vmem:[#allocation2 + $0x188] sm:$0xff]
        %v1877 = vld [vmem:[#allocation2 + $0x190] sm:$0xff]
        %v1878 = vld [vmem:[#allocation2 + $0x198] sm:$0xff]
        %v1879 = vld [vmem:[#allocation2 + $0x1a0] sm:$0xff]
        %v1880 = vld [vmem:[#allocation2 + $0x1a8] sm:$0xff]
        %v1881 = vld [vmem:[#allocation2 + $0x1b0] sm:$0xff]
        %v1882 = vld [vmem:[#allocation2 + $0x1b8] sm:$0xff]
        %v1883 = vld [vmem:[#allocation2 + $0x1c0] sm:$0xff]
        %v1884 = vld [vmem:[#allocation2 + $0x1c8] sm:$0xff]
        %v1885 = vld [vmem:[#allocation2 + $0x1d0] sm:$0xff]
        %v1886 = vld [vmem:[#allocation2 + $0x1d8] sm:$0xff]
        %v1887 = vld [vmem:[#allocation2 + $0x1e0] sm:$0xff]
        %v1888 = vld [vmem:[#allocation2 + $0x1e8] sm:$0xff]
        %v1889 = vld [vmem:[#allocation2 + $0x1f0] sm:$0xff]
        %v1890 = vld [vmem:[#allocation2 + $0x1f8] sm:$0xff]
        %v1891 = vadd.f32 %v1827, %v1669
        %v1892 = vadd.f32 %v1828, %v1671
        %v1893 = vadd.f32 %v1829, %v1673
        %v1894 = vadd.f32 %v1830, %v1675
        %v1895 = vadd.f32 %v1831, %v1679
        %v1896 = vadd.f32 %v1832, %v1681
        %v1897 = vadd.f32 %v1833, %v1683
        %v1898 = vadd.f32 %v1834, %v1685
        %v1899 = vadd.f32 %v1835, %v1689
        %v1900 = vadd.f32 %v1836, %v1691
        %v1901 = vadd.f32 %v1837, %v1693
        %v1902 = vadd.f32 %v1838, %v1695
        %v1903 = vadd.f32 %v1839, %v1699
        %v1904 = vadd.f32 %v1840, %v1701
        %v1905 = vadd.f32 %v1841, %v1703
        %v1906 = vadd.f32 %v1842, %v1705
        %v1907 = vadd.f32 %v1843, %v1709
        %v1908 = vadd.f32 %v1844, %v1711
        %v1909 = vadd.f32 %v1845, %v1713
        %v1910 = vadd.f32 %v1846, %v1715
        %v1911 = vadd.f32 %v1847, %v1719
        %v1912 = vadd.f32 %v1848, %v1721
        %v1913 = vadd.f32 %v1849, %v1723
        %v1914 = vadd.f32 %v1850, %v1725
        %v1915 = vadd.f32 %v1851, %v1729
        %v1916 = vadd.f32 %v1852, %v1731
        %v1917 = vadd.f32 %v1853, %v1733
        %v1918 = vadd.f32 %v1854, %v1735
        %v1919 = vadd.f32 %v1855, %v1739
        %v1920 = vadd.f32 %v1856, %v1741
        %v1921 = vadd.f32 %v1857, %v1743
        %v1922 = vadd.f32 %v1858, %v1745
        %v1923 = vadd.f32 %v1859, %v1749
        %v1924 = vadd.f32 %v1860, %v1751
        %v1925 = vadd.f32 %v1861, %v1753
        %v1926 = vadd.f32 %v1862, %v1755
        %v1927 = vadd.f32 %v1863, %v1759
        %v1928 = vadd.f32 %v1864, %v1761
        %v1929 = vadd.f32 %v1865, %v1763
        %v1930 = vadd.f32 %v1866, %v1765
        %v1931 = vadd.f32 %v1867, %v1769
        %v1932 = vadd.f32 %v1868, %v1771
        %v1933 = vadd.f32 %v1869, %v1773
        %v1934 = vadd.f32 %v1870, %v1775
        %v1935 = vadd.f32 %v1871, %v1779
        %v1936 = vadd.f32 %v1872, %v1781
        %v1937 = vadd.f32 %v1873, %v1783
        %v1938 = vadd.f32 %v1874, %v1785
        %v1939 = vadd.f32 %v1875, %v1789
        %v1940 = vadd.f32 %v1876, %v1791
        %v1941 = vadd.f32 %v1877, %v1793
        %v1942 = vadd.f32 %v1878, %v1795
        %v1943 = vadd.f32 %v1879, %v1799
        %v1944 = vadd.f32 %v1880, %v1801
        %v1945 = vadd.f32 %v1881, %v1803
        %v1946 = vadd.f32 %v1882, %v1805
        %v1947 = vadd.f32 %v1883, %v1809
        %v1948 = vadd.f32 %v1884, %v1811
        %v1949 = vadd.f32 %v1885, %v1813
        %v1950 = vadd.f32 %v1886, %v1815
        %v1951 = vadd.f32 %v1887, %v1819
        %v1952 = vadd.f32 %v1888, %v1821
        %v1953 = vadd.f32 %v1889, %v1823
        %v1954 = vadd.f32 %v1890, %v1825
        %1955 = vst [vmem:[#allocation2] sm:$0xff] %v1891
        %1956 = vst.msk [vmem:[#allocation2 + $0x8] sm:$0xff] %vm517, %v1892
        %1957 = vst [vmem:[#allocation2 + $0x10] sm:$0xff] %v1893
        %1958 = vst.msk [vmem:[#allocation2 + $0x18] sm:$0xff] %vm517, %v1894
        %1959 = vst [vmem:[#allocation2 + $0x20] sm:$0xff] %v1895
        %1960 = vst.msk [vmem:[#allocation2 + $0x28] sm:$0xff] %vm517, %v1896
        %1961 = vst [vmem:[#allocation2 + $0x30] sm:$0xff] %v1897
        %1962 = vst.msk [vmem:[#allocation2 + $0x38] sm:$0xff] %vm517, %v1898
        %1963 = vst [vmem:[#allocation2 + $0x40] sm:$0xff] %v1899
        %1964 = vst.msk [vmem:[#allocation2 + $0x48] sm:$0xff] %vm517, %v1900
        %1965 = vst [vmem:[#allocation2 + $0x50] sm:$0xff] %v1901
        %1966 = vst.msk [vmem:[#allocation2 + $0x58] sm:$0xff] %vm517, %v1902
        %1967 = vst [vmem:[#allocation2 + $0x60] sm:$0xff] %v1903
        %1968 = vst.msk [vmem:[#allocation2 + $0x68] sm:$0xff] %vm517, %v1904
        %1969 = vst [vmem:[#allocation2 + $0x70] sm:$0xff] %v1905
        %1970 = vst.msk [vmem:[#allocation2 + $0x78] sm:$0xff] %vm517, %v1906
        %1971 = vst [vmem:[#allocation2 + $0x80] sm:$0xff] %v1907
        %1972 = vst.msk [vmem:[#allocation2 + $0x88] sm:$0xff] %vm517, %v1908
        %1973 = vst [vmem:[#allocation2 + $0x90] sm:$0xff] %v1909
        %1974 = vst.msk [vmem:[#allocation2 + $0x98] sm:$0xff] %vm517, %v1910
        %1975 = vst [vmem:[#allocation2 + $0xa0] sm:$0xff] %v1911
        %1976 = vst.msk [vmem:[#allocation2 + $0xa8] sm:$0xff] %vm517, %v1912
        %1977 = vst [vmem:[#allocation2 + $0xb0] sm:$0xff] %v1913
        %1978 = vst.msk [vmem:[#allocation2 + $0xb8] sm:$0xff] %vm517, %v1914
        %1979 = vst [vmem:[#allocation2 + $0xc0] sm:$0xff] %v1915
        %1980 = vst.msk [vmem:[#allocation2 + $0xc8] sm:$0xff] %vm517, %v1916
        %1981 = vst [vmem:[#allocation2 + $0xd0] sm:$0xff] %v1917
        %1982 = vst.msk [vmem:[#allocation2 + $0xd8] sm:$0xff] %vm517, %v1918
        %1983 = vst [vmem:[#allocation2 + $0xe0] sm:$0xff] %v1919
        %1984 = vst.msk [vmem:[#allocation2 + $0xe8] sm:$0xff] %vm517, %v1920
        %1985 = vst [vmem:[#allocation2 + $0xf0] sm:$0xff] %v1921
        %1986 = vst.msk [vmem:[#allocation2 + $0xf8] sm:$0xff] %vm517, %v1922
        %1987 = vst [vmem:[#allocation2 + $0x100] sm:$0xff] %v1923
        %1988 = vst.msk [vmem:[#allocation2 + $0x108] sm:$0xff] %vm517, %v1924
        %1989 = vst [vmem:[#allocation2 + $0x110] sm:$0xff] %v1925
        %1990 = vst.msk [vmem:[#allocation2 + $0x118] sm:$0xff] %vm517, %v1926
        %1991 = vst [vmem:[#allocation2 + $0x120] sm:$0xff] %v1927
        %1992 = vst.msk [vmem:[#allocation2 + $0x128] sm:$0xff] %vm517, %v1928
        %1993 = vst [vmem:[#allocation2 + $0x130] sm:$0xff] %v1929
        %1994 = vst.msk [vmem:[#allocation2 + $0x138] sm:$0xff] %vm517, %v1930
        %1995 = vst [vmem:[#allocation2 + $0x140] sm:$0xff] %v1931
        %1996 = vst.msk [vmem:[#allocation2 + $0x148] sm:$0xff] %vm517, %v1932
        %1997 = vst [vmem:[#allocation2 + $0x150] sm:$0xff] %v1933
        %1998 = vst.msk [vmem:[#allocation2 + $0x158] sm:$0xff] %vm517, %v1934
        %1999 = vst [vmem:[#allocation2 + $0x160] sm:$0xff] %v1935
        %2000 = vst.msk [vmem:[#allocation2 + $0x168] sm:$0xff] %vm517, %v1936
        %2001 = vst [vmem:[#allocation2 + $0x170] sm:$0xff] %v1937
        %2002 = vst.msk [vmem:[#allocation2 + $0x178] sm:$0xff] %vm517, %v1938
        %2003 = vst [vmem:[#allocation2 + $0x180] sm:$0xff] %v1939
        %2004 = vst.msk [vmem:[#allocation2 + $0x188] sm:$0xff] %vm517, %v1940
        %2005 = vst [vmem:[#allocation2 + $0x190] sm:$0xff] %v1941
        %2006 = vst.msk [vmem:[#allocation2 + $0x198] sm:$0xff] %vm517, %v1942
        %2007 = vst [vmem:[#allocation2 + $0x1a0] sm:$0xff] %v1943
        %2008 = vst.msk [vmem:[#allocation2 + $0x1a8] sm:$0xff] %vm517, %v1944
        %2009 = vst [vmem:[#allocation2 + $0x1b0] sm:$0xff] %v1945
        %2010 = vst.msk [vmem:[#allocation2 + $0x1b8] sm:$0xff] %vm517, %v1946
        %2011 = vst [vmem:[#allocation2 + $0x1c0] sm:$0xff] %v1947
        %2012 = vst.msk [vmem:[#allocation2 + $0x1c8] sm:$0xff] %vm517, %v1948
        %2013 = vst [vmem:[#allocation2 + $0x1d0] sm:$0xff] %v1949
        %2014 = vst.msk [vmem:[#allocation2 + $0x1d8] sm:$0xff] %vm517, %v1950
        %2015 = vst [vmem:[#allocation2 + $0x1e0] sm:$0xff] %v1951
        %2016 = vst.msk [vmem:[#allocation2 + $0x1e8] sm:$0xff] %vm517, %v1952
        %2017 = vst [vmem:[#allocation2 + $0x1f0] sm:$0xff] %v1953
        %2018 = vst.msk [vmem:[#allocation2 + $0x1f8] sm:$0xff] %vm517, %v1954
        %v2019 = vld [vmem:[#allocation2] sm:$0xff]
        %v2020 = vld [vmem:[#allocation2 + $0x8] sm:$0xff]
        %v2021 = vld [vmem:[#allocation2 + $0x10] sm:$0xff]
        %v2022 = vld [vmem:[#allocation2 + $0x18] sm:$0xff]
        %v2023 = vld [vmem:[#allocation2 + $0x20] sm:$0xff]
        %v2024 = vld [vmem:[#allocation2 + $0x28] sm:$0xff]
        %v2025 = vld [vmem:[#allocation2 + $0x30] sm:$0xff]
        %v2026 = vld [vmem:[#allocation2 + $0x38] sm:$0xff]
        %v2027 = vld [vmem:[#allocation2 + $0x40] sm:$0xff]
        %v2028 = vld [vmem:[#allocation2 + $0x48] sm:$0xff]
        %v2029 = vld [vmem:[#allocation2 + $0x50] sm:$0xff]
        %v2030 = vld [vmem:[#allocation2 + $0x58] sm:$0xff]
        %v2031 = vld [vmem:[#allocation2 + $0x60] sm:$0xff]
        %v2032 = vld [vmem:[#allocation2 + $0x68] sm:$0xff]
        %v2033 = vld [vmem:[#allocation2 + $0x70] sm:$0xff]
        %v2034 = vld [vmem:[#allocation2 + $0x78] sm:$0xff]
        %v2035 = vld [vmem:[#allocation2 + $0x80] sm:$0xff]
        %v2036 = vld [vmem:[#allocation2 + $0x88] sm:$0xff]
        %v2037 = vld [vmem:[#allocation2 + $0x90] sm:$0xff]
        %v2038 = vld [vmem:[#allocation2 + $0x98] sm:$0xff]
        %v2039 = vld [vmem:[#allocation2 + $0xa0] sm:$0xff]
        %v2040 = vld [vmem:[#allocation2 + $0xa8] sm:$0xff]
        %v2041 = vld [vmem:[#allocation2 + $0xb0] sm:$0xff]
        %v2042 = vld [vmem:[#allocation2 + $0xb8] sm:$0xff]
        %v2043 = vld [vmem:[#allocation2 + $0xc0] sm:$0xff]
        %v2044 = vld [vmem:[#allocation2 + $0xc8] sm:$0xff]
        %v2045 = vld [vmem:[#allocation2 + $0xd0] sm:$0xff]
        %v2046 = vld [vmem:[#allocation2 + $0xd8] sm:$0xff]
        %v2047 = vld [vmem:[#allocation2 + $0xe0] sm:$0xff]
        %v2048 = vld [vmem:[#allocation2 + $0xe8] sm:$0xff]
        %v2049 = vld [vmem:[#allocation2 + $0xf0] sm:$0xff]
        %v2050 = vld [vmem:[#allocation2 + $0xf8] sm:$0xff]
        %v2051 = vld [vmem:[#allocation2 + $0x100] sm:$0xff]
        %v2052 = vld [vmem:[#allocation2 + $0x108] sm:$0xff]
        %v2053 = vld [vmem:[#allocation2 + $0x110] sm:$0xff]
        %v2054 = vld [vmem:[#allocation2 + $0x118] sm:$0xff]
        %v2055 = vld [vmem:[#allocation2 + $0x120] sm:$0xff]
        %v2056 = vld [vmem:[#allocation2 + $0x128] sm:$0xff]
        %v2057 = vld [vmem:[#allocation2 + $0x130] sm:$0xff]
        %v2058 = vld [vmem:[#allocation2 + $0x138] sm:$0xff]
        %v2059 = vld [vmem:[#allocation2 + $0x140] sm:$0xff]
        %v2060 = vld [vmem:[#allocation2 + $0x148] sm:$0xff]
        %v2061 = vld [vmem:[#allocation2 + $0x150] sm:$0xff]
        %v2062 = vld [vmem:[#allocation2 + $0x158] sm:$0xff]
        %v2063 = vld [vmem:[#allocation2 + $0x160] sm:$0xff]
        %v2064 = vld [vmem:[#allocation2 + $0x168] sm:$0xff]
        %v2065 = vld [vmem:[#allocation2 + $0x170] sm:$0xff]
        %v2066 = vld [vmem:[#allocation2 + $0x178] sm:$0xff]
        %v2067 = vld [vmem:[#allocation2 + $0x180] sm:$0xff]
        %v2068 = vld [vmem:[#allocation2 + $0x188] sm:$0xff]
        %v2069 = vld [vmem:[#allocation2 + $0x190] sm:$0xff]
        %v2070 = vld [vmem:[#allocation2 + $0x198] sm:$0xff]
        %v2071 = vld [vmem:[#allocation2 + $0x1a0] sm:$0xff]
        %v2072 = vld [vmem:[#allocation2 + $0x1a8] sm:$0xff]
        %v2073 = vld [vmem:[#allocation2 + $0x1b0] sm:$0xff]
        %v2074 = vld [vmem:[#allocation2 + $0x1b8] sm:$0xff]
        %v2075 = vld [vmem:[#allocation2 + $0x1c0] sm:$0xff]
        %v2076 = vld [vmem:[#allocation2 + $0x1c8] sm:$0xff]
        %v2077 = vld [vmem:[#allocation2 + $0x1d0] sm:$0xff]
        %v2078 = vld [vmem:[#allocation2 + $0x1d8] sm:$0xff]
        %v2079 = vld [vmem:[#allocation2 + $0x1e0] sm:$0xff]
        %v2080 = vld [vmem:[#allocation2 + $0x1e8] sm:$0xff]
        %v2081 = vld [vmem:[#allocation2 + $0x1f0] sm:$0xff]
        %v2082 = vld [vmem:[#allocation2 + $0x1f8] sm:$0xff]
        %v2083 = vpack.c.bf16 %v2021, %v2019
        %v2084 = vpack.c.bf16 %v2025, %v2023
        %v2085 = vpack.c.bf16 %v2029, %v2027
        %v2086 = vpack.c.bf16 %v2033, %v2031
        %v2087 = vpack.c.bf16 %v2037, %v2035
        %v2088 = vpack.c.bf16 %v2041, %v2039
        %v2089 = vpack.c.bf16 %v2045, %v2043
        %v2090 = vpack.c.bf16 %v2049, %v2047
        %v2091 = vpack.c.bf16 %v2053, %v2051
        %v2092 = vpack.c.bf16 %v2057, %v2055
        %v2093 = vpack.c.bf16 %v2061, %v2059
        %v2094 = vpack.c.bf16 %v2065, %v2063
        %v2095 = vpack.c.bf16 %v2069, %v2067
        %v2096 = vpack.c.bf16 %v2073, %v2071
        %v2097 = vpack.c.bf16 %v2077, %v2075
        %v2098 = vpack.c.bf16 %v2081, %v2079
        %v2099 = vpack.c.bf16 %v2022, %v2020
        %v2100 = vpack.c.bf16 %v2026, %v2024
        %v2101 = vpack.c.bf16 %v2030, %v2028
        %v2102 = vpack.c.bf16 %v2034, %v2032
        %v2103 = vpack.c.bf16 %v2038, %v2036
        %v2104 = vpack.c.bf16 %v2042, %v2040
        %v2105 = vpack.c.bf16 %v2046, %v2044
        %v2106 = vpack.c.bf16 %v2050, %v2048
        %v2107 = vpack.c.bf16 %v2054, %v2052
        %v2108 = vpack.c.bf16 %v2058, %v2056
        %v2109 = vpack.c.bf16 %v2062, %v2060
        %v2110 = vpack.c.bf16 %v2066, %v2064
        %v2111 = vpack.c.bf16 %v2070, %v2068
        %v2112 = vpack.c.bf16 %v2074, %v2072
        %v2113 = vpack.c.bf16 %v2078, %v2076
        %v2114 = vpack.c.bf16 %v2082, %v2080
        %v2115 = vld [vmem:[#allocation8] sm:$0xff]
        %v2116 = vld [vmem:[#allocation8 + $0x8] sm:$0xff]
        %v2117 = vld [vmem:[#allocation8 + $0x10] sm:$0xff]
        %v2118 = vld [vmem:[#allocation8 + $0x18] sm:$0xff]
        %v2119 = vld [vmem:[#allocation8 + $0x20] sm:$0xff]
        %v2120 = vld [vmem:[#allocation8 + $0x28] sm:$0xff]
        %v2121 = vld [vmem:[#allocation8 + $0x30] sm:$0xff]
        %v2122 = vld [vmem:[#allocation8 + $0x38] sm:$0xff]
        %v2123 = vld [vmem:[#allocation8 + $0x40] sm:$0xff]
        %v2124 = vld [vmem:[#allocation8 + $0x48] sm:$0xff]
        %v2125 = vld [vmem:[#allocation8 + $0x50] sm:$0xff]
        %v2126 = vld [vmem:[#allocation8 + $0x58] sm:$0xff]
        %v2127 = vld [vmem:[#allocation8 + $0x60] sm:$0xff]
        %v2128 = vld [vmem:[#allocation8 + $0x68] sm:$0xff]
        %v2129 = vld [vmem:[#allocation8 + $0x70] sm:$0xff]
        %v2130 = vld [vmem:[#allocation8 + $0x78] sm:$0xff]
        %v2131 = vld [vmem:[#allocation8 + $0x80] sm:$0xff]
        %v2132 = vld [vmem:[#allocation8 + $0x88] sm:$0xff]
        %v2133 = vld [vmem:[#allocation8 + $0x90] sm:$0xff]
        %v2134 = vld [vmem:[#allocation8 + $0x98] sm:$0xff]
        %v2135 = vld [vmem:[#allocation8 + $0xa0] sm:$0xff]
        %v2136 = vld [vmem:[#allocation8 + $0xa8] sm:$0xff]
        %v2137 = vld [vmem:[#allocation8 + $0xb0] sm:$0xff]
        %v2138 = vld [vmem:[#allocation8 + $0xb8] sm:$0xff]
        %v2139 = vld [vmem:[#allocation8 + $0xc0] sm:$0xff]
        %v2140 = vld [vmem:[#allocation8 + $0xc8] sm:$0xff]
        %v2141 = vld [vmem:[#allocation8 + $0xd0] sm:$0xff]
        %v2142 = vld [vmem:[#allocation8 + $0xd8] sm:$0xff]
        %v2143 = vld [vmem:[#allocation8 + $0xe0] sm:$0xff]
        %v2144 = vld [vmem:[#allocation8 + $0xe8] sm:$0xff]
        %v2145 = vld [vmem:[#allocation8 + $0xf0] sm:$0xff]
        %v2146 = vld [vmem:[#allocation8 + $0xf8] sm:$0xff]
        %v2179 = vunpack.c.l.b16 %v2115
        %v2180 = vunpack.c.h.b16 %v2115
        %v2181 = vunpack.c.l.b16 %v2116
        %v2182 = vunpack.c.h.b16 %v2116
        %v2183 = vunpack.c.l.b16 %v2117
        %v2184 = vunpack.c.h.b16 %v2117
        %v2185 = vunpack.c.l.b16 %v2118
        %v2186 = vunpack.c.h.b16 %v2118
        %v2187 = vunpack.c.l.b16 %v2119
        %v2188 = vunpack.c.h.b16 %v2119
        %v2189 = vunpack.c.l.b16 %v2120
        %v2190 = vunpack.c.h.b16 %v2120
        %v2191 = vunpack.c.l.b16 %v2121
        %v2192 = vunpack.c.h.b16 %v2121
        %v2193 = vunpack.c.l.b16 %v2122
        %v2194 = vunpack.c.h.b16 %v2122
        %v2195 = vunpack.c.l.b16 %v2123
        %v2196 = vunpack.c.h.b16 %v2123
        %v2197 = vunpack.c.l.b16 %v2124
        %v2198 = vunpack.c.h.b16 %v2124
        %v2199 = vunpack.c.l.b16 %v2125
        %v2200 = vunpack.c.h.b16 %v2125
        %v2201 = vunpack.c.l.b16 %v2126
        %v2202 = vunpack.c.h.b16 %v2126
        %v2203 = vunpack.c.l.b16 %v2127
        %v2204 = vunpack.c.h.b16 %v2127
        %v2205 = vunpack.c.l.b16 %v2128
        %v2206 = vunpack.c.h.b16 %v2128
        %v2207 = vunpack.c.l.b16 %v2129
        %v2208 = vunpack.c.h.b16 %v2129
        %v2209 = vunpack.c.l.b16 %v2130
        %v2210 = vunpack.c.h.b16 %v2130
        %v2211 = vunpack.c.l.b16 %v2131
        %v2212 = vunpack.c.h.b16 %v2131
        %v2213 = vunpack.c.l.b16 %v2132
        %v2214 = vunpack.c.h.b16 %v2132
        %v2215 = vunpack.c.l.b16 %v2133
        %v2216 = vunpack.c.h.b16 %v2133
        %v2217 = vunpack.c.l.b16 %v2134
        %v2218 = vunpack.c.h.b16 %v2134
        %v2219 = vunpack.c.l.b16 %v2135
        %v2220 = vunpack.c.h.b16 %v2135
        %v2221 = vunpack.c.l.b16 %v2136
        %v2222 = vunpack.c.h.b16 %v2136
        %v2223 = vunpack.c.l.b16 %v2137
        %v2224 = vunpack.c.h.b16 %v2137
        %v2225 = vunpack.c.l.b16 %v2138
        %v2226 = vunpack.c.h.b16 %v2138
        %v2227 = vunpack.c.l.b16 %v2139
        %v2228 = vunpack.c.h.b16 %v2139
        %v2229 = vunpack.c.l.b16 %v2140
        %v2230 = vunpack.c.h.b16 %v2140
        %v2231 = vunpack.c.l.b16 %v2141
        %v2232 = vunpack.c.h.b16 %v2141
        %v2233 = vunpack.c.l.b16 %v2142
        %v2234 = vunpack.c.h.b16 %v2142
        %v2235 = vunpack.c.l.b16 %v2143
        %v2236 = vunpack.c.h.b16 %v2143
        %v2237 = vunpack.c.l.b16 %v2144
        %v2238 = vunpack.c.h.b16 %v2144
        %v2239 = vunpack.c.l.b16 %v2145
        %v2240 = vunpack.c.h.b16 %v2145
        %v2241 = vunpack.c.l.b16 %v2146
        %v2242 = vunpack.c.h.b16 %v2146
        %v2243 = vpack.c.b16 %v2181, %v2179
        %v2244 = vpack.c.b16 %v2182, %v2180
        %v2245 = vpack.c.b16 %v2185, %v2183
        %v2246 = vpack.c.b16 %v2186, %v2184
        %v2247 = vpack.c.b16 %v2189, %v2187
        %v2248 = vpack.c.b16 %v2190, %v2188
        %v2249 = vpack.c.b16 %v2193, %v2191
        %v2250 = vpack.c.b16 %v2194, %v2192
        %v2251 = vpack.c.b16 %v2197, %v2195
        %v2252 = vpack.c.b16 %v2198, %v2196
        %v2253 = vpack.c.b16 %v2201, %v2199
        %v2254 = vpack.c.b16 %v2202, %v2200
        %v2255 = vpack.c.b16 %v2205, %v2203
        %v2256 = vpack.c.b16 %v2206, %v2204
        %v2257 = vpack.c.b16 %v2209, %v2207
        %v2258 = vpack.c.b16 %v2210, %v2208
        %v2259 = vpack.c.b16 %v2213, %v2211
        %v2260 = vpack.c.b16 %v2214, %v2212
        %v2261 = vpack.c.b16 %v2217, %v2215
        %v2262 = vpack.c.b16 %v2218, %v2216
        %v2263 = vpack.c.b16 %v2221, %v2219
        %v2264 = vpack.c.b16 %v2222, %v2220
        %v2265 = vpack.c.b16 %v2225, %v2223
        %v2266 = vpack.c.b16 %v2226, %v2224
        %v2267 = vpack.c.b16 %v2229, %v2227
        %v2268 = vpack.c.b16 %v2230, %v2228
        %v2269 = vpack.c.b16 %v2233, %v2231
        %v2270 = vpack.c.b16 %v2234, %v2232
        %v2271 = vpack.c.b16 %v2237, %v2235
        %v2272 = vpack.c.b16 %v2238, %v2236
        %v2273 = vpack.c.b16 %v2241, %v2239
        %v2274 = vpack.c.b16 %v2242, %v2240
        %2307 = vmatprep.subr.bf16.mxu0 0
        %2308 = vmatpush1.bf16.msra.mxu0 %v2083
        %2309 = vmatprep.subr.bf16.mxu0 0
        %2310 = vmatpush1.bf16.msra.mxu0 %v2084
        %2311 = vmatprep.subr.bf16.mxu0 0
        %2312 = vmatpush1.bf16.msra.mxu0 %v2085
        %2313 = vmatprep.subr.bf16.mxu0 0
        %2314 = vmatpush1.bf16.msra.mxu0 %v2086
        %2315 = vmatprep.subr.bf16.mxu0 0
        %2316 = vmatpush1.bf16.msra.mxu0 %v2087
        %2317 = vmatprep.subr.bf16.mxu0 0
        %2318 = vmatpush1.bf16.msra.mxu0 %v2088
        %2319 = vmatprep.subr.bf16.mxu0 0
        %2320 = vmatpush1.bf16.msra.mxu0 %v2089
        %2321 = vmatprep.subr.bf16.mxu0 0
        %2322 = vmatpush1.bf16.msra.mxu0 %v2090
        %2323 = vmatprep.subr.bf16.mxu0 0
        %2324 = vmatpush1.bf16.msra.mxu0 %v2091
        %2325 = vmatprep.subr.bf16.mxu0 0
        %2326 = vmatpush1.bf16.msra.mxu0 %v2092
        %2327 = vmatprep.subr.bf16.mxu0 0
        %2328 = vmatpush1.bf16.msra.mxu0 %v2093
        %2329 = vmatprep.subr.bf16.mxu0 0
        %2330 = vmatpush1.bf16.msra.mxu0 %v2094
        %2331 = vmatprep.subr.bf16.mxu0 0
        %2332 = vmatpush1.bf16.msra.mxu0 %v2095
        %2333 = vmatprep.subr.bf16.mxu0 0
        %2334 = vmatpush1.bf16.msra.mxu0 %v2096
        %2335 = vmatprep.subr.bf16.mxu0 0
        %2336 = vmatpush1.bf16.msra.mxu0 %v2097
        %2337 = vmatprep.subr.bf16.mxu0 0
        %2338 = vmatpush1.bf16.msra.mxu0 %v2098
        %2339 = vmatprep.mubr.bf16.mxu0 %v2244
        %2340 = vmatmul.mubr.bf16.gmra.mrb[0].mxu0 %v2243
        %v2341 = vpop.f32.mrb[0].mxu0
        %v2342 = vadd.f32 0.0, %v2341
        %v2343 = vpop.f32.mrb[0].mxu0
        %v2344 = vpop.f32.mrb[0].mxu0
        %v2345 = vadd.f32 0.0, %v2344
        %v2346 = vpop.f32.mrb[0].mxu0
        %2347 = vmatprep.mubr.bf16.mxu0 %v2246
        %2348 = vmatmul.mubr.bf16.gmra.mrb[0].mxu0 %v2245
        %v2349 = vpop.f32.mrb[0].mxu0
        %v2350 = vadd.f32 0.0, %v2349
        %v2351 = vpop.f32.mrb[0].mxu0
        %v2352 = vpop.f32.mrb[0].mxu0
        %v2353 = vadd.f32 0.0, %v2352
        %v2354 = vpop.f32.mrb[0].mxu0
        %2355 = vmatprep.mubr.bf16.mxu0 %v2248
        %2356 = vmatmul.mubr.bf16.gmra.mrb[0].mxu0 %v2247
        %v2357 = vpop.f32.mrb[0].mxu0
        %v2358 = vadd.f32 0.0, %v2357
        %v2359 = vpop.f32.mrb[0].mxu0
        %v2360 = vpop.f32.mrb[0].mxu0
        %v2361 = vadd.f32 0.0, %v2360
        %v2362 = vpop.f32.mrb[0].mxu0
        %2363 = vmatprep.mubr.bf16.mxu0 %v2250
        %2364 = vmatmul.mubr.bf16.gmra.mrb[0].mxu0 %v2249
        %v2365 = vpop.f32.mrb[0].mxu0
        %v2366 = vadd.f32 0.0, %v2365
        %v2367 = vpop.f32.mrb[0].mxu0
        %v2368 = vpop.f32.mrb[0].mxu0
        %v2369 = vadd.f32 0.0, %v2368
        %v2370 = vpop.f32.mrb[0].mxu0
        %2371 = vmatprep.mubr.bf16.mxu0 %v2252
        %2372 = vmatmul.mubr.bf16.gmra.mrb[0].mxu0 %v2251
        %v2373 = vpop.f32.mrb[0].mxu0
        %v2374 = vadd.f32 0.0, %v2373
        %v2375 = vpop.f32.mrb[0].mxu0
        %v2376 = vpop.f32.mrb[0].mxu0
        %v2377 = vadd.f32 0.0, %v2376
        %v2378 = vpop.f32.mrb[0].mxu0
        %2379 = vmatprep.mubr.bf16.mxu0 %v2254
        %2380 = vmatmul.mubr.bf16.gmra.mrb[0].mxu0 %v2253
        %v2381 = vpop.f32.mrb[0].mxu0
        %v2382 = vadd.f32 0.0, %v2381
        %v2383 = vpop.f32.mrb[0].mxu0
        %v2384 = vpop.f32.mrb[0].mxu0
        %v2385 = vadd.f32 0.0, %v2384
        %v2386 = vpop.f32.mrb[0].mxu0
        %2387 = vmatprep.mubr.bf16.mxu0 %v2256
        %2388 = vmatmul.mubr.bf16.gmra.mrb[0].mxu0 %v2255
        %v2389 = vpop.f32.mrb[0].mxu0
        %v2390 = vadd.f32 0.0, %v2389
        %v2391 = vpop.f32.mrb[0].mxu0
        %v2392 = vpop.f32.mrb[0].mxu0
        %v2393 = vadd.f32 0.0, %v2392
        %v2394 = vpop.f32.mrb[0].mxu0
        %2395 = vmatprep.mubr.bf16.mxu0 %v2258
        %2396 = vmatmul.mubr.bf16.gmra.mrb[0].mxu0 %v2257
        %v2397 = vpop.f32.mrb[0].mxu0
        %v2398 = vadd.f32 0.0, %v2397
        %v2399 = vpop.f32.mrb[0].mxu0
        %v2400 = vpop.f32.mrb[0].mxu0
        %v2401 = vadd.f32 0.0, %v2400
        %v2402 = vpop.f32.mrb[0].mxu0
        %2403 = vmatprep.mubr.bf16.mxu0 %v2260
        %2404 = vmatmul.mubr.bf16.gmra.mrb[0].mxu0 %v2259
        %v2405 = vpop.f32.mrb[0].mxu0
        %v2406 = vadd.f32 0.0, %v2405
        %v2407 = vpop.f32.mrb[0].mxu0
        %v2408 = vpop.f32.mrb[0].mxu0
        %v2409 = vadd.f32 0.0, %v2408
        %v2410 = vpop.f32.mrb[0].mxu0
        %2411 = vmatprep.mubr.bf16.mxu0 %v2262
        %2412 = vmatmul.mubr.bf16.gmra.mrb[0].mxu0 %v2261
        %v2413 = vpop.f32.mrb[0].mxu0
        %v2414 = vadd.f32 0.0, %v2413
        %v2415 = vpop.f32.mrb[0].mxu0
        %v2416 = vpop.f32.mrb[0].mxu0
        %v2417 = vadd.f32 0.0, %v2416
        %v2418 = vpop.f32.mrb[0].mxu0
        %2419 = vmatprep.mubr.bf16.mxu0 %v2264
        %2420 = vmatmul.mubr.bf16.gmra.mrb[0].mxu0 %v2263
        %v2421 = vpop.f32.mrb[0].mxu0
        %v2422 = vadd.f32 0.0, %v2421
        %v2423 = vpop.f32.mrb[0].mxu0
        %v2424 = vpop.f32.mrb[0].mxu0
        %v2425 = vadd.f32 0.0, %v2424
        %v2426 = vpop.f32.mrb[0].mxu0
        %2427 = vmatprep.mubr.bf16.mxu0 %v2266
        %2428 = vmatmul.mubr.bf16.gmra.mrb[0].mxu0 %v2265
        %v2429 = vpop.f32.mrb[0].mxu0
        %v2430 = vadd.f32 0.0, %v2429
        %v2431 = vpop.f32.mrb[0].mxu0
        %v2432 = vpop.f32.mrb[0].mxu0
        %v2433 = vadd.f32 0.0, %v2432
        %v2434 = vpop.f32.mrb[0].mxu0
        %2435 = vmatprep.mubr.bf16.mxu0 %v2268
        %2436 = vmatmul.mubr.bf16.gmra.mrb[0].mxu0 %v2267
        %v2437 = vpop.f32.mrb[0].mxu0
        %v2438 = vadd.f32 0.0, %v2437
        %v2439 = vpop.f32.mrb[0].mxu0
        %v2440 = vpop.f32.mrb[0].mxu0
        %v2441 = vadd.f32 0.0, %v2440
        %v2442 = vpop.f32.mrb[0].mxu0
        %2443 = vmatprep.mubr.bf16.mxu0 %v2270
        %2444 = vmatmul.mubr.bf16.gmra.mrb[0].mxu0 %v2269
        %v2445 = vpop.f32.mrb[0].mxu0
        %v2446 = vadd.f32 0.0, %v2445
        %v2447 = vpop.f32.mrb[0].mxu0
        %v2448 = vpop.f32.mrb[0].mxu0
        %v2449 = vadd.f32 0.0, %v2448
        %v2450 = vpop.f32.mrb[0].mxu0
        %2451 = vmatprep.mubr.bf16.mxu0 %v2272
        %2452 = vmatmul.mubr.bf16.gmra.mrb[0].mxu0 %v2271
        %v2453 = vpop.f32.mrb[0].mxu0
        %v2454 = vadd.f32 0.0, %v2453
        %v2455 = vpop.f32.mrb[0].mxu0
        %v2456 = vpop.f32.mrb[0].mxu0
        %v2457 = vadd.f32 0.0, %v2456
        %v2458 = vpop.f32.mrb[0].mxu0
        %2459 = vmatprep.mubr.bf16.mxu0 %v2274
        %2460 = vmatmul.mubr.bf16.gmra.mrb[0].mxu0 %v2273
        %v2461 = vpop.f32.mrb[0].mxu0
        %v2462 = vadd.f32 0.0, %v2461
        %v2463 = vpop.f32.mrb[0].mxu0
        %v2464 = vpop.f32.mrb[0].mxu0
        %v2465 = vadd.f32 0.0, %v2464
        %v2466 = vpop.f32.mrb[0].mxu0
        %2467 = vdwg.mxu0
        %2500 = vrot.lane.b32.xlu0 %v2342, 64
        %v2501 = vpop.permute.xlu0 %2500
        %2502 = vrot.lane.b32.xlu0 %v2345, 64
        %v2503 = vpop.permute.xlu0 %2502
        %2504 = vrot.lane.b32.xlu0 %v2350, 64
        %v2505 = vpop.permute.xlu0 %2504
        %2506 = vrot.lane.b32.xlu0 %v2353, 64
        %v2507 = vpop.permute.xlu0 %2506
        %2508 = vrot.lane.b32.xlu0 %v2358, 64
        %v2509 = vpop.permute.xlu0 %2508
        %2510 = vrot.lane.b32.xlu0 %v2361, 64
        %v2511 = vpop.permute.xlu0 %2510
        %2512 = vrot.lane.b32.xlu0 %v2366, 64
        %v2513 = vpop.permute.xlu0 %2512
        %2514 = vrot.lane.b32.xlu0 %v2369, 64
        %v2515 = vpop.permute.xlu0 %2514
        %2516 = vrot.lane.b32.xlu0 %v2374, 64
        %v2517 = vpop.permute.xlu0 %2516
        %2518 = vrot.lane.b32.xlu0 %v2377, 64
        %v2519 = vpop.permute.xlu0 %2518
        %2520 = vrot.lane.b32.xlu0 %v2382, 64
        %v2521 = vpop.permute.xlu0 %2520
        %2522 = vrot.lane.b32.xlu0 %v2385, 64
        %v2523 = vpop.permute.xlu0 %2522
        %2524 = vrot.lane.b32.xlu0 %v2390, 64
        %v2525 = vpop.permute.xlu0 %2524
        %2526 = vrot.lane.b32.xlu0 %v2393, 64
        %v2527 = vpop.permute.xlu0 %2526
        %2528 = vrot.lane.b32.xlu0 %v2398, 64
        %v2529 = vpop.permute.xlu0 %2528
        %2530 = vrot.lane.b32.xlu0 %v2401, 64
        %v2531 = vpop.permute.xlu0 %2530
        %2532 = vrot.lane.b32.xlu0 %v2406, 64
        %v2533 = vpop.permute.xlu0 %2532
        %2534 = vrot.lane.b32.xlu0 %v2409, 64
        %v2535 = vpop.permute.xlu0 %2534
        %2536 = vrot.lane.b32.xlu0 %v2414, 64
        %v2537 = vpop.permute.xlu0 %2536
        %2538 = vrot.lane.b32.xlu0 %v2417, 64
        %v2539 = vpop.permute.xlu0 %2538
        %2540 = vrot.lane.b32.xlu0 %v2422, 64
        %v2541 = vpop.permute.xlu0 %2540
        %2542 = vrot.lane.b32.xlu0 %v2425, 64
        %v2543 = vpop.permute.xlu0 %2542
        %2544 = vrot.lane.b32.xlu0 %v2430, 64
        %v2545 = vpop.permute.xlu0 %2544
        %2546 = vrot.lane.b32.xlu0 %v2433, 64
        %v2547 = vpop.permute.xlu0 %2546
        %2548 = vrot.lane.b32.xlu0 %v2438, 64
        %v2549 = vpop.permute.xlu0 %2548
        %2550 = vrot.lane.b32.xlu0 %v2441, 64
        %v2551 = vpop.permute.xlu0 %2550
        %2552 = vrot.lane.b32.xlu0 %v2446, 64
        %v2553 = vpop.permute.xlu0 %2552
        %2554 = vrot.lane.b32.xlu0 %v2449, 64
        %v2555 = vpop.permute.xlu0 %2554
        %2556 = vrot.lane.b32.xlu0 %v2454, 64
        %v2557 = vpop.permute.xlu0 %2556
        %2558 = vrot.lane.b32.xlu0 %v2457, 64
        %v2559 = vpop.permute.xlu0 %2558
        %2560 = vrot.lane.b32.xlu0 %v2462, 64
        %v2561 = vpop.permute.xlu0 %2560
        %2562 = vrot.lane.b32.xlu0 %v2465, 64
        %v2563 = vpop.permute.xlu0 %2562
        %v2596 = vadd.f32 %v2019, %v2501
        %v2597 = vadd.f32 %v2021, %v2503
        %v2598 = vadd.f32 %v2023, %v2505
        %v2599 = vadd.f32 %v2025, %v2507
        %v2600 = vadd.f32 %v2027, %v2509
        %v2601 = vadd.f32 %v2029, %v2511
        %v2602 = vadd.f32 %v2031, %v2513
        %v2603 = vadd.f32 %v2033, %v2515
        %v2604 = vadd.f32 %v2035, %v2517
        %v2605 = vadd.f32 %v2037, %v2519
        %v2606 = vadd.f32 %v2039, %v2521
        %v2607 = vadd.f32 %v2041, %v2523
        %v2608 = vadd.f32 %v2043, %v2525
        %v2609 = vadd.f32 %v2045, %v2527
        %v2610 = vadd.f32 %v2047, %v2529
        %v2611 = vadd.f32 %v2049, %v2531
        %v2612 = vadd.f32 %v2051, %v2533
        %v2613 = vadd.f32 %v2053, %v2535
        %v2614 = vadd.f32 %v2055, %v2537
        %v2615 = vadd.f32 %v2057, %v2539
        %v2616 = vadd.f32 %v2059, %v2541
        %v2617 = vadd.f32 %v2061, %v2543
        %v2618 = vadd.f32 %v2063, %v2545
        %v2619 = vadd.f32 %v2065, %v2547
        %v2620 = vadd.f32 %v2067, %v2549
        %v2621 = vadd.f32 %v2069, %v2551
        %v2622 = vadd.f32 %v2071, %v2553
        %v2623 = vadd.f32 %v2073, %v2555
        %v2624 = vadd.f32 %v2075, %v2557
        %v2625 = vadd.f32 %v2077, %v2559
        %v2626 = vadd.f32 %v2079, %v2561
        %v2627 = vadd.f32 %v2081, %v2563
        %s2628 = scalar_lea.vmem [#allocation8], 256
        %v2629 = vld [vmem:[%s2628] sm:$0xff]
        %v2630 = vld [vmem:[%s2628 + $0x8] sm:$0xff]
        %v2631 = vld [vmem:[%s2628 + $0x10] sm:$0xff]
        %v2632 = vld [vmem:[%s2628 + $0x18] sm:$0xff]
        %v2633 = vld [vmem:[%s2628 + $0x20] sm:$0xff]
        %v2634 = vld [vmem:[%s2628 + $0x28] sm:$0xff]
        %v2635 = vld [vmem:[%s2628 + $0x30] sm:$0xff]
        %v2636 = vld [vmem:[%s2628 + $0x38] sm:$0xff]
        %v2637 = vld [vmem:[%s2628 + $0x40] sm:$0xff]
        %v2638 = vld [vmem:[%s2628 + $0x48] sm:$0xff]
        %v2639 = vld [vmem:[%s2628 + $0x50] sm:$0xff]
        %v2640 = vld [vmem:[%s2628 + $0x58] sm:$0xff]
        %v2641 = vld [vmem:[%s2628 + $0x60] sm:$0xff]
        %v2642 = vld [vmem:[%s2628 + $0x68] sm:$0xff]
        %v2643 = vld [vmem:[%s2628 + $0x70] sm:$0xff]
        %v2644 = vld [vmem:[%s2628 + $0x78] sm:$0xff]
        %v2645 = vld [vmem:[%s2628 + $0x80] sm:$0xff]
        %v2646 = vld [vmem:[%s2628 + $0x88] sm:$0xff]
        %v2647 = vld [vmem:[%s2628 + $0x90] sm:$0xff]
        %v2648 = vld [vmem:[%s2628 + $0x98] sm:$0xff]
        %v2649 = vld [vmem:[%s2628 + $0xa0] sm:$0xff]
        %v2650 = vld [vmem:[%s2628 + $0xa8] sm:$0xff]
        %v2651 = vld [vmem:[%s2628 + $0xb0] sm:$0xff]
        %v2652 = vld [vmem:[%s2628 + $0xb8] sm:$0xff]
        %v2653 = vld [vmem:[%s2628 + $0xc0] sm:$0xff]
        %v2654 = vld [vmem:[%s2628 + $0xc8] sm:$0xff]
        %v2655 = vld [vmem:[%s2628 + $0xd0] sm:$0xff]
        %v2656 = vld [vmem:[%s2628 + $0xd8] sm:$0xff]
        %v2657 = vld [vmem:[%s2628 + $0xe0] sm:$0xff]
        %v2658 = vld [vmem:[%s2628 + $0xe8] sm:$0xff]
        %v2659 = vld [vmem:[%s2628 + $0xf0] sm:$0xff]
        %v2660 = vld [vmem:[%s2628 + $0xf8] sm:$0xff]
        %v2693 = vunpack.c.l.b16 %v2629
        %v2694 = vunpack.c.h.b16 %v2629
        %v2695 = vunpack.c.l.b16 %v2630
        %v2696 = vunpack.c.h.b16 %v2630
        %v2697 = vunpack.c.l.b16 %v2631
        %v2698 = vunpack.c.h.b16 %v2631
        %v2699 = vunpack.c.l.b16 %v2632
        %v2700 = vunpack.c.h.b16 %v2632
        %v2701 = vunpack.c.l.b16 %v2633
        %v2702 = vunpack.c.h.b16 %v2633
        %v2703 = vunpack.c.l.b16 %v2634
        %v2704 = vunpack.c.h.b16 %v2634
        %v2705 = vunpack.c.l.b16 %v2635
        %v2706 = vunpack.c.h.b16 %v2635
        %v2707 = vunpack.c.l.b16 %v2636
        %v2708 = vunpack.c.h.b16 %v2636
        %v2709 = vunpack.c.l.b16 %v2637
        %v2710 = vunpack.c.h.b16 %v2637
        %v2711 = vunpack.c.l.b16 %v2638
        %v2712 = vunpack.c.h.b16 %v2638
        %v2713 = vunpack.c.l.b16 %v2639
        %v2714 = vunpack.c.h.b16 %v2639
        %v2715 = vunpack.c.l.b16 %v2640
        %v2716 = vunpack.c.h.b16 %v2640
        %v2717 = vunpack.c.l.b16 %v2641
        %v2718 = vunpack.c.h.b16 %v2641
        %v2719 = vunpack.c.l.b16 %v2642
        %v2720 = vunpack.c.h.b16 %v2642
        %v2721 = vunpack.c.l.b16 %v2643
        %v2722 = vunpack.c.h.b16 %v2643
        %v2723 = vunpack.c.l.b16 %v2644
        %v2724 = vunpack.c.h.b16 %v2644
        %v2725 = vunpack.c.l.b16 %v2645
        %v2726 = vunpack.c.h.b16 %v2645
        %v2727 = vunpack.c.l.b16 %v2646
        %v2728 = vunpack.c.h.b16 %v2646
        %v2729 = vunpack.c.l.b16 %v2647
        %v2730 = vunpack.c.h.b16 %v2647
        %v2731 = vunpack.c.l.b16 %v2648
        %v2732 = vunpack.c.h.b16 %v2648
        %v2733 = vunpack.c.l.b16 %v2649
        %v2734 = vunpack.c.h.b16 %v2649
        %v2735 = vunpack.c.l.b16 %v2650
        %v2736 = vunpack.c.h.b16 %v2650
        %v2737 = vunpack.c.l.b16 %v2651
        %v2738 = vunpack.c.h.b16 %v2651
        %v2739 = vunpack.c.l.b16 %v2652
        %v2740 = vunpack.c.h.b16 %v2652
        %v2741 = vunpack.c.l.b16 %v2653
        %v2742 = vunpack.c.h.b16 %v2653
        %v2743 = vunpack.c.l.b16 %v2654
        %v2744 = vunpack.c.h.b16 %v2654
        %v2745 = vunpack.c.l.b16 %v2655
        %v2746 = vunpack.c.h.b16 %v2655
        %v2747 = vunpack.c.l.b16 %v2656
        %v2748 = vunpack.c.h.b16 %v2656
        %v2749 = vunpack.c.l.b16 %v2657
        %v2750 = vunpack.c.h.b16 %v2657
        %v2751 = vunpack.c.l.b16 %v2658
        %v2752 = vunpack.c.h.b16 %v2658
        %v2753 = vunpack.c.l.b16 %v2659
        %v2754 = vunpack.c.h.b16 %v2659
        %v2755 = vunpack.c.l.b16 %v2660
        %v2756 = vunpack.c.h.b16 %v2660
        %v2757 = vpack.c.b16 %v2695, %v2693
        %v2758 = vpack.c.b16 %v2696, %v2694
        %v2759 = vpack.c.b16 %v2699, %v2697
        %v2760 = vpack.c.b16 %v2700, %v2698
        %v2761 = vpack.c.b16 %v2703, %v2701
        %v2762 = vpack.c.b16 %v2704, %v2702
        %v2763 = vpack.c.b16 %v2707, %v2705
        %v2764 = vpack.c.b16 %v2708, %v2706
        %v2765 = vpack.c.b16 %v2711, %v2709
        %v2766 = vpack.c.b16 %v2712, %v2710
        %v2767 = vpack.c.b16 %v2715, %v2713
        %v2768 = vpack.c.b16 %v2716, %v2714
        %v2769 = vpack.c.b16 %v2719, %v2717
        %v2770 = vpack.c.b16 %v2720, %v2718
        %v2771 = vpack.c.b16 %v2723, %v2721
        %v2772 = vpack.c.b16 %v2724, %v2722
        %v2773 = vpack.c.b16 %v2727, %v2725
        %v2774 = vpack.c.b16 %v2728, %v2726
        %v2775 = vpack.c.b16 %v2731, %v2729
        %v2776 = vpack.c.b16 %v2732, %v2730
        %v2777 = vpack.c.b16 %v2735, %v2733
        %v2778 = vpack.c.b16 %v2736, %v2734
        %v2779 = vpack.c.b16 %v2739, %v2737
        %v2780 = vpack.c.b16 %v2740, %v2738
        %v2781 = vpack.c.b16 %v2743, %v2741
        %v2782 = vpack.c.b16 %v2744, %v2742
        %v2783 = vpack.c.b16 %v2747, %v2745
        %v2784 = vpack.c.b16 %v2748, %v2746
        %v2785 = vpack.c.b16 %v2751, %v2749
        %v2786 = vpack.c.b16 %v2752, %v2750
        %v2787 = vpack.c.b16 %v2755, %v2753
        %v2788 = vpack.c.b16 %v2756, %v2754
        %2821 = vmatprep.subr.bf16.mxu0 0
        %2822 = vmatpush1.bf16.msra.mxu0 %v2099
        %2823 = vmatprep.subr.bf16.mxu0 0
        %2824 = vmatpush1.bf16.msra.mxu0 %v2100
        %2825 = vmatprep.subr.bf16.mxu0 0
        %2826 = vmatpush1.bf16.msra.mxu0 %v2101
        %2827 = vmatprep.subr.bf16.mxu0 0
        %2828 = vmatpush1.bf16.msra.mxu0 %v2102
        %2829 = vmatprep.subr.bf16.mxu0 0
        %2830 = vmatpush1.bf16.msra.mxu0 %v2103
        %2831 = vmatprep.subr.bf16.mxu0 0
        %2832 = vmatpush1.bf16.msra.mxu0 %v2104
        %2833 = vmatprep.subr.bf16.mxu0 0
        %2834 = vmatpush1.bf16.msra.mxu0 %v2105
        %2835 = vmatprep.subr.bf16.mxu0 0
        %2836 = vmatpush1.bf16.msra.mxu0 %v2106
        %2837 = vmatprep.subr.bf16.mxu0 0
        %2838 = vmatpush1.bf16.msra.mxu0 %v2107
        %2839 = vmatprep.subr.bf16.mxu0 0
        %2840 = vmatpush1.bf16.msra.mxu0 %v2108
        %2841 = vmatprep.subr.bf16.mxu0 0
        %2842 = vmatpush1.bf16.msra.mxu0 %v2109
        %2843 = vmatprep.subr.bf16.mxu0 0
        %2844 = vmatpush1.bf16.msra.mxu0 %v2110
        %2845 = vmatprep.subr.bf16.mxu0 0
        %2846 = vmatpush1.bf16.msra.mxu0 %v2111
        %2847 = vmatprep.subr.bf16.mxu0 0
        %2848 = vmatpush1.bf16.msra.mxu0 %v2112
        %2849 = vmatprep.subr.bf16.mxu0 0
        %2850 = vmatpush1.bf16.msra.mxu0 %v2113
        %2851 = vmatprep.subr.bf16.mxu0 0
        %2852 = vmatpush1.bf16.msra.mxu0 %v2114
        %2853 = vmatprep.mubr.bf16.mxu0 %v2758
        %2854 = vmatmul.mubr.bf16.gmra.mrb[0].mxu0 %v2757
        %v2855 = vpop.f32.mrb[0].mxu0
        %v2856 = vadd.f32 0.0, %v2855
        %v2857 = vpop.f32.mrb[0].mxu0
        %v2858 = vpop.f32.mrb[0].mxu0
        %v2859 = vadd.f32 0.0, %v2858
        %v2860 = vpop.f32.mrb[0].mxu0
        %2861 = vmatprep.mubr.bf16.mxu0 %v2760
        %2862 = vmatmul.mubr.bf16.gmra.mrb[0].mxu0 %v2759
        %v2863 = vpop.f32.mrb[0].mxu0
        %v2864 = vadd.f32 0.0, %v2863
        %v2865 = vpop.f32.mrb[0].mxu0
        %v2866 = vpop.f32.mrb[0].mxu0
        %v2867 = vadd.f32 0.0, %v2866
        %v2868 = vpop.f32.mrb[0].mxu0
        %2869 = vmatprep.mubr.bf16.mxu0 %v2762
        %2870 = vmatmul.mubr.bf16.gmra.mrb[0].mxu0 %v2761
        %v2871 = vpop.f32.mrb[0].mxu0
        %v2872 = vadd.f32 0.0, %v2871
        %v2873 = vpop.f32.mrb[0].mxu0
        %v2874 = vpop.f32.mrb[0].mxu0
        %v2875 = vadd.f32 0.0, %v2874
        %v2876 = vpop.f32.mrb[0].mxu0
        %2877 = vmatprep.mubr.bf16.mxu0 %v2764
        %2878 = vmatmul.mubr.bf16.gmra.mrb[0].mxu0 %v2763
        %v2879 = vpop.f32.mrb[0].mxu0
        %v2880 = vadd.f32 0.0, %v2879
        %v2881 = vpop.f32.mrb[0].mxu0
        %v2882 = vpop.f32.mrb[0].mxu0
        %v2883 = vadd.f32 0.0, %v2882
        %v2884 = vpop.f32.mrb[0].mxu0
        %2885 = vmatprep.mubr.bf16.mxu0 %v2766
        %2886 = vmatmul.mubr.bf16.gmra.mrb[0].mxu0 %v2765
        %v2887 = vpop.f32.mrb[0].mxu0
        %v2888 = vadd.f32 0.0, %v2887
        %v2889 = vpop.f32.mrb[0].mxu0
        %v2890 = vpop.f32.mrb[0].mxu0
        %v2891 = vadd.f32 0.0, %v2890
        %v2892 = vpop.f32.mrb[0].mxu0
        %2893 = vmatprep.mubr.bf16.mxu0 %v2768
        %2894 = vmatmul.mubr.bf16.gmra.mrb[0].mxu0 %v2767
        %v2895 = vpop.f32.mrb[0].mxu0
        %v2896 = vadd.f32 0.0, %v2895
        %v2897 = vpop.f32.mrb[0].mxu0
        %v2898 = vpop.f32.mrb[0].mxu0
        %v2899 = vadd.f32 0.0, %v2898
        %v2900 = vpop.f32.mrb[0].mxu0
        %2901 = vmatprep.mubr.bf16.mxu0 %v2770
        %2902 = vmatmul.mubr.bf16.gmra.mrb[0].mxu0 %v2769
        %v2903 = vpop.f32.mrb[0].mxu0
        %v2904 = vadd.f32 0.0, %v2903
        %v2905 = vpop.f32.mrb[0].mxu0
        %v2906 = vpop.f32.mrb[0].mxu0
        %v2907 = vadd.f32 0.0, %v2906
        %v2908 = vpop.f32.mrb[0].mxu0
        %2909 = vmatprep.mubr.bf16.mxu0 %v2772
        %2910 = vmatmul.mubr.bf16.gmra.mrb[0].mxu0 %v2771
        %v2911 = vpop.f32.mrb[0].mxu0
        %v2912 = vadd.f32 0.0, %v2911
        %v2913 = vpop.f32.mrb[0].mxu0
        %v2914 = vpop.f32.mrb[0].mxu0
        %v2915 = vadd.f32 0.0, %v2914
        %v2916 = vpop.f32.mrb[0].mxu0
        %2917 = vmatprep.mubr.bf16.mxu0 %v2774
        %2918 = vmatmul.mubr.bf16.gmra.mrb[0].mxu0 %v2773
        %v2919 = vpop.f32.mrb[0].mxu0
        %v2920 = vadd.f32 0.0, %v2919
        %v2921 = vpop.f32.mrb[0].mxu0
        %v2922 = vpop.f32.mrb[0].mxu0
        %v2923 = vadd.f32 0.0, %v2922
        %v2924 = vpop.f32.mrb[0].mxu0
        %2925 = vmatprep.mubr.bf16.mxu0 %v2776
        %2926 = vmatmul.mubr.bf16.gmra.mrb[0].mxu0 %v2775
        %v2927 = vpop.f32.mrb[0].mxu0
        %v2928 = vadd.f32 0.0, %v2927
        %v2929 = vpop.f32.mrb[0].mxu0
        %v2930 = vpop.f32.mrb[0].mxu0
        %v2931 = vadd.f32 0.0, %v2930
        %v2932 = vpop.f32.mrb[0].mxu0
        %2933 = vmatprep.mubr.bf16.mxu0 %v2778
        %2934 = vmatmul.mubr.bf16.gmra.mrb[0].mxu0 %v2777
        %v2935 = vpop.f32.mrb[0].mxu0
        %v2936 = vadd.f32 0.0, %v2935
        %v2937 = vpop.f32.mrb[0].mxu0
        %v2938 = vpop.f32.mrb[0].mxu0
        %v2939 = vadd.f32 0.0, %v2938
        %v2940 = vpop.f32.mrb[0].mxu0
        %2941 = vmatprep.mubr.bf16.mxu0 %v2780
        %2942 = vmatmul.mubr.bf16.gmra.mrb[0].mxu0 %v2779
        %v2943 = vpop.f32.mrb[0].mxu0
        %v2944 = vadd.f32 0.0, %v2943
        %v2945 = vpop.f32.mrb[0].mxu0
        %v2946 = vpop.f32.mrb[0].mxu0
        %v2947 = vadd.f32 0.0, %v2946
        %v2948 = vpop.f32.mrb[0].mxu0
        %2949 = vmatprep.mubr.bf16.mxu0 %v2782
        %2950 = vmatmul.mubr.bf16.gmra.mrb[0].mxu0 %v2781
        %v2951 = vpop.f32.mrb[0].mxu0
        %v2952 = vadd.f32 0.0, %v2951
        %v2953 = vpop.f32.mrb[0].mxu0
        %v2954 = vpop.f32.mrb[0].mxu0
        %v2955 = vadd.f32 0.0, %v2954
        %v2956 = vpop.f32.mrb[0].mxu0
        %2957 = vmatprep.mubr.bf16.mxu0 %v2784
        %2958 = vmatmul.mubr.bf16.gmra.mrb[0].mxu0 %v2783
        %v2959 = vpop.f32.mrb[0].mxu0
        %v2960 = vadd.f32 0.0, %v2959
        %v2961 = vpop.f32.mrb[0].mxu0
        %v2962 = vpop.f32.mrb[0].mxu0
        %v2963 = vadd.f32 0.0, %v2962
        %v2964 = vpop.f32.mrb[0].mxu0
        %2965 = vmatprep.mubr.bf16.mxu0 %v2786
        %2966 = vmatmul.mubr.bf16.gmra.mrb[0].mxu0 %v2785
        %v2967 = vpop.f32.mrb[0].mxu0
        %v2968 = vadd.f32 0.0, %v2967
        %v2969 = vpop.f32.mrb[0].mxu0
        %v2970 = vpop.f32.mrb[0].mxu0
        %v2971 = vadd.f32 0.0, %v2970
        %v2972 = vpop.f32.mrb[0].mxu0
        %2973 = vmatprep.mubr.bf16.mxu0 %v2788
        %2974 = vmatmul.mubr.bf16.gmra.mrb[0].mxu0 %v2787
        %v2975 = vpop.f32.mrb[0].mxu0
        %v2976 = vadd.f32 0.0, %v2975
        %v2977 = vpop.f32.mrb[0].mxu0
        %v2978 = vpop.f32.mrb[0].mxu0
        %v2979 = vadd.f32 0.0, %v2978
        %v2980 = vpop.f32.mrb[0].mxu0
        %2981 = vdwg.mxu0
        %3014 = vrot.lane.b32.xlu0 %v2856, 64
        %v3015 = vpop.permute.xlu0 %3014
        %3016 = vrot.lane.b32.xlu0 %v2859, 64
        %v3017 = vpop.permute.xlu0 %3016
        %3018 = vrot.lane.b32.xlu0 %v2864, 64
        %v3019 = vpop.permute.xlu0 %3018
        %3020 = vrot.lane.b32.xlu0 %v2867, 64
        %v3021 = vpop.permute.xlu0 %3020
        %3022 = vrot.lane.b32.xlu0 %v2872, 64
        %v3023 = vpop.permute.xlu0 %3022
        %3024 = vrot.lane.b32.xlu0 %v2875, 64
        %v3025 = vpop.permute.xlu0 %3024
        %3026 = vrot.lane.b32.xlu0 %v2880, 64
        %v3027 = vpop.permute.xlu0 %3026
        %3028 = vrot.lane.b32.xlu0 %v2883, 64
        %v3029 = vpop.permute.xlu0 %3028
        %3030 = vrot.lane.b32.xlu0 %v2888, 64
        %v3031 = vpop.permute.xlu0 %3030
        %3032 = vrot.lane.b32.xlu0 %v2891, 64
        %v3033 = vpop.permute.xlu0 %3032
        %3034 = vrot.lane.b32.xlu0 %v2896, 64
        %v3035 = vpop.permute.xlu0 %3034
        %3036 = vrot.lane.b32.xlu0 %v2899, 64
        %v3037 = vpop.permute.xlu0 %3036
        %3038 = vrot.lane.b32.xlu0 %v2904, 64
        %v3039 = vpop.permute.xlu0 %3038
        %3040 = vrot.lane.b32.xlu0 %v2907, 64
        %v3041 = vpop.permute.xlu0 %3040
        %3042 = vrot.lane.b32.xlu0 %v2912, 64
        %v3043 = vpop.permute.xlu0 %3042
        %3044 = vrot.lane.b32.xlu0 %v2915, 64
        %v3045 = vpop.permute.xlu0 %3044
        %3046 = vrot.lane.b32.xlu0 %v2920, 64
        %v3047 = vpop.permute.xlu0 %3046
        %3048 = vrot.lane.b32.xlu0 %v2923, 64
        %v3049 = vpop.permute.xlu0 %3048
        %3050 = vrot.lane.b32.xlu0 %v2928, 64
        %v3051 = vpop.permute.xlu0 %3050
        %3052 = vrot.lane.b32.xlu0 %v2931, 64
        %v3053 = vpop.permute.xlu0 %3052
        %3054 = vrot.lane.b32.xlu0 %v2936, 64
        %v3055 = vpop.permute.xlu0 %3054
        %3056 = vrot.lane.b32.xlu0 %v2939, 64
        %v3057 = vpop.permute.xlu0 %3056
        %3058 = vrot.lane.b32.xlu0 %v2944, 64
        %v3059 = vpop.permute.xlu0 %3058
        %3060 = vrot.lane.b32.xlu0 %v2947, 64
        %v3061 = vpop.permute.xlu0 %3060
        %3062 = vrot.lane.b32.xlu0 %v2952, 64
        %v3063 = vpop.permute.xlu0 %3062
        %3064 = vrot.lane.b32.xlu0 %v2955, 64
        %v3065 = vpop.permute.xlu0 %3064
        %3066 = vrot.lane.b32.xlu0 %v2960, 64
        %v3067 = vpop.permute.xlu0 %3066
        %3068 = vrot.lane.b32.xlu0 %v2963, 64
        %v3069 = vpop.permute.xlu0 %3068
        %3070 = vrot.lane.b32.xlu0 %v2968, 64
        %v3071 = vpop.permute.xlu0 %3070
        %3072 = vrot.lane.b32.xlu0 %v2971, 64
        %v3073 = vpop.permute.xlu0 %3072
        %3074 = vrot.lane.b32.xlu0 %v2976, 64
        %v3075 = vpop.permute.xlu0 %3074
        %3076 = vrot.lane.b32.xlu0 %v2979, 64
        %v3077 = vpop.permute.xlu0 %3076
        %v3110 = vadd.f32 %v2596, %v3015
        %v3111 = vadd.f32 %v2597, %v3017
        %v3112 = vadd.f32 %v2598, %v3019
        %v3113 = vadd.f32 %v2599, %v3021
        %v3114 = vadd.f32 %v2600, %v3023
        %v3115 = vadd.f32 %v2601, %v3025
        %v3116 = vadd.f32 %v2602, %v3027
        %v3117 = vadd.f32 %v2603, %v3029
        %v3118 = vadd.f32 %v2604, %v3031
        %v3119 = vadd.f32 %v2605, %v3033
        %v3120 = vadd.f32 %v2606, %v3035
        %v3121 = vadd.f32 %v2607, %v3037
        %v3122 = vadd.f32 %v2608, %v3039
        %v3123 = vadd.f32 %v2609, %v3041
        %v3124 = vadd.f32 %v2610, %v3043
        %v3125 = vadd.f32 %v2611, %v3045
        %v3126 = vadd.f32 %v2612, %v3047
        %v3127 = vadd.f32 %v2613, %v3049
        %v3128 = vadd.f32 %v2614, %v3051
        %v3129 = vadd.f32 %v2615, %v3053
        %v3130 = vadd.f32 %v2616, %v3055
        %v3131 = vadd.f32 %v2617, %v3057
        %v3132 = vadd.f32 %v2618, %v3059
        %v3133 = vadd.f32 %v2619, %v3061
        %v3134 = vadd.f32 %v2620, %v3063
        %v3135 = vadd.f32 %v2621, %v3065
        %v3136 = vadd.f32 %v2622, %v3067
        %v3137 = vadd.f32 %v2623, %v3069
        %v3138 = vadd.f32 %v2624, %v3071
        %v3139 = vadd.f32 %v2625, %v3073
        %v3140 = vadd.f32 %v2626, %v3075
        %v3141 = vadd.f32 %v2627, %v3077
        %v3142 = vld [vmem:[#allocation9] sm:$0x1]
        %v3144 = vlaneseq
        %v3145 = vshrl.u32 %v3144, 7
        %v3146 = vsub.s32 0, %v3145
        %v3147 = vrot.slane %v3142, %v3146
        %3148 = vrot.lane.b32.xlu0 %v3147, 64
        %v3149 = vpop.permute.xlu0 %3148
        %v3151 = vmul.f32 %v3110, %v3149
        %v3152 = vmul.f32 %v3111, %v3149
        %v3153 = vmul.f32 %v3112, %v3149
        %v3154 = vmul.f32 %v3113, %v3149
        %v3155 = vmul.f32 %v3114, %v3149
        %v3156 = vmul.f32 %v3115, %v3149
        %v3157 = vmul.f32 %v3116, %v3149
        %v3158 = vmul.f32 %v3117, %v3149
        %v3159 = vmul.f32 %v3118, %v3149
        %v3160 = vmul.f32 %v3119, %v3149
        %v3161 = vmul.f32 %v3120, %v3149
        %v3162 = vmul.f32 %v3121, %v3149
        %v3163 = vmul.f32 %v3122, %v3149
        %v3164 = vmul.f32 %v3123, %v3149
        %v3165 = vmul.f32 %v3124, %v3149
        %v3166 = vmul.f32 %v3125, %v3149
        %v3167 = vmul.f32 %v3126, %v3149
        %v3168 = vmul.f32 %v3127, %v3149
        %v3169 = vmul.f32 %v3128, %v3149
        %v3170 = vmul.f32 %v3129, %v3149
        %v3171 = vmul.f32 %v3130, %v3149
        %v3172 = vmul.f32 %v3131, %v3149
        %v3173 = vmul.f32 %v3132, %v3149
        %v3174 = vmul.f32 %v3133, %v3149
        %v3175 = vmul.f32 %v3134, %v3149
        %v3176 = vmul.f32 %v3135, %v3149
        %v3177 = vmul.f32 %v3136, %v3149
        %v3178 = vmul.f32 %v3137, %v3149
        %v3179 = vmul.f32 %v3138, %v3149
        %v3180 = vmul.f32 %v3139, %v3149
        %v3181 = vmul.f32 %v3140, %v3149
        %v3182 = vmul.f32 %v3141, %v3149
        %v3183 = vld [vmem:[#allocation11] sm:$0x1]
        %v3185 = vlaneseq
        %v3186 = vshrl.u32 %v3185, 7
        %v3187 = vsub.s32 0, %v3186
        %v3188 = vrot.slane %v3183, %v3187
        %3189 = vrot.lane.b32.xlu0 %v3188, 64
        %v3190 = vpop.permute.xlu0 %3189
        %v3192 = vadd.f32 %v3151, %v3190
        %v3193 = vadd.f32 %v3152, %v3190
        %v3194 = vadd.f32 %v3153, %v3190
        %v3195 = vadd.f32 %v3154, %v3190
        %v3196 = vadd.f32 %v3155, %v3190
        %v3197 = vadd.f32 %v3156, %v3190
        %v3198 = vadd.f32 %v3157, %v3190
        %v3199 = vadd.f32 %v3158, %v3190
        %v3200 = vadd.f32 %v3159, %v3190
        %v3201 = vadd.f32 %v3160, %v3190
        %v3202 = vadd.f32 %v3161, %v3190
        %v3203 = vadd.f32 %v3162, %v3190
        %v3204 = vadd.f32 %v3163, %v3190
        %v3205 = vadd.f32 %v3164, %v3190
        %v3206 = vadd.f32 %v3165, %v3190
        %v3207 = vadd.f32 %v3166, %v3190
        %v3208 = vadd.f32 %v3167, %v3190
        %v3209 = vadd.f32 %v3168, %v3190
        %v3210 = vadd.f32 %v3169, %v3190
        %v3211 = vadd.f32 %v3170, %v3190
        %v3212 = vadd.f32 %v3171, %v3190
        %v3213 = vadd.f32 %v3172, %v3190
        %v3214 = vadd.f32 %v3173, %v3190
        %v3215 = vadd.f32 %v3174, %v3190
        %v3216 = vadd.f32 %v3175, %v3190
        %v3217 = vadd.f32 %v3176, %v3190
        %v3218 = vadd.f32 %v3177, %v3190
        %v3219 = vadd.f32 %v3178, %v3190
        %v3220 = vadd.f32 %v3179, %v3190
        %v3221 = vadd.f32 %v3180, %v3190
        %v3222 = vadd.f32 %v3181, %v3190
        %v3223 = vadd.f32 %v3182, %v3190
        %vm3224 = vcmp.gt.f32.partialorder %v3192, 0.0
        %vm3225 = vcmp.gt.f32.partialorder %v3193, 0.0
        %vm3226 = vcmp.gt.f32.partialorder %v3194, 0.0
        %vm3227 = vcmp.gt.f32.partialorder %v3195, 0.0
        %vm3228 = vcmp.gt.f32.partialorder %v3196, 0.0
        %vm3229 = vcmp.gt.f32.partialorder %v3197, 0.0
        %vm3230 = vcmp.gt.f32.partialorder %v3198, 0.0
        %vm3231 = vcmp.gt.f32.partialorder %v3199, 0.0
        %vm3232 = vcmp.gt.f32.partialorder %v3200, 0.0
        %vm3233 = vcmp.gt.f32.partialorder %v3201, 0.0
        %vm3234 = vcmp.gt.f32.partialorder %v3202, 0.0
        %vm3235 = vcmp.gt.f32.partialorder %v3203, 0.0
        %vm3236 = vcmp.gt.f32.partialorder %v3204, 0.0
        %vm3237 = vcmp.gt.f32.partialorder %v3205, 0.0
        %vm3238 = vcmp.gt.f32.partialorder %v3206, 0.0
        %vm3239 = vcmp.gt.f32.partialorder %v3207, 0.0
        %vm3240 = vcmp.gt.f32.partialorder %v3208, 0.0
        %vm3241 = vcmp.gt.f32.partialorder %v3209, 0.0
        %vm3242 = vcmp.gt.f32.partialorder %v3210, 0.0
        %vm3243 = vcmp.gt.f32.partialorder %v3211, 0.0
        %vm3244 = vcmp.gt.f32.partialorder %v3212, 0.0
        %vm3245 = vcmp.gt.f32.partialorder %v3213, 0.0
        %vm3246 = vcmp.gt.f32.partialorder %v3214, 0.0
        %vm3247 = vcmp.gt.f32.partialorder %v3215, 0.0
        %vm3248 = vcmp.gt.f32.partialorder %v3216, 0.0
        %vm3249 = vcmp.gt.f32.partialorder %v3217, 0.0
        %vm3250 = vcmp.gt.f32.partialorder %v3218, 0.0
        %vm3251 = vcmp.gt.f32.partialorder %v3219, 0.0
        %vm3252 = vcmp.gt.f32.partialorder %v3220, 0.0
        %vm3253 = vcmp.gt.f32.partialorder %v3221, 0.0
        %vm3254 = vcmp.gt.f32.partialorder %v3222, 0.0
        %vm3255 = vcmp.gt.f32.partialorder %v3223, 0.0
        %v3256 = vld [vmem:[#allocation12] sm:$0x1]
        %v3258 = vlaneseq
        %v3259 = vshrl.u32 %v3258, 7
        %v3260 = vsub.s32 0, %v3259
        %v3261 = vrot.slane %v3256, %v3260
        %3295 = vrot.lane.b32.xlu0 %v3192, 64
        %v3296 = vpop.permute.xlu0 %3295
        %3297 = vrot.lane.b32.xlu0 %v3193, 64
        %v3298 = vpop.permute.xlu0 %3297
        %3299 = vrot.lane.b32.xlu0 %v3194, 64
        %v3300 = vpop.permute.xlu0 %3299
        %3301 = vrot.lane.b32.xlu0 %v3195, 64
        %v3302 = vpop.permute.xlu0 %3301
        %3303 = vrot.lane.b32.xlu0 %v3196, 64
        %v3304 = vpop.permute.xlu0 %3303
        %3305 = vrot.lane.b32.xlu0 %v3197, 64
        %v3306 = vpop.permute.xlu0 %3305
        %3307 = vrot.lane.b32.xlu0 %v3198, 64
        %v3308 = vpop.permute.xlu0 %3307
        %3309 = vrot.lane.b32.xlu0 %v3199, 64
        %v3310 = vpop.permute.xlu0 %3309
        %3311 = vrot.lane.b32.xlu0 %v3200, 64
        %v3312 = vpop.permute.xlu0 %3311
        %3313 = vrot.lane.b32.xlu0 %v3201, 64
        %v3314 = vpop.permute.xlu0 %3313
        %3315 = vrot.lane.b32.xlu0 %v3202, 64
        %v3316 = vpop.permute.xlu0 %3315
        %3317 = vrot.lane.b32.xlu0 %v3203, 64
        %v3318 = vpop.permute.xlu0 %3317
        %3319 = vrot.lane.b32.xlu0 %v3204, 64
        %v3320 = vpop.permute.xlu0 %3319
        %3321 = vrot.lane.b32.xlu0 %v3205, 64
        %v3322 = vpop.permute.xlu0 %3321
        %3323 = vrot.lane.b32.xlu0 %v3206, 64
        %v3324 = vpop.permute.xlu0 %3323
        %3325 = vrot.lane.b32.xlu0 %v3207, 64
        %v3326 = vpop.permute.xlu0 %3325
        %3327 = vrot.lane.b32.xlu0 %v3208, 64
        %v3328 = vpop.permute.xlu0 %3327
        %3329 = vrot.lane.b32.xlu0 %v3209, 64
        %v3330 = vpop.permute.xlu0 %3329
        %3331 = vrot.lane.b32.xlu0 %v3210, 64
        %v3332 = vpop.permute.xlu0 %3331
        %3333 = vrot.lane.b32.xlu0 %v3211, 64
        %v3334 = vpop.permute.xlu0 %3333
        %3335 = vrot.lane.b32.xlu0 %v3212, 64
        %v3336 = vpop.permute.xlu0 %3335
        %3337 = vrot.lane.b32.xlu0 %v3213, 64
        %v3338 = vpop.permute.xlu0 %3337
        %3339 = vrot.lane.b32.xlu0 %v3214, 64
        %v3340 = vpop.permute.xlu0 %3339
        %3341 = vrot.lane.b32.xlu0 %v3215, 64
        %v3342 = vpop.permute.xlu0 %3341
        %3343 = vrot.lane.b32.xlu0 %v3216, 64
        %v3344 = vpop.permute.xlu0 %3343
        %3345 = vrot.lane.b32.xlu0 %v3217, 64
        %v3346 = vpop.permute.xlu0 %3345
        %3347 = vrot.lane.b32.xlu0 %v3218, 64
        %v3348 = vpop.permute.xlu0 %3347
        %3349 = vrot.lane.b32.xlu0 %v3219, 64
        %v3350 = vpop.permute.xlu0 %3349
        %3351 = vrot.lane.b32.xlu0 %v3220, 64
        %v3352 = vpop.permute.xlu0 %3351
        %3353 = vrot.lane.b32.xlu0 %v3221, 64
        %v3354 = vpop.permute.xlu0 %3353
        %3355 = vrot.lane.b32.xlu0 %v3222, 64
        %v3356 = vpop.permute.xlu0 %3355
        %3357 = vrot.lane.b32.xlu0 %v3223, 64
        %v3358 = vpop.permute.xlu0 %3357
        %v3391 = vmul.f32 %v3261, %v3296
        %v3392 = vmul.f32 %v3261, %v3298
        %v3393 = vmul.f32 %v3261, %v3300
        %v3394 = vmul.f32 %v3261, %v3302
        %v3395 = vmul.f32 %v3261, %v3304
        %v3396 = vmul.f32 %v3261, %v3306
        %v3397 = vmul.f32 %v3261, %v3308
        %v3398 = vmul.f32 %v3261, %v3310
        %v3399 = vmul.f32 %v3261, %v3312
        %v3400 = vmul.f32 %v3261, %v3314
        %v3401 = vmul.f32 %v3261, %v3316
        %v3402 = vmul.f32 %v3261, %v3318
        %v3403 = vmul.f32 %v3261, %v3320
        %v3404 = vmul.f32 %v3261, %v3322
        %v3405 = vmul.f32 %v3261, %v3324
        %v3406 = vmul.f32 %v3261, %v3326
        %v3407 = vmul.f32 %v3261, %v3328
        %v3408 = vmul.f32 %v3261, %v3330
        %v3409 = vmul.f32 %v3261, %v3332
        %v3410 = vmul.f32 %v3261, %v3334
        %v3411 = vmul.f32 %v3261, %v3336
        %v3412 = vmul.f32 %v3261, %v3338
        %v3413 = vmul.f32 %v3261, %v3340
        %v3414 = vmul.f32 %v3261, %v3342
        %v3415 = vmul.f32 %v3261, %v3344
        %v3416 = vmul.f32 %v3261, %v3346
        %v3417 = vmul.f32 %v3261, %v3348
        %v3418 = vmul.f32 %v3261, %v3350
        %v3419 = vmul.f32 %v3261, %v3352
        %v3420 = vmul.f32 %v3261, %v3354
        %v3421 = vmul.f32 %v3261, %v3356
        %v3422 = vmul.f32 %v3261, %v3358
        %3455 = vrot.lane.b32.xlu0 %v3391, 64
        %v3456 = vpop.permute.xlu0 %3455
        %3457 = vrot.lane.b32.xlu0 %v3392, 64
        %v3458 = vpop.permute.xlu0 %3457
        %3459 = vrot.lane.b32.xlu0 %v3393, 64
        %v3460 = vpop.permute.xlu0 %3459
        %3461 = vrot.lane.b32.xlu0 %v3394, 64
        %v3462 = vpop.permute.xlu0 %3461
        %3463 = vrot.lane.b32.xlu0 %v3395, 64
        %v3464 = vpop.permute.xlu0 %3463
        %3465 = vrot.lane.b32.xlu0 %v3396, 64
        %v3466 = vpop.permute.xlu0 %3465
        %3467 = vrot.lane.b32.xlu0 %v3397, 64
        %v3468 = vpop.permute.xlu0 %3467
        %3469 = vrot.lane.b32.xlu0 %v3398, 64
        %v3470 = vpop.permute.xlu0 %3469
        %3471 = vrot.lane.b32.xlu0 %v3399, 64
        %v3472 = vpop.permute.xlu0 %3471
        %3473 = vrot.lane.b32.xlu0 %v3400, 64
        %v3474 = vpop.permute.xlu0 %3473
        %3475 = vrot.lane.b32.xlu0 %v3401, 64
        %v3476 = vpop.permute.xlu0 %3475
        %3477 = vrot.lane.b32.xlu0 %v3402, 64
        %v3478 = vpop.permute.xlu0 %3477
        %3479 = vrot.lane.b32.xlu0 %v3403, 64
        %v3480 = vpop.permute.xlu0 %3479
        %3481 = vrot.lane.b32.xlu0 %v3404, 64
        %v3482 = vpop.permute.xlu0 %3481
        %3483 = vrot.lane.b32.xlu0 %v3405, 64
        %v3484 = vpop.permute.xlu0 %3483
        %3485 = vrot.lane.b32.xlu0 %v3406, 64
        %v3486 = vpop.permute.xlu0 %3485
        %3487 = vrot.lane.b32.xlu0 %v3407, 64
        %v3488 = vpop.permute.xlu0 %3487
        %3489 = vrot.lane.b32.xlu0 %v3408, 64
        %v3490 = vpop.permute.xlu0 %3489
        %3491 = vrot.lane.b32.xlu0 %v3409, 64
        %v3492 = vpop.permute.xlu0 %3491
        %3493 = vrot.lane.b32.xlu0 %v3410, 64
        %v3494 = vpop.permute.xlu0 %3493
        %3495 = vrot.lane.b32.xlu0 %v3411, 64
        %v3496 = vpop.permute.xlu0 %3495
        %3497 = vrot.lane.b32.xlu0 %v3412, 64
        %v3498 = vpop.permute.xlu0 %3497
        %3499 = vrot.lane.b32.xlu0 %v3413, 64
        %v3500 = vpop.permute.xlu0 %3499
        %3501 = vrot.lane.b32.xlu0 %v3414, 64
        %v3502 = vpop.permute.xlu0 %3501
        %3503 = vrot.lane.b32.xlu0 %v3415, 64
        %v3504 = vpop.permute.xlu0 %3503
        %3505 = vrot.lane.b32.xlu0 %v3416, 64
        %v3506 = vpop.permute.xlu0 %3505
        %3507 = vrot.lane.b32.xlu0 %v3417, 64
        %v3508 = vpop.permute.xlu0 %3507
        %3509 = vrot.lane.b32.xlu0 %v3418, 64
        %v3510 = vpop.permute.xlu0 %3509
        %3511 = vrot.lane.b32.xlu0 %v3419, 64
        %v3512 = vpop.permute.xlu0 %3511
        %3513 = vrot.lane.b32.xlu0 %v3420, 64
        %v3514 = vpop.permute.xlu0 %3513
        %3515 = vrot.lane.b32.xlu0 %v3421, 64
        %v3516 = vpop.permute.xlu0 %3515
        %3517 = vrot.lane.b32.xlu0 %v3422, 64
        %v3518 = vpop.permute.xlu0 %3517
        %v3551 = vsel %vm3224, %v3192, %v3456
        %v3552 = vsel %vm3225, %v3193, %v3458
        %v3553 = vsel %vm3226, %v3194, %v3460
        %v3554 = vsel %vm3227, %v3195, %v3462
        %v3555 = vsel %vm3228, %v3196, %v3464
        %v3556 = vsel %vm3229, %v3197, %v3466
        %v3557 = vsel %vm3230, %v3198, %v3468
        %v3558 = vsel %vm3231, %v3199, %v3470
        %v3559 = vsel %vm3232, %v3200, %v3472
        %v3560 = vsel %vm3233, %v3201, %v3474
        %v3561 = vsel %vm3234, %v3202, %v3476
        %v3562 = vsel %vm3235, %v3203, %v3478
        %v3563 = vsel %vm3236, %v3204, %v3480
        %v3564 = vsel %vm3237, %v3205, %v3482
        %v3565 = vsel %vm3238, %v3206, %v3484
        %v3566 = vsel %vm3239, %v3207, %v3486
        %v3567 = vsel %vm3240, %v3208, %v3488
        %v3568 = vsel %vm3241, %v3209, %v3490
        %v3569 = vsel %vm3242, %v3210, %v3492
        %v3570 = vsel %vm3243, %v3211, %v3494
        %v3571 = vsel %vm3244, %v3212, %v3496
        %v3572 = vsel %vm3245, %v3213, %v3498
        %v3573 = vsel %vm3246, %v3214, %v3500
        %v3574 = vsel %vm3247, %v3215, %v3502
        %v3575 = vsel %vm3248, %v3216, %v3504
        %v3576 = vsel %vm3249, %v3217, %v3506
        %v3577 = vsel %vm3250, %v3218, %v3508
        %v3578 = vsel %vm3251, %v3219, %v3510
        %v3579 = vsel %vm3252, %v3220, %v3512
        %v3580 = vsel %vm3253, %v3221, %v3514
        %v3581 = vsel %vm3254, %v3222, %v3516
        %v3582 = vsel %vm3255, %v3223, %v3518
        %3615 = vrot.lane.b32.xlu0 %v3551, 64
        %v3616 = vpop.permute.xlu0 %3615
        %3617 = vrot.lane.b32.xlu0 %v3552, 64
        %v3618 = vpop.permute.xlu0 %3617
        %3619 = vrot.lane.b32.xlu0 %v3553, 64
        %v3620 = vpop.permute.xlu0 %3619
        %3621 = vrot.lane.b32.xlu0 %v3554, 64
        %v3622 = vpop.permute.xlu0 %3621
        %3623 = vrot.lane.b32.xlu0 %v3555, 64
        %v3624 = vpop.permute.xlu0 %3623
        %3625 = vrot.lane.b32.xlu0 %v3556, 64
        %v3626 = vpop.permute.xlu0 %3625
        %3627 = vrot.lane.b32.xlu0 %v3557, 64
        %v3628 = vpop.permute.xlu0 %3627
        %3629 = vrot.lane.b32.xlu0 %v3558, 64
        %v3630 = vpop.permute.xlu0 %3629
        %3631 = vrot.lane.b32.xlu0 %v3559, 64
        %v3632 = vpop.permute.xlu0 %3631
        %3633 = vrot.lane.b32.xlu0 %v3560, 64
        %v3634 = vpop.permute.xlu0 %3633
        %3635 = vrot.lane.b32.xlu0 %v3561, 64
        %v3636 = vpop.permute.xlu0 %3635
        %3637 = vrot.lane.b32.xlu0 %v3562, 64
        %v3638 = vpop.permute.xlu0 %3637
        %3639 = vrot.lane.b32.xlu0 %v3563, 64
        %v3640 = vpop.permute.xlu0 %3639
        %3641 = vrot.lane.b32.xlu0 %v3564, 64
        %v3642 = vpop.permute.xlu0 %3641
        %3643 = vrot.lane.b32.xlu0 %v3565, 64
        %v3644 = vpop.permute.xlu0 %3643
        %3645 = vrot.lane.b32.xlu0 %v3566, 64
        %v3646 = vpop.permute.xlu0 %3645
        %3647 = vrot.lane.b32.xlu0 %v3567, 64
        %v3648 = vpop.permute.xlu0 %3647
        %3649 = vrot.lane.b32.xlu0 %v3568, 64
        %v3650 = vpop.permute.xlu0 %3649
        %3651 = vrot.lane.b32.xlu0 %v3569, 64
        %v3652 = vpop.permute.xlu0 %3651
        %3653 = vrot.lane.b32.xlu0 %v3570, 64
        %v3654 = vpop.permute.xlu0 %3653
        %3655 = vrot.lane.b32.xlu0 %v3571, 64
        %v3656 = vpop.permute.xlu0 %3655
        %3657 = vrot.lane.b32.xlu0 %v3572, 64
        %v3658 = vpop.permute.xlu0 %3657
        %3659 = vrot.lane.b32.xlu0 %v3573, 64
        %v3660 = vpop.permute.xlu0 %3659
        %3661 = vrot.lane.b32.xlu0 %v3574, 64
        %v3662 = vpop.permute.xlu0 %3661
        %3663 = vrot.lane.b32.xlu0 %v3575, 64
        %v3664 = vpop.permute.xlu0 %3663
        %3665 = vrot.lane.b32.xlu0 %v3576, 64
        %v3666 = vpop.permute.xlu0 %3665
        %3667 = vrot.lane.b32.xlu0 %v3577, 64
        %v3668 = vpop.permute.xlu0 %3667
        %3669 = vrot.lane.b32.xlu0 %v3578, 64
        %v3670 = vpop.permute.xlu0 %3669
        %3671 = vrot.lane.b32.xlu0 %v3579, 64
        %v3672 = vpop.permute.xlu0 %3671
        %3673 = vrot.lane.b32.xlu0 %v3580, 64
        %v3674 = vpop.permute.xlu0 %3673
        %3675 = vrot.lane.b32.xlu0 %v3581, 64
        %v3676 = vpop.permute.xlu0 %3675
        %3677 = vrot.lane.b32.xlu0 %v3582, 64
        %v3678 = vpop.permute.xlu0 %3677
        %3711 = vst.msk [vmem:[%s350] sm:$0xff] %vm517, %v3616
        %3712 = vst.msk [vmem:[%s350 + $0x8] sm:$0xff] %vm517, %v3618
        %3713 = vst.msk [vmem:[%s350 + $0x10] sm:$0xff] %vm517, %v3620
        %3714 = vst.msk [vmem:[%s350 + $0x18] sm:$0xff] %vm517, %v3622
        %3715 = vst.msk [vmem:[%s350 + $0x20] sm:$0xff] %vm517, %v3624
        %3716 = vst.msk [vmem:[%s350 + $0x28] sm:$0xff] %vm517, %v3626
        %3717 = vst.msk [vmem:[%s350 + $0x30] sm:$0xff] %vm517, %v3628
        %3718 = vst.msk [vmem:[%s350 + $0x38] sm:$0xff] %vm517, %v3630
        %3719 = vst.msk [vmem:[%s350 + $0x40] sm:$0xff] %vm517, %v3632
        %3720 = vst.msk [vmem:[%s350 + $0x48] sm:$0xff] %vm517, %v3634
        %3721 = vst.msk [vmem:[%s350 + $0x50] sm:$0xff] %vm517, %v3636
        %3722 = vst.msk [vmem:[%s350 + $0x58] sm:$0xff] %vm517, %v3638
        %3723 = vst.msk [vmem:[%s350 + $0x60] sm:$0xff] %vm517, %v3640
        %3724 = vst.msk [vmem:[%s350 + $0x68] sm:$0xff] %vm517, %v3642
        %3725 = vst.msk [vmem:[%s350 + $0x70] sm:$0xff] %vm517, %v3644
        %3726 = vst.msk [vmem:[%s350 + $0x78] sm:$0xff] %vm517, %v3646
        %3727 = vst.msk [vmem:[%s350 + $0x80] sm:$0xff] %vm517, %v3648
        %3728 = vst.msk [vmem:[%s350 + $0x88] sm:$0xff] %vm517, %v3650
        %3729 = vst.msk [vmem:[%s350 + $0x90] sm:$0xff] %vm517, %v3652
        %3730 = vst.msk [vmem:[%s350 + $0x98] sm:$0xff] %vm517, %v3654
        %3731 = vst.msk [vmem:[%s350 + $0xa0] sm:$0xff] %vm517, %v3656
        %3732 = vst.msk [vmem:[%s350 + $0xa8] sm:$0xff] %vm517, %v3658
        %3733 = vst.msk [vmem:[%s350 + $0xb0] sm:$0xff] %vm517, %v3660
        %3734 = vst.msk [vmem:[%s350 + $0xb8] sm:$0xff] %vm517, %v3662
        %3735 = vst.msk [vmem:[%s350 + $0xc0] sm:$0xff] %vm517, %v3664
        %3736 = vst.msk [vmem:[%s350 + $0xc8] sm:$0xff] %vm517, %v3666
        %3737 = vst.msk [vmem:[%s350 + $0xd0] sm:$0xff] %vm517, %v3668
        %3738 = vst.msk [vmem:[%s350 + $0xd8] sm:$0xff] %vm517, %v3670
        %3739 = vst.msk [vmem:[%s350 + $0xe0] sm:$0xff] %vm517, %v3672
        %3740 = vst.msk [vmem:[%s350 + $0xe8] sm:$0xff] %vm517, %v3674
        %3741 = vst.msk [vmem:[%s350 + $0xf0] sm:$0xff] %vm517, %v3676
        %3742 = vst.msk [vmem:[%s350 + $0xf8] sm:$0xff] %vm517, %v3678
        %s3743 = sand.u32 %s179, 1
        %s3744 = scalar_lea.sflag [#allocation5], %s3743
        %s3745 = sand.u32 %s179, 1
        %s3746 = smul.addr %s3745, 256
        %s3747 = scalar_lea.vmem [#allocation14], %s3746
        // Predicated region
        $region69: #{deconv_forward.5} parent=43 // pred_check
          %p3748 = pneg %p189
        $region70: #{deconv_forward.5} parent=43 // pred_check_branch
          %3750 = sbr.rel (%p3748) target = $region72
        $region71: #{deconv_forward.5} parent=43 // pred_region
          %s3751 = smul.u32 8, %s31
          %s3753 = ssub.s32 4096, 4096
          %3754 = vsyncadd %s3744, %s3753
          %s3755 = smul.addr %s3751, 4
          %s3756 = smul.addr %s30, 128
          %s3757 = sadd.s32 %s3755, %s3756
          %s3758 = smul.addr %s3757, 128
          %s3759 = scalar_lea.hbm %s6, %s3758
          %s3760 = sshll.u32 %s3747, 4
          %s3761 = int_to_ptr.vmem [resolvable:$true] %s3760
          %3766 = dma.vmem_to_hbm [thread:$0]  %s3761, 4096, %s3759, %s3744, 128, 128, 8
        $region72: #{deconv_forward.5} parent=43 // pred_fallthru
          _
      $region44: #{deconv_forward.5} parent=5 // pred_fallthru
        _
      %p3767 = scmp.le.s32.totalorder 2, %s21
      // Predicated region
      $region73: #{deconv_forward.5} parent=5 // pred_check
        %p3768 = pneg %p3767
      $region74: #{deconv_forward.5} parent=5 // pred_check_branch
        %3770 = sbr.rel (%p3768) target = $region76
      $region75: #{deconv_forward.5} parent=5 // pred_region
        %s3771 = ssub.s32 %s21, 2
        // Predicated region
        $region77: #{deconv_forward.5} parent=75 // pred_check
          %p3772 = pneg %p195
        $region78: #{deconv_forward.5} parent=75 // pred_check_branch
          %3774 = sbr.rel (%p3772) target = $region80
        $region79: #{deconv_forward.5} parent=75 // pred_region
          %s3775 = sand.u32 %s180, 1
          %s3776 = scalar_lea.sflag [#allocation5], %s3775
          %s3777 = sand.u32 %s180, 1
          %s3778 = smul.addr %s3777, 256
          %s3779 = scalar_lea.vmem [#allocation14], %s3778
          %3780 = dma.done %s3776, 4096
        $region80: #{deconv_forward.5} parent=75 // pred_fallthru
          _
      $region76: #{deconv_forward.5} parent=5 // pred_fallthru
        _
    $region6: #{deconv_forward.5} parent=1 // loop_footer
      %s25 = sadd.s32 1, %s21
    $region7: #{deconv_forward.5} parent=1 // loop_footer_branch
      %20 = sbr.rel target = $region3
    $region8: #{deconv_forward.5} parent=1 // loop_exit
      _
    %3781 = vsyncpa [#allocation4], 1
    %s3782 = scalar_lea.sflag [#allocation4], 1
    %3783 = vsyncpa %s3782, 1
    %3784 = vsyncpa [#allocation7], 1
    %3785 = vsyncpa [#allocation10], 1
    %3786 = vsyncpa [#allocation13], 1
    %3787 = vsyncpa [#allocation5], 1
    %s3788 = scalar_lea.sflag [#allocation5], 1
    %3789 = vsyncpa %s3788, 1

</llo_original>
